<compile_context>
chip_gen: v7x
topology: tpu7x:2x2x1
jax: 0.10.0
libtpu: 0.0.40
codegen_flags: <defaults>
</compile_context>

<pallas_src>
import functools

import jax
import jax.numpy as jnp
from jax.experimental import pallas as pl
from jax.experimental.pallas import tpu as pltpu


# ----------------------------------------------------------------------------
# Helpers
# ----------------------------------------------------------------------------
def _round_up(x, m):
    return (x + m - 1) // m * m


def _pick_tile(dim, cap, align):
    """Full dim if it fits under `cap`, else the largest aligned divisor <= cap."""
    if dim <= cap:
        return dim
    t = (cap // align) * align
    while t >= align:
        if dim % t == 0:
            return t
        t -= align
    raise ValueError(
        f"dimension {dim} has no {align}-aligned tile <= {cap}; pad it to a "
        f"multiple of {align} before calling the kernel.")


def _pick_time_chunk(T, cap=8):
    """Largest divisor of T that is <= cap (bounded unroll of the recurrence)."""
    for tc in range(min(T, cap), 0, -1):
        if T % tc == 0:
            return tc
    return 1


def _reorder_gates(w, H):
    """PyTorch gate order [i, f, g, o] -> kernel order [i, f, o, g] (last axis)."""
    i, f, g, o = jnp.split(w, 4, axis=-1)
    return jnp.concatenate([i, f, o, g], axis=-1)


# ----------------------------------------------------------------------------
# Kernel 1: grouped multi-input matmul  out[g] = act(sum_i a_i @ w_i[g] + b[g]).
# Used for the hoisted input-to-hidden gates G = x @ Wih + b (both directions
# on the group axis) and for the final Linear(2H -> F*D) + Tanh.
# ----------------------------------------------------------------------------
def _grouped_mm_kernel(*refs, n_in, compute_dtype, activation):
    a_refs = refs[:n_in]
    w_refs = refs[n_in:2 * n_in]
    b_ref = refs[2 * n_in]
    o_ref = refs[2 * n_in + 1]

    acc = jnp.dot(a_refs[0][...].astype(compute_dtype), w_refs[0][...],
                  preferred_element_type=jnp.float32)
    for i in range(1, n_in):
        acc = acc + jnp.dot(a_refs[i][...].astype(compute_dtype), w_refs[i][...],
                            preferred_element_type=jnp.float32)
    acc = acc + b_ref[...]            # bias added post-accumulation in f32
    if activation == "tanh":
        acc = jnp.tanh(acc)
    o_ref[...] = acc.astype(o_ref.dtype)


def grouped_matmul(a_list, w_list, bias, *, activation=None,
                   out_dtype=jnp.float32, compute_dtype=jnp.bfloat16,
                   tm_cap=512, tn_cap=512):
    """a_i: (M, K_i); w_i: (G, K_i, N); bias: (G, 1, N) f32 -> out (G, M, N)."""
    n_in = len(a_list)
    M = a_list[0].shape[0]
    G, _, N = w_list[0].shape

    tm = _pick_tile(M, tm_cap, 8)
    tn = _pick_tile(N, tn_cap, 128)
    # Weight-stationary sweep: M is the innermost grid axis, so each (K, tn)
    # weight block stays resident in VMEM across the whole M sweep.
    grid = (G, N // tn, M // tm)

    # Weights cast once to bf16: halves weight HBM traffic, feeds MXU at bf16 rate.
    w_list = [w.astype(compute_dtype) for w in w_list]

    in_specs = []
    for a in a_list:
        in_specs.append(pl.BlockSpec((tm, a.shape[1]), lambda g, n, m: (m, 0)))
    for w in w_list:
        in_specs.append(pl.BlockSpec((None, w.shape[1], tn),
                                     lambda g, n, m: (g, 0, n)))
    in_specs.append(pl.BlockSpec((None, 1, tn), lambda g, n, m: (g, 0, n)))

    # Explicit VMEM budget (v7x has only 64 MiB physical / 32 MiB default scoped).
    tile_bytes = (sum(2 * tm * a.shape[1] * a.dtype.itemsize for a in a_list)
                  + sum(2 * w.shape[1] * tn * 2 for w in w_list)
                  + 2 * tn * 4
                  + 2 * tm * tn * jnp.dtype(out_dtype).itemsize)
    vmem_limit = int(min(64 * 1024 * 1024, max(16 * 1024 * 1024, 2 * tile_bytes)))

    kernel = functools.partial(_grouped_mm_kernel, n_in=n_in,
                               compute_dtype=compute_dtype, activation=activation)
    return pl.pallas_call(
        kernel,
        out_shape=jax.ShapeDtypeStruct((G, M, N), out_dtype),
        grid_spec=pltpu.PrefetchScalarGridSpec(
            num_scalar_prefetch=0,
            grid=grid,
            in_specs=in_specs,
            out_specs=pl.BlockSpec((None, tm, tn), lambda g, n, m: (g, m, n)),
        ),
        compiler_params=pltpu.CompilerParams(
            dimension_semantics=("parallel", "parallel", "parallel"),
            vmem_limit_bytes=vmem_limit),
    )(*a_list, *w_list, bias)


# ----------------------------------------------------------------------------
# Kernel 2: fused bidirectional LSTM recurrence.
#   grid = (2 directions [parallel], T//Tc time chunks [arbitrary]).
#   Input gates G are precomputed (bf16); each step does h @ Whh + gate math.
#   Backward direction: chunk order reversed in the index_map; the within-chunk
#   order is reversed with STATIC Python indices inside a pl.when branch.
#   Gate column layout (pre-permuted in the wrapper): [i, f, o, g].
# ----------------------------------------------------------------------------
def _bilstm_kernel(g_ref, whh_ref, h_out_ref, h_sc, c_sc,
                   *, hidden, tc, compute_dtype):
    d = pl.program_id(0)        # direction: 0 = forward, 1 = backward
    chunk = pl.program_id(1)    # time-chunk index (sequential)

    @pl.when(chunk == 0)
    def _():
        h_sc[...] = jnp.zeros_like(h_sc)
        c_sc[...] = jnp.zeros_like(c_sc)

    whh = whh_ref[...]          # (H, 4H), bf16
    H = hidden

    def run_chunk(order):
        h = h_sc[...]
        c = c_sc[...]
        for t in order:                      # static Python-int indexing
            gates = g_ref[t].astype(jnp.float32) + jnp.dot(
                h.astype(compute_dtype), whh,
                preferred_element_type=jnp.float32)           # (B, 4H) f32
            # one fused sigmoid over [i, f, o], one tanh over [g]
            sig = jax.nn.sigmoid(gates[:, :3 * H])
            g_t = jnp.tanh(gates[:, 3 * H:])
            c = sig[:, H:2 * H] * c + sig[:, :H] * g_t        # f*c + i*g
            h = sig[:, 2 * H:3 * H] * jnp.tanh(c)             # o*tanh(c)
            h_out_ref[t] = h.astype(h_out_ref.dtype)
        h_sc[...] = h
        c_sc[...] = c

    @pl.when(d == 0)
    def _():
        run_chunk(range(tc))

    @pl.when(d == 1)
    def _():
        run_chunk(range(tc - 1, -1, -1))


def bilstm_recurrent(g_stack, whh_stack, *, compute_dtype=jnp.bfloat16,
                     out_dtype=jnp.bfloat16, tc_cap=8):
    """g_stack: (2, T, Bp, 4H); whh_stack: (2, H, 4H) -> h: (2, T, Bp, H)."""
    _, T, Bp, H4 = g_stack.shape
    H = H4 // 4
    tc = _pick_time_chunk(T, tc_cap)
    nc = T // tc
    whh_stack = whh_stack.astype(compute_dtype)

    # backward direction consumes / writes time chunks in reverse order
    def time_map(d, c):
        return (d, (1 - d) * c + d * (nc - 1 - c), 0, 0)

    kernel = functools.partial(_bilstm_kernel, hidden=H, tc=tc,
                               compute_dtype=compute_dtype)
    return pl.pallas_call(
        kernel,
        out_shape=jax.ShapeDtypeStruct((2, T, Bp, H), out_dtype),
        grid_spec=pltpu.PrefetchScalarGridSpec(
            num_scalar_prefetch=0,
            grid=(2, nc),
            in_specs=[
                pl.BlockSpec((None, tc, Bp, H4), time_map),
                pl.BlockSpec((None, H, H4), lambda d, c: (d, 0, 0)),
            ],
            out_specs=pl.BlockSpec((None, tc, Bp, H), time_map),
            scratch_shapes=[
                pltpu.VMEM((Bp, H), jnp.float32),   # h state (f32)
                pltpu.VMEM((Bp, H), jnp.float32),   # c state (f32)
            ],
        ),
        compiler_params=pltpu.CompilerParams(
            # direction axis parallel (-> both TensorCores on v7x), time sequential
            dimension_semantics=("parallel", "arbitrary")),
    )(g_stack, whh_stack)


# ----------------------------------------------------------------------------
# DPCL forward
# ----------------------------------------------------------------------------
def dpcl_forward(x_btf, params, emb_D, *, compute_dtype=jnp.bfloat16):
    """x_btf: (B, T, F) -> (B, T*F, D)."""
    B, T, F = x_btf.shape
    Bp = _round_up(B, 8)        # full (8,128) vregs / unmasked stores in recurrence

    # TODO(synk): fold this transpose (and the output one) into the matmul index
    # maps for production shapes; negligible at these sizes.
    x_tbf = jnp.transpose(x_btf, (1, 0, 2))              # time-major (T, B, F)
    if Bp != B:
        x_tbf = jnp.pad(x_tbf, ((0, 0), (0, Bp - B), (0, 0)))
    # TODO(synk): for production nfft (e.g. 129) pad the layer-0 feature dim F to
    # a multiple of 128 (zero-padded Wih rows) for full-lane MXU contraction.

    h = None                                             # (2, T, Bp, H) per layer
    for li, layer in enumerate(params["lstm"]):
        wih_f, whh_f, b_f = layer["fwd"]
        wih_b, whh_b, b_b = layer["bwd"]
        H = whh_f.shape[0]
        assert H % 128 == 0, "pad hidden size to a multiple of 128"
        H4 = 4 * H

        # gate columns [i,f,g,o] -> [i,f,o,g]: one sigmoid + one tanh per step
        wih_f, wih_b = _reorder_gates(wih_f, H), _reorder_gates(wih_b, H)
        whh_f, whh_b = _reorder_gates(whh_f, H), _reorder_gates(whh_b, H)
        b_f, b_b = _reorder_gates(b_f, H), _reorder_gates(b_b, H)

        bias_stack = jnp.stack([b_f, b_b])               # (2, 1, 4H)
        whh_stack = jnp.stack([whh_f, whh_b])            # (2, H, 4H)

        if li == 0:
            a_list = [x_tbf.reshape(T * Bp, F)]
            w_list = [jnp.stack([wih_f, wih_b])]         # (2, F, 4H)
        else:
            Hp = h.shape[-1]
            # consume the two direction halves directly -> no (T,B,2H) concat
            a_list = [h[0].reshape(T * Bp, Hp), h[1].reshape(T * Bp, Hp)]
            w_list = [jnp.stack([wih_f[:Hp], wih_b[:Hp]]),
                      jnp.stack([wih_f[Hp:], wih_b[Hp:]])]

        # Hoisted input-to-hidden matmul (+bias) for all timesteps, both dirs.
        # Gates stored bf16 (largest tensor streamed into the recurrence).
        g = grouped_matmul(a_list, w_list, bias_stack, activation=None,
                           out_dtype=jnp.bfloat16, compute_dtype=compute_dtype)
        g = g.reshape(2, T, Bp, H4)
        h = bilstm_recurrent(g, whh_stack, compute_dtype=compute_dtype,
                             out_dtype=jnp.bfloat16)

    # Final Linear(2H -> F*D) + Tanh, consuming the two direction halves directly.
    Hp = h.shape[-1]
    N = F * emb_D
    Np = _round_up(N, 128)                               # lane-dense output blocks
    lin_w, lin_b = params["lin_w"], params["lin_b"]
    if Np != N:
        lin_w = jnp.pad(lin_w, ((0, 0), (0, Np - N)))
        lin_b = jnp.pad(lin_b, ((0, 0), (0, Np - N)))
    a_list = [h[0].reshape(T * Bp, Hp), h[1].reshape(T * Bp, Hp)]
    w_list = [lin_w[:Hp][None], lin_w[Hp:][None]]        # (1, H, Np) each
    y = grouped_matmul(a_list, w_list, lin_b[None], activation="tanh",
                       out_dtype=jnp.float32, compute_dtype=compute_dtype)
    y = y[0][:, :N].reshape(T, Bp, N)
    y = jnp.transpose(y, (1, 0, 2))[:B].reshape(B, T * F, emb_D)
    return y


# ----------------------------------------------------------------------------
# Pure-JAX reference (bf16 MXU-operand casts, f32 accumulation/state,
# original [i,f,g,o] gate order, no batch padding)
# ----------------------------------------------------------------------------
def _lstm_ref_dir(x_tbf, wih, whh, b, cdt):
    T, B, _ = x_tbf.shape
    H = whh.shape[0]
    wih_c = wih.astype(cdt)
    whh_c = whh.astype(cdt)

    def step(carry, x_t):
        h, c = carry
        g = (jnp.dot(x_t.astype(cdt), wih_c, preferred_element_type=jnp.float32)
             + jnp.dot(h.astype(cdt), whh_c, preferred_element_type=jnp.float32)
             + b)
        i = jax.nn.sigmoid(g[:, :H])
        f = jax.nn.sigmoid(g[:, H:2 * H])
        gg = jnp.tanh(g[:, 2 * H:3 * H])
        o = jax.nn.sigmoid(g[:, 3 * H:])
        c = f * c + i * gg
        h = o * jnp.tanh(c)
        return (h, c), h

    init = (jnp.zeros((B, H), jnp.float32), jnp.zeros((B, H), jnp.float32))
    _, hs = jax.lax.scan(step, init, x_tbf)
    return hs


def dpcl_ref(x_btf, params, emb_D, cdt):
    B, T, F = x_btf.shape
    h = jnp.transpose(x_btf, (1, 0, 2))
    for lp in params["lstm"]:
        hf = _lstm_ref_dir(h, *lp["fwd"], cdt)
        hb = _lstm_ref_dir(h[::-1], *lp["bwd"], cdt)[::-1]
        h = jnp.concatenate([hf, hb], axis=-1)
    h2 = jnp.transpose(h, (1, 0, 2)).reshape(B * T, -1)
    y = jnp.tanh(jnp.dot(h2.astype(cdt), params["lin_w"].astype(cdt),
                         preferred_element_type=jnp.float32) + params["lin_b"])
    return y.reshape(B, T * F, emb_D)


# ----------------------------------------------------------------------------
# Deterministic parameter init (PyTorch-style uniform(-1/sqrt(H), 1/sqrt(H)))
# ----------------------------------------------------------------------------
def init_params(key, nfft, hidden, num_layers, emb_D):
    k = 1.0 / jnp.sqrt(hidden)

    def uni(key, shape):
        return jax.random.uniform(key, shape, jnp.float32, minval=-k, maxval=k)

    params = {"lstm": []}
    keys = jax.random.split(key, num_layers * 2 * 3 + 2)
    ki = 0
    in_size = nfft
    for _ in range(num_layers):
        layer = {}
        for d in ("fwd", "bwd"):
            wih = uni(keys[ki], (in_size, 4 * hidden)); ki += 1
            whh = uni(keys[ki], (hidden, 4 * hidden)); ki += 1
            b = uni(keys[ki], (1, 4 * hidden)); ki += 1   # b_ih + b_hh combined
            layer[d] = (wih, whh, b)
        params["lstm"].append(layer)
        in_size = 2 * hidden
    params["lin_w"] = uni(keys[ki], (2 * hidden, nfft * emb_D)); ki += 1
    params["lin_b"] = uni(keys[ki], (1, nfft * emb_D)); ki += 1
    return params


if __name__ == "__main__":
    # Small shapes consistent with DPCL(num_layer=2, nfft=F, hidden_cells=H, emb_D=D).
    # H=128 keeps the gate slices 128-lane aligned; B is padded to 8 internally.
    B, T, F = 2, 16, 16            # batch, time, freq bins (nfft)
    H, D, NUM_LAYERS = 128, 8, 2

    key = jax.random.PRNGKey(0)
    k_in, k_par = jax.random.split(key)
    x = jax.random.normal(k_in, (B, T, F), dtype=jnp.float32)
    params = init_params(k_par, F, H, NUM_LAYERS, D)

    fwd = jax.jit(functools.partial(dpcl_forward, emb_D=D))
    out = jax.block_until_ready(fwd(x, params))
    assert out.shape == (B, T * F, D), out.shape

    ref = jax.block_until_ready(dpcl_ref(x, params, D, jnp.bfloat16))
    max_err = float(jnp.max(jnp.abs(out - ref)))
    # Kernel stores G / h in bf16, so tolerance is slightly looser than before.
    assert jnp.allclose(out, ref, atol=2e-2, rtol=2e-2), max_err

    print("KERNEL_OK")
</pallas_src>

<mosaic_0001>
module attributes {stable_mosaic.version = 11 : i64} {
  func.func @_grouped_mm_kernel(%arg0: i32, %arg1: i32, %arg2: i32, %arg3: memref<128x16xf32, #tpu.memory_space<vmem>>, %arg4: memref<1x16x512xbf16, #tpu.memory_space<vmem>>, %arg5: memref<1x1x512xf32, #tpu.memory_space<vmem>>, %arg6: memref<1x128x512xbf16, #tpu.memory_space<vmem>>) attributes {dimension_semantics = [#tpu.dimension_semantics<parallel>, #tpu.dimension_semantics<parallel>, #tpu.dimension_semantics<parallel>], iteration_bounds = array<i64: 2, 1, 1>, scalar_prefetch = 0 : i64, scratch_operands = 0 : i64, tpu.core_type = #tpu.core_type<tc>, window_params = [{transform_indices = @transform_0, window_bounds = array<i64: 128, 16>}, {transform_indices = @transform_1, window_bounds = array<i64: 1, 16, 512>}, {transform_indices = @transform_2, window_bounds = array<i64: 1, 1, 512>}, {transform_indices = @transform_3, window_bounds = array<i64: 1, 128, 512>}]} {
    %c0 = arith.constant 0 : index
    %c0_0 = arith.constant 0 : index
    %0 = vector.load %arg3[%c0, %c0_0] : memref<128x16xf32, #tpu.memory_space<vmem>>, vector<128x16xf32>
    %1 = arith.truncf %0 : vector<128x16xf32> to vector<128x16xbf16>
    %c0_1 = arith.constant 0 : index
    %c0_2 = arith.constant 0 : index
    %c0_3 = arith.constant 0 : index
    %2 = vector.load %arg4[%c0_1, %c0_2, %c0_3] : memref<1x16x512xbf16, #tpu.memory_space<vmem>>, vector<1x16x512xbf16>
    %3 = vector.shape_cast %2 : vector<1x16x512xbf16> to vector<16x512xbf16>
    %cst = arith.constant dense<0.000000e+00> : vector<128x512xf32>
    %4 = tpu.matmul %1, %3, %cst {dimension_numbers = #tpu.dot_dimension_numbers<[1], [0], [0], [1], [0, 0, 1, 1], [], []>} : vector<128x16xbf16>, vector<16x512xbf16>, vector<128x512xf32> -> vector<128x512xf32>
    %c0_4 = arith.constant 0 : index
    %c0_5 = arith.constant 0 : index
    %c0_6 = arith.constant 0 : index
    %5 = vector.load %arg5[%c0_4, %c0_5, %c0_6] : memref<1x1x512xf32, #tpu.memory_space<vmem>>, vector<1x1x512xf32>
    %6 = vector.shape_cast %5 : vector<1x1x512xf32> to vector<1x512xf32>
    %7 = vector.broadcast %6 : vector<1x512xf32> to vector<128x512xf32>
    %8 = arith.addf %4, %7 : vector<128x512xf32>
    %9 = arith.truncf %8 : vector<128x512xf32> to vector<128x512xbf16>
    %c0_7 = arith.constant 0 : index
    %c0_8 = arith.constant 0 : index
    %c0_9 = arith.constant 0 : index
    %10 = vector.load %arg6[%c0_7, %c0_8, %c0_9] : memref<1x128x512xbf16, #tpu.memory_space<vmem>>, vector<1x128x512xbf16>
    %11 = vector.shape_cast %10 : vector<1x128x512xbf16> to vector<128x512xbf16>
    %12 = vector.shape_cast %9 : vector<128x512xbf16> to vector<1x128x512xbf16>
    tpu.vector_store %arg6[%c0_7, %c0_8, %c0_9], %12 {strides = array<i32>} : memref<1x128x512xbf16, #tpu.memory_space<vmem>>, vector<1x128x512xbf16>,
    return
  }
  func.func @transform_0(%arg0: i32, %arg1: i32, %arg2: i32) -> (i32, i32) {
    %c0_i32 = arith.constant 0 : i32
    %c0_i32_0 = arith.constant 0 : i32
    return %arg2, %c0_i32 : i32, i32
  }
  func.func @transform_1(%arg0: i32, %arg1: i32, %arg2: i32) -> (i32, i32, i32) {
    %c0_i32 = arith.constant 0 : i32
    %c0_i32_0 = arith.constant 0 : i32
    return %arg0, %c0_i32, %arg1 : i32, i32, i32
  }
  func.func @transform_2(%arg0: i32, %arg1: i32, %arg2: i32) -> (i32, i32, i32) {
    %c0_i32 = arith.constant 0 : i32
    %c0_i32_0 = arith.constant 0 : i32
    return %arg0, %c0_i32, %arg1 : i32, i32, i32
  }
  func.func @transform_3(%arg0: i32, %arg1: i32, %arg2: i32) -> (i32, i32, i32) {
    %c0_i32 = arith.constant 0 : i32
    return %arg0, %arg2, %arg1 : i32, i32, i32
  }
}

module attributes {stable_mosaic.version = 11 : i64} {
  func.func @_bilstm_kernel(%arg0: i32, %arg1: i32, %arg2: memref<1x8x8x512xbf16, #tpu.memory_space<vmem>>, %arg3: memref<1x128x512xbf16, #tpu.memory_space<vmem>>, %arg4: memref<1x8x8x128xbf16, #tpu.memory_space<vmem>>, %arg5: memref<8x128xf32, #tpu.memory_space<vmem>>, %arg6: memref<8x128xf32, #tpu.memory_space<vmem>>) attributes {dimension_semantics = [#tpu.dimension_semantics<parallel>, #tpu.dimension_semantics<arbitrary>], iteration_bounds = array<i64: 2, 2>, scalar_prefetch = 0 : i64, scratch_operands = 2 : i64, tpu.core_type = #tpu.core_type<tc>, window_params = [{transform_indices = @transform_0, window_bounds = array<i64: 1, 8, 8, 512>}, {transform_indices = @transform_1, window_bounds = array<i64: 1, 128, 512>}, {transform_indices = @transform_2, window_bounds = array<i64: 1, 8, 8, 128>}]} {
    %c0_i32 = arith.constant 0 : i32
    %0 = arith.cmpi eq, %arg1, %c0_i32 : i32
    %1 = arith.extui %0 : i1 to i32
    %c0_i32_0 = arith.constant 0 : i32
    %2 = arith.cmpi ne, %1, %c0_i32_0 : i32
    scf.if %2 {
      %cst = arith.constant 0.000000e+00 : f32
      %11 = vector.broadcast %cst : f32 to vector<8x128xf32>
      %c0_6 = arith.constant 0 : index
      %c0_7 = arith.constant 0 : index
      %12 = vector.load %arg5[%c0_6, %c0_7] : memref<8x128xf32, #tpu.memory_space<vmem>>, vector<8x128xf32>
      tpu.vector_store %arg5[%c0_6, %c0_7], %11 {strides = array<i32>} : memref<8x128xf32, #tpu.memory_space<vmem>>, vector<8x128xf32>,
      %cst_8 = arith.constant 0.000000e+00 : f32
      %13 = vector.broadcast %cst_8 : f32 to vector<8x128xf32>
      %c0_9 = arith.constant 0 : index
      %c0_10 = arith.constant 0 : index
      %14 = vector.load %arg6[%c0_9, %c0_10] : memref<8x128xf32, #tpu.memory_space<vmem>>, vector<8x128xf32>
      tpu.vector_store %arg6[%c0_9, %c0_10], %13 {strides = array<i32>} : memref<8x128xf32, #tpu.memory_space<vmem>>, vector<8x128xf32>,
    } else {
    }
    %c0 = arith.constant 0 : index
    %c0_1 = arith.constant 0 : index
    %c0_2 = arith.constant 0 : index
    %3 = vector.load %arg3[%c0, %c0_1, %c0_2] : memref<1x128x512xbf16, #tpu.memory_space<vmem>>, vector<1x128x512xbf16>
    %4 = vector.shape_cast %3 : vector<1x128x512xbf16> to vector<128x512xbf16>
    %c0_i32_3 = arith.constant 0 : i32
    %5 = arith.cmpi eq, %arg0, %c0_i32_3 : i32
    %6 = arith.extui %5 : i1 to i32
    %c0_i32_4 = arith.constant 0 : i32
    %7 = arith.cmpi ne, %6, %c0_i32_4 : i32
    scf.if %7 {
      %c0_6 = arith.constant 0 : index
      %c0_7 = arith.constant 0 : index
      %11 = vector.load %arg5[%c0_6, %c0_7] : memref<8x128xf32, #tpu.memory_space<vmem>>, vector<8x128xf32>
      %c0_8 = arith.constant 0 : index
      %c0_9 = arith.constant 0 : index
      %12 = vector.load %arg6[%c0_8, %c0_9] : memref<8x128xf32, #tpu.memory_space<vmem>>, vector<8x128xf32>
      %c0_10 = arith.constant 0 : index
      %c0_11 = arith.constant 0 : index
      %c0_12 = arith.constant 0 : index
      %c0_13 = arith.constant 0 : index
      %13 = vector.load %arg2[%c0_10, %c0_11, %c0_12, %c0_13] : memref<1x8x8x512xbf16, #tpu.memory_space<vmem>>, vector<1x1x8x512xbf16>
      %14 = vector.shape_cast %13 : vector<1x1x8x512xbf16> to vector<8x512xbf16>
      %15 = arith.extf %14 : vector<8x512xbf16> to vector<8x512xf32>
      %16 = arith.truncf %11 : vector<8x128xf32> to vector<8x128xbf16>
      %cst = arith.constant dense<0.000000e+00> : vector<8x512xf32>
      %17 = tpu.matmul %16, %4, %cst {dimension_numbers = #tpu.dot_dimension_numbers<[1], [0], [0], [1], [0, 0, 1, 1], [], []>} : vector<8x128xbf16>, vector<128x512xbf16>, vector<8x512xf32> -> vector<8x512xf32>
      %18 = arith.addf %15, %17 : vector<8x512xf32>
      %19 = vector.extract_strided_slice %18 {offsets = [0, 0], sizes = [8, 384], strides = [1, 1]} : vector<8x512xf32> to vector<8x384xf32>
      %20 = arith.negf %19 : vector<8x384xf32>
      %21 = math.exp %20 : vector<8x384xf32>
      %cst_14 = arith.constant 1.000000e+00 : f32
      %22 = vector.broadcast %cst_14 : f32 to vector<8x384xf32>
      %23 = arith.addf %22, %21 : vector<8x384xf32>
      %24 = arith.divf %22, %23 : vector<8x384xf32>
      %25 = vector.extract_strided_slice %18 {offsets = [0, 384], sizes = [8, 128], strides = [1, 1]} : vector<8x512xf32> to vector<8x128xf32>
      %26 = math.tanh %25 : vector<8x128xf32>
      %27 = vector.extract_strided_slice %24 {offsets = [0, 128], sizes = [8, 128], strides = [1, 1]} : vector<8x384xf32> to vector<8x128xf32>
      %28 = arith.mulf %27, %12 : vector<8x128xf32>
      %29 = vector.extract_strided_slice %24 {offsets = [0, 0], sizes = [8, 128], strides = [1, 1]} : vector<8x384xf32> to vector<8x128xf32>
      %30 = arith.mulf %29, %26 : vector<8x128xf32>
      %31 = arith.addf %28, %30 : vector<8x128xf32>
      %32 = vector.extract_strided_slice %24 {offsets = [0, 256], sizes = [8, 128], strides = [1, 1]} : vector<8x384xf32> to vector<8x128xf32>
      %33 = math.tanh %31 : vector<8x128xf32>
      %34 = arith.mulf %32, %33 : vector<8x128xf32>
      %35 = arith.truncf %34 : vector<8x128xf32> to vector<8x128xbf16>
      %c0_15 = arith.constant 0 : index
      %c0_16 = arith.constant 0 : index
      %c0_17 = arith.constant 0 : index
      %c0_18 = arith.constant 0 : index
      %36 = vector.load %arg4[%c0_15, %c0_16, %c0_17, %c0_18] : memref<1x8x8x128xbf16, #tpu.memory_space<vmem>>, vector<1x1x8x128xbf16>
      %37 = vector.shape_cast %36 : vector<1x1x8x128xbf16> to vector<8x128xbf16>
      %38 = vector.shape_cast %35 : vector<8x128xbf16> to vector<1x1x8x128xbf16>
      tpu.vector_store %arg4[%c0_15, %c0_16, %c0_17, %c0_18], %38 {strides = array<i32>} : memref<1x8x8x128xbf16, #tpu.memory_space<vmem>>, vector<1x1x8x128xbf16>,
      %c0_19 = arith.constant 0 : index
      %c1 = arith.constant 1 : index
      %c0_20 = arith.constant 0 : index
      %c0_21 = arith.constant 0 : index
      %39 = vector.load %arg2[%c0_19, %c1, %c0_20, %c0_21] : memref<1x8x8x512xbf16, #tpu.memory_space<vmem>>, vector<1x1x8x512xbf16>
      %40 = vector.shape_cast %39 : vector<1x1x8x512xbf16> to vector<8x512xbf16>
      %41 = arith.extf %40 : vector<8x512xbf16> to vector<8x512xf32>
      %42 = arith.truncf %34 : vector<8x128xf32> to vector<8x128xbf16>
      %cst_22 = arith.constant dense<0.000000e+00> : vector<8x512xf32>
      %43 = tpu.matmul %42, %4, %cst_22 {dimension_numbers = #tpu.dot_dimension_numbers<[1], [0], [0], [1], [0, 0, 1, 1], [], []>} : vector<8x128xbf16>, vector<128x512xbf16>, vector<8x512xf32> -> vector<8x512xf32>
      %44 = arith.addf %41, %43 : vector<8x512xf32>
      %45 = vector.extract_strided_slice %44 {offsets = [0, 0], sizes = [8, 384], strides = [1, 1]} : vector<8x512xf32> to vector<8x384xf32>
      %46 = arith.negf %45 : vector<8x384xf32>
      %47 = math.exp %46 : vector<8x384xf32>
      %cst_23 = arith.constant 1.000000e+00 : f32
      %48 = vector.broadcast %cst_23 : f32 to vector<8x384xf32>
      %49 = arith.addf %48, %47 : vector<8x384xf32>
      %50 = arith.divf %48, %49 : vector<8x384xf32>
      %51 = vector.extract_strided_slice %44 {offsets = [0, 384], sizes = [8, 128], strides = [1, 1]} : vector<8x512xf32> to vector<8x128xf32>
      %52 = math.tanh %51 : vector<8x128xf32>
      %53 = vector.extract_strided_slice %50 {offsets = [0, 128], sizes = [8, 128], strides = [1, 1]} : vector<8x384xf32> to vector<8x128xf32>
      %54 = arith.mulf %53, %31 : vector<8x128xf32>
      %55 = vector.extract_strided_slice %50 {offsets = [0, 0], sizes = [8, 128], strides = [1, 1]} : vector<8x384xf32> to vector<8x128xf32>
      %56 = arith.mulf %55, %52 : vector<8x128xf32>
      %57 = arith.addf %54, %56 : vector<8x128xf32>
      %58 = vector.extract_strided_slice %50 {offsets = [0, 256], sizes = [8, 128], strides = [1, 1]} : vector<8x384xf32> to vector<8x128xf32>
      %59 = math.tanh %57 : vector<8x128xf32>
      %60 = arith.mulf %58, %59 : vector<8x128xf32>
      %61 = arith.truncf %60 : vector<8x128xf32> to vector<8x128xbf16>
      %c0_24 = arith.constant 0 : index
      %c1_25 = arith.constant 1 : index
      %c0_26 = arith.constant 0 : index
      %c0_27 = arith.constant 0 : index
      %62 = vector.load %arg4[%c0_24, %c1_25, %c0_26, %c0_27] : memref<1x8x8x128xbf16, #tpu.memory_space<vmem>>, vector<1x1x8x128xbf16>
      %63 = vector.shape_cast %62 : vector<1x1x8x128xbf16> to vector<8x128xbf16>
      %64 = vector.shape_cast %61 : vector<8x128xbf16> to vector<1x1x8x128xbf16>
      tpu.vector_store %arg4[%c0_24, %c1_25, %c0_26, %c0_27], %64 {strides = array<i32>} : memref<1x8x8x128xbf16, #tpu.memory_space<vmem>>, vector<1x1x8x128xbf16>,
      %c0_28 = arith.constant 0 : index
      %c2 = arith.constant 2 : index
      %c0_29 = arith.constant 0 : index
      %c0_30 = arith.constant 0 : index
      %65 = vector.load %arg2[%c0_28, %c2, %c0_29, %c0_30] : memref<1x8x8x512xbf16, #tpu.memory_space<vmem>>, vector<1x1x8x512xbf16>
      %66 = vector.shape_cast %65 : vector<1x1x8x512xbf16> to vector<8x512xbf16>
      %67 = arith.extf %66 : vector<8x512xbf16> to vector<8x512xf32>
      %68 = arith.truncf %60 : vector<8x128xf32> to vector<8x128xbf16>
      %cst_31 = arith.constant dense<0.000000e+00> : vector<8x512xf32>
      %69 = tpu.matmul %68, %4, %cst_31 {dimension_numbers = #tpu.dot_dimension_numbers<[1], [0], [0], [1], [0, 0, 1, 1], [], []>} : vector<8x128xbf16>, vector<128x512xbf16>, vector<8x512xf32> -> vector<8x512xf32>
      %70 = arith.addf %67, %69 : vector<8x512xf32>
      %71 = vector.extract_strided_slice %70 {offsets = [0, 0], sizes = [8, 384], strides = [1, 1]} : vector<8x512xf32> to vector<8x384xf32>
      %72 = arith.negf %71 : vector<8x384xf32>
      %73 = math.exp %72 : vector<8x384xf32>
      %cst_32 = arith.constant 1.000000e+00 : f32
      %74 = vector.broadcast %cst_32 : f32 to vector<8x384xf32>
      %75 = arith.addf %74, %73 : vector<8x384xf32>
      %76 = arith.divf %74, %75 : vector<8x384xf32>
      %77 = vector.extract_strided_slice %70 {offsets = [0, 384], sizes = [8, 128], strides = [1, 1]} : vector<8x512xf32> to vector<8x128xf32>
      %78 = math.tanh %77 : vector<8x128xf32>
      %79 = vector.extract_strided_slice %76 {offsets = [0, 128], sizes = [8, 128], strides = [1, 1]} : vector<8x384xf32> to vector<8x128xf32>
      %80 = arith.mulf %79, %57 : vector<8x128xf32>
      %81 = vector.extract_strided_slice %76 {offsets = [0, 0], sizes = [8, 128], strides = [1, 1]} : vector<8x384xf32> to vector<8x128xf32>
      %82 = arith.mulf %81, %78 : vector<8x128xf32>
      %83 = arith.addf %80, %82 : vector<8x128xf32>
      %84 = vector.extract_strided_slice %76 {offsets = [0, 256], sizes = [8, 128], strides = [1, 1]} : vector<8x384xf32> to vector<8x128xf32>
      %85 = math.tanh %83 : vector<8x128xf32>
      %86 = arith.mulf %84, %85 : vector<8x128xf32>
      %87 = arith.truncf %86 : vector<8x128xf32> to vector<8x128xbf16>
      %c0_33 = arith.constant 0 : index
      %c2_34 = arith.constant 2 : index
      %c0_35 = arith.constant 0 : index
      %c0_36 = arith.constant 0 : index
      %88 = vector.load %arg4[%c0_33, %c2_34, %c0_35, %c0_36] : memref<1x8x8x128xbf16, #tpu.memory_space<vmem>>, vector<1x1x8x128xbf16>
      %89 = vector.shape_cast %88 : vector<1x1x8x128xbf16> to vector<8x128xbf16>
      %90 = vector.shape_cast %87 : vector<8x128xbf16> to vector<1x1x8x128xbf16>
      tpu.vector_store %arg4[%c0_33, %c2_34, %c0_35, %c0_36], %90 {strides = array<i32>} : memref<1x8x8x128xbf16, #tpu.memory_space<vmem>>, vector<1x1x8x128xbf16>,
      %c0_37 = arith.constant 0 : index
      %c3 = arith.constant 3 : index
      %c0_38 = arith.constant 0 : index
      %c0_39 = arith.constant 0 : index
      %91 = vector.load %arg2[%c0_37, %c3, %c0_38, %c0_39] : memref<1x8x8x512xbf16, #tpu.memory_space<vmem>>, vector<1x1x8x512xbf16>
      %92 = vector.shape_cast %91 : vector<1x1x8x512xbf16> to vector<8x512xbf16>
      %93 = arith.extf %92 : vector<8x512xbf16> to vector<8x512xf32>
      %94 = arith.truncf %86 : vector<8x128xf32> to vector<8x128xbf16>
      %cst_40 = arith.constant dense<0.000000e+00> : vector<8x512xf32>
      %95 = tpu.matmul %94, %4, %cst_40 {dimension_numbers = #tpu.dot_dimension_numbers<[1], [0], [0], [1], [0, 0, 1, 1], [], []>} : vector<8x128xbf16>, vector<128x512xbf16>, vector<8x512xf32> -> vector<8x512xf32>
      %96 = arith.addf %93, %95 : vector<8x512xf32>
      %97 = vector.extract_strided_slice %96 {offsets = [0, 0], sizes = [8, 384], strides = [1, 1]} : vector<8x512xf32> to vector<8x384xf32>
      %98 = arith.negf %97 : vector<8x384xf32>
      %99 = math.exp %98 : vector<8x384xf32>
      %cst_41 = arith.constant 1.000000e+00 : f32
      %100 = vector.broadcast %cst_41 : f32 to vector<8x384xf32>
      %101 = arith.addf %100, %99 : vector<8x384xf32>
      %102 = arith.divf %100, %101 : vector<8x384xf32>
      %103 = vector.extract_strided_slice %96 {offsets = [0, 384], sizes = [8, 128], strides = [1, 1]} : vector<8x512xf32> to vector<8x128xf32>
      %104 = math.tanh %103 : vector<8x128xf32>
      %105 = vector.extract_strided_slice %102 {offsets = [0, 128], sizes = [8, 128], strides = [1, 1]} : vector<8x384xf32> to vector<8x128xf32>
      %106 = arith.mulf %105, %83 : vector<8x128xf32>
      %107 = vector.extract_strided_slice %102 {offsets = [0, 0], sizes = [8, 128], strides = [1, 1]} : vector<8x384xf32> to vector<8x128xf32>
      %108 = arith.mulf %107, %104 : vector<8x128xf32>
      %109 = arith.addf %106, %108 : vector<8x128xf32>
      %110 = vector.extract_strided_slice %102 {offsets = [0, 256], sizes = [8, 128], strides = [1, 1]} : vector<8x384xf32> to vector<8x128xf32>
      %111 = math.tanh %109 : vector<8x128xf32>
      %112 = arith.mulf %110, %111 : vector<8x128xf32>
      %113 = arith.truncf %112 : vector<8x128xf32> to vector<8x128xbf16>
      %c0_42 = arith.constant 0 : index
      %c3_43 = arith.constant 3 : index
      %c0_44 = arith.constant 0 : index
      %c0_45 = arith.constant 0 : index
      %114 = vector.load %arg4[%c0_42, %c3_43, %c0_44, %c0_45] : memref<1x8x8x128xbf16, #tpu.memory_space<vmem>>, vector<1x1x8x128xbf16>
      %115 = vector.shape_cast %114 : vector<1x1x8x128xbf16> to vector<8x128xbf16>
      %116 = vector.shape_cast %113 : vector<8x128xbf16> to vector<1x1x8x128xbf16>
      tpu.vector_store %arg4[%c0_42, %c3_43, %c0_44, %c0_45], %116 {strides = array<i32>} : memref<1x8x8x128xbf16, #tpu.memory_space<vmem>>, vector<1x1x8x128xbf16>,
      %c0_46 = arith.constant 0 : index
      %c4 = arith.constant 4 : index
      %c0_47 = arith.constant 0 : index
      %c0_48 = arith.constant 0 : index
      %117 = vector.load %arg2[%c0_46, %c4, %c0_47, %c0_48] : memref<1x8x8x512xbf16, #tpu.memory_space<vmem>>, vector<1x1x8x512xbf16>
      %118 = vector.shape_cast %117 : vector<1x1x8x512xbf16> to vector<8x512xbf16>
      %119 = arith.extf %118 : vector<8x512xbf16> to vector<8x512xf32>
      %120 = arith.truncf %112 : vector<8x128xf32> to vector<8x128xbf16>
      %cst_49 = arith.constant dense<0.000000e+00> : vector<8x512xf32>
      %121 = tpu.matmul %120, %4, %cst_49 {dimension_numbers = #tpu.dot_dimension_numbers<[1], [0], [0], [1], [0, 0, 1, 1], [], []>} : vector<8x128xbf16>, vector<128x512xbf16>, vector<8x512xf32> -> vector<8x512xf32>
      %122 = arith.addf %119, %121 : vector<8x512xf32>
      %123 = vector.extract_strided_slice %122 {offsets = [0, 0], sizes = [8, 384], strides = [1, 1]} : vector<8x512xf32> to vector<8x384xf32>
      %124 = arith.negf %123 : vector<8x384xf32>
      %125 = math.exp %124 : vector<8x384xf32>
      %cst_50 = arith.constant 1.000000e+00 : f32
      %126 = vector.broadcast %cst_50 : f32 to vector<8x384xf32>
      %127 = arith.addf %126, %125 : vector<8x384xf32>
      %128 = arith.divf %126, %127 : vector<8x384xf32>
      %129 = vector.extract_strided_slice %122 {offsets = [0, 384], sizes = [8, 128], strides = [1, 1]} : vector<8x512xf32> to vector<8x128xf32>
      %130 = math.tanh %129 : vector<8x128xf32>
      %131 = vector.extract_strided_slice %128 {offsets = [0, 128], sizes = [8, 128], strides = [1, 1]} : vector<8x384xf32> to vector<8x128xf32>
      %132 = arith.mulf %131, %109 : vector<8x128xf32>
      %133 = vector.extract_strided_slice %128 {offsets = [0, 0], sizes = [8, 128], strides = [1, 1]} : vector<8x384xf32> to vector<8x128xf32>
      %134 = arith.mulf %133, %130 : vector<8x128xf32>
      %135 = arith.addf %132, %134 : vector<8x128xf32>
      %136 = vector.extract_strided_slice %128 {offsets = [0, 256], sizes = [8, 128], strides = [1, 1]} : vector<8x384xf32> to vector<8x128xf32>
      %137 = math.tanh %135 : vector<8x128xf32>
      %138 = arith.mulf %136, %137 : vector<8x128xf32>
      %139 = arith.truncf %138 : vector<8x128xf32> to vector<8x128xbf16>
      %c0_51 = arith.constant 0 : index
      %c4_52 = arith.constant 4 : index
      %c0_53 = arith.constant 0 : index
      %c0_54 = arith.constant 0 : index
      %140 = vector.load %arg4[%c0_51, %c4_52, %c0_53, %c0_54] : memref<1x8x8x128xbf16, #tpu.memory_space<vmem>>, vector<1x1x8x128xbf16>
      %141 = vector.shape_cast %140 : vector<1x1x8x128xbf16> to vector<8x128xbf16>
      %142 = vector.shape_cast %139 : vector<8x128xbf16> to vector<1x1x8x128xbf16>
      tpu.vector_store %arg4[%c0_51, %c4_52, %c0_53, %c0_54], %142 {strides = array<i32>} : memref<1x8x8x128xbf16, #tpu.memory_space<vmem>>, vector<1x1x8x128xbf16>,
      %c0_55 = arith.constant 0 : index
      %c5 = arith.constant 5 : index
      %c0_56 = arith.constant 0 : index
      %c0_57 = arith.constant 0 : index
      %143 = vector.load %arg2[%c0_55, %c5, %c0_56, %c0_57] : memref<1x8x8x512xbf16, #tpu.memory_space<vmem>>, vector<1x1x8x512xbf16>
      %144 = vector.shape_cast %143 : vector<1x1x8x512xbf16> to vector<8x512xbf16>
      %145 = arith.extf %144 : vector<8x512xbf16> to vector<8x512xf32>
      %146 = arith.truncf %138 : vector<8x128xf32> to vector<8x128xbf16>
      %cst_58 = arith.constant dense<0.000000e+00> : vector<8x512xf32>
      %147 = tpu.matmul %146, %4, %cst_58 {dimension_numbers = #tpu.dot_dimension_numbers<[1], [0], [0], [1], [0, 0, 1, 1], [], []>} : vector<8x128xbf16>, vector<128x512xbf16>, vector<8x512xf32> -> vector<8x512xf32>
      %148 = arith.addf %145, %147 : vector<8x512xf32>
      %149 = vector.extract_strided_slice %148 {offsets = [0, 0], sizes = [8, 384], strides = [1, 1]} : vector<8x512xf32> to vector<8x384xf32>
      %150 = arith.negf %149 : vector<8x384xf32>
      %151 = math.exp %150 : vector<8x384xf32>
      %cst_59 = arith.constant 1.000000e+00 : f32
      %152 = vector.broadcast %cst_59 : f32 to vector<8x384xf32>
      %153 = arith.addf %152, %151 : vector<8x384xf32>
      %154 = arith.divf %152, %153 : vector<8x384xf32>
      %155 = vector.extract_strided_slice %148 {offsets = [0, 384], sizes = [8, 128], strides = [1, 1]} : vector<8x512xf32> to vector<8x128xf32>
      %156 = math.tanh %155 : vector<8x128xf32>
      %157 = vector.extract_strided_slice %154 {offsets = [0, 128], sizes = [8, 128], strides = [1, 1]} : vector<8x384xf32> to vector<8x128xf32>
      %158 = arith.mulf %157, %135 : vector<8x128xf32>
      %159 = vector.extract_strided_slice %154 {offsets = [0, 0], sizes = [8, 128], strides = [1, 1]} : vector<8x384xf32> to vector<8x128xf32>
      %160 = arith.mulf %159, %156 : vector<8x128xf32>
      %161 = arith.addf %158, %160 : vector<8x128xf32>
      %162 = vector.extract_strided_slice %154 {offsets = [0, 256], sizes = [8, 128], strides = [1, 1]} : vector<8x384xf32> to vector<8x128xf32>
      %163 = math.tanh %161 : vector<8x128xf32>
      %164 = arith.mulf %162, %163 : vector<8x128xf32>
      %165 = arith.truncf %164 : vector<8x128xf32> to vector<8x128xbf16>
      %c0_60 = arith.constant 0 : index
      %c5_61 = arith.constant 5 : index
      %c0_62 = arith.constant 0 : index
      %c0_63 = arith.constant 0 : index
      %166 = vector.load %arg4[%c0_60, %c5_61, %c0_62, %c0_63] : memref<1x8x8x128xbf16, #tpu.memory_space<vmem>>, vector<1x1x8x128xbf16>
      %167 = vector.shape_cast %166 : vector<1x1x8x128xbf16> to vector<8x128xbf16>
      %168 = vector.shape_cast %165 : vector<8x128xbf16> to vector<1x1x8x128xbf16>
      tpu.vector_store %arg4[%c0_60, %c5_61, %c0_62, %c0_63], %168 {strides = array<i32>} : memref<1x8x8x128xbf16, #tpu.memory_space<vmem>>, vector<1x1x8x128xbf16>,
      %c0_64 = arith.constant 0 : index
      %c6 = arith.constant 6 : index
      %c0_65 = arith.constant 0 : index
      %c0_66 = arith.constant 0 : index
      %169 = vector.load %arg2[%c0_64, %c6, %c0_65, %c0_66] : memref<1x8x8x512xbf16, #tpu.memory_space<vmem>>, vector<1x1x8x512xbf16>
      %170 = vector.shape_cast %169 : vector<1x1x8x512xbf16> to vector<8x512xbf16>
      %171 = arith.extf %170 : vector<8x512xbf16> to vector<8x512xf32>
      %172 = arith.truncf %164 : vector<8x128xf32> to vector<8x128xbf16>
      %cst_67 = arith.constant dense<0.000000e+00> : vector<8x512xf32>
      %173 = tpu.matmul %172, %4, %cst_67 {dimension_numbers = #tpu.dot_dimension_numbers<[1], [0], [0], [1], [0, 0, 1, 1], [], []>} : vector<8x128xbf16>, vector<128x512xbf16>, vector<8x512xf32> -> vector<8x512xf32>
      %174 = arith.addf %171, %173 : vector<8x512xf32>
      %175 = vector.extract_strided_slice %174 {offsets = [0, 0], sizes = [8, 384], strides = [1, 1]} : vector<8x512xf32> to vector<8x384xf32>
      %176 = arith.negf %175 : vector<8x384xf32>
      %177 = math.exp %176 : vector<8x384xf32>
      %cst_68 = arith.constant 1.000000e+00 : f32
      %178 = vector.broadcast %cst_68 : f32 to vector<8x384xf32>
      %179 = arith.addf %178, %177 : vector<8x384xf32>
      %180 = arith.divf %178, %179 : vector<8x384xf32>
      %181 = vector.extract_strided_slice %174 {offsets = [0, 384], sizes = [8, 128], strides = [1, 1]} : vector<8x512xf32> to vector<8x128xf32>
      %182 = math.tanh %181 : vector<8x128xf32>
      %183 = vector.extract_strided_slice %180 {offsets = [0, 128], sizes = [8, 128], strides = [1, 1]} : vector<8x384xf32> to vector<8x128xf32>
      %184 = arith.mulf %183, %161 : vector<8x128xf32>
      %185 = vector.extract_strided_slice %180 {offsets = [0, 0], sizes = [8, 128], strides = [1, 1]} : vector<8x384xf32> to vector<8x128xf32>
      %186 = arith.mulf %185, %182 : vector<8x128xf32>
      %187 = arith.addf %184, %186 : vector<8x128xf32>
      %188 = vector.extract_strided_slice %180 {offsets = [0, 256], sizes = [8, 128], strides = [1, 1]} : vector<8x384xf32> to vector<8x128xf32>
      %189 = math.tanh %187 : vector<8x128xf32>
      %190 = arith.mulf %188, %189 : vector<8x128xf32>
      %191 = arith.truncf %190 : vector<8x128xf32> to vector<8x128xbf16>
      %c0_69 = arith.constant 0 : index
      %c6_70 = arith.constant 6 : index
      %c0_71 = arith.constant 0 : index
      %c0_72 = arith.constant 0 : index
      %192 = vector.load %arg4[%c0_69, %c6_70, %c0_71, %c0_72] : memref<1x8x8x128xbf16, #tpu.memory_space<vmem>>, vector<1x1x8x128xbf16>
      %193 = vector.shape_cast %192 : vector<1x1x8x128xbf16> to vector<8x128xbf16>
      %194 = vector.shape_cast %191 : vector<8x128xbf16> to vector<1x1x8x128xbf16>
      tpu.vector_store %arg4[%c0_69, %c6_70, %c0_71, %c0_72], %194 {strides = array<i32>} : memref<1x8x8x128xbf16, #tpu.memory_space<vmem>>, vector<1x1x8x128xbf16>,
      %c0_73 = arith.constant 0 : index
      %c7 = arith.constant 7 : index
      %c0_74 = arith.constant 0 : index
      %c0_75 = arith.constant 0 : index
      %195 = vector.load %arg2[%c0_73, %c7, %c0_74, %c0_75] : memref<1x8x8x512xbf16, #tpu.memory_space<vmem>>, vector<1x1x8x512xbf16>
      %196 = vector.shape_cast %195 : vector<1x1x8x512xbf16> to vector<8x512xbf16>
      %197 = arith.extf %196 : vector<8x512xbf16> to vector<8x512xf32>
      %198 = arith.truncf %190 : vector<8x128xf32> to vector<8x128xbf16>
      %cst_76 = arith.constant dense<0.000000e+00> : vector<8x512xf32>
      %199 = tpu.matmul %198, %4, %cst_76 {dimension_numbers = #tpu.dot_dimension_numbers<[1], [0], [0], [1], [0, 0, 1, 1], [], []>} : vector<8x128xbf16>, vector<128x512xbf16>, vector<8x512xf32> -> vector<8x512xf32>
      %200 = arith.addf %197, %199 : vector<8x512xf32>
      %201 = vector.extract_strided_slice %200 {offsets = [0, 0], sizes = [8, 384], strides = [1, 1]} : vector<8x512xf32> to vector<8x384xf32>
      %202 = arith.negf %201 : vector<8x384xf32>
      %203 = math.exp %202 : vector<8x384xf32>
      %cst_77 = arith.constant 1.000000e+00 : f32
      %204 = vector.broadcast %cst_77 : f32 to vector<8x384xf32>
      %205 = arith.addf %204, %203 : vector<8x384xf32>
      %206 = arith.divf %204, %205 : vector<8x384xf32>
      %207 = vector.extract_strided_slice %200 {offsets = [0, 384], sizes = [8, 128], strides = [1, 1]} : vector<8x512xf32> to vector<8x128xf32>
      %208 = math.tanh %207 : vector<8x128xf32>
      %209 = vector.extract_strided_slice %206 {offsets = [0, 128], sizes = [8, 128], strides = [1, 1]} : vector<8x384xf32> to vector<8x128xf32>
      %210 = arith.mulf %209, %187 : vector<8x128xf32>
      %211 = vector.extract_strided_slice %206 {offsets = [0, 0], sizes = [8, 128], strides = [1, 1]} : vector<8x384xf32> to vector<8x128xf32>
      %212 = arith.mulf %211, %208 : vector<8x128xf32>
      %213 = arith.addf %210, %212 : vector<8x128xf32>
      %214 = vector.extract_strided_slice %206 {offsets = [0, 256], sizes = [8, 128], strides = [1, 1]} : vector<8x384xf32> to vector<8x128xf32>
      %215 = math.tanh %213 : vector<8x128xf32>
      %216 = arith.mulf %214, %215 : vector<8x128xf32>
      %217 = arith.truncf %216 : vector<8x128xf32> to vector<8x128xbf16>
      %c0_78 = arith.constant 0 : index
      %c7_79 = arith.constant 7 : index
      %c0_80 = arith.constant 0 : index
      %c0_81 = arith.constant 0 : index
      %218 = vector.load %arg4[%c0_78, %c7_79, %c0_80, %c0_81] : memref<1x8x8x128xbf16, #tpu.memory_space<vmem>>, vector<1x1x8x128xbf16>
      %219 = vector.shape_cast %218 : vector<1x1x8x128xbf16> to vector<8x128xbf16>
      %220 = vector.shape_cast %217 : vector<8x128xbf16> to vector<1x1x8x128xbf16>
      tpu.vector_store %arg4[%c0_78, %c7_79, %c0_80, %c0_81], %220 {strides = array<i32>} : memref<1x8x8x128xbf16, #tpu.memory_space<vmem>>, vector<1x1x8x128xbf16>,
      %c0_82 = arith.constant 0 : index
      %c0_83 = arith.constant 0 : index
      %221 = vector.load %arg5[%c0_82, %c0_83] : memref<8x128xf32, #tpu.memory_space<vmem>>, vector<8x128xf32>
      tpu.vector_store %arg5[%c0_82, %c0_83], %216 {strides = array<i32>} : memref<8x128xf32, #tpu.memory_space<vmem>>, vector<8x128xf32>,
      %c0_84 = arith.constant 0 : index
      %c0_85 = arith.constant 0 : index
      %222 = vector.load %arg6[%c0_84, %c0_85] : memref<8x128xf32, #tpu.memory_space<vmem>>, vector<8x128xf32>
      tpu.vector_store %arg6[%c0_84, %c0_85], %213 {strides = array<i32>} : memref<8x128xf32, #tpu.memory_space<vmem>>, vector<8x128xf32>,
    } else {
    }
    %c1_i32 = arith.constant 1 : i32
    %8 = arith.cmpi eq, %arg0, %c1_i32 : i32
    %9 = arith.extui %8 : i1 to i32
    %c0_i32_5 = arith.constant 0 : i32
    %10 = arith.cmpi ne, %9, %c0_i32_5 : i32
    scf.if %10 {
      %c0_6 = arith.constant 0 : index
      %c0_7 = arith.constant 0 : index
      %11 = vector.load %arg5[%c0_6, %c0_7] : memref<8x128xf32, #tpu.memory_space<vmem>>, vector<8x128xf32>
      %c0_8 = arith.constant 0 : index
      %c0_9 = arith.constant 0 : index
      %12 = vector.load %arg6[%c0_8, %c0_9] : memref<8x128xf32, #tpu.memory_space<vmem>>, vector<8x128xf32>
      %c0_10 = arith.constant 0 : index
      %c7 = arith.constant 7 : index
      %c0_11 = arith.constant 0 : index
      %c0_12 = arith.constant 0 : index
      %13 = vector.load %arg2[%c0_10, %c7, %c0_11, %c0_12] : memref<1x8x8x512xbf16, #tpu.memory_space<vmem>>, vector<1x1x8x512xbf16>
      %14 = vector.shape_cast %13 : vector<1x1x8x512xbf16> to vector<8x512xbf16>
      %15 = arith.extf %14 : vector<8x512xbf16> to vector<8x512xf32>
      %16 = arith.truncf %11 : vector<8x128xf32> to vector<8x128xbf16>
      %cst = arith.constant dense<0.000000e+00> : vector<8x512xf32>
      %17 = tpu.matmul %16, %4, %cst {dimension_numbers = #tpu.dot_dimension_numbers<[1], [0], [0], [1], [0, 0, 1, 1], [], []>} : vector<8x128xbf16>, vector<128x512xbf16>, vector<8x512xf32> -> vector<8x512xf32>
      %18 = arith.addf %15, %17 : vector<8x512xf32>
      %19 = vector.extract_strided_slice %18 {offsets = [0, 0], sizes = [8, 384], strides = [1, 1]} : vector<8x512xf32> to vector<8x384xf32>
      %20 = arith.negf %19 : vector<8x384xf32>
      %21 = math.exp %20 : vector<8x384xf32>
      %cst_13 = arith.constant 1.000000e+00 : f32
      %22 = vector.broadcast %cst_13 : f32 to vector<8x384xf32>
      %23 = arith.addf %22, %21 : vector<8x384xf32>
      %24 = arith.divf %22, %23 : vector<8x384xf32>
      %25 = vector.extract_strided_slice %18 {offsets = [0, 384], sizes = [8, 128], strides = [1, 1]} : vector<8x512xf32> to vector<8x128xf32>
      %26 = math.tanh %25 : vector<8x128xf32>
      %27 = vector.extract_strided_slice %24 {offsets = [0, 128], sizes = [8, 128], strides = [1, 1]} : vector<8x384xf32> to vector<8x128xf32>
      %28 = arith.mulf %27, %12 : vector<8x128xf32>
      %29 = vector.extract_strided_slice %24 {offsets = [0, 0], sizes = [8, 128], strides = [1, 1]} : vector<8x384xf32> to vector<8x128xf32>
      %30 = arith.mulf %29, %26 : vector<8x128xf32>
      %31 = arith.addf %28, %30 : vector<8x128xf32>
      %32 = vector.extract_strided_slice %24 {offsets = [0, 256], sizes = [8, 128], strides = [1, 1]} : vector<8x384xf32> to vector<8x128xf32>
      %33 = math.tanh %31 : vector<8x128xf32>
      %34 = arith.mulf %32, %33 : vector<8x128xf32>
      %35 = arith.truncf %34 : vector<8x128xf32> to vector<8x128xbf16>
      %c0_14 = arith.constant 0 : index
      %c7_15 = arith.constant 7 : index
      %c0_16 = arith.constant 0 : index
      %c0_17 = arith.constant 0 : index
      %36 = vector.load %arg4[%c0_14, %c7_15, %c0_16, %c0_17] : memref<1x8x8x128xbf16, #tpu.memory_space<vmem>>, vector<1x1x8x128xbf16>
      %37 = vector.shape_cast %36 : vector<1x1x8x128xbf16> to vector<8x128xbf16>
      %38 = vector.shape_cast %35 : vector<8x128xbf16> to vector<1x1x8x128xbf16>
      tpu.vector_store %arg4[%c0_14, %c7_15, %c0_16, %c0_17], %38 {strides = array<i32>} : memref<1x8x8x128xbf16, #tpu.memory_space<vmem>>, vector<1x1x8x128xbf16>,
      %c0_18 = arith.constant 0 : index
      %c6 = arith.constant 6 : index
      %c0_19 = arith.constant 0 : index
      %c0_20 = arith.constant 0 : index
      %39 = vector.load %arg2[%c0_18, %c6, %c0_19, %c0_20] : memref<1x8x8x512xbf16, #tpu.memory_space<vmem>>, vector<1x1x8x512xbf16>
      %40 = vector.shape_cast %39 : vector<1x1x8x512xbf16> to vector<8x512xbf16>
      %41 = arith.extf %40 : vector<8x512xbf16> to vector<8x512xf32>
      %42 = arith.truncf %34 : vector<8x128xf32> to vector<8x128xbf16>
      %cst_21 = arith.constant dense<0.000000e+00> : vector<8x512xf32>
      %43 = tpu.matmul %42, %4, %cst_21 {dimension_numbers = #tpu.dot_dimension_numbers<[1], [0], [0], [1], [0, 0, 1, 1], [], []>} : vector<8x128xbf16>, vector<128x512xbf16>, vector<8x512xf32> -> vector<8x512xf32>
      %44 = arith.addf %41, %43 : vector<8x512xf32>
      %45 = vector.extract_strided_slice %44 {offsets = [0, 0], sizes = [8, 384], strides = [1, 1]} : vector<8x512xf32> to vector<8x384xf32>
      %46 = arith.negf %45 : vector<8x384xf32>
      %47 = math.exp %46 : vector<8x384xf32>
      %cst_22 = arith.constant 1.000000e+00 : f32
      %48 = vector.broadcast %cst_22 : f32 to vector<8x384xf32>
      %49 = arith.addf %48, %47 : vector<8x384xf32>
      %50 = arith.divf %48, %49 : vector<8x384xf32>
      %51 = vector.extract_strided_slice %44 {offsets = [0, 384], sizes = [8, 128], strides = [1, 1]} : vector<8x512xf32> to vector<8x128xf32>
      %52 = math.tanh %51 : vector<8x128xf32>
      %53 = vector.extract_strided_slice %50 {offsets = [0, 128], sizes = [8, 128], strides = [1, 1]} : vector<8x384xf32> to vector<8x128xf32>
      %54 = arith.mulf %53, %31 : vector<8x128xf32>
      %55 = vector.extract_strided_slice %50 {offsets = [0, 0], sizes = [8, 128], strides = [1, 1]} : vector<8x384xf32> to vector<8x128xf32>
      %56 = arith.mulf %55, %52 : vector<8x128xf32>
      %57 = arith.addf %54, %56 : vector<8x128xf32>
      %58 = vector.extract_strided_slice %50 {offsets = [0, 256], sizes = [8, 128], strides = [1, 1]} : vector<8x384xf32> to vector<8x128xf32>
      %59 = math.tanh %57 : vector<8x128xf32>
      %60 = arith.mulf %58, %59 : vector<8x128xf32>
      %61 = arith.truncf %60 : vector<8x128xf32> to vector<8x128xbf16>
      %c0_23 = arith.constant 0 : index
      %c6_24 = arith.constant 6 : index
      %c0_25 = arith.constant 0 : index
      %c0_26 = arith.constant 0 : index
      %62 = vector.load %arg4[%c0_23, %c6_24, %c0_25, %c0_26] : memref<1x8x8x128xbf16, #tpu.memory_space<vmem>>, vector<1x1x8x128xbf16>
      %63 = vector.shape_cast %62 : vector<1x1x8x128xbf16> to vector<8x128xbf16>
      %64 = vector.shape_cast %61 : vector<8x128xbf16> to vector<1x1x8x128xbf16>
      tpu.vector_store %arg4[%c0_23, %c6_24, %c0_25, %c0_26], %64 {strides = array<i32>} : memref<1x8x8x128xbf16, #tpu.memory_space<vmem>>, vector<1x1x8x128xbf16>,
      %c0_27 = arith.constant 0 : index
      %c5 = arith.constant 5 : index
      %c0_28 = arith.constant 0 : index
      %c0_29 = arith.constant 0 : index
      %65 = vector.load %arg2[%c0_27, %c5, %c0_28, %c0_29] : memref<1x8x8x512xbf16, #tpu.memory_space<vmem>>, vector<1x1x8x512xbf16>
      %66 = vector.shape_cast %65 : vector<1x1x8x512xbf16> to vector<8x512xbf16>
      %67 = arith.extf %66 : vector<8x512xbf16> to vector<8x512xf32>
      %68 = arith.truncf %60 : vector<8x128xf32> to vector<8x128xbf16>
      %cst_30 = arith.constant dense<0.000000e+00> : vector<8x512xf32>
      %69 = tpu.matmul %68, %4, %cst_30 {dimension_numbers = #tpu.dot_dimension_numbers<[1], [0], [0], [1], [0, 0, 1, 1], [], []>} : vector<8x128xbf16>, vector<128x512xbf16>, vector<8x512xf32> -> vector<8x512xf32>
      %70 = arith.addf %67, %69 : vector<8x512xf32>
      %71 = vector.extract_strided_slice %70 {offsets = [0, 0], sizes = [8, 384], strides = [1, 1]} : vector<8x512xf32> to vector<8x384xf32>
      %72 = arith.negf %71 : vector<8x384xf32>
      %73 = math.exp %72 : vector<8x384xf32>
      %cst_31 = arith.constant 1.000000e+00 : f32
      %74 = vector.broadcast %cst_31 : f32 to vector<8x384xf32>
      %75 = arith.addf %74, %73 : vector<8x384xf32>
      %76 = arith.divf %74, %75 : vector<8x384xf32>
      %77 = vector.extract_strided_slice %70 {offsets = [0, 384], sizes = [8, 128], strides = [1, 1]} : vector<8x512xf32> to vector<8x128xf32>
      %78 = math.tanh %77 : vector<8x128xf32>
      %79 = vector.extract_strided_slice %76 {offsets = [0, 128], sizes = [8, 128], strides = [1, 1]} : vector<8x384xf32> to vector<8x128xf32>
      %80 = arith.mulf %79, %57 : vector<8x128xf32>
      %81 = vector.extract_strided_slice %76 {offsets = [0, 0], sizes = [8, 128], strides = [1, 1]} : vector<8x384xf32> to vector<8x128xf32>
      %82 = arith.mulf %81, %78 : vector<8x128xf32>
      %83 = arith.addf %80, %82 : vector<8x128xf32>
      %84 = vector.extract_strided_slice %76 {offsets = [0, 256], sizes = [8, 128], strides = [1, 1]} : vector<8x384xf32> to vector<8x128xf32>
      %85 = math.tanh %83 : vector<8x128xf32>
      %86 = arith.mulf %84, %85 : vector<8x128xf32>
      %87 = arith.truncf %86 : vector<8x128xf32> to vector<8x128xbf16>
      %c0_32 = arith.constant 0 : index
      %c5_33 = arith.constant 5 : index
      %c0_34 = arith.constant 0 : index
      %c0_35 = arith.constant 0 : index
      %88 = vector.load %arg4[%c0_32, %c5_33, %c0_34, %c0_35] : memref<1x8x8x128xbf16, #tpu.memory_space<vmem>>, vector<1x1x8x128xbf16>
      %89 = vector.shape_cast %88 : vector<1x1x8x128xbf16> to vector<8x128xbf16>
      %90 = vector.shape_cast %87 : vector<8x128xbf16> to vector<1x1x8x128xbf16>
      tpu.vector_store %arg4[%c0_32, %c5_33, %c0_34, %c0_35], %90 {strides = array<i32>} : memref<1x8x8x128xbf16, #tpu.memory_space<vmem>>, vector<1x1x8x128xbf16>,
      %c0_36 = arith.constant 0 : index
      %c4 = arith.constant 4 : index
      %c0_37 = arith.constant 0 : index
      %c0_38 = arith.constant 0 : index
      %91 = vector.load %arg2[%c0_36, %c4, %c0_37, %c0_38] : memref<1x8x8x512xbf16, #tpu.memory_space<vmem>>, vector<1x1x8x512xbf16>
      %92 = vector.shape_cast %91 : vector<1x1x8x512xbf16> to vector<8x512xbf16>
      %93 = arith.extf %92 : vector<8x512xbf16> to vector<8x512xf32>
      %94 = arith.truncf %86 : vector<8x128xf32> to vector<8x128xbf16>
      %cst_39 = arith.constant dense<0.000000e+00> : vector<8x512xf32>
      %95 = tpu.matmul %94, %4, %cst_39 {dimension_numbers = #tpu.dot_dimension_numbers<[1], [0], [0], [1], [0, 0, 1, 1], [], []>} : vector<8x128xbf16>, vector<128x512xbf16>, vector<8x512xf32> -> vector<8x512xf32>
      %96 = arith.addf %93, %95 : vector<8x512xf32>
      %97 = vector.extract_strided_slice %96 {offsets = [0, 0], sizes = [8, 384], strides = [1, 1]} : vector<8x512xf32> to vector<8x384xf32>
      %98 = arith.negf %97 : vector<8x384xf32>
      %99 = math.exp %98 : vector<8x384xf32>
      %cst_40 = arith.constant 1.000000e+00 : f32
      %100 = vector.broadcast %cst_40 : f32 to vector<8x384xf32>
      %101 = arith.addf %100, %99 : vector<8x384xf32>
      %102 = arith.divf %100, %101 : vector<8x384xf32>
      %103 = vector.extract_strided_slice %96 {offsets = [0, 384], sizes = [8, 128], strides = [1, 1]} : vector<8x512xf32> to vector<8x128xf32>
      %104 = math.tanh %103 : vector<8x128xf32>
      %105 = vector.extract_strided_slice %102 {offsets = [0, 128], sizes = [8, 128], strides = [1, 1]} : vector<8x384xf32> to vector<8x128xf32>
      %106 = arith.mulf %105, %83 : vector<8x128xf32>
      %107 = vector.extract_strided_slice %102 {offsets = [0, 0], sizes = [8, 128], strides = [1, 1]} : vector<8x384xf32> to vector<8x128xf32>
      %108 = arith.mulf %107, %104 : vector<8x128xf32>
      %109 = arith.addf %106, %108 : vector<8x128xf32>
      %110 = vector.extract_strided_slice %102 {offsets = [0, 256], sizes = [8, 128], strides = [1, 1]} : vector<8x384xf32> to vector<8x128xf32>
      %111 = math.tanh %109 : vector<8x128xf32>
      %112 = arith.mulf %110, %111 : vector<8x128xf32>
      %113 = arith.truncf %112 : vector<8x128xf32> to vector<8x128xbf16>
      %c0_41 = arith.constant 0 : index
      %c4_42 = arith.constant 4 : index
      %c0_43 = arith.constant 0 : index
      %c0_44 = arith.constant 0 : index
      %114 = vector.load %arg4[%c0_41, %c4_42, %c0_43, %c0_44] : memref<1x8x8x128xbf16, #tpu.memory_space<vmem>>, vector<1x1x8x128xbf16>
      %115 = vector.shape_cast %114 : vector<1x1x8x128xbf16> to vector<8x128xbf16>
      %116 = vector.shape_cast %113 : vector<8x128xbf16> to vector<1x1x8x128xbf16>
      tpu.vector_store %arg4[%c0_41, %c4_42, %c0_43, %c0_44], %116 {strides = array<i32>} : memref<1x8x8x128xbf16, #tpu.memory_space<vmem>>, vector<1x1x8x128xbf16>,
      %c0_45 = arith.constant 0 : index
      %c3 = arith.constant 3 : index
      %c0_46 = arith.constant 0 : index
      %c0_47 = arith.constant 0 : index
      %117 = vector.load %arg2[%c0_45, %c3, %c0_46, %c0_47] : memref<1x8x8x512xbf16, #tpu.memory_space<vmem>>, vector<1x1x8x512xbf16>
      %118 = vector.shape_cast %117 : vector<1x1x8x512xbf16> to vector<8x512xbf16>
      %119 = arith.extf %118 : vector<8x512xbf16> to vector<8x512xf32>
      %120 = arith.truncf %112 : vector<8x128xf32> to vector<8x128xbf16>
      %cst_48 = arith.constant dense<0.000000e+00> : vector<8x512xf32>
      %121 = tpu.matmul %120, %4, %cst_48 {dimension_numbers = #tpu.dot_dimension_numbers<[1], [0], [0], [1], [0, 0, 1, 1], [], []>} : vector<8x128xbf16>, vector<128x512xbf16>, vector<8x512xf32> -> vector<8x512xf32>
      %122 = arith.addf %119, %121 : vector<8x512xf32>
      %123 = vector.extract_strided_slice %122 {offsets = [0, 0], sizes = [8, 384], strides = [1, 1]} : vector<8x512xf32> to vector<8x384xf32>
      %124 = arith.negf %123 : vector<8x384xf32>
      %125 = math.exp %124 : vector<8x384xf32>
      %cst_49 = arith.constant 1.000000e+00 : f32
      %126 = vector.broadcast %cst_49 : f32 to vector<8x384xf32>
      %127 = arith.addf %126, %125 : vector<8x384xf32>
      %128 = arith.divf %126, %127 : vector<8x384xf32>
      %129 = vector.extract_strided_slice %122 {offsets = [0, 384], sizes = [8, 128], strides = [1, 1]} : vector<8x512xf32> to vector<8x128xf32>
      %130 = math.tanh %129 : vector<8x128xf32>
      %131 = vector.extract_strided_slice %128 {offsets = [0, 128], sizes = [8, 128], strides = [1, 1]} : vector<8x384xf32> to vector<8x128xf32>
      %132 = arith.mulf %131, %109 : vector<8x128xf32>
      %133 = vector.extract_strided_slice %128 {offsets = [0, 0], sizes = [8, 128], strides = [1, 1]} : vector<8x384xf32> to vector<8x128xf32>
      %134 = arith.mulf %133, %130 : vector<8x128xf32>
      %135 = arith.addf %132, %134 : vector<8x128xf32>
      %136 = vector.extract_strided_slice %128 {offsets = [0, 256], sizes = [8, 128], strides = [1, 1]} : vector<8x384xf32> to vector<8x128xf32>
      %137 = math.tanh %135 : vector<8x128xf32>
      %138 = arith.mulf %136, %137 : vector<8x128xf32>
      %139 = arith.truncf %138 : vector<8x128xf32> to vector<8x128xbf16>
      %c0_50 = arith.constant 0 : index
      %c3_51 = arith.constant 3 : index
      %c0_52 = arith.constant 0 : index
      %c0_53 = arith.constant 0 : index
      %140 = vector.load %arg4[%c0_50, %c3_51, %c0_52, %c0_53] : memref<1x8x8x128xbf16, #tpu.memory_space<vmem>>, vector<1x1x8x128xbf16>
      %141 = vector.shape_cast %140 : vector<1x1x8x128xbf16> to vector<8x128xbf16>
      %142 = vector.shape_cast %139 : vector<8x128xbf16> to vector<1x1x8x128xbf16>
      tpu.vector_store %arg4[%c0_50, %c3_51, %c0_52, %c0_53], %142 {strides = array<i32>} : memref<1x8x8x128xbf16, #tpu.memory_space<vmem>>, vector<1x1x8x128xbf16>,
      %c0_54 = arith.constant 0 : index
      %c2 = arith.constant 2 : index
      %c0_55 = arith.constant 0 : index
      %c0_56 = arith.constant 0 : index
      %143 = vector.load %arg2[%c0_54, %c2, %c0_55, %c0_56] : memref<1x8x8x512xbf16, #tpu.memory_space<vmem>>, vector<1x1x8x512xbf16>
      %144 = vector.shape_cast %143 : vector<1x1x8x512xbf16> to vector<8x512xbf16>
      %145 = arith.extf %144 : vector<8x512xbf16> to vector<8x512xf32>
      %146 = arith.truncf %138 : vector<8x128xf32> to vector<8x128xbf16>
      %cst_57 = arith.constant dense<0.000000e+00> : vector<8x512xf32>
      %147 = tpu.matmul %146, %4, %cst_57 {dimension_numbers = #tpu.dot_dimension_numbers<[1], [0], [0], [1], [0, 0, 1, 1], [], []>} : vector<8x128xbf16>, vector<128x512xbf16>, vector<8x512xf32> -> vector<8x512xf32>
      %148 = arith.addf %145, %147 : vector<8x512xf32>
      %149 = vector.extract_strided_slice %148 {offsets = [0, 0], sizes = [8, 384], strides = [1, 1]} : vector<8x512xf32> to vector<8x384xf32>
      %150 = arith.negf %149 : vector<8x384xf32>
      %151 = math.exp %150 : vector<8x384xf32>
      %cst_58 = arith.constant 1.000000e+00 : f32
      %152 = vector.broadcast %cst_58 : f32 to vector<8x384xf32>
      %153 = arith.addf %152, %151 : vector<8x384xf32>
      %154 = arith.divf %152, %153 : vector<8x384xf32>
      %155 = vector.extract_strided_slice %148 {offsets = [0, 384], sizes = [8, 128], strides = [1, 1]} : vector<8x512xf32> to vector<8x128xf32>
      %156 = math.tanh %155 : vector<8x128xf32>
      %157 = vector.extract_strided_slice %154 {offsets = [0, 128], sizes = [8, 128], strides = [1, 1]} : vector<8x384xf32> to vector<8x128xf32>
      %158 = arith.mulf %157, %135 : vector<8x128xf32>
      %159 = vector.extract_strided_slice %154 {offsets = [0, 0], sizes = [8, 128], strides = [1, 1]} : vector<8x384xf32> to vector<8x128xf32>
      %160 = arith.mulf %159, %156 : vector<8x128xf32>
      %161 = arith.addf %158, %160 : vector<8x128xf32>
      %162 = vector.extract_strided_slice %154 {offsets = [0, 256], sizes = [8, 128], strides = [1, 1]} : vector<8x384xf32> to vector<8x128xf32>
      %163 = math.tanh %161 : vector<8x128xf32>
      %164 = arith.mulf %162, %163 : vector<8x128xf32>
      %165 = arith.truncf %164 : vector<8x128xf32> to vector<8x128xbf16>
      %c0_59 = arith.constant 0 : index
      %c2_60 = arith.constant 2 : index
      %c0_61 = arith.constant 0 : index
      %c0_62 = arith.constant 0 : index
      %166 = vector.load %arg4[%c0_59, %c2_60, %c0_61, %c0_62] : memref<1x8x8x128xbf16, #tpu.memory_space<vmem>>, vector<1x1x8x128xbf16>
      %167 = vector.shape_cast %166 : vector<1x1x8x128xbf16> to vector<8x128xbf16>
      %168 = vector.shape_cast %165 : vector<8x128xbf16> to vector<1x1x8x128xbf16>
      tpu.vector_store %arg4[%c0_59, %c2_60, %c0_61, %c0_62], %168 {strides = array<i32>} : memref<1x8x8x128xbf16, #tpu.memory_space<vmem>>, vector<1x1x8x128xbf16>,
      %c0_63 = arith.constant 0 : index
      %c1 = arith.constant 1 : index
      %c0_64 = arith.constant 0 : index
      %c0_65 = arith.constant 0 : index
      %169 = vector.load %arg2[%c0_63, %c1, %c0_64, %c0_65] : memref<1x8x8x512xbf16, #tpu.memory_space<vmem>>, vector<1x1x8x512xbf16>
      %170 = vector.shape_cast %169 : vector<1x1x8x512xbf16> to vector<8x512xbf16>
      %171 = arith.extf %170 : vector<8x512xbf16> to vector<8x512xf32>
      %172 = arith.truncf %164 : vector<8x128xf32> to vector<8x128xbf16>
      %cst_66 = arith.constant dense<0.000000e+00> : vector<8x512xf32>
      %173 = tpu.matmul %172, %4, %cst_66 {dimension_numbers = #tpu.dot_dimension_numbers<[1], [0], [0], [1], [0, 0, 1, 1], [], []>} : vector<8x128xbf16>, vector<128x512xbf16>, vector<8x512xf32> -> vector<8x512xf32>
      %174 = arith.addf %171, %173 : vector<8x512xf32>
      %175 = vector.extract_strided_slice %174 {offsets = [0, 0], sizes = [8, 384], strides = [1, 1]} : vector<8x512xf32> to vector<8x384xf32>
      %176 = arith.negf %175 : vector<8x384xf32>
      %177 = math.exp %176 : vector<8x384xf32>
      %cst_67 = arith.constant 1.000000e+00 : f32
      %178 = vector.broadcast %cst_67 : f32 to vector<8x384xf32>
      %179 = arith.addf %178, %177 : vector<8x384xf32>
      %180 = arith.divf %178, %179 : vector<8x384xf32>
      %181 = vector.extract_strided_slice %174 {offsets = [0, 384], sizes = [8, 128], strides = [1, 1]} : vector<8x512xf32> to vector<8x128xf32>
      %182 = math.tanh %181 : vector<8x128xf32>
      %183 = vector.extract_strided_slice %180 {offsets = [0, 128], sizes = [8, 128], strides = [1, 1]} : vector<8x384xf32> to vector<8x128xf32>
      %184 = arith.mulf %183, %161 : vector<8x128xf32>
      %185 = vector.extract_strided_slice %180 {offsets = [0, 0], sizes = [8, 128], strides = [1, 1]} : vector<8x384xf32> to vector<8x128xf32>
      %186 = arith.mulf %185, %182 : vector<8x128xf32>
      %187 = arith.addf %184, %186 : vector<8x128xf32>
      %188 = vector.extract_strided_slice %180 {offsets = [0, 256], sizes = [8, 128], strides = [1, 1]} : vector<8x384xf32> to vector<8x128xf32>
      %189 = math.tanh %187 : vector<8x128xf32>
      %190 = arith.mulf %188, %189 : vector<8x128xf32>
      %191 = arith.truncf %190 : vector<8x128xf32> to vector<8x128xbf16>
      %c0_68 = arith.constant 0 : index
      %c1_69 = arith.constant 1 : index
      %c0_70 = arith.constant 0 : index
      %c0_71 = arith.constant 0 : index
      %192 = vector.load %arg4[%c0_68, %c1_69, %c0_70, %c0_71] : memref<1x8x8x128xbf16, #tpu.memory_space<vmem>>, vector<1x1x8x128xbf16>
      %193 = vector.shape_cast %192 : vector<1x1x8x128xbf16> to vector<8x128xbf16>
      %194 = vector.shape_cast %191 : vector<8x128xbf16> to vector<1x1x8x128xbf16>
      tpu.vector_store %arg4[%c0_68, %c1_69, %c0_70, %c0_71], %194 {strides = array<i32>} : memref<1x8x8x128xbf16, #tpu.memory_space<vmem>>, vector<1x1x8x128xbf16>,
      %c0_72 = arith.constant 0 : index
      %c0_73 = arith.constant 0 : index
      %c0_74 = arith.constant 0 : index
      %c0_75 = arith.constant 0 : index
      %195 = vector.load %arg2[%c0_72, %c0_73, %c0_74, %c0_75] : memref<1x8x8x512xbf16, #tpu.memory_space<vmem>>, vector<1x1x8x512xbf16>
      %196 = vector.shape_cast %195 : vector<1x1x8x512xbf16> to vector<8x512xbf16>
      %197 = arith.extf %196 : vector<8x512xbf16> to vector<8x512xf32>
      %198 = arith.truncf %190 : vector<8x128xf32> to vector<8x128xbf16>
      %cst_76 = arith.constant dense<0.000000e+00> : vector<8x512xf32>
      %199 = tpu.matmul %198, %4, %cst_76 {dimension_numbers = #tpu.dot_dimension_numbers<[1], [0], [0], [1], [0, 0, 1, 1], [], []>} : vector<8x128xbf16>, vector<128x512xbf16>, vector<8x512xf32> -> vector<8x512xf32>
      %200 = arith.addf %197, %199 : vector<8x512xf32>
      %201 = vector.extract_strided_slice %200 {offsets = [0, 0], sizes = [8, 384], strides = [1, 1]} : vector<8x512xf32> to vector<8x384xf32>
      %202 = arith.negf %201 : vector<8x384xf32>
      %203 = math.exp %202 : vector<8x384xf32>
      %cst_77 = arith.constant 1.000000e+00 : f32
      %204 = vector.broadcast %cst_77 : f32 to vector<8x384xf32>
      %205 = arith.addf %204, %203 : vector<8x384xf32>
      %206 = arith.divf %204, %205 : vector<8x384xf32>
      %207 = vector.extract_strided_slice %200 {offsets = [0, 384], sizes = [8, 128], strides = [1, 1]} : vector<8x512xf32> to vector<8x128xf32>
      %208 = math.tanh %207 : vector<8x128xf32>
      %209 = vector.extract_strided_slice %206 {offsets = [0, 128], sizes = [8, 128], strides = [1, 1]} : vector<8x384xf32> to vector<8x128xf32>
      %210 = arith.mulf %209, %187 : vector<8x128xf32>
      %211 = vector.extract_strided_slice %206 {offsets = [0, 0], sizes = [8, 128], strides = [1, 1]} : vector<8x384xf32> to vector<8x128xf32>
      %212 = arith.mulf %211, %208 : vector<8x128xf32>
      %213 = arith.addf %210, %212 : vector<8x128xf32>
      %214 = vector.extract_strided_slice %206 {offsets = [0, 256], sizes = [8, 128], strides = [1, 1]} : vector<8x384xf32> to vector<8x128xf32>
      %215 = math.tanh %213 : vector<8x128xf32>
      %216 = arith.mulf %214, %215 : vector<8x128xf32>
      %217 = arith.truncf %216 : vector<8x128xf32> to vector<8x128xbf16>
      %c0_78 = arith.constant 0 : index
      %c0_79 = arith.constant 0 : index
      %c0_80 = arith.constant 0 : index
      %c0_81 = arith.constant 0 : index
      %218 = vector.load %arg4[%c0_78, %c0_79, %c0_80, %c0_81] : memref<1x8x8x128xbf16, #tpu.memory_space<vmem>>, vector<1x1x8x128xbf16>
      %219 = vector.shape_cast %218 : vector<1x1x8x128xbf16> to vector<8x128xbf16>
      %220 = vector.shape_cast %217 : vector<8x128xbf16> to vector<1x1x8x128xbf16>
      tpu.vector_store %arg4[%c0_78, %c0_79, %c0_80, %c0_81], %220 {strides = array<i32>} : memref<1x8x8x128xbf16, #tpu.memory_space<vmem>>, vector<1x1x8x128xbf16>,
      %c0_82 = arith.constant 0 : index
      %c0_83 = arith.constant 0 : index
      %221 = vector.load %arg5[%c0_82, %c0_83] : memref<8x128xf32, #tpu.memory_space<vmem>>, vector<8x128xf32>
      tpu.vector_store %arg5[%c0_82, %c0_83], %216 {strides = array<i32>} : memref<8x128xf32, #tpu.memory_space<vmem>>, vector<8x128xf32>,
      %c0_84 = arith.constant 0 : index
      %c0_85 = arith.constant 0 : index
      %222 = vector.load %arg6[%c0_84, %c0_85] : memref<8x128xf32, #tpu.memory_space<vmem>>, vector<8x128xf32>
      tpu.vector_store %arg6[%c0_84, %c0_85], %213 {strides = array<i32>} : memref<8x128xf32, #tpu.memory_space<vmem>>, vector<8x128xf32>,
    } else {
    }
    return
  }
  func.func @transform_0(%arg0: i32, %arg1: i32) -> (i32, i32, i32, i32) {
    %c1_i32 = arith.constant 1 : i32
    %0 = arith.subi %c1_i32, %arg0 : i32
    %1 = arith.muli %0, %arg1 : i32
    %c1_i32_0 = arith.constant 1 : i32
    %2 = arith.subi %c1_i32_0, %arg1 : i32
    %3 = arith.muli %arg0, %2 : i32
    %4 = arith.addi %1, %3 : i32
    %c0_i32 = arith.constant 0 : i32
    %c0_i32_1 = arith.constant 0 : i32
    %c0_i32_2 = arith.constant 0 : i32
    return %arg0, %4, %c0_i32, %c0_i32_1 : i32, i32, i32, i32
  }
  func.func @transform_1(%arg0: i32, %arg1: i32) -> (i32, i32, i32) {
    %c0_i32 = arith.constant 0 : i32
    %c0_i32_0 = arith.constant 0 : i32
    %c0_i32_1 = arith.constant 0 : i32
    return %arg0, %c0_i32, %c0_i32_0 : i32, i32, i32
  }
  func.func @transform_2(%arg0: i32, %arg1: i32) -> (i32, i32, i32, i32) {
    %c1_i32 = arith.constant 1 : i32
    %0 = arith.subi %c1_i32, %arg0 : i32
    %1 = arith.muli %0, %arg1 : i32
    %c1_i32_0 = arith.constant 1 : i32
    %2 = arith.subi %c1_i32_0, %arg1 : i32
    %3 = arith.muli %arg0, %2 : i32
    %4 = arith.addi %1, %3 : i32
    %c0_i32 = arith.constant 0 : i32
    %c0_i32_1 = arith.constant 0 : i32
    %c0_i32_2 = arith.constant 0 : i32
    return %arg0, %4, %c0_i32, %c0_i32_1 : i32, i32, i32, i32
  }
}

module attributes {stable_mosaic.version = 11 : i64} {
  func.func @_grouped_mm_kernel(%arg0: i32, %arg1: i32, %arg2: i32, %arg3: memref<128x128xbf16, #tpu.memory_space<vmem>>, %arg4: memref<128x128xbf16, #tpu.memory_space<vmem>>, %arg5: memref<1x128x512xbf16, #tpu.memory_space<vmem>>, %arg6: memref<1x128x512xbf16, #tpu.memory_space<vmem>>, %arg7: memref<1x1x512xf32, #tpu.memory_space<vmem>>, %arg8: memref<1x128x512xbf16, #tpu.memory_space<vmem>>) attributes {dimension_semantics = [#tpu.dimension_semantics<parallel>, #tpu.dimension_semantics<parallel>, #tpu.dimension_semantics<parallel>], iteration_bounds = array<i64: 2, 1, 1>, scalar_prefetch = 0 : i64, scratch_operands = 0 : i64, tpu.core_type = #tpu.core_type<tc>, window_params = [{transform_indices = @transform_0, window_bounds = array<i64: 128, 128>}, {transform_indices = @transform_1, window_bounds = array<i64: 128, 128>}, {transform_indices = @transform_2, window_bounds = array<i64: 1, 128, 512>}, {transform_indices = @transform_3, window_bounds = array<i64: 1, 128, 512>}, {transform_indices = @transform_4, window_bounds = array<i64: 1, 1, 512>}, {transform_indices = @transform_5, window_bounds = array<i64: 1, 128, 512>}]} {
    %c0 = arith.constant 0 : index
    %c0_0 = arith.constant 0 : index
    %0 = vector.load %arg3[%c0, %c0_0] : memref<128x128xbf16, #tpu.memory_space<vmem>>, vector<128x128xbf16>
    %c0_1 = arith.constant 0 : index
    %c0_2 = arith.constant 0 : index
    %c0_3 = arith.constant 0 : index
    %1 = vector.load %arg5[%c0_1, %c0_2, %c0_3] : memref<1x128x512xbf16, #tpu.memory_space<vmem>>, vector<1x128x512xbf16>
    %2 = vector.shape_cast %1 : vector<1x128x512xbf16> to vector<128x512xbf16>
    %cst = arith.constant dense<0.000000e+00> : vector<128x512xf32>
    %3 = tpu.matmul %0, %2, %cst {dimension_numbers = #tpu.dot_dimension_numbers<[1], [0], [0], [1], [0, 0, 1, 1], [], []>} : vector<128x128xbf16>, vector<128x512xbf16>, vector<128x512xf32> -> vector<128x512xf32>
    %c0_4 = arith.constant 0 : index
    %c0_5 = arith.constant 0 : index
    %4 = vector.load %arg4[%c0_4, %c0_5] : memref<128x128xbf16, #tpu.memory_space<vmem>>, vector<128x128xbf16>
    %c0_6 = arith.constant 0 : index
    %c0_7 = arith.constant 0 : index
    %c0_8 = arith.constant 0 : index
    %5 = vector.load %arg6[%c0_6, %c0_7, %c0_8] : memref<1x128x512xbf16, #tpu.memory_space<vmem>>, vector<1x128x512xbf16>
    %6 = vector.shape_cast %5 : vector<1x128x512xbf16> to vector<128x512xbf16>
    %cst_9 = arith.constant dense<0.000000e+00> : vector<128x512xf32>
    %7 = tpu.matmul %4, %6, %cst_9 {dimension_numbers = #tpu.dot_dimension_numbers<[1], [0], [0], [1], [0, 0, 1, 1], [], []>} : vector<128x128xbf16>, vector<128x512xbf16>, vector<128x512xf32> -> vector<128x512xf32>
    %8 = arith.addf %3, %7 : vector<128x512xf32>
    %c0_10 = arith.constant 0 : index
    %c0_11 = arith.constant 0 : index
    %c0_12 = arith.constant 0 : index
    %9 = vector.load %arg7[%c0_10, %c0_11, %c0_12] : memref<1x1x512xf32, #tpu.memory_space<vmem>>, vector<1x1x512xf32>
    %10 = vector.shape_cast %9 : vector<1x1x512xf32> to vector<1x512xf32>
    %11 = vector.broadcast %10 : vector<1x512xf32> to vector<128x512xf32>
    %12 = arith.addf %8, %11 : vector<128x512xf32>
    %13 = arith.truncf %12 : vector<128x512xf32> to vector<128x512xbf16>
    %c0_13 = arith.constant 0 : index
    %c0_14 = arith.constant 0 : index
    %c0_15 = arith.constant 0 : index
    %14 = vector.load %arg8[%c0_13, %c0_14, %c0_15] : memref<1x128x512xbf16, #tpu.memory_space<vmem>>, vector<1x128x512xbf16>
    %15 = vector.shape_cast %14 : vector<1x128x512xbf16> to vector<128x512xbf16>
    %16 = vector.shape_cast %13 : vector<128x512xbf16> to vector<1x128x512xbf16>
    tpu.vector_store %arg8[%c0_13, %c0_14, %c0_15], %16 {strides = array<i32>} : memref<1x128x512xbf16, #tpu.memory_space<vmem>>, vector<1x128x512xbf16>,
    return
  }
  func.func @transform_0(%arg0: i32, %arg1: i32, %arg2: i32) -> (i32, i32) {
    %c0_i32 = arith.constant 0 : i32
    %c0_i32_0 = arith.constant 0 : i32
    return %arg2, %c0_i32 : i32, i32
  }
  func.func @transform_1(%arg0: i32, %arg1: i32, %arg2: i32) -> (i32, i32) {
    %c0_i32 = arith.constant 0 : i32
    %c0_i32_0 = arith.constant 0 : i32
    return %arg2, %c0_i32 : i32, i32
  }
  func.func @transform_2(%arg0: i32, %arg1: i32, %arg2: i32) -> (i32, i32, i32) {
    %c0_i32 = arith.constant 0 : i32
    %c0_i32_0 = arith.constant 0 : i32
    return %arg0, %c0_i32, %arg1 : i32, i32, i32
  }
  func.func @transform_3(%arg0: i32, %arg1: i32, %arg2: i32) -> (i32, i32, i32) {
    %c0_i32 = arith.constant 0 : i32
    %c0_i32_0 = arith.constant 0 : i32
    return %arg0, %c0_i32, %arg1 : i32, i32, i32
  }
  func.func @transform_4(%arg0: i32, %arg1: i32, %arg2: i32) -> (i32, i32, i32) {
    %c0_i32 = arith.constant 0 : i32
    %c0_i32_0 = arith.constant 0 : i32
    return %arg0, %c0_i32, %arg1 : i32, i32, i32
  }
  func.func @transform_5(%arg0: i32, %arg1: i32, %arg2: i32) -> (i32, i32, i32) {
    %c0_i32 = arith.constant 0 : i32
    return %arg0, %arg2, %arg1 : i32, i32, i32
  }
}

module attributes {stable_mosaic.version = 11 : i64} {
  func.func @_grouped_mm_kernel(%arg0: i32, %arg1: i32, %arg2: i32, %arg3: memref<128x128xbf16, #tpu.memory_space<vmem>>, %arg4: memref<128x128xbf16, #tpu.memory_space<vmem>>, %arg5: memref<1x128x128xbf16, #tpu.memory_space<vmem>>, %arg6: memref<1x128x128xbf16, #tpu.memory_space<vmem>>, %arg7: memref<1x1x128xf32, #tpu.memory_space<vmem>>, %arg8: memref<1x128x128xf32, #tpu.memory_space<vmem>>) attributes {dimension_semantics = [#tpu.dimension_semantics<parallel>, #tpu.dimension_semantics<parallel>, #tpu.dimension_semantics<parallel>], iteration_bounds = array<i64: 1, 1, 1>, scalar_prefetch = 0 : i64, scratch_operands = 0 : i64, tpu.core_type = #tpu.core_type<tc>, window_params = [{transform_indices = @transform_0, window_bounds = array<i64: 128, 128>}, {transform_indices = @transform_1, window_bounds = array<i64: 128, 128>}, {transform_indices = @transform_2, window_bounds = array<i64: 1, 128, 128>}, {transform_indices = @transform_3, window_bounds = array<i64: 1, 128, 128>}, {transform_indices = @transform_4, window_bounds = array<i64: 1, 1, 128>}, {transform_indices = @transform_5, window_bounds = array<i64: 1, 128, 128>}]} {
    %c0 = arith.constant 0 : index
    %c0_0 = arith.constant 0 : index
    %0 = vector.load %arg3[%c0, %c0_0] : memref<128x128xbf16, #tpu.memory_space<vmem>>, vector<128x128xbf16>
    %c0_1 = arith.constant 0 : index
    %c0_2 = arith.constant 0 : index
    %c0_3 = arith.constant 0 : index
    %1 = vector.load %arg5[%c0_1, %c0_2, %c0_3] : memref<1x128x128xbf16, #tpu.memory_space<vmem>>, vector<1x128x128xbf16>
    %2 = vector.shape_cast %1 : vector<1x128x128xbf16> to vector<128x128xbf16>
    %cst = arith.constant dense<0.000000e+00> : vector<128x128xf32>
    %3 = tpu.matmul %0, %2, %cst {dimension_numbers = #tpu.dot_dimension_numbers<[1], [0], [0], [1], [0, 0, 1, 1], [], []>} : vector<128x128xbf16>, vector<128x128xbf16>, vector<128x128xf32> -> vector<128x128xf32>
    %c0_4 = arith.constant 0 : index
    %c0_5 = arith.constant 0 : index
    %4 = vector.load %arg4[%c0_4, %c0_5] : memref<128x128xbf16, #tpu.memory_space<vmem>>, vector<128x128xbf16>
    %c0_6 = arith.constant 0 : index
    %c0_7 = arith.constant 0 : index
    %c0_8 = arith.constant 0 : index
    %5 = vector.load %arg6[%c0_6, %c0_7, %c0_8] : memref<1x128x128xbf16, #tpu.memory_space<vmem>>, vector<1x128x128xbf16>
    %6 = vector.shape_cast %5 : vector<1x128x128xbf16> to vector<128x128xbf16>
    %cst_9 = arith.constant dense<0.000000e+00> : vector<128x128xf32>
    %7 = tpu.matmul %4, %6, %cst_9 {dimension_numbers = #tpu.dot_dimension_numbers<[1], [0], [0], [1], [0, 0, 1, 1], [], []>} : vector<128x128xbf16>, vector<128x128xbf16>, vector<128x128xf32> -> vector<128x128xf32>
    %8 = arith.addf %3, %7 : vector<128x128xf32>
    %c0_10 = arith.constant 0 : index
    %c0_11 = arith.constant 0 : index
    %c0_12 = arith.constant 0 : index
    %9 = vector.load %arg7[%c0_10, %c0_11, %c0_12] : memref<1x1x128xf32, #tpu.memory_space<vmem>>, vector<1x1x128xf32>
    %10 = vector.shape_cast %9 : vector<1x1x128xf32> to vector<1x128xf32>
    %11 = vector.broadcast %10 : vector<1x128xf32> to vector<128x128xf32>
    %12 = arith.addf %8, %11 : vector<128x128xf32>
    %13 = math.tanh %12 : vector<128x128xf32>
    %c0_13 = arith.constant 0 : index
    %c0_14 = arith.constant 0 : index
    %c0_15 = arith.constant 0 : index
    %14 = vector.load %arg8[%c0_13, %c0_14, %c0_15] : memref<1x128x128xf32, #tpu.memory_space<vmem>>, vector<1x128x128xf32>
    %15 = vector.shape_cast %14 : vector<1x128x128xf32> to vector<128x128xf32>
    %16 = vector.shape_cast %13 : vector<128x128xf32> to vector<1x128x128xf32>
    tpu.vector_store %arg8[%c0_13, %c0_14, %c0_15], %16 {strides = array<i32>} : memref<1x128x128xf32, #tpu.memory_space<vmem>>, vector<1x128x128xf32>,
    return
  }
  func.func @transform_0(%arg0: i32, %arg1: i32, %arg2: i32) -> (i32, i32) {
    %c0_i32 = arith.constant 0 : i32
    %c0_i32_0 = arith.constant 0 : i32
    return %arg2, %c0_i32 : i32, i32
  }
  func.func @transform_1(%arg0: i32, %arg1: i32, %arg2: i32) -> (i32, i32) {
    %c0_i32 = arith.constant 0 : i32
    %c0_i32_0 = arith.constant 0 : i32
    return %arg2, %c0_i32 : i32, i32
  }
  func.func @transform_2(%arg0: i32, %arg1: i32, %arg2: i32) -> (i32, i32, i32) {
    %c0_i32 = arith.constant 0 : i32
    %c0_i32_0 = arith.constant 0 : i32
    return %arg0, %c0_i32, %arg1 : i32, i32, i32
  }
  func.func @transform_3(%arg0: i32, %arg1: i32, %arg2: i32) -> (i32, i32, i32) {
    %c0_i32 = arith.constant 0 : i32
    %c0_i32_0 = arith.constant 0 : i32
    return %arg0, %c0_i32, %arg1 : i32, i32, i32
  }
  func.func @transform_4(%arg0: i32, %arg1: i32, %arg2: i32) -> (i32, i32, i32) {
    %c0_i32 = arith.constant 0 : i32
    %c0_i32_0 = arith.constant 0 : i32
    return %arg0, %c0_i32, %arg1 : i32, i32, i32
  }
  func.func @transform_5(%arg0: i32, %arg1: i32, %arg2: i32) -> (i32, i32, i32) {
    %c0_i32 = arith.constant 0 : i32
    return %arg0, %arg2, %arg1 : i32, i32, i32
  }
}

</mosaic_0001>

<llo_original>
// kernel: dpcl_forward.5
$region0: #{dpcl_forward.5}
  #allocation0 [shape = 'u32[]', space=smem, size = 0x4, offset = 0x4, fixed_abs, tag = 'smem constant byte address 0x4 - core index']
  #allocation1 [shape = 'u32[144,128]{1,0:T(1,128)}', space=vmem, size = 0x12000, scoped, tag = 'internal scratch']
  %s0 = inlined_call_operand.vmem [shape: f32[128,16], index: 0, kind: input, shape index: {}]
  %s1 = inlined_call_operand.vmem [shape: bf16[2,16,512], index: 1, kind: input, shape index: {}]
  %s2 = inlined_call_operand.vmem [shape: f32[2,1,512], index: 2, kind: input, shape index: {}]
  %s3 = inlined_call_operand.vmem [shape: bf16[2,128,512], index: 3, kind: output, shape index: {}]
  %s4 = sld [smem:[#allocation0]]
  $region45: #{dpcl_forward.5} parent=0
    _
  %s6 = ssub.s32 1, %s4
  %s7 = scalar_select 0, %s6, %s4
  loop: start=0, step=1, limit=4
  $region2: #{dpcl_forward.5} parent=0 // loop_pre_header
    _
  $region3: #{dpcl_forward.5} parent=0 // loop_header
    %s9 = sphi 0, %s13
    %p10 = scmp.ge.s32.totalorder %s9, 4
    %s16 = sphi 0, %s35
    %s17 = sphi 0, %s31
    %s18 = sphi 0, %s27
    %s19 = sphi 0, %s16
    %s20 = sphi 0, %s17
    %s21 = sphi 0, %s18
    %s22 = sphi 0, %s19
    %s23 = sphi 0, %s20
    %s24 = sphi 0, %s21
    %s38 = sphi 0, %s40
    %s41 = sphi 0, %s38
    %s42 = sphi 0, %s41
    %s58 = sphi 0, %s42
    %s66 = sphi 0, %s68
    %s69 = sphi 0, %s66
    %s70 = sphi 0, %s69
    %s86 = sphi 0, %s70
    %s94 = sphi 0, %s96
    %s97 = sphi 0, %s94
    %s98 = sphi 0, %s97
    %s114 = sphi 0, %s98
    %s124 = sphi 0, %s126
    %s127 = sphi 0, %s124
    %s128 = sphi 0, %s127
    %s144 = sphi 0, %s128
  $region4: #{dpcl_forward.5} parent=0 // loop_header_branch
    %12 = sbr.rel (%p10) target = $region8
  $region5: #{dpcl_forward.5} parent=0 // loop_body
    %s14 = ssub.s32 %s9, 1
    %s15 = ssub.s32 %s9, 2
    %s25 = sadd.s32 1, %s18
    %p26 = scmp.ge.s32.totalorder %s25, 1
    %s27 = scalar_select %p26, 0, %s25
    %s28 = sadd.s32 1, %s17
    %s29 = scalar_select %p26, %s28, %s17
    %p30 = scmp.ge.s32.totalorder %s29, 1
    %s31 = scalar_select %p30, 0, %s29
    %s32 = sadd.s32 1, %s16
    %s33 = scalar_select %p30, %s32, %s16
    %p34 = scmp.ge.s32.totalorder %s33, 2
    %s35 = scalar_select %p34, 0, %s33
    %s36 = ssub.s32 %s18, %s27
    %p37 = scmp.eq.s32.totalorder %s36, 0
    %s39 = sadd.s32 %s38, 1
    %s40 = scalar_select %p37, %s38, %s39
    %p43 = pneg %p37
    %p44 = scmp.eq.s32.totalorder %s9, 1
    %p45 = por %p43, %p44
    %p46 = scmp.ne.s32.totalorder %s38, %s41
    %p47 = scmp.eq.s32.totalorder %s9, 0
    %p48 = por %p46, %p47
    %p49 = scmp.ne.s32.totalorder %s38, %s41
    %p50 = scmp.eq.s32.totalorder %s14, 1
    %p51 = por %p49, %p50
    %p52 = scmp.ne.s32.totalorder %s41, %s42
    %p53 = scmp.eq.s32.totalorder %s14, 0
    %p54 = por %p52, %p53
    %p55 = scmp.ne.s32.totalorder %s41, %s42
    %p56 = scmp.eq.s32.totalorder %s15, 1
    %p57 = por %p55, %p56
    %p59 = scmp.ne.s32.totalorder %s42, %s58
    %p60 = scmp.eq.s32.totalorder %s15, 0
    %p61 = por %p59, %p60
    %s62 = ssub.s32 %s16, %s35
    %s63 = ssub.s32 %s17, %s31
    %s64 = sor.u32 %s62, %s63
    %p65 = scmp.eq.s32.totalorder %s64, 0
    %s67 = sadd.s32 %s66, 1
    %s68 = scalar_select %p65, %s66, %s67
    %p71 = pneg %p65
    %p72 = scmp.eq.s32.totalorder %s9, 1
    %p73 = por %p71, %p72
    %p74 = scmp.ne.s32.totalorder %s66, %s69
    %p75 = scmp.eq.s32.totalorder %s9, 0
    %p76 = por %p74, %p75
    %p77 = scmp.ne.s32.totalorder %s66, %s69
    %p78 = scmp.eq.s32.totalorder %s14, 1
    %p79 = por %p77, %p78
    %p80 = scmp.ne.s32.totalorder %s69, %s70
    %p81 = scmp.eq.s32.totalorder %s14, 0
    %p82 = por %p80, %p81
    %p83 = scmp.ne.s32.totalorder %s69, %s70
    %p84 = scmp.eq.s32.totalorder %s15, 1
    %p85 = por %p83, %p84
    %p87 = scmp.ne.s32.totalorder %s70, %s86
    %p88 = scmp.eq.s32.totalorder %s15, 0
    %p89 = por %p87, %p88
    %s90 = ssub.s32 %s16, %s35
    %s91 = ssub.s32 %s17, %s31
    %s92 = sor.u32 %s90, %s91
    %p93 = scmp.eq.s32.totalorder %s92, 0
    %s95 = sadd.s32 %s94, 1
    %s96 = scalar_select %p93, %s94, %s95
    %p99 = pneg %p93
    %p100 = scmp.eq.s32.totalorder %s9, 1
    %p101 = por %p99, %p100
    %p102 = scmp.ne.s32.totalorder %s94, %s97
    %p103 = scmp.eq.s32.totalorder %s9, 0
    %p104 = por %p102, %p103
    %p105 = scmp.ne.s32.totalorder %s94, %s97
    %p106 = scmp.eq.s32.totalorder %s14, 1
    %p107 = por %p105, %p106
    %p108 = scmp.ne.s32.totalorder %s97, %s98
    %p109 = scmp.eq.s32.totalorder %s14, 0
    %p110 = por %p108, %p109
    %p111 = scmp.ne.s32.totalorder %s97, %s98
    %p112 = scmp.eq.s32.totalorder %s15, 1
    %p113 = por %p111, %p112
    %p115 = scmp.ne.s32.totalorder %s98, %s114
    %p116 = scmp.eq.s32.totalorder %s15, 0
    %p117 = por %p115, %p116
    %s118 = ssub.s32 %s16, %s35
    %s119 = ssub.s32 %s18, %s27
    %s120 = sor.u32 %s118, %s119
    %s121 = ssub.s32 %s17, %s31
    %s122 = sor.u32 %s120, %s121
    %p123 = scmp.eq.s32.totalorder %s122, 0
    %s125 = sadd.s32 %s124, 1
    %s126 = scalar_select %p123, %s124, %s125
    %p129 = pneg %p123
    %p130 = scmp.eq.s32.totalorder %s9, 1
    %p131 = por %p129, %p130
    %p132 = scmp.ne.s32.totalorder %s124, %s127
    %p133 = scmp.eq.s32.totalorder %s9, 0
    %p134 = por %p132, %p133
    %p135 = scmp.ne.s32.totalorder %s124, %s127
    %p136 = scmp.eq.s32.totalorder %s14, 1
    %p137 = por %p135, %p136
    %p138 = scmp.ne.s32.totalorder %s127, %s128
    %p139 = scmp.eq.s32.totalorder %s14, 0
    %p140 = por %p138, %p139
    %p141 = scmp.ne.s32.totalorder %s127, %s128
    %p142 = scmp.eq.s32.totalorder %s15, 1
    %p143 = por %p141, %p142
    %p145 = scmp.ne.s32.totalorder %s128, %s144
    %p146 = scmp.eq.s32.totalorder %s15, 0
    %p147 = por %p145, %p146
    %p148 = scmp.le.s32.totalorder 1, %s9
    %p149 = scmp.lt.s32.totalorder %s9, 3
    %p150 = pnand %p148, %p149
    %p151 = pneg %p150
    // Predicated region
    $region9: #{dpcl_forward.5} parent=5 // pred_check
      _
    $region10: #{dpcl_forward.5} parent=5 // pred_check_branch
      %153 = sbr.rel (%p150) target = $region12
    $region11: #{dpcl_forward.5} parent=5 // pred_region
      %s154 = ssub.s32 %s9, 1
      // Predicated region
      $region13: #{dpcl_forward.5} parent=11 // pred_check
        %p155 = pneg %p54
      $region14: #{dpcl_forward.5} parent=11 // pred_check_branch
        %157 = sbr.rel (%p155) target = $region16
      $region15: #{dpcl_forward.5} parent=11 // pred_region
        %s158 = smul.u32 16, %s21
        %p159 = scmp.lt.s32.totalorder %s158, 15
        %s160 = scalar_select %p159, %s158, 15
        %s161 = smul.addr %s160, 8
        %s162 = scalar_lea.vmem %s0, %s161
        %s163 = smul.u32 16, %s21
      $region16: #{dpcl_forward.5} parent=11 // pred_fallthru
        _
    $region12: #{dpcl_forward.5} parent=5 // pred_fallthru
      _
    %p164 = scmp.lt.s32.totalorder %s9, 2
    // Predicated region
    $region17: #{dpcl_forward.5} parent=5 // pred_check
      %p165 = pneg %p164
    $region18: #{dpcl_forward.5} parent=5 // pred_check_branch
      %167 = sbr.rel (%p165) target = $region20
    $region19: #{dpcl_forward.5} parent=5 // pred_region
      // Predicated region
      $region21: #{dpcl_forward.5} parent=19 // pred_check
        %p168 = pneg %p76
      $region22: #{dpcl_forward.5} parent=19 // pred_check_branch
        %170 = sbr.rel (%p168) target = $region24
      $region23: #{dpcl_forward.5} parent=19 // pred_region
        %s171 = smul.u32 4, %s17
        %p172 = scmp.lt.s32.totalorder %s16, 1
        %s173 = scalar_select %p172, %s16, 1
        %p174 = scmp.lt.s32.totalorder %s171, 3
        %s175 = scalar_select %p174, %s171, 3
        %s176 = smul.addr %s173, 8
        %s177 = sadd.s32 %s175, %s176
        %s178 = smul.addr %s177, 4
        %s179 = scalar_lea.vmem %s1, %s178
        %s180 = smul.u32 4, %s17
      $region24: #{dpcl_forward.5} parent=19 // pred_fallthru
        _
      // Predicated region
      $region25: #{dpcl_forward.5} parent=19 // pred_check
        %p181 = pneg %p104
      $region26: #{dpcl_forward.5} parent=19 // pred_check_branch
        %183 = sbr.rel (%p181) target = $region28
      $region27: #{dpcl_forward.5} parent=19 // pred_region
        %s184 = smul.u32 4, %s17
        %p185 = scmp.lt.s32.totalorder %s16, 1
        %s186 = scalar_select %p185, %s16, 1
        %p187 = scmp.lt.s32.totalorder %s184, 3
        %s188 = scalar_select %p187, %s184, 3
        %s189 = smul.addr %s186, 4
        %s190 = sadd.s32 %s188, %s189
        %s191 = scalar_lea.vmem %s2, %s190
        %s192 = smul.u32 4, %s17
      $region28: #{dpcl_forward.5} parent=19 // pred_fallthru
        _
    $region20: #{dpcl_forward.5} parent=5 // pred_fallthru
      _
    %p193 = scmp.le.s32.totalorder 1, %s9
    %p194 = scmp.lt.s32.totalorder %s9, 3
    %p195 = pnand %p193, %p194
    %p196 = pneg %p195
    // Predicated region
    $region29: #{dpcl_forward.5} parent=5 // pred_check
      _
    $region30: #{dpcl_forward.5} parent=5 // pred_check_branch
      %198 = sbr.rel (%p195) target = $region32
    $region31: #{dpcl_forward.5} parent=5 // pred_region
      %s199 = ssub.s32 %s9, 1
      %s200 = smul.u32 16, %s21
      %p201 = scmp.lt.s32.totalorder %s200, 15
      %s202 = scalar_select %p201, %s200, 15
      %s203 = smul.addr %s202, 8
      %s204 = scalar_lea.vmem %s0, %s203
      %p205 = pneg %p54
      %p206 = pneg %p51
      %s207 = smul.u32 4, %s20
      %p208 = scmp.lt.s32.totalorder %s19, 1
      %s209 = scalar_select %p208, %s19, 1
      %p210 = scmp.lt.s32.totalorder %s207, 3
      %s211 = scalar_select %p210, %s207, 3
      %s212 = smul.addr %s209, 8
      %s213 = sadd.s32 %s211, %s212
      %s214 = smul.addr %s213, 4
      %s215 = scalar_lea.vmem %s1, %s214
      %p216 = pneg %p82
      %p217 = pneg %p79
      %s218 = smul.u32 4, %s20
      %p219 = scmp.lt.s32.totalorder %s19, 1
      %s220 = scalar_select %p219, %s19, 1
      %p221 = scmp.lt.s32.totalorder %s218, 3
      %s222 = scalar_select %p221, %s218, 3
      %s223 = smul.addr %s220, 4
      %s224 = sadd.s32 %s222, %s223
      %s225 = scalar_lea.vmem %s2, %s224
      %p226 = pneg %p110
      %p227 = pneg %p107
      %p228 = pneg %p140
      %p229 = pneg %p137
      %s230 = smul.u32 16, %s21
      %s231 = smul.u32 4, %s20
      %p232 = scmp.lt.s32.totalorder %s19, 1
      %s233 = scalar_select %p232, %s19, 1
      %p234 = scmp.lt.s32.totalorder %s230, 15
      %s235 = scalar_select %p234, %s230, 15
      %p236 = scmp.lt.s32.totalorder %s231, 3
      %s237 = scalar_select %p236, %s231, 3
      %s238 = smul.addr %s235, 4
      %s239 = sadd.s32 %s237, %s238
      %s240 = smul.addr %s233, 64
      %s241 = sadd.s32 %s239, %s240
      %s242 = smul.addr %s241, 4
      %s243 = scalar_lea.vmem %s3, %s242
      %s244 = smul.u32 16, %s21
      %p245 = scmp.lt.s32.totalorder %s244, 15
      %s246 = scalar_select %p245, %s244, 15
      %s247 = smul.addr %s246, 8
      %s248 = scalar_lea.vmem %s0, %s247
      %s249 = smul.u32 16, %s21
      %s250 = smul.u32 4, %s20
      %p251 = scmp.lt.s32.totalorder %s19, 1
      %s252 = scalar_select %p251, %s19, 1
      %p253 = scmp.lt.s32.totalorder %s250, 3
      %s254 = scalar_select %p253, %s250, 3
      %s255 = smul.addr %s252, 8
      %s256 = sadd.s32 %s254, %s255
      %s257 = smul.addr %s256, 4
      %s258 = scalar_lea.vmem %s1, %s257
      %s259 = smul.u32 4, %s20
      %s260 = smul.u32 4, %s20
      %p261 = scmp.lt.s32.totalorder %s19, 1
      %s262 = scalar_select %p261, %s19, 1
      %p263 = scmp.lt.s32.totalorder %s260, 3
      %s264 = scalar_select %p263, %s260, 3
      %s265 = smul.addr %s262, 4
      %s266 = sadd.s32 %s264, %s265
      %s267 = scalar_lea.vmem %s2, %s266
      %s268 = smul.u32 4, %s20
      %s269 = smul.u32 16, %s21
      %s270 = smul.u32 4, %s20
      %p271 = scmp.lt.s32.totalorder %s19, 1
      %s272 = scalar_select %p271, %s19, 1
      %p273 = scmp.lt.s32.totalorder %s269, 15
      %s274 = scalar_select %p273, %s269, 15
      %p275 = scmp.lt.s32.totalorder %s270, 3
      %s276 = scalar_select %p275, %s270, 3
      %s277 = smul.addr %s274, 4
      %s278 = sadd.s32 %s276, %s277
      %s279 = smul.addr %s272, 64
      %s280 = sadd.s32 %s278, %s279
      %s281 = smul.addr %s280, 4
      %s282 = scalar_lea.vmem %s3, %s281
      %s283 = smul.u32 16, %s21
      %s284 = smul.u32 4, %s20
      %v286 = vld [vmem:[%s248] sm:$0xff]
      %v287 = vld [vmem:[%s248 + $0x8] sm:$0xff]
      %v288 = vld [vmem:[%s248 + $0x10] sm:$0xff]
      %v289 = vld [vmem:[%s248 + $0x18] sm:$0xff]
      %v290 = vld [vmem:[%s248 + $0x20] sm:$0xff]
      %v291 = vld [vmem:[%s248 + $0x28] sm:$0xff]
      %v292 = vld [vmem:[%s248 + $0x30] sm:$0xff]
      %v293 = vld [vmem:[%s248 + $0x38] sm:$0xff]
      %v294 = vld [vmem:[%s248 + $0x40] sm:$0xff]
      %v295 = vld [vmem:[%s248 + $0x48] sm:$0xff]
      %v296 = vld [vmem:[%s248 + $0x50] sm:$0xff]
      %v297 = vld [vmem:[%s248 + $0x58] sm:$0xff]
      %v298 = vld [vmem:[%s248 + $0x60] sm:$0xff]
      %v299 = vld [vmem:[%s248 + $0x68] sm:$0xff]
      %v300 = vld [vmem:[%s248 + $0x70] sm:$0xff]
      %v301 = vld [vmem:[%s248 + $0x78] sm:$0xff]
      %v302 = vpack.c.bf16 %v287, %v286
      %v303 = vpack.c.bf16 %v289, %v288
      %v304 = vpack.c.bf16 %v291, %v290
      %v305 = vpack.c.bf16 %v293, %v292
      %v306 = vpack.c.bf16 %v295, %v294
      %v307 = vpack.c.bf16 %v297, %v296
      %v308 = vpack.c.bf16 %v299, %v298
      %v309 = vpack.c.bf16 %v301, %v300
      %v310 = vld [vmem:[%s258] sm:$0xff]
      %v311 = vld [vmem:[%s258 + $0x8] sm:$0xff]
      %v312 = vld [vmem:[%s258 + $0x10] sm:$0xff]
      %v313 = vld [vmem:[%s258 + $0x18] sm:$0xff]
      %v314 = vld [vmem:[%s267] sm:$0xf]
      %v316 = vlaneseq
      %v317 = vshrl.u32 %v316, 7
      %v318 = vsub.s32 0, %v317
      %v319 = vrot.slane %v314, %v318
      %v320 = vlaneseq
      %v321 = vshrl.u32 %v320, 7
      %v322 = vsub.s32 1, %v321
      %v323 = vrot.slane %v314, %v322
      %v324 = vlaneseq
      %v325 = vshrl.u32 %v324, 7
      %v326 = vsub.s32 2, %v325
      %v327 = vrot.slane %v314, %v326
      %v328 = vlaneseq
      %v329 = vshrl.u32 %v328, 7
      %v330 = vsub.s32 3, %v329
      %v331 = vrot.slane %v314, %v330
      %v340 = vunpack.c.l.b16 %v310
      %v341 = vunpack.c.h.b16 %v310
      %v342 = vunpack.c.l.b16 %v311
      %v343 = vunpack.c.h.b16 %v311
      %v344 = vunpack.c.l.b16 %v312
      %v345 = vunpack.c.h.b16 %v312
      %v346 = vunpack.c.l.b16 %v313
      %v347 = vunpack.c.h.b16 %v313
      %v348 = vpack.c.b16 %v344, %v340
      %v349 = vpack.c.b16 %v345, %v341
      %v350 = vpack.c.b16 %v346, %v342
      %v351 = vpack.c.b16 %v347, %v343
      %vm356 = vcmask 130048
      %v358 = vsel %vm356, %v302, 0
      %v361 = vsel %vm356, %v303, 0
      %v364 = vsel %vm356, %v304, 0
      %v367 = vsel %vm356, %v305, 0
      %v370 = vsel %vm356, %v306, 0
      %v373 = vsel %vm356, %v307, 0
      %v376 = vsel %vm356, %v308, 0
      %v379 = vsel %vm356, %v309, 0
      %381 = vmatprep.subr.bf16.mxu0 %v349
      %382 = vmatpush1.bf16.msra.mxu0 %v348
      %383 = vmatprep.subr.bf16.mxu0 0
      %384 = vmatpush1.bf16.msra.mxu0 0
      %385 = vmatprep.subr.bf16.mxu0 0
      %386 = vmatpush1.bf16.msra.mxu0 0
      %387 = vmatprep.subr.bf16.mxu0 0
      %388 = vmatpush1.bf16.msra.mxu0 0
      %389 = vmatprep.subr.bf16.mxu0 0
      %390 = vmatpush1.bf16.msra.mxu0 0
      %391 = vmatprep.subr.bf16.mxu0 0
      %392 = vmatpush1.bf16.msra.mxu0 0
      %393 = vmatprep.subr.bf16.mxu0 0
      %394 = vmatpush1.bf16.msra.mxu0 0
      %395 = vmatprep.subr.bf16.mxu0 0
      %396 = vmatpush1.bf16.msra.mxu0 0
      %397 = vmatprep.subr.bf16.mxu0 0
      %398 = vmatpush1.bf16.msra.mxu0 0
      %399 = vmatprep.subr.bf16.mxu0 0
      %400 = vmatpush1.bf16.msra.mxu0 0
      %401 = vmatprep.subr.bf16.mxu0 0
      %402 = vmatpush1.bf16.msra.mxu0 0
      %403 = vmatprep.subr.bf16.mxu0 0
      %404 = vmatpush1.bf16.msra.mxu0 0
      %405 = vmatprep.subr.bf16.mxu0 0
      %406 = vmatpush1.bf16.msra.mxu0 0
      %407 = vmatprep.subr.bf16.mxu0 0
      %408 = vmatpush1.bf16.msra.mxu0 0
      %409 = vmatprep.subr.bf16.mxu0 0
      %410 = vmatpush1.bf16.msra.mxu0 0
      %411 = vmatprep.subr.bf16.mxu0 0
      %412 = vmatpush1.bf16.msra.mxu0 0
      %413 = vmatprep.mubr.bf16.mxu0 0
      %414 = vmatmul.mubr.bf16.gmra.mrb[0].mxu0 %v358
      %v415 = vpop.f32.mrb[0].mxu0
      %v416 = vadd.f32 %v319, %v415
      %v417 = vpop.f32.mrb[0].mxu0
      %v418 = vadd.f32 %v323, %v417
      %v419 = vpop.f32.mrb[0].mxu0
      %v420 = vadd.f32 %v319, %v419
      %v421 = vpop.f32.mrb[0].mxu0
      %v422 = vadd.f32 %v323, %v421
      %423 = vmatprep.mubr.bf16.mxu0 0
      %424 = vmatmul.mubr.bf16.gmra.mrb[0].mxu0 %v361
      %v425 = vpop.f32.mrb[0].mxu0
      %v426 = vadd.f32 %v319, %v425
      %v427 = vpop.f32.mrb[0].mxu0
      %v428 = vadd.f32 %v323, %v427
      %v429 = vpop.f32.mrb[0].mxu0
      %v430 = vadd.f32 %v319, %v429
      %v431 = vpop.f32.mrb[0].mxu0
      %v432 = vadd.f32 %v323, %v431
      %433 = vmatprep.mubr.bf16.mxu0 0
      %434 = vmatmul.mubr.bf16.gmra.mrb[0].mxu0 %v364
      %v435 = vpop.f32.mrb[0].mxu0
      %v436 = vadd.f32 %v319, %v435
      %v437 = vpop.f32.mrb[0].mxu0
      %v438 = vadd.f32 %v323, %v437
      %v439 = vpop.f32.mrb[0].mxu0
      %v440 = vadd.f32 %v319, %v439
      %v441 = vpop.f32.mrb[0].mxu0
      %v442 = vadd.f32 %v323, %v441
      %443 = vmatprep.mubr.bf16.mxu0 0
      %444 = vmatmul.mubr.bf16.gmra.mrb[0].mxu0 %v367
      %v445 = vpop.f32.mrb[0].mxu0
      %v446 = vadd.f32 %v319, %v445
      %v447 = vpop.f32.mrb[0].mxu0
      %v448 = vadd.f32 %v323, %v447
      %v449 = vpop.f32.mrb[0].mxu0
      %v450 = vadd.f32 %v319, %v449
      %v451 = vpop.f32.mrb[0].mxu0
      %v452 = vadd.f32 %v323, %v451
      %453 = vmatprep.mubr.bf16.mxu0 0
      %454 = vmatmul.mubr.bf16.gmra.mrb[0].mxu0 %v370
      %v455 = vpop.f32.mrb[0].mxu0
      %v456 = vadd.f32 %v319, %v455
      %v457 = vpop.f32.mrb[0].mxu0
      %v458 = vadd.f32 %v323, %v457
      %v459 = vpop.f32.mrb[0].mxu0
      %v460 = vadd.f32 %v319, %v459
      %v461 = vpop.f32.mrb[0].mxu0
      %v462 = vadd.f32 %v323, %v461
      %463 = vmatprep.mubr.bf16.mxu0 0
      %464 = vmatmul.mubr.bf16.gmra.mrb[0].mxu0 %v373
      %v465 = vpop.f32.mrb[0].mxu0
      %v466 = vadd.f32 %v319, %v465
      %v467 = vpop.f32.mrb[0].mxu0
      %v468 = vadd.f32 %v323, %v467
      %v469 = vpop.f32.mrb[0].mxu0
      %v470 = vadd.f32 %v319, %v469
      %v471 = vpop.f32.mrb[0].mxu0
      %v472 = vadd.f32 %v323, %v471
      %473 = vmatprep.mubr.bf16.mxu0 0
      %474 = vmatmul.mubr.bf16.gmra.mrb[0].mxu0 %v376
      %v475 = vpop.f32.mrb[0].mxu0
      %v476 = vadd.f32 %v319, %v475
      %v477 = vpop.f32.mrb[0].mxu0
      %v478 = vadd.f32 %v323, %v477
      %v479 = vpop.f32.mrb[0].mxu0
      %v480 = vadd.f32 %v319, %v479
      %v481 = vpop.f32.mrb[0].mxu0
      %v482 = vadd.f32 %v323, %v481
      %483 = vmatprep.mubr.bf16.mxu0 0
      %484 = vmatmul.mubr.bf16.gmra.mrb[0].mxu0 %v379
      %v485 = vpop.f32.mrb[0].mxu0
      %v486 = vadd.f32 %v319, %v485
      %v487 = vpop.f32.mrb[0].mxu0
      %v488 = vadd.f32 %v323, %v487
      %v489 = vpop.f32.mrb[0].mxu0
      %v490 = vadd.f32 %v319, %v489
      %v491 = vpop.f32.mrb[0].mxu0
      %v492 = vadd.f32 %v323, %v491
      %493 = vdwg.mxu0
      %494 = vmatprep.subr.bf16.mxu0 %v351
      %495 = vmatpush1.bf16.msra.mxu0 %v350
      %496 = vmatprep.subr.bf16.mxu0 0
      %497 = vmatpush1.bf16.msra.mxu0 0
      %498 = vmatprep.subr.bf16.mxu0 0
      %499 = vmatpush1.bf16.msra.mxu0 0
      %500 = vmatprep.subr.bf16.mxu0 0
      %501 = vmatpush1.bf16.msra.mxu0 0
      %502 = vmatprep.subr.bf16.mxu0 0
      %503 = vmatpush1.bf16.msra.mxu0 0
      %504 = vmatprep.subr.bf16.mxu0 0
      %505 = vmatpush1.bf16.msra.mxu0 0
      %506 = vmatprep.subr.bf16.mxu0 0
      %507 = vmatpush1.bf16.msra.mxu0 0
      %508 = vmatprep.subr.bf16.mxu0 0
      %509 = vmatpush1.bf16.msra.mxu0 0
      %510 = vmatprep.subr.bf16.mxu0 0
      %511 = vmatpush1.bf16.msra.mxu0 0
      %512 = vmatprep.subr.bf16.mxu0 0
      %513 = vmatpush1.bf16.msra.mxu0 0
      %514 = vmatprep.subr.bf16.mxu0 0
      %515 = vmatpush1.bf16.msra.mxu0 0
      %516 = vmatprep.subr.bf16.mxu0 0
      %517 = vmatpush1.bf16.msra.mxu0 0
      %518 = vmatprep.subr.bf16.mxu0 0
      %519 = vmatpush1.bf16.msra.mxu0 0
      %520 = vmatprep.subr.bf16.mxu0 0
      %521 = vmatpush1.bf16.msra.mxu0 0
      %522 = vmatprep.subr.bf16.mxu0 0
      %523 = vmatpush1.bf16.msra.mxu0 0
      %524 = vmatprep.subr.bf16.mxu0 0
      %525 = vmatpush1.bf16.msra.mxu0 0
      %526 = vmatprep.mubr.bf16.mxu0 0
      %527 = vmatmul.mubr.bf16.gmra.mrb[0].mxu0 %v358
      %v528 = vpop.f32.mrb[0].mxu0
      %v529 = vadd.f32 %v327, %v528
      %v530 = vpop.f32.mrb[0].mxu0
      %v531 = vadd.f32 %v331, %v530
      %v532 = vpop.f32.mrb[0].mxu0
      %v533 = vadd.f32 %v327, %v532
      %v534 = vpop.f32.mrb[0].mxu0
      %v535 = vadd.f32 %v331, %v534
      %536 = vmatprep.mubr.bf16.mxu0 0
      %537 = vmatmul.mubr.bf16.gmra.mrb[0].mxu0 %v361
      %v538 = vpop.f32.mrb[0].mxu0
      %v539 = vadd.f32 %v327, %v538
      %v540 = vpop.f32.mrb[0].mxu0
      %v541 = vadd.f32 %v331, %v540
      %v542 = vpop.f32.mrb[0].mxu0
      %v543 = vadd.f32 %v327, %v542
      %v544 = vpop.f32.mrb[0].mxu0
      %v545 = vadd.f32 %v331, %v544
      %546 = vmatprep.mubr.bf16.mxu0 0
      %547 = vmatmul.mubr.bf16.gmra.mrb[0].mxu0 %v364
      %v548 = vpop.f32.mrb[0].mxu0
      %v549 = vadd.f32 %v327, %v548
      %v550 = vpop.f32.mrb[0].mxu0
      %v551 = vadd.f32 %v331, %v550
      %v552 = vpop.f32.mrb[0].mxu0
      %v553 = vadd.f32 %v327, %v552
      %v554 = vpop.f32.mrb[0].mxu0
      %v555 = vadd.f32 %v331, %v554
      %556 = vmatprep.mubr.bf16.mxu0 0
      %557 = vmatmul.mubr.bf16.gmra.mrb[0].mxu0 %v367
      %v558 = vpop.f32.mrb[0].mxu0
      %v559 = vadd.f32 %v327, %v558
      %v560 = vpop.f32.mrb[0].mxu0
      %v561 = vadd.f32 %v331, %v560
      %v562 = vpop.f32.mrb[0].mxu0
      %v563 = vadd.f32 %v327, %v562
      %v564 = vpop.f32.mrb[0].mxu0
      %v565 = vadd.f32 %v331, %v564
      %566 = vmatprep.mubr.bf16.mxu0 0
      %567 = vmatmul.mubr.bf16.gmra.mrb[0].mxu0 %v370
      %v568 = vpop.f32.mrb[0].mxu0
      %v569 = vadd.f32 %v327, %v568
      %v570 = vpop.f32.mrb[0].mxu0
      %v571 = vadd.f32 %v331, %v570
      %v572 = vpop.f32.mrb[0].mxu0
      %v573 = vadd.f32 %v327, %v572
      %v574 = vpop.f32.mrb[0].mxu0
      %v575 = vadd.f32 %v331, %v574
      %576 = vmatprep.mubr.bf16.mxu0 0
      %577 = vmatmul.mubr.bf16.gmra.mrb[0].mxu0 %v373
      %v578 = vpop.f32.mrb[0].mxu0
      %v579 = vadd.f32 %v327, %v578
      %v580 = vpop.f32.mrb[0].mxu0
      %v581 = vadd.f32 %v331, %v580
      %v582 = vpop.f32.mrb[0].mxu0
      %v583 = vadd.f32 %v327, %v582
      %v584 = vpop.f32.mrb[0].mxu0
      %v585 = vadd.f32 %v331, %v584
      %586 = vmatprep.mubr.bf16.mxu0 0
      %587 = vmatmul.mubr.bf16.gmra.mrb[0].mxu0 %v376
      %v588 = vpop.f32.mrb[0].mxu0
      %v589 = vadd.f32 %v327, %v588
      %v590 = vpop.f32.mrb[0].mxu0
      %v591 = vadd.f32 %v331, %v590
      %v592 = vpop.f32.mrb[0].mxu0
      %v593 = vadd.f32 %v327, %v592
      %v594 = vpop.f32.mrb[0].mxu0
      %v595 = vadd.f32 %v331, %v594
      %596 = vmatprep.mubr.bf16.mxu0 0
      %597 = vmatmul.mubr.bf16.gmra.mrb[0].mxu0 %v379
      %v598 = vpop.f32.mrb[0].mxu0
      %v599 = vadd.f32 %v327, %v598
      %v600 = vpop.f32.mrb[0].mxu0
      %v601 = vadd.f32 %v331, %v600
      %v602 = vpop.f32.mrb[0].mxu0
      %v603 = vadd.f32 %v327, %v602
      %v604 = vpop.f32.mrb[0].mxu0
      %v605 = vadd.f32 %v331, %v604
      %606 = vdwg.mxu0
      %v607 = vpack.c.bf16 %v420, %v416
      %v608 = vpack.c.bf16 %v422, %v418
      %v609 = vpack.c.bf16 %v533, %v529
      %v610 = vpack.c.bf16 %v535, %v531
      %v611 = vpack.c.bf16 %v430, %v426
      %v612 = vpack.c.bf16 %v432, %v428
      %v613 = vpack.c.bf16 %v543, %v539
      %v614 = vpack.c.bf16 %v545, %v541
      %v615 = vpack.c.bf16 %v440, %v436
      %v616 = vpack.c.bf16 %v442, %v438
      %v617 = vpack.c.bf16 %v553, %v549
      %v618 = vpack.c.bf16 %v555, %v551
      %v619 = vpack.c.bf16 %v450, %v446
      %v620 = vpack.c.bf16 %v452, %v448
      %v621 = vpack.c.bf16 %v563, %v559
      %v622 = vpack.c.bf16 %v565, %v561
      %v623 = vpack.c.bf16 %v460, %v456
      %v624 = vpack.c.bf16 %v462, %v458
      %v625 = vpack.c.bf16 %v573, %v569
      %v626 = vpack.c.bf16 %v575, %v571
      %v627 = vpack.c.bf16 %v470, %v466
      %v628 = vpack.c.bf16 %v472, %v468
      %v629 = vpack.c.bf16 %v583, %v579
      %v630 = vpack.c.bf16 %v585, %v581
      %v631 = vpack.c.bf16 %v480, %v476
      %v632 = vpack.c.bf16 %v482, %v478
      %v633 = vpack.c.bf16 %v593, %v589
      %v634 = vpack.c.bf16 %v595, %v591
      %v635 = vpack.c.bf16 %v490, %v486
      %v636 = vpack.c.bf16 %v492, %v488
      %v637 = vpack.c.bf16 %v603, %v599
      %v638 = vpack.c.bf16 %v605, %v601
      %v671 = vunpack.c.l.b16 %v607
      %v672 = vunpack.c.l.b16 %v608
      %v673 = vunpack.c.l.b16 %v609
      %v674 = vunpack.c.l.b16 %v610
      %v675 = vunpack.c.h.b16 %v607
      %v676 = vunpack.c.h.b16 %v608
      %v677 = vunpack.c.h.b16 %v609
      %v678 = vunpack.c.h.b16 %v610
      %v679 = vunpack.c.l.b16 %v611
      %v680 = vunpack.c.l.b16 %v612
      %v681 = vunpack.c.l.b16 %v613
      %v682 = vunpack.c.l.b16 %v614
      %v683 = vunpack.c.h.b16 %v611
      %v684 = vunpack.c.h.b16 %v612
      %v685 = vunpack.c.h.b16 %v613
      %v686 = vunpack.c.h.b16 %v614
      %v687 = vunpack.c.l.b16 %v615
      %v688 = vunpack.c.l.b16 %v616
      %v689 = vunpack.c.l.b16 %v617
      %v690 = vunpack.c.l.b16 %v618
      %v691 = vunpack.c.h.b16 %v615
      %v692 = vunpack.c.h.b16 %v616
      %v693 = vunpack.c.h.b16 %v617
      %v694 = vunpack.c.h.b16 %v618
      %v695 = vunpack.c.l.b16 %v619
      %v696 = vunpack.c.l.b16 %v620
      %v697 = vunpack.c.l.b16 %v621
      %v698 = vunpack.c.l.b16 %v622
      %v699 = vunpack.c.h.b16 %v619
      %v700 = vunpack.c.h.b16 %v620
      %v701 = vunpack.c.h.b16 %v621
      %v702 = vunpack.c.h.b16 %v622
      %v703 = vunpack.c.l.b16 %v623
      %v704 = vunpack.c.l.b16 %v624
      %v705 = vunpack.c.l.b16 %v625
      %v706 = vunpack.c.l.b16 %v626
      %v707 = vunpack.c.h.b16 %v623
      %v708 = vunpack.c.h.b16 %v624
      %v709 = vunpack.c.h.b16 %v625
      %v710 = vunpack.c.h.b16 %v626
      %v711 = vunpack.c.l.b16 %v627
      %v712 = vunpack.c.l.b16 %v628
      %v713 = vunpack.c.l.b16 %v629
      %v714 = vunpack.c.l.b16 %v630
      %v715 = vunpack.c.h.b16 %v627
      %v716 = vunpack.c.h.b16 %v628
      %v717 = vunpack.c.h.b16 %v629
      %v718 = vunpack.c.h.b16 %v630
      %v719 = vunpack.c.l.b16 %v631
      %v720 = vunpack.c.l.b16 %v632
      %v721 = vunpack.c.l.b16 %v633
      %v722 = vunpack.c.l.b16 %v634
      %v723 = vunpack.c.h.b16 %v631
      %v724 = vunpack.c.h.b16 %v632
      %v725 = vunpack.c.h.b16 %v633
      %v726 = vunpack.c.h.b16 %v634
      %v727 = vunpack.c.l.b16 %v635
      %v728 = vunpack.c.l.b16 %v636
      %v729 = vunpack.c.l.b16 %v637
      %v730 = vunpack.c.l.b16 %v638
      %v731 = vunpack.c.h.b16 %v635
      %v732 = vunpack.c.h.b16 %v636
      %v733 = vunpack.c.h.b16 %v637
      %v734 = vunpack.c.h.b16 %v638
      %v735 = vpack.c.b16 %v672, %v671
      %v736 = vpack.c.b16 %v674, %v673
      %v737 = vpack.c.b16 %v676, %v675
      %v738 = vpack.c.b16 %v678, %v677
      %v739 = vpack.c.b16 %v680, %v679
      %v740 = vpack.c.b16 %v682, %v681
      %v741 = vpack.c.b16 %v684, %v683
      %v742 = vpack.c.b16 %v686, %v685
      %v743 = vpack.c.b16 %v688, %v687
      %v744 = vpack.c.b16 %v690, %v689
      %v745 = vpack.c.b16 %v692, %v691
      %v746 = vpack.c.b16 %v694, %v693
      %v747 = vpack.c.b16 %v696, %v695
      %v748 = vpack.c.b16 %v698, %v697
      %v749 = vpack.c.b16 %v700, %v699
      %v750 = vpack.c.b16 %v702, %v701
      %v751 = vpack.c.b16 %v704, %v703
      %v752 = vpack.c.b16 %v706, %v705
      %v753 = vpack.c.b16 %v708, %v707
      %v754 = vpack.c.b16 %v710, %v709
      %v755 = vpack.c.b16 %v712, %v711
      %v756 = vpack.c.b16 %v714, %v713
      %v757 = vpack.c.b16 %v716, %v715
      %v758 = vpack.c.b16 %v718, %v717
      %v759 = vpack.c.b16 %v720, %v719
      %v760 = vpack.c.b16 %v722, %v721
      %v761 = vpack.c.b16 %v724, %v723
      %v762 = vpack.c.b16 %v726, %v725
      %v763 = vpack.c.b16 %v728, %v727
      %v764 = vpack.c.b16 %v730, %v729
      %v765 = vpack.c.b16 %v732, %v731
      %v766 = vpack.c.b16 %v734, %v733
      %799 = vst [vmem:[%s282] sm:$0xff] %v735
      %800 = vst [vmem:[%s282 + $0x8] sm:$0xff] %v736
      %801 = vst [vmem:[%s282 + $0x10] sm:$0xff] %v737
      %802 = vst [vmem:[%s282 + $0x18] sm:$0xff] %v738
      %803 = vst [vmem:[%s282 + $0x20] sm:$0xff] %v739
      %804 = vst [vmem:[%s282 + $0x28] sm:$0xff] %v740
      %805 = vst [vmem:[%s282 + $0x30] sm:$0xff] %v741
      %806 = vst [vmem:[%s282 + $0x38] sm:$0xff] %v742
      %807 = vst [vmem:[%s282 + $0x40] sm:$0xff] %v743
      %808 = vst [vmem:[%s282 + $0x48] sm:$0xff] %v744
      %809 = vst [vmem:[%s282 + $0x50] sm:$0xff] %v745
      %810 = vst [vmem:[%s282 + $0x58] sm:$0xff] %v746
      %811 = vst [vmem:[%s282 + $0x60] sm:$0xff] %v747
      %812 = vst [vmem:[%s282 + $0x68] sm:$0xff] %v748
      %813 = vst [vmem:[%s282 + $0x70] sm:$0xff] %v749
      %814 = vst [vmem:[%s282 + $0x78] sm:$0xff] %v750
      %815 = vst [vmem:[%s282 + $0x80] sm:$0xff] %v751
      %816 = vst [vmem:[%s282 + $0x88] sm:$0xff] %v752
      %817 = vst [vmem:[%s282 + $0x90] sm:$0xff] %v753
      %818 = vst [vmem:[%s282 + $0x98] sm:$0xff] %v754
      %819 = vst [vmem:[%s282 + $0xa0] sm:$0xff] %v755
      %820 = vst [vmem:[%s282 + $0xa8] sm:$0xff] %v756
      %821 = vst [vmem:[%s282 + $0xb0] sm:$0xff] %v757
      %822 = vst [vmem:[%s282 + $0xb8] sm:$0xff] %v758
      %823 = vst [vmem:[%s282 + $0xc0] sm:$0xff] %v759
      %824 = vst [vmem:[%s282 + $0xc8] sm:$0xff] %v760
      %825 = vst [vmem:[%s282 + $0xd0] sm:$0xff] %v761
      %826 = vst [vmem:[%s282 + $0xd8] sm:$0xff] %v762
      %827 = vst [vmem:[%s282 + $0xe0] sm:$0xff] %v763
      %828 = vst [vmem:[%s282 + $0xe8] sm:$0xff] %v764
      %829 = vst [vmem:[%s282 + $0xf0] sm:$0xff] %v765
      %830 = vst [vmem:[%s282 + $0xf8] sm:$0xff] %v766
      %s831 = smul.u32 16, %s21
      %s832 = smul.u32 4, %s20
      %p833 = scmp.lt.s32.totalorder %s19, 1
      %s834 = scalar_select %p833, %s19, 1
      %p835 = scmp.lt.s32.totalorder %s831, 15
      %s836 = scalar_select %p835, %s831, 15
      %p837 = scmp.lt.s32.totalorder %s832, 3
      %s838 = scalar_select %p837, %s832, 3
      %s839 = smul.addr %s836, 4
      %s840 = sadd.s32 %s838, %s839
      %s841 = smul.addr %s834, 64
      %s842 = sadd.s32 %s840, %s841
      %s843 = smul.addr %s842, 4
      %s844 = scalar_lea.vmem %s3, %s843
      // Predicated region
      $region33: #{dpcl_forward.5} parent=31 // pred_check
        %p845 = pneg %p137
      $region34: #{dpcl_forward.5} parent=31 // pred_check_branch
        %847 = sbr.rel (%p845) target = $region36
      $region35: #{dpcl_forward.5} parent=31 // pred_region
        %s848 = smul.u32 16, %s21
        %s849 = smul.u32 4, %s20
      $region36: #{dpcl_forward.5} parent=31 // pred_fallthru
        _
    $region32: #{dpcl_forward.5} parent=5 // pred_fallthru
      _
    %p850 = scmp.le.s32.totalorder 2, %s9
    // Predicated region
    $region37: #{dpcl_forward.5} parent=5 // pred_check
      %p851 = pneg %p850
    $region38: #{dpcl_forward.5} parent=5 // pred_check_branch
      %853 = sbr.rel (%p851) target = $region40
    $region39: #{dpcl_forward.5} parent=5 // pred_region
      %s854 = ssub.s32 %s9, 2
      // Predicated region
      $region41: #{dpcl_forward.5} parent=39 // pred_check
        %p855 = pneg %p143
      $region42: #{dpcl_forward.5} parent=39 // pred_check_branch
        %857 = sbr.rel (%p855) target = $region44
      $region43: #{dpcl_forward.5} parent=39 // pred_region
        %s858 = smul.u32 16, %s24
        %s859 = smul.u32 4, %s23
        %p860 = scmp.lt.s32.totalorder %s22, 1
        %s861 = scalar_select %p860, %s22, 1
        %p862 = scmp.lt.s32.totalorder %s858, 15
        %s863 = scalar_select %p862, %s858, 15
        %p864 = scmp.lt.s32.totalorder %s859, 3
        %s865 = scalar_select %p864, %s859, 3
        %s866 = smul.addr %s863, 4
        %s867 = sadd.s32 %s865, %s866
        %s868 = smul.addr %s861, 64
        %s869 = sadd.s32 %s867, %s868
        %s870 = smul.addr %s869, 4
        %s871 = scalar_lea.vmem %s3, %s870
      $region44: #{dpcl_forward.5} parent=39 // pred_fallthru
        _
    $region40: #{dpcl_forward.5} parent=5 // pred_fallthru
      _
  $region6: #{dpcl_forward.5} parent=0 // loop_footer
    %s13 = sadd.s32 1, %s9
  $region7: #{dpcl_forward.5} parent=0 // loop_footer_branch
    %8 = sbr.rel target = $region3
  $region8: #{dpcl_forward.5} parent=0 // loop_exit
    _

// kernel: dpcl_forward.7
$region0: #{dpcl_forward.7}
  #allocation0 [shape = 'u32[]', space=smem, size = 0x4, offset = 0x4, fixed_abs, tag = 'smem constant byte address 0x4 - core index']
  #allocation1 [shape = 'u32[144,128]{1,0:T(1,128)}', space=vmem, size = 0x12000, scoped, tag = 'internal scratch']
  %s0 = inlined_call_operand.vmem [shape: bf16[128,128], index: 0, kind: input, shape index: {}]
  %s1 = inlined_call_operand.vmem [shape: bf16[128,128], index: 1, kind: input, shape index: {}]
  %s2 = inlined_call_operand.vmem [shape: bf16[2,128,512], index: 2, kind: input, shape index: {}]
  %s3 = inlined_call_operand.vmem [shape: bf16[2,128,512], index: 3, kind: input, shape index: {}]
  %s4 = inlined_call_operand.vmem [shape: f32[2,1,512], index: 4, kind: input, shape index: {}]
  %s5 = inlined_call_operand.vmem [shape: bf16[2,128,512], index: 5, kind: output, shape index: {}]
  %s6 = sld [smem:[#allocation0]]
  $region53: #{dpcl_forward.7} parent=0
    _
  %s8 = ssub.s32 1, %s6
  %s9 = scalar_select 0, %s8, %s6
  loop: start=0, step=1, limit=4
  $region2: #{dpcl_forward.7} parent=0 // loop_pre_header
    _
  $region3: #{dpcl_forward.7} parent=0 // loop_header
    %s11 = sphi 0, %s15
    %p12 = scmp.ge.s32.totalorder %s11, 4
    %s18 = sphi 0, %s37
    %s19 = sphi 0, %s33
    %s20 = sphi 0, %s29
    %s21 = sphi 0, %s18
    %s22 = sphi 0, %s19
    %s23 = sphi 0, %s20
    %s24 = sphi 0, %s21
    %s25 = sphi 0, %s22
    %s26 = sphi 0, %s23
    %s40 = sphi 0, %s42
    %s43 = sphi 0, %s40
    %s44 = sphi 0, %s43
    %s60 = sphi 0, %s44
    %s66 = sphi 0, %s68
    %s69 = sphi 0, %s66
    %s70 = sphi 0, %s69
    %s86 = sphi 0, %s70
    %s94 = sphi 0, %s96
    %s97 = sphi 0, %s94
    %s98 = sphi 0, %s97
    %s114 = sphi 0, %s98
    %s122 = sphi 0, %s124
    %s125 = sphi 0, %s122
    %s126 = sphi 0, %s125
    %s142 = sphi 0, %s126
    %s150 = sphi 0, %s152
    %s153 = sphi 0, %s150
    %s154 = sphi 0, %s153
    %s170 = sphi 0, %s154
    %s180 = sphi 0, %s182
    %s183 = sphi 0, %s180
    %s184 = sphi 0, %s183
    %s200 = sphi 0, %s184
  $region4: #{dpcl_forward.7} parent=0 // loop_header_branch
    %14 = sbr.rel (%p12) target = $region8
  $region5: #{dpcl_forward.7} parent=0 // loop_body
    %s16 = ssub.s32 %s11, 1
    %s17 = ssub.s32 %s11, 2
    %s27 = sadd.s32 1, %s20
    %p28 = scmp.ge.s32.totalorder %s27, 1
    %s29 = scalar_select %p28, 0, %s27
    %s30 = sadd.s32 1, %s19
    %s31 = scalar_select %p28, %s30, %s19
    %p32 = scmp.ge.s32.totalorder %s31, 1
    %s33 = scalar_select %p32, 0, %s31
    %s34 = sadd.s32 1, %s18
    %s35 = scalar_select %p32, %s34, %s18
    %p36 = scmp.ge.s32.totalorder %s35, 2
    %s37 = scalar_select %p36, 0, %s35
    %s38 = ssub.s32 %s20, %s29
    %p39 = scmp.eq.s32.totalorder %s38, 0
    %s41 = sadd.s32 %s40, 1
    %s42 = scalar_select %p39, %s40, %s41
    %p45 = pneg %p39
    %p46 = scmp.eq.s32.totalorder %s11, 1
    %p47 = por %p45, %p46
    %p48 = scmp.ne.s32.totalorder %s40, %s43
    %p49 = scmp.eq.s32.totalorder %s11, 0
    %p50 = por %p48, %p49
    %p51 = scmp.ne.s32.totalorder %s40, %s43
    %p52 = scmp.eq.s32.totalorder %s16, 1
    %p53 = por %p51, %p52
    %p54 = scmp.ne.s32.totalorder %s43, %s44
    %p55 = scmp.eq.s32.totalorder %s16, 0
    %p56 = por %p54, %p55
    %p57 = scmp.ne.s32.totalorder %s43, %s44
    %p58 = scmp.eq.s32.totalorder %s17, 1
    %p59 = por %p57, %p58
    %p61 = scmp.ne.s32.totalorder %s44, %s60
    %p62 = scmp.eq.s32.totalorder %s17, 0
    %p63 = por %p61, %p62
    %s64 = ssub.s32 %s20, %s29
    %p65 = scmp.eq.s32.totalorder %s64, 0
    %s67 = sadd.s32 %s66, 1
    %s68 = scalar_select %p65, %s66, %s67
    %p71 = pneg %p65
    %p72 = scmp.eq.s32.totalorder %s11, 1
    %p73 = por %p71, %p72
    %p74 = scmp.ne.s32.totalorder %s66, %s69
    %p75 = scmp.eq.s32.totalorder %s11, 0
    %p76 = por %p74, %p75
    %p77 = scmp.ne.s32.totalorder %s66, %s69
    %p78 = scmp.eq.s32.totalorder %s16, 1
    %p79 = por %p77, %p78
    %p80 = scmp.ne.s32.totalorder %s69, %s70
    %p81 = scmp.eq.s32.totalorder %s16, 0
    %p82 = por %p80, %p81
    %p83 = scmp.ne.s32.totalorder %s69, %s70
    %p84 = scmp.eq.s32.totalorder %s17, 1
    %p85 = por %p83, %p84
    %p87 = scmp.ne.s32.totalorder %s70, %s86
    %p88 = scmp.eq.s32.totalorder %s17, 0
    %p89 = por %p87, %p88
    %s90 = ssub.s32 %s18, %s37
    %s91 = ssub.s32 %s19, %s33
    %s92 = sor.u32 %s90, %s91
    %p93 = scmp.eq.s32.totalorder %s92, 0
    %s95 = sadd.s32 %s94, 1
    %s96 = scalar_select %p93, %s94, %s95
    %p99 = pneg %p93
    %p100 = scmp.eq.s32.totalorder %s11, 1
    %p101 = por %p99, %p100
    %p102 = scmp.ne.s32.totalorder %s94, %s97
    %p103 = scmp.eq.s32.totalorder %s11, 0
    %p104 = por %p102, %p103
    %p105 = scmp.ne.s32.totalorder %s94, %s97
    %p106 = scmp.eq.s32.totalorder %s16, 1
    %p107 = por %p105, %p106
    %p108 = scmp.ne.s32.totalorder %s97, %s98
    %p109 = scmp.eq.s32.totalorder %s16, 0
    %p110 = por %p108, %p109
    %p111 = scmp.ne.s32.totalorder %s97, %s98
    %p112 = scmp.eq.s32.totalorder %s17, 1
    %p113 = por %p111, %p112
    %p115 = scmp.ne.s32.totalorder %s98, %s114
    %p116 = scmp.eq.s32.totalorder %s17, 0
    %p117 = por %p115, %p116
    %s118 = ssub.s32 %s18, %s37
    %s119 = ssub.s32 %s19, %s33
    %s120 = sor.u32 %s118, %s119
    %p121 = scmp.eq.s32.totalorder %s120, 0
    %s123 = sadd.s32 %s122, 1
    %s124 = scalar_select %p121, %s122, %s123
    %p127 = pneg %p121
    %p128 = scmp.eq.s32.totalorder %s11, 1
    %p129 = por %p127, %p128
    %p130 = scmp.ne.s32.totalorder %s122, %s125
    %p131 = scmp.eq.s32.totalorder %s11, 0
    %p132 = por %p130, %p131
    %p133 = scmp.ne.s32.totalorder %s122, %s125
    %p134 = scmp.eq.s32.totalorder %s16, 1
    %p135 = por %p133, %p134
    %p136 = scmp.ne.s32.totalorder %s125, %s126
    %p137 = scmp.eq.s32.totalorder %s16, 0
    %p138 = por %p136, %p137
    %p139 = scmp.ne.s32.totalorder %s125, %s126
    %p140 = scmp.eq.s32.totalorder %s17, 1
    %p141 = por %p139, %p140
    %p143 = scmp.ne.s32.totalorder %s126, %s142
    %p144 = scmp.eq.s32.totalorder %s17, 0
    %p145 = por %p143, %p144
    %s146 = ssub.s32 %s18, %s37
    %s147 = ssub.s32 %s19, %s33
    %s148 = sor.u32 %s146, %s147
    %p149 = scmp.eq.s32.totalorder %s148, 0
    %s151 = sadd.s32 %s150, 1
    %s152 = scalar_select %p149, %s150, %s151
    %p155 = pneg %p149
    %p156 = scmp.eq.s32.totalorder %s11, 1
    %p157 = por %p155, %p156
    %p158 = scmp.ne.s32.totalorder %s150, %s153
    %p159 = scmp.eq.s32.totalorder %s11, 0
    %p160 = por %p158, %p159
    %p161 = scmp.ne.s32.totalorder %s150, %s153
    %p162 = scmp.eq.s32.totalorder %s16, 1
    %p163 = por %p161, %p162
    %p164 = scmp.ne.s32.totalorder %s153, %s154
    %p165 = scmp.eq.s32.totalorder %s16, 0
    %p166 = por %p164, %p165
    %p167 = scmp.ne.s32.totalorder %s153, %s154
    %p168 = scmp.eq.s32.totalorder %s17, 1
    %p169 = por %p167, %p168
    %p171 = scmp.ne.s32.totalorder %s154, %s170
    %p172 = scmp.eq.s32.totalorder %s17, 0
    %p173 = por %p171, %p172
    %s174 = ssub.s32 %s18, %s37
    %s175 = ssub.s32 %s20, %s29
    %s176 = sor.u32 %s174, %s175
    %s177 = ssub.s32 %s19, %s33
    %s178 = sor.u32 %s176, %s177
    %p179 = scmp.eq.s32.totalorder %s178, 0
    %s181 = sadd.s32 %s180, 1
    %s182 = scalar_select %p179, %s180, %s181
    %p185 = pneg %p179
    %p186 = scmp.eq.s32.totalorder %s11, 1
    %p187 = por %p185, %p186
    %p188 = scmp.ne.s32.totalorder %s180, %s183
    %p189 = scmp.eq.s32.totalorder %s11, 0
    %p190 = por %p188, %p189
    %p191 = scmp.ne.s32.totalorder %s180, %s183
    %p192 = scmp.eq.s32.totalorder %s16, 1
    %p193 = por %p191, %p192
    %p194 = scmp.ne.s32.totalorder %s183, %s184
    %p195 = scmp.eq.s32.totalorder %s16, 0
    %p196 = por %p194, %p195
    %p197 = scmp.ne.s32.totalorder %s183, %s184
    %p198 = scmp.eq.s32.totalorder %s17, 1
    %p199 = por %p197, %p198
    %p201 = scmp.ne.s32.totalorder %s184, %s200
    %p202 = scmp.eq.s32.totalorder %s17, 0
    %p203 = por %p201, %p202
    %p204 = scmp.le.s32.totalorder 1, %s11
    %p205 = scmp.lt.s32.totalorder %s11, 3
    %p206 = pnand %p204, %p205
    %p207 = pneg %p206
    // Predicated region
    $region9: #{dpcl_forward.7} parent=5 // pred_check
      _
    $region10: #{dpcl_forward.7} parent=5 // pred_check_branch
      %209 = sbr.rel (%p206) target = $region12
    $region11: #{dpcl_forward.7} parent=5 // pred_region
      %s210 = ssub.s32 %s11, 1
      // Predicated region
      $region13: #{dpcl_forward.7} parent=11 // pred_check
        %p211 = pneg %p56
      $region14: #{dpcl_forward.7} parent=11 // pred_check_branch
        %213 = sbr.rel (%p211) target = $region16
      $region15: #{dpcl_forward.7} parent=11 // pred_region
        %s214 = smul.u32 16, %s23
        %p215 = scmp.lt.s32.totalorder %s214, 15
        %s216 = scalar_select %p215, %s214, 15
        %s217 = smul.addr %s216, 4
        %s218 = scalar_lea.vmem %s0, %s217
        %s219 = smul.u32 16, %s23
      $region16: #{dpcl_forward.7} parent=11 // pred_fallthru
        _
      // Predicated region
      $region17: #{dpcl_forward.7} parent=11 // pred_check
        %p220 = pneg %p82
      $region18: #{dpcl_forward.7} parent=11 // pred_check_branch
        %222 = sbr.rel (%p220) target = $region20
      $region19: #{dpcl_forward.7} parent=11 // pred_region
        %s223 = smul.u32 16, %s23
        %p224 = scmp.lt.s32.totalorder %s223, 15
        %s225 = scalar_select %p224, %s223, 15
        %s226 = smul.addr %s225, 4
        %s227 = scalar_lea.vmem %s1, %s226
        %s228 = smul.u32 16, %s23
      $region20: #{dpcl_forward.7} parent=11 // pred_fallthru
        _
    $region12: #{dpcl_forward.7} parent=5 // pred_fallthru
      _
    %p229 = scmp.lt.s32.totalorder %s11, 2
    // Predicated region
    $region21: #{dpcl_forward.7} parent=5 // pred_check
      %p230 = pneg %p229
    $region22: #{dpcl_forward.7} parent=5 // pred_check_branch
      %232 = sbr.rel (%p230) target = $region24
    $region23: #{dpcl_forward.7} parent=5 // pred_region
      // Predicated region
      $region25: #{dpcl_forward.7} parent=23 // pred_check
        %p233 = pneg %p104
      $region26: #{dpcl_forward.7} parent=23 // pred_check_branch
        %235 = sbr.rel (%p233) target = $region28
      $region27: #{dpcl_forward.7} parent=23 // pred_region
        %s236 = smul.u32 4, %s19
        %p237 = scmp.lt.s32.totalorder %s18, 1
        %s238 = scalar_select %p237, %s18, 1
        %p239 = scmp.lt.s32.totalorder %s236, 3
        %s240 = scalar_select %p239, %s236, 3
        %s241 = smul.addr %s238, 64
        %s242 = sadd.s32 %s240, %s241
        %s243 = smul.addr %s242, 4
        %s244 = scalar_lea.vmem %s2, %s243
        %s245 = smul.u32 4, %s19
      $region28: #{dpcl_forward.7} parent=23 // pred_fallthru
        _
      // Predicated region
      $region29: #{dpcl_forward.7} parent=23 // pred_check
        %p246 = pneg %p132
      $region30: #{dpcl_forward.7} parent=23 // pred_check_branch
        %248 = sbr.rel (%p246) target = $region32
      $region31: #{dpcl_forward.7} parent=23 // pred_region
        %s249 = smul.u32 4, %s19
        %p250 = scmp.lt.s32.totalorder %s18, 1
        %s251 = scalar_select %p250, %s18, 1
        %p252 = scmp.lt.s32.totalorder %s249, 3
        %s253 = scalar_select %p252, %s249, 3
        %s254 = smul.addr %s251, 64
        %s255 = sadd.s32 %s253, %s254
        %s256 = smul.addr %s255, 4
        %s257 = scalar_lea.vmem %s3, %s256
        %s258 = smul.u32 4, %s19
      $region32: #{dpcl_forward.7} parent=23 // pred_fallthru
        _
      // Predicated region
      $region33: #{dpcl_forward.7} parent=23 // pred_check
        %p259 = pneg %p160
      $region34: #{dpcl_forward.7} parent=23 // pred_check_branch
        %261 = sbr.rel (%p259) target = $region36
      $region35: #{dpcl_forward.7} parent=23 // pred_region
        %s262 = smul.u32 4, %s19
        %p263 = scmp.lt.s32.totalorder %s18, 1
        %s264 = scalar_select %p263, %s18, 1
        %p265 = scmp.lt.s32.totalorder %s262, 3
        %s266 = scalar_select %p265, %s262, 3
        %s267 = smul.addr %s264, 4
        %s268 = sadd.s32 %s266, %s267
        %s269 = scalar_lea.vmem %s4, %s268
        %s270 = smul.u32 4, %s19
      $region36: #{dpcl_forward.7} parent=23 // pred_fallthru
        _
    $region24: #{dpcl_forward.7} parent=5 // pred_fallthru
      _
    %p271 = scmp.le.s32.totalorder 1, %s11
    %p272 = scmp.lt.s32.totalorder %s11, 3
    %p273 = pnand %p271, %p272
    %p274 = pneg %p273
    // Predicated region
    $region37: #{dpcl_forward.7} parent=5 // pred_check
      _
    $region38: #{dpcl_forward.7} parent=5 // pred_check_branch
      %276 = sbr.rel (%p273) target = $region40
    $region39: #{dpcl_forward.7} parent=5 // pred_region
      %s277 = ssub.s32 %s11, 1
      %s278 = smul.u32 16, %s23
      %p279 = scmp.lt.s32.totalorder %s278, 15
      %s280 = scalar_select %p279, %s278, 15
      %s281 = smul.addr %s280, 4
      %s282 = scalar_lea.vmem %s0, %s281
      %p283 = pneg %p56
      %p284 = pneg %p53
      %s285 = smul.u32 16, %s23
      %p286 = scmp.lt.s32.totalorder %s285, 15
      %s287 = scalar_select %p286, %s285, 15
      %s288 = smul.addr %s287, 4
      %s289 = scalar_lea.vmem %s1, %s288
      %p290 = pneg %p82
      %p291 = pneg %p79
      %s292 = smul.u32 4, %s22
      %p293 = scmp.lt.s32.totalorder %s21, 1
      %s294 = scalar_select %p293, %s21, 1
      %p295 = scmp.lt.s32.totalorder %s292, 3
      %s296 = scalar_select %p295, %s292, 3
      %s297 = smul.addr %s294, 64
      %s298 = sadd.s32 %s296, %s297
      %s299 = smul.addr %s298, 4
      %s300 = scalar_lea.vmem %s2, %s299
      %p301 = pneg %p110
      %p302 = pneg %p107
      %s303 = smul.u32 4, %s22
      %p304 = scmp.lt.s32.totalorder %s21, 1
      %s305 = scalar_select %p304, %s21, 1
      %p306 = scmp.lt.s32.totalorder %s303, 3
      %s307 = scalar_select %p306, %s303, 3
      %s308 = smul.addr %s305, 64
      %s309 = sadd.s32 %s307, %s308
      %s310 = smul.addr %s309, 4
      %s311 = scalar_lea.vmem %s3, %s310
      %p312 = pneg %p138
      %p313 = pneg %p135
      %s314 = smul.u32 4, %s22
      %p315 = scmp.lt.s32.totalorder %s21, 1
      %s316 = scalar_select %p315, %s21, 1
      %p317 = scmp.lt.s32.totalorder %s314, 3
      %s318 = scalar_select %p317, %s314, 3
      %s319 = smul.addr %s316, 4
      %s320 = sadd.s32 %s318, %s319
      %s321 = scalar_lea.vmem %s4, %s320
      %p322 = pneg %p166
      %p323 = pneg %p163
      %p324 = pneg %p196
      %p325 = pneg %p193
      %s326 = smul.u32 16, %s23
      %s327 = smul.u32 4, %s22
      %p328 = scmp.lt.s32.totalorder %s21, 1
      %s329 = scalar_select %p328, %s21, 1
      %p330 = scmp.lt.s32.totalorder %s326, 15
      %s331 = scalar_select %p330, %s326, 15
      %p332 = scmp.lt.s32.totalorder %s327, 3
      %s333 = scalar_select %p332, %s327, 3
      %s334 = smul.addr %s331, 4
      %s335 = sadd.s32 %s333, %s334
      %s336 = smul.addr %s329, 64
      %s337 = sadd.s32 %s335, %s336
      %s338 = smul.addr %s337, 4
      %s339 = scalar_lea.vmem %s5, %s338
      %s340 = smul.u32 16, %s23
      %p341 = scmp.lt.s32.totalorder %s340, 15
      %s342 = scalar_select %p341, %s340, 15
      %s343 = smul.addr %s342, 4
      %s344 = scalar_lea.vmem %s0, %s343
      %s345 = smul.u32 16, %s23
      %s346 = smul.u32 16, %s23
      %p347 = scmp.lt.s32.totalorder %s346, 15
      %s348 = scalar_select %p347, %s346, 15
      %s349 = smul.addr %s348, 4
      %s350 = scalar_lea.vmem %s1, %s349
      %s351 = smul.u32 16, %s23
      %s352 = smul.u32 4, %s22
      %p353 = scmp.lt.s32.totalorder %s21, 1
      %s354 = scalar_select %p353, %s21, 1
      %p355 = scmp.lt.s32.totalorder %s352, 3
      %s356 = scalar_select %p355, %s352, 3
      %s357 = smul.addr %s354, 64
      %s358 = sadd.s32 %s356, %s357
      %s359 = smul.addr %s358, 4
      %s360 = scalar_lea.vmem %s2, %s359
      %s361 = smul.u32 4, %s22
      %s362 = smul.u32 4, %s22
      %p363 = scmp.lt.s32.totalorder %s21, 1
      %s364 = scalar_select %p363, %s21, 1
      %p365 = scmp.lt.s32.totalorder %s362, 3
      %s366 = scalar_select %p365, %s362, 3
      %s367 = smul.addr %s364, 64
      %s368 = sadd.s32 %s366, %s367
      %s369 = smul.addr %s368, 4
      %s370 = scalar_lea.vmem %s3, %s369
      %s371 = smul.u32 4, %s22
      %s372 = smul.u32 4, %s22
      %p373 = scmp.lt.s32.totalorder %s21, 1
      %s374 = scalar_select %p373, %s21, 1
      %p375 = scmp.lt.s32.totalorder %s372, 3
      %s376 = scalar_select %p375, %s372, 3
      %s377 = smul.addr %s374, 4
      %s378 = sadd.s32 %s376, %s377
      %s379 = scalar_lea.vmem %s4, %s378
      %s380 = smul.u32 4, %s22
      %s381 = smul.u32 16, %s23
      %s382 = smul.u32 4, %s22
      %p383 = scmp.lt.s32.totalorder %s21, 1
      %s384 = scalar_select %p383, %s21, 1
      %p385 = scmp.lt.s32.totalorder %s381, 15
      %s386 = scalar_select %p385, %s381, 15
      %p387 = scmp.lt.s32.totalorder %s382, 3
      %s388 = scalar_select %p387, %s382, 3
      %s389 = smul.addr %s386, 4
      %s390 = sadd.s32 %s388, %s389
      %s391 = smul.addr %s384, 64
      %s392 = sadd.s32 %s390, %s391
      %s393 = smul.addr %s392, 4
      %s394 = scalar_lea.vmem %s5, %s393
      %s395 = smul.u32 16, %s23
      %s396 = smul.u32 4, %s22
      %v398 = vld [vmem:[%s344] sm:$0xf]
      %v399 = vld [vmem:[%s344 + $0x4] sm:$0xf]
      %v400 = vld [vmem:[%s344 + $0x8] sm:$0xf]
      %v401 = vld [vmem:[%s344 + $0xc] sm:$0xf]
      %v402 = vld [vmem:[%s344 + $0x10] sm:$0xf]
      %v403 = vld [vmem:[%s344 + $0x14] sm:$0xf]
      %v404 = vld [vmem:[%s344 + $0x18] sm:$0xf]
      %v405 = vld [vmem:[%s344 + $0x1c] sm:$0xf]
      %v406 = vld [vmem:[%s344 + $0x20] sm:$0xf]
      %v407 = vld [vmem:[%s344 + $0x24] sm:$0xf]
      %v408 = vld [vmem:[%s344 + $0x28] sm:$0xf]
      %v409 = vld [vmem:[%s344 + $0x2c] sm:$0xf]
      %v410 = vld [vmem:[%s344 + $0x30] sm:$0xf]
      %v411 = vld [vmem:[%s344 + $0x34] sm:$0xf]
      %v412 = vld [vmem:[%s344 + $0x38] sm:$0xf]
      %v413 = vld [vmem:[%s344 + $0x3c] sm:$0xf]
      %v414 = vld [vmem:[%s360] sm:$0xff]
      %v415 = vld [vmem:[%s360 + $0x8] sm:$0xff]
      %v416 = vld [vmem:[%s360 + $0x10] sm:$0xff]
      %v417 = vld [vmem:[%s360 + $0x18] sm:$0xff]
      %v418 = vld [vmem:[%s360 + $0x20] sm:$0xff]
      %v419 = vld [vmem:[%s360 + $0x28] sm:$0xff]
      %v420 = vld [vmem:[%s360 + $0x30] sm:$0xff]
      %v421 = vld [vmem:[%s360 + $0x38] sm:$0xff]
      %v422 = vld [vmem:[%s360 + $0x40] sm:$0xff]
      %v423 = vld [vmem:[%s360 + $0x48] sm:$0xff]
      %v424 = vld [vmem:[%s360 + $0x50] sm:$0xff]
      %v425 = vld [vmem:[%s360 + $0x58] sm:$0xff]
      %v426 = vld [vmem:[%s360 + $0x60] sm:$0xff]
      %v427 = vld [vmem:[%s360 + $0x68] sm:$0xff]
      %v428 = vld [vmem:[%s360 + $0x70] sm:$0xff]
      %v429 = vld [vmem:[%s360 + $0x78] sm:$0xff]
      %v430 = vld [vmem:[%s360 + $0x80] sm:$0xff]
      %v431 = vld [vmem:[%s360 + $0x88] sm:$0xff]
      %v432 = vld [vmem:[%s360 + $0x90] sm:$0xff]
      %v433 = vld [vmem:[%s360 + $0x98] sm:$0xff]
      %v434 = vld [vmem:[%s360 + $0xa0] sm:$0xff]
      %v435 = vld [vmem:[%s360 + $0xa8] sm:$0xff]
      %v436 = vld [vmem:[%s360 + $0xb0] sm:$0xff]
      %v437 = vld [vmem:[%s360 + $0xb8] sm:$0xff]
      %v438 = vld [vmem:[%s360 + $0xc0] sm:$0xff]
      %v439 = vld [vmem:[%s360 + $0xc8] sm:$0xff]
      %v440 = vld [vmem:[%s360 + $0xd0] sm:$0xff]
      %v441 = vld [vmem:[%s360 + $0xd8] sm:$0xff]
      %v442 = vld [vmem:[%s360 + $0xe0] sm:$0xff]
      %v443 = vld [vmem:[%s360 + $0xe8] sm:$0xff]
      %v444 = vld [vmem:[%s360 + $0xf0] sm:$0xff]
      %v445 = vld [vmem:[%s360 + $0xf8] sm:$0xff]
      %v446 = vld [vmem:[%s350] sm:$0xf]
      %v447 = vld [vmem:[%s350 + $0x4] sm:$0xf]
      %v448 = vld [vmem:[%s350 + $0x8] sm:$0xf]
      %v449 = vld [vmem:[%s350 + $0xc] sm:$0xf]
      %v450 = vld [vmem:[%s350 + $0x10] sm:$0xf]
      %v451 = vld [vmem:[%s350 + $0x14] sm:$0xf]
      %v452 = vld [vmem:[%s350 + $0x18] sm:$0xf]
      %v453 = vld [vmem:[%s350 + $0x1c] sm:$0xf]
      %v454 = vld [vmem:[%s350 + $0x20] sm:$0xf]
      %v455 = vld [vmem:[%s350 + $0x24] sm:$0xf]
      %v456 = vld [vmem:[%s350 + $0x28] sm:$0xf]
      %v457 = vld [vmem:[%s350 + $0x2c] sm:$0xf]
      %v458 = vld [vmem:[%s350 + $0x30] sm:$0xf]
      %v459 = vld [vmem:[%s350 + $0x34] sm:$0xf]
      %v460 = vld [vmem:[%s350 + $0x38] sm:$0xf]
      %v461 = vld [vmem:[%s350 + $0x3c] sm:$0xf]
      %v462 = vld [vmem:[%s370] sm:$0xff]
      %v463 = vld [vmem:[%s370 + $0x8] sm:$0xff]
      %v464 = vld [vmem:[%s370 + $0x10] sm:$0xff]
      %v465 = vld [vmem:[%s370 + $0x18] sm:$0xff]
      %v466 = vld [vmem:[%s370 + $0x20] sm:$0xff]
      %v467 = vld [vmem:[%s370 + $0x28] sm:$0xff]
      %v468 = vld [vmem:[%s370 + $0x30] sm:$0xff]
      %v469 = vld [vmem:[%s370 + $0x38] sm:$0xff]
      %v470 = vld [vmem:[%s370 + $0x40] sm:$0xff]
      %v471 = vld [vmem:[%s370 + $0x48] sm:$0xff]
      %v472 = vld [vmem:[%s370 + $0x50] sm:$0xff]
      %v473 = vld [vmem:[%s370 + $0x58] sm:$0xff]
      %v474 = vld [vmem:[%s370 + $0x60] sm:$0xff]
      %v475 = vld [vmem:[%s370 + $0x68] sm:$0xff]
      %v476 = vld [vmem:[%s370 + $0x70] sm:$0xff]
      %v477 = vld [vmem:[%s370 + $0x78] sm:$0xff]
      %v478 = vld [vmem:[%s370 + $0x80] sm:$0xff]
      %v479 = vld [vmem:[%s370 + $0x88] sm:$0xff]
      %v480 = vld [vmem:[%s370 + $0x90] sm:$0xff]
      %v481 = vld [vmem:[%s370 + $0x98] sm:$0xff]
      %v482 = vld [vmem:[%s370 + $0xa0] sm:$0xff]
      %v483 = vld [vmem:[%s370 + $0xa8] sm:$0xff]
      %v484 = vld [vmem:[%s370 + $0xb0] sm:$0xff]
      %v485 = vld [vmem:[%s370 + $0xb8] sm:$0xff]
      %v486 = vld [vmem:[%s370 + $0xc0] sm:$0xff]
      %v487 = vld [vmem:[%s370 + $0xc8] sm:$0xff]
      %v488 = vld [vmem:[%s370 + $0xd0] sm:$0xff]
      %v489 = vld [vmem:[%s370 + $0xd8] sm:$0xff]
      %v490 = vld [vmem:[%s370 + $0xe0] sm:$0xff]
      %v491 = vld [vmem:[%s370 + $0xe8] sm:$0xff]
      %v492 = vld [vmem:[%s370 + $0xf0] sm:$0xff]
      %v493 = vld [vmem:[%s370 + $0xf8] sm:$0xff]
      %v510 = vunpack.c.l.b16 %v446
      %v511 = vunpack.c.l.b16 %v447
      %v512 = vunpack.c.l.b16 %v448
      %v513 = vunpack.c.l.b16 %v449
      %v514 = vunpack.c.l.b16 %v450
      %v515 = vunpack.c.l.b16 %v451
      %v516 = vunpack.c.l.b16 %v452
      %v517 = vunpack.c.l.b16 %v453
      %v518 = vunpack.c.l.b16 %v454
      %v519 = vunpack.c.l.b16 %v455
      %v520 = vunpack.c.l.b16 %v456
      %v521 = vunpack.c.l.b16 %v457
      %v522 = vunpack.c.l.b16 %v458
      %v523 = vunpack.c.l.b16 %v459
      %v524 = vunpack.c.l.b16 %v460
      %v525 = vunpack.c.l.b16 %v461
      %v526 = vpack.c.b16 %v511, %v510
      %v527 = vpack.c.b16 %v513, %v512
      %v528 = vpack.c.b16 %v515, %v514
      %v529 = vpack.c.b16 %v517, %v516
      %v530 = vpack.c.b16 %v519, %v518
      %v531 = vpack.c.b16 %v521, %v520
      %v532 = vpack.c.b16 %v523, %v522
      %v533 = vpack.c.b16 %v525, %v524
      %v574 = vunpack.c.l.b16 %v462
      %v575 = vunpack.c.h.b16 %v462
      %v576 = vunpack.c.l.b16 %v463
      %v577 = vunpack.c.h.b16 %v463
      %v578 = vunpack.c.l.b16 %v464
      %v579 = vunpack.c.h.b16 %v464
      %v580 = vunpack.c.l.b16 %v465
      %v581 = vunpack.c.h.b16 %v465
      %v582 = vunpack.c.l.b16 %v466
      %v583 = vunpack.c.h.b16 %v466
      %v584 = vunpack.c.l.b16 %v467
      %v585 = vunpack.c.h.b16 %v467
      %v586 = vunpack.c.l.b16 %v468
      %v587 = vunpack.c.h.b16 %v468
      %v588 = vunpack.c.l.b16 %v469
      %v589 = vunpack.c.h.b16 %v469
      %v590 = vunpack.c.l.b16 %v470
      %v591 = vunpack.c.h.b16 %v470
      %v592 = vunpack.c.l.b16 %v471
      %v593 = vunpack.c.h.b16 %v471
      %v594 = vunpack.c.l.b16 %v472
      %v595 = vunpack.c.h.b16 %v472
      %v596 = vunpack.c.l.b16 %v473
      %v597 = vunpack.c.h.b16 %v473
      %v598 = vunpack.c.l.b16 %v474
      %v599 = vunpack.c.h.b16 %v474
      %v600 = vunpack.c.l.b16 %v475
      %v601 = vunpack.c.h.b16 %v475
      %v602 = vunpack.c.l.b16 %v476
      %v603 = vunpack.c.h.b16 %v476
      %v604 = vunpack.c.l.b16 %v477
      %v605 = vunpack.c.h.b16 %v477
      %v606 = vunpack.c.l.b16 %v478
      %v607 = vunpack.c.h.b16 %v478
      %v608 = vunpack.c.l.b16 %v479
      %v609 = vunpack.c.h.b16 %v479
      %v610 = vunpack.c.l.b16 %v480
      %v611 = vunpack.c.h.b16 %v480
      %v612 = vunpack.c.l.b16 %v481
      %v613 = vunpack.c.h.b16 %v481
      %v614 = vunpack.c.l.b16 %v482
      %v615 = vunpack.c.h.b16 %v482
      %v616 = vunpack.c.l.b16 %v483
      %v617 = vunpack.c.h.b16 %v483
      %v618 = vunpack.c.l.b16 %v484
      %v619 = vunpack.c.h.b16 %v484
      %v620 = vunpack.c.l.b16 %v485
      %v621 = vunpack.c.h.b16 %v485
      %v622 = vunpack.c.l.b16 %v486
      %v623 = vunpack.c.h.b16 %v486
      %v624 = vunpack.c.l.b16 %v487
      %v625 = vunpack.c.h.b16 %v487
      %v626 = vunpack.c.l.b16 %v488
      %v627 = vunpack.c.h.b16 %v488
      %v628 = vunpack.c.l.b16 %v489
      %v629 = vunpack.c.h.b16 %v489
      %v630 = vunpack.c.l.b16 %v490
      %v631 = vunpack.c.h.b16 %v490
      %v632 = vunpack.c.l.b16 %v491
      %v633 = vunpack.c.h.b16 %v491
      %v634 = vunpack.c.l.b16 %v492
      %v635 = vunpack.c.h.b16 %v492
      %v636 = vunpack.c.l.b16 %v493
      %v637 = vunpack.c.h.b16 %v493
      %v638 = vpack.c.b16 %v578, %v574
      %v639 = vpack.c.b16 %v579, %v575
      %v640 = vpack.c.b16 %v580, %v576
      %v641 = vpack.c.b16 %v581, %v577
      %v642 = vpack.c.b16 %v586, %v582
      %v643 = vpack.c.b16 %v587, %v583
      %v644 = vpack.c.b16 %v588, %v584
      %v645 = vpack.c.b16 %v589, %v585
      %v646 = vpack.c.b16 %v594, %v590
      %v647 = vpack.c.b16 %v595, %v591
      %v648 = vpack.c.b16 %v596, %v592
      %v649 = vpack.c.b16 %v597, %v593
      %v650 = vpack.c.b16 %v602, %v598
      %v651 = vpack.c.b16 %v603, %v599
      %v652 = vpack.c.b16 %v604, %v600
      %v653 = vpack.c.b16 %v605, %v601
      %v654 = vpack.c.b16 %v610, %v606
      %v655 = vpack.c.b16 %v611, %v607
      %v656 = vpack.c.b16 %v612, %v608
      %v657 = vpack.c.b16 %v613, %v609
      %v658 = vpack.c.b16 %v618, %v614
      %v659 = vpack.c.b16 %v619, %v615
      %v660 = vpack.c.b16 %v620, %v616
      %v661 = vpack.c.b16 %v621, %v617
      %v662 = vpack.c.b16 %v626, %v622
      %v663 = vpack.c.b16 %v627, %v623
      %v664 = vpack.c.b16 %v628, %v624
      %v665 = vpack.c.b16 %v629, %v625
      %v666 = vpack.c.b16 %v634, %v630
      %v667 = vpack.c.b16 %v635, %v631
      %v668 = vpack.c.b16 %v636, %v632
      %v669 = vpack.c.b16 %v637, %v633
      %702 = vmatprep.subr.bf16.mxu0 %v639
      %703 = vmatpush1.bf16.msra.mxu0 %v638
      %704 = vmatprep.subr.bf16.mxu0 %v643
      %705 = vmatpush1.bf16.msra.mxu0 %v642
      %706 = vmatprep.subr.bf16.mxu0 %v647
      %707 = vmatpush1.bf16.msra.mxu0 %v646
      %708 = vmatprep.subr.bf16.mxu0 %v651
      %709 = vmatpush1.bf16.msra.mxu0 %v650
      %710 = vmatprep.subr.bf16.mxu0 %v655
      %711 = vmatpush1.bf16.msra.mxu0 %v654
      %712 = vmatprep.subr.bf16.mxu0 %v659
      %713 = vmatpush1.bf16.msra.mxu0 %v658
      %714 = vmatprep.subr.bf16.mxu0 %v663
      %715 = vmatpush1.bf16.msra.mxu0 %v662
      %716 = vmatprep.subr.bf16.mxu0 %v667
      %717 = vmatpush1.bf16.msra.mxu0 %v666
      %718 = vmatprep.subr.bf16.mxu0 0
      %719 = vmatpush1.bf16.msra.mxu0 0
      %720 = vmatprep.subr.bf16.mxu0 0
      %721 = vmatpush1.bf16.msra.mxu0 0
      %722 = vmatprep.subr.bf16.mxu0 0
      %723 = vmatpush1.bf16.msra.mxu0 0
      %724 = vmatprep.subr.bf16.mxu0 0
      %725 = vmatpush1.bf16.msra.mxu0 0
      %726 = vmatprep.subr.bf16.mxu0 0
      %727 = vmatpush1.bf16.msra.mxu0 0
      %728 = vmatprep.subr.bf16.mxu0 0
      %729 = vmatpush1.bf16.msra.mxu0 0
      %730 = vmatprep.subr.bf16.mxu0 0
      %731 = vmatpush1.bf16.msra.mxu0 0
      %732 = vmatprep.subr.bf16.mxu0 0
      %733 = vmatpush1.bf16.msra.mxu0 0
      %734 = vmatprep.mubr.bf16.mxu0 0
      %735 = vmatmul.mubr.bf16.gmra.mrb[0].mxu0 %v526
      %v736 = vpop.f32.mrb[0].mxu0
      %v737 = vadd.f32 0.0, %v736
      %v738 = vpop.f32.mrb[0].mxu0
      %v739 = vadd.f32 0.0, %v738
      %v740 = vpop.f32.mrb[0].mxu0
      %v741 = vadd.f32 0.0, %v740
      %v742 = vpop.f32.mrb[0].mxu0
      %v743 = vadd.f32 0.0, %v742
      %744 = vmatprep.mubr.bf16.mxu0 0
      %745 = vmatmul.mubr.bf16.gmra.mrb[0].mxu0 %v527
      %v746 = vpop.f32.mrb[0].mxu0
      %v747 = vadd.f32 0.0, %v746
      %v748 = vpop.f32.mrb[0].mxu0
      %v749 = vadd.f32 0.0, %v748
      %v750 = vpop.f32.mrb[0].mxu0
      %v751 = vadd.f32 0.0, %v750
      %v752 = vpop.f32.mrb[0].mxu0
      %v753 = vadd.f32 0.0, %v752
      %754 = vmatprep.mubr.bf16.mxu0 0
      %755 = vmatmul.mubr.bf16.gmra.mrb[0].mxu0 %v528
      %v756 = vpop.f32.mrb[0].mxu0
      %v757 = vadd.f32 0.0, %v756
      %v758 = vpop.f32.mrb[0].mxu0
      %v759 = vadd.f32 0.0, %v758
      %v760 = vpop.f32.mrb[0].mxu0
      %v761 = vadd.f32 0.0, %v760
      %v762 = vpop.f32.mrb[0].mxu0
      %v763 = vadd.f32 0.0, %v762
      %764 = vmatprep.mubr.bf16.mxu0 0
      %765 = vmatmul.mubr.bf16.gmra.mrb[0].mxu0 %v529
      %v766 = vpop.f32.mrb[0].mxu0
      %v767 = vadd.f32 0.0, %v766
      %v768 = vpop.f32.mrb[0].mxu0
      %v769 = vadd.f32 0.0, %v768
      %v770 = vpop.f32.mrb[0].mxu0
      %v771 = vadd.f32 0.0, %v770
      %v772 = vpop.f32.mrb[0].mxu0
      %v773 = vadd.f32 0.0, %v772
      %774 = vmatprep.mubr.bf16.mxu0 0
      %775 = vmatmul.mubr.bf16.gmra.mrb[0].mxu0 %v530
      %v776 = vpop.f32.mrb[0].mxu0
      %v777 = vadd.f32 0.0, %v776
      %v778 = vpop.f32.mrb[0].mxu0
      %v779 = vadd.f32 0.0, %v778
      %v780 = vpop.f32.mrb[0].mxu0
      %v781 = vadd.f32 0.0, %v780
      %v782 = vpop.f32.mrb[0].mxu0
      %v783 = vadd.f32 0.0, %v782
      %784 = vmatprep.mubr.bf16.mxu0 0
      %785 = vmatmul.mubr.bf16.gmra.mrb[0].mxu0 %v531
      %v786 = vpop.f32.mrb[0].mxu0
      %v787 = vadd.f32 0.0, %v786
      %v788 = vpop.f32.mrb[0].mxu0
      %v789 = vadd.f32 0.0, %v788
      %v790 = vpop.f32.mrb[0].mxu0
      %v791 = vadd.f32 0.0, %v790
      %v792 = vpop.f32.mrb[0].mxu0
      %v793 = vadd.f32 0.0, %v792
      %794 = vmatprep.mubr.bf16.mxu0 0
      %795 = vmatmul.mubr.bf16.gmra.mrb[0].mxu0 %v532
      %v796 = vpop.f32.mrb[0].mxu0
      %v797 = vadd.f32 0.0, %v796
      %v798 = vpop.f32.mrb[0].mxu0
      %v799 = vadd.f32 0.0, %v798
      %v800 = vpop.f32.mrb[0].mxu0
      %v801 = vadd.f32 0.0, %v800
      %v802 = vpop.f32.mrb[0].mxu0
      %v803 = vadd.f32 0.0, %v802
      %804 = vmatprep.mubr.bf16.mxu0 0
      %805 = vmatmul.mubr.bf16.gmra.mrb[0].mxu0 %v533
      %v806 = vpop.f32.mrb[0].mxu0
      %v807 = vadd.f32 0.0, %v806
      %v808 = vpop.f32.mrb[0].mxu0
      %v809 = vadd.f32 0.0, %v808
      %v810 = vpop.f32.mrb[0].mxu0
      %v811 = vadd.f32 0.0, %v810
      %v812 = vpop.f32.mrb[0].mxu0
      %v813 = vadd.f32 0.0, %v812
      %814 = vdwg.mxu0
      %815 = vmatprep.subr.bf16.mxu0 %v641
      %816 = vmatpush1.bf16.msra.mxu0 %v640
      %817 = vmatprep.subr.bf16.mxu0 %v645
      %818 = vmatpush1.bf16.msra.mxu0 %v644
      %819 = vmatprep.subr.bf16.mxu0 %v649
      %820 = vmatpush1.bf16.msra.mxu0 %v648
      %821 = vmatprep.subr.bf16.mxu0 %v653
      %822 = vmatpush1.bf16.msra.mxu0 %v652
      %823 = vmatprep.subr.bf16.mxu0 %v657
      %824 = vmatpush1.bf16.msra.mxu0 %v656
      %825 = vmatprep.subr.bf16.mxu0 %v661
      %826 = vmatpush1.bf16.msra.mxu0 %v660
      %827 = vmatprep.subr.bf16.mxu0 %v665
      %828 = vmatpush1.bf16.msra.mxu0 %v664
      %829 = vmatprep.subr.bf16.mxu0 %v669
      %830 = vmatpush1.bf16.msra.mxu0 %v668
      %831 = vmatprep.subr.bf16.mxu0 0
      %832 = vmatpush1.bf16.msra.mxu0 0
      %833 = vmatprep.subr.bf16.mxu0 0
      %834 = vmatpush1.bf16.msra.mxu0 0
      %835 = vmatprep.subr.bf16.mxu0 0
      %836 = vmatpush1.bf16.msra.mxu0 0
      %837 = vmatprep.subr.bf16.mxu0 0
      %838 = vmatpush1.bf16.msra.mxu0 0
      %839 = vmatprep.subr.bf16.mxu0 0
      %840 = vmatpush1.bf16.msra.mxu0 0
      %841 = vmatprep.subr.bf16.mxu0 0
      %842 = vmatpush1.bf16.msra.mxu0 0
      %843 = vmatprep.subr.bf16.mxu0 0
      %844 = vmatpush1.bf16.msra.mxu0 0
      %845 = vmatprep.subr.bf16.mxu0 0
      %846 = vmatpush1.bf16.msra.mxu0 0
      %847 = vmatprep.mubr.bf16.mxu0 0
      %848 = vmatmul.mubr.bf16.gmra.mrb[0].mxu0 %v526
      %v849 = vpop.f32.mrb[0].mxu0
      %v850 = vadd.f32 0.0, %v849
      %v851 = vpop.f32.mrb[0].mxu0
      %v852 = vadd.f32 0.0, %v851
      %v853 = vpop.f32.mrb[0].mxu0
      %v854 = vadd.f32 0.0, %v853
      %v855 = vpop.f32.mrb[0].mxu0
      %v856 = vadd.f32 0.0, %v855
      %857 = vmatprep.mubr.bf16.mxu0 0
      %858 = vmatmul.mubr.bf16.gmra.mrb[0].mxu0 %v527
      %v859 = vpop.f32.mrb[0].mxu0
      %v860 = vadd.f32 0.0, %v859
      %v861 = vpop.f32.mrb[0].mxu0
      %v862 = vadd.f32 0.0, %v861
      %v863 = vpop.f32.mrb[0].mxu0
      %v864 = vadd.f32 0.0, %v863
      %v865 = vpop.f32.mrb[0].mxu0
      %v866 = vadd.f32 0.0, %v865
      %867 = vmatprep.mubr.bf16.mxu0 0
      %868 = vmatmul.mubr.bf16.gmra.mrb[0].mxu0 %v528
      %v869 = vpop.f32.mrb[0].mxu0
      %v870 = vadd.f32 0.0, %v869
      %v871 = vpop.f32.mrb[0].mxu0
      %v872 = vadd.f32 0.0, %v871
      %v873 = vpop.f32.mrb[0].mxu0
      %v874 = vadd.f32 0.0, %v873
      %v875 = vpop.f32.mrb[0].mxu0
      %v876 = vadd.f32 0.0, %v875
      %877 = vmatprep.mubr.bf16.mxu0 0
      %878 = vmatmul.mubr.bf16.gmra.mrb[0].mxu0 %v529
      %v879 = vpop.f32.mrb[0].mxu0
      %v880 = vadd.f32 0.0, %v879
      %v881 = vpop.f32.mrb[0].mxu0
      %v882 = vadd.f32 0.0, %v881
      %v883 = vpop.f32.mrb[0].mxu0
      %v884 = vadd.f32 0.0, %v883
      %v885 = vpop.f32.mrb[0].mxu0
      %v886 = vadd.f32 0.0, %v885
      %887 = vmatprep.mubr.bf16.mxu0 0
      %888 = vmatmul.mubr.bf16.gmra.mrb[0].mxu0 %v530
      %v889 = vpop.f32.mrb[0].mxu0
      %v890 = vadd.f32 0.0, %v889
      %v891 = vpop.f32.mrb[0].mxu0
      %v892 = vadd.f32 0.0, %v891
      %v893 = vpop.f32.mrb[0].mxu0
      %v894 = vadd.f32 0.0, %v893
      %v895 = vpop.f32.mrb[0].mxu0
      %v896 = vadd.f32 0.0, %v895
      %897 = vmatprep.mubr.bf16.mxu0 0
      %898 = vmatmul.mubr.bf16.gmra.mrb[0].mxu0 %v531
      %v899 = vpop.f32.mrb[0].mxu0
      %v900 = vadd.f32 0.0, %v899
      %v901 = vpop.f32.mrb[0].mxu0
      %v902 = vadd.f32 0.0, %v901
      %v903 = vpop.f32.mrb[0].mxu0
      %v904 = vadd.f32 0.0, %v903
      %v905 = vpop.f32.mrb[0].mxu0
      %v906 = vadd.f32 0.0, %v905
      %907 = vmatprep.mubr.bf16.mxu0 0
      %908 = vmatmul.mubr.bf16.gmra.mrb[0].mxu0 %v532
      %v909 = vpop.f32.mrb[0].mxu0
      %v910 = vadd.f32 0.0, %v909
      %v911 = vpop.f32.mrb[0].mxu0
      %v912 = vadd.f32 0.0, %v911
      %v913 = vpop.f32.mrb[0].mxu0
      %v914 = vadd.f32 0.0, %v913
      %v915 = vpop.f32.mrb[0].mxu0
      %v916 = vadd.f32 0.0, %v915
      %917 = vmatprep.mubr.bf16.mxu0 0
      %918 = vmatmul.mubr.bf16.gmra.mrb[0].mxu0 %v533
      %v919 = vpop.f32.mrb[0].mxu0
      %v920 = vadd.f32 0.0, %v919
      %v921 = vpop.f32.mrb[0].mxu0
      %v922 = vadd.f32 0.0, %v921
      %v923 = vpop.f32.mrb[0].mxu0
      %v924 = vadd.f32 0.0, %v923
      %v925 = vpop.f32.mrb[0].mxu0
      %v926 = vadd.f32 0.0, %v925
      %927 = vdwg.mxu0
      %v944 = vunpack.c.l.b16 %v398
      %v945 = vunpack.c.l.b16 %v399
      %v946 = vunpack.c.l.b16 %v400
      %v947 = vunpack.c.l.b16 %v401
      %v948 = vunpack.c.l.b16 %v402
      %v949 = vunpack.c.l.b16 %v403
      %v950 = vunpack.c.l.b16 %v404
      %v951 = vunpack.c.l.b16 %v405
      %v952 = vunpack.c.l.b16 %v406
      %v953 = vunpack.c.l.b16 %v407
      %v954 = vunpack.c.l.b16 %v408
      %v955 = vunpack.c.l.b16 %v409
      %v956 = vunpack.c.l.b16 %v410
      %v957 = vunpack.c.l.b16 %v411
      %v958 = vunpack.c.l.b16 %v412
      %v959 = vunpack.c.l.b16 %v413
      %v960 = vpack.c.b16 %v945, %v944
      %v961 = vpack.c.b16 %v947, %v946
      %v962 = vpack.c.b16 %v949, %v948
      %v963 = vpack.c.b16 %v951, %v950
      %v964 = vpack.c.b16 %v953, %v952
      %v965 = vpack.c.b16 %v955, %v954
      %v966 = vpack.c.b16 %v957, %v956
      %v967 = vpack.c.b16 %v959, %v958
      %v1008 = vunpack.c.l.b16 %v414
      %v1009 = vunpack.c.h.b16 %v414
      %v1010 = vunpack.c.l.b16 %v415
      %v1011 = vunpack.c.h.b16 %v415
      %v1012 = vunpack.c.l.b16 %v416
      %v1013 = vunpack.c.h.b16 %v416
      %v1014 = vunpack.c.l.b16 %v417
      %v1015 = vunpack.c.h.b16 %v417
      %v1016 = vunpack.c.l.b16 %v418
      %v1017 = vunpack.c.h.b16 %v418
      %v1018 = vunpack.c.l.b16 %v419
      %v1019 = vunpack.c.h.b16 %v419
      %v1020 = vunpack.c.l.b16 %v420
      %v1021 = vunpack.c.h.b16 %v420
      %v1022 = vunpack.c.l.b16 %v421
      %v1023 = vunpack.c.h.b16 %v421
      %v1024 = vunpack.c.l.b16 %v422
      %v1025 = vunpack.c.h.b16 %v422
      %v1026 = vunpack.c.l.b16 %v423
      %v1027 = vunpack.c.h.b16 %v423
      %v1028 = vunpack.c.l.b16 %v424
      %v1029 = vunpack.c.h.b16 %v424
      %v1030 = vunpack.c.l.b16 %v425
      %v1031 = vunpack.c.h.b16 %v425
      %v1032 = vunpack.c.l.b16 %v426
      %v1033 = vunpack.c.h.b16 %v426
      %v1034 = vunpack.c.l.b16 %v427
      %v1035 = vunpack.c.h.b16 %v427
      %v1036 = vunpack.c.l.b16 %v428
      %v1037 = vunpack.c.h.b16 %v428
      %v1038 = vunpack.c.l.b16 %v429
      %v1039 = vunpack.c.h.b16 %v429
      %v1040 = vunpack.c.l.b16 %v430
      %v1041 = vunpack.c.h.b16 %v430
      %v1042 = vunpack.c.l.b16 %v431
      %v1043 = vunpack.c.h.b16 %v431
      %v1044 = vunpack.c.l.b16 %v432
      %v1045 = vunpack.c.h.b16 %v432
      %v1046 = vunpack.c.l.b16 %v433
      %v1047 = vunpack.c.h.b16 %v433
      %v1048 = vunpack.c.l.b16 %v434
      %v1049 = vunpack.c.h.b16 %v434
      %v1050 = vunpack.c.l.b16 %v435
      %v1051 = vunpack.c.h.b16 %v435
      %v1052 = vunpack.c.l.b16 %v436
      %v1053 = vunpack.c.h.b16 %v436
      %v1054 = vunpack.c.l.b16 %v437
      %v1055 = vunpack.c.h.b16 %v437
      %v1056 = vunpack.c.l.b16 %v438
      %v1057 = vunpack.c.h.b16 %v438
      %v1058 = vunpack.c.l.b16 %v439
      %v1059 = vunpack.c.h.b16 %v439
      %v1060 = vunpack.c.l.b16 %v440
      %v1061 = vunpack.c.h.b16 %v440
      %v1062 = vunpack.c.l.b16 %v441
      %v1063 = vunpack.c.h.b16 %v441
      %v1064 = vunpack.c.l.b16 %v442
      %v1065 = vunpack.c.h.b16 %v442
      %v1066 = vunpack.c.l.b16 %v443
      %v1067 = vunpack.c.h.b16 %v443
      %v1068 = vunpack.c.l.b16 %v444
      %v1069 = vunpack.c.h.b16 %v444
      %v1070 = vunpack.c.l.b16 %v445
      %v1071 = vunpack.c.h.b16 %v445
      %v1072 = vpack.c.b16 %v1012, %v1008
      %v1073 = vpack.c.b16 %v1013, %v1009
      %v1074 = vpack.c.b16 %v1014, %v1010
      %v1075 = vpack.c.b16 %v1015, %v1011
      %v1076 = vpack.c.b16 %v1020, %v1016
      %v1077 = vpack.c.b16 %v1021, %v1017
      %v1078 = vpack.c.b16 %v1022, %v1018
      %v1079 = vpack.c.b16 %v1023, %v1019
      %v1080 = vpack.c.b16 %v1028, %v1024
      %v1081 = vpack.c.b16 %v1029, %v1025
      %v1082 = vpack.c.b16 %v1030, %v1026
      %v1083 = vpack.c.b16 %v1031, %v1027
      %v1084 = vpack.c.b16 %v1036, %v1032
      %v1085 = vpack.c.b16 %v1037, %v1033
      %v1086 = vpack.c.b16 %v1038, %v1034
      %v1087 = vpack.c.b16 %v1039, %v1035
      %v1088 = vpack.c.b16 %v1044, %v1040
      %v1089 = vpack.c.b16 %v1045, %v1041
      %v1090 = vpack.c.b16 %v1046, %v1042
      %v1091 = vpack.c.b16 %v1047, %v1043
      %v1092 = vpack.c.b16 %v1052, %v1048
      %v1093 = vpack.c.b16 %v1053, %v1049
      %v1094 = vpack.c.b16 %v1054, %v1050
      %v1095 = vpack.c.b16 %v1055, %v1051
      %v1096 = vpack.c.b16 %v1060, %v1056
      %v1097 = vpack.c.b16 %v1061, %v1057
      %v1098 = vpack.c.b16 %v1062, %v1058
      %v1099 = vpack.c.b16 %v1063, %v1059
      %v1100 = vpack.c.b16 %v1068, %v1064
      %v1101 = vpack.c.b16 %v1069, %v1065
      %v1102 = vpack.c.b16 %v1070, %v1066
      %v1103 = vpack.c.b16 %v1071, %v1067
      %1136 = vmatprep.subr.bf16.mxu0 %v1073
      %1137 = vmatpush1.bf16.msra.mxu0 %v1072
      %1138 = vmatprep.subr.bf16.mxu0 %v1077
      %1139 = vmatpush1.bf16.msra.mxu0 %v1076
      %1140 = vmatprep.subr.bf16.mxu0 %v1081
      %1141 = vmatpush1.bf16.msra.mxu0 %v1080
      %1142 = vmatprep.subr.bf16.mxu0 %v1085
      %1143 = vmatpush1.bf16.msra.mxu0 %v1084
      %1144 = vmatprep.subr.bf16.mxu0 %v1089
      %1145 = vmatpush1.bf16.msra.mxu0 %v1088
      %1146 = vmatprep.subr.bf16.mxu0 %v1093
      %1147 = vmatpush1.bf16.msra.mxu0 %v1092
      %1148 = vmatprep.subr.bf16.mxu0 %v1097
      %1149 = vmatpush1.bf16.msra.mxu0 %v1096
      %1150 = vmatprep.subr.bf16.mxu0 %v1101
      %1151 = vmatpush1.bf16.msra.mxu0 %v1100
      %1152 = vmatprep.subr.bf16.mxu0 0
      %1153 = vmatpush1.bf16.msra.mxu0 0
      %1154 = vmatprep.subr.bf16.mxu0 0
      %1155 = vmatpush1.bf16.msra.mxu0 0
      %1156 = vmatprep.subr.bf16.mxu0 0
      %1157 = vmatpush1.bf16.msra.mxu0 0
      %1158 = vmatprep.subr.bf16.mxu0 0
      %1159 = vmatpush1.bf16.msra.mxu0 0
      %1160 = vmatprep.subr.bf16.mxu0 0
      %1161 = vmatpush1.bf16.msra.mxu0 0
      %1162 = vmatprep.subr.bf16.mxu0 0
      %1163 = vmatpush1.bf16.msra.mxu0 0
      %1164 = vmatprep.subr.bf16.mxu0 0
      %1165 = vmatpush1.bf16.msra.mxu0 0
      %1166 = vmatprep.subr.bf16.mxu0 0
      %1167 = vmatpush1.bf16.msra.mxu0 0
      %1168 = vmatprep.mubr.bf16.mxu0 0
      %1169 = vmatmul.mubr.bf16.gmra.mrb[0].mxu0 %v960
      %v1170 = vpop.f32.mrb[0].mxu0
      %v1171 = vadd.f32 %v737, %v1170
      %v1172 = vpop.f32.mrb[0].mxu0
      %v1173 = vadd.f32 %v739, %v1172
      %v1174 = vpop.f32.mrb[0].mxu0
      %v1175 = vadd.f32 %v741, %v1174
      %v1176 = vpop.f32.mrb[0].mxu0
      %v1177 = vadd.f32 %v743, %v1176
      %1178 = vmatprep.mubr.bf16.mxu0 0
      %1179 = vmatmul.mubr.bf16.gmra.mrb[0].mxu0 %v961
      %v1180 = vpop.f32.mrb[0].mxu0
      %v1181 = vadd.f32 %v747, %v1180
      %v1182 = vpop.f32.mrb[0].mxu0
      %v1183 = vadd.f32 %v749, %v1182
      %v1184 = vpop.f32.mrb[0].mxu0
      %v1185 = vadd.f32 %v751, %v1184
      %v1186 = vpop.f32.mrb[0].mxu0
      %v1187 = vadd.f32 %v753, %v1186
      %1188 = vmatprep.mubr.bf16.mxu0 0
      %1189 = vmatmul.mubr.bf16.gmra.mrb[0].mxu0 %v962
      %v1190 = vpop.f32.mrb[0].mxu0
      %v1191 = vadd.f32 %v757, %v1190
      %v1192 = vpop.f32.mrb[0].mxu0
      %v1193 = vadd.f32 %v759, %v1192
      %v1194 = vpop.f32.mrb[0].mxu0
      %v1195 = vadd.f32 %v761, %v1194
      %v1196 = vpop.f32.mrb[0].mxu0
      %v1197 = vadd.f32 %v763, %v1196
      %1198 = vmatprep.mubr.bf16.mxu0 0
      %1199 = vmatmul.mubr.bf16.gmra.mrb[0].mxu0 %v963
      %v1200 = vpop.f32.mrb[0].mxu0
      %v1201 = vadd.f32 %v767, %v1200
      %v1202 = vpop.f32.mrb[0].mxu0
      %v1203 = vadd.f32 %v769, %v1202
      %v1204 = vpop.f32.mrb[0].mxu0
      %v1205 = vadd.f32 %v771, %v1204
      %v1206 = vpop.f32.mrb[0].mxu0
      %v1207 = vadd.f32 %v773, %v1206
      %1208 = vmatprep.mubr.bf16.mxu0 0
      %1209 = vmatmul.mubr.bf16.gmra.mrb[0].mxu0 %v964
      %v1210 = vpop.f32.mrb[0].mxu0
      %v1211 = vadd.f32 %v777, %v1210
      %v1212 = vpop.f32.mrb[0].mxu0
      %v1213 = vadd.f32 %v779, %v1212
      %v1214 = vpop.f32.mrb[0].mxu0
      %v1215 = vadd.f32 %v781, %v1214
      %v1216 = vpop.f32.mrb[0].mxu0
      %v1217 = vadd.f32 %v783, %v1216
      %1218 = vmatprep.mubr.bf16.mxu0 0
      %1219 = vmatmul.mubr.bf16.gmra.mrb[0].mxu0 %v965
      %v1220 = vpop.f32.mrb[0].mxu0
      %v1221 = vadd.f32 %v787, %v1220
      %v1222 = vpop.f32.mrb[0].mxu0
      %v1223 = vadd.f32 %v789, %v1222
      %v1224 = vpop.f32.mrb[0].mxu0
      %v1225 = vadd.f32 %v791, %v1224
      %v1226 = vpop.f32.mrb[0].mxu0
      %v1227 = vadd.f32 %v793, %v1226
      %1228 = vmatprep.mubr.bf16.mxu0 0
      %1229 = vmatmul.mubr.bf16.gmra.mrb[0].mxu0 %v966
      %v1230 = vpop.f32.mrb[0].mxu0
      %v1231 = vadd.f32 %v797, %v1230
      %v1232 = vpop.f32.mrb[0].mxu0
      %v1233 = vadd.f32 %v799, %v1232
      %v1234 = vpop.f32.mrb[0].mxu0
      %v1235 = vadd.f32 %v801, %v1234
      %v1236 = vpop.f32.mrb[0].mxu0
      %v1237 = vadd.f32 %v803, %v1236
      %1238 = vmatprep.mubr.bf16.mxu0 0
      %1239 = vmatmul.mubr.bf16.gmra.mrb[0].mxu0 %v967
      %v1240 = vpop.f32.mrb[0].mxu0
      %v1241 = vadd.f32 %v807, %v1240
      %v1242 = vpop.f32.mrb[0].mxu0
      %v1243 = vadd.f32 %v809, %v1242
      %v1244 = vpop.f32.mrb[0].mxu0
      %v1245 = vadd.f32 %v811, %v1244
      %v1246 = vpop.f32.mrb[0].mxu0
      %v1247 = vadd.f32 %v813, %v1246
      %1248 = vdwg.mxu0
      %1249 = vmatprep.subr.bf16.mxu0 %v1075
      %1250 = vmatpush1.bf16.msra.mxu0 %v1074
      %1251 = vmatprep.subr.bf16.mxu0 %v1079
      %1252 = vmatpush1.bf16.msra.mxu0 %v1078
      %1253 = vmatprep.subr.bf16.mxu0 %v1083
      %1254 = vmatpush1.bf16.msra.mxu0 %v1082
      %1255 = vmatprep.subr.bf16.mxu0 %v1087
      %1256 = vmatpush1.bf16.msra.mxu0 %v1086
      %1257 = vmatprep.subr.bf16.mxu0 %v1091
      %1258 = vmatpush1.bf16.msra.mxu0 %v1090
      %1259 = vmatprep.subr.bf16.mxu0 %v1095
      %1260 = vmatpush1.bf16.msra.mxu0 %v1094
      %1261 = vmatprep.subr.bf16.mxu0 %v1099
      %1262 = vmatpush1.bf16.msra.mxu0 %v1098
      %1263 = vmatprep.subr.bf16.mxu0 %v1103
      %1264 = vmatpush1.bf16.msra.mxu0 %v1102
      %1265 = vmatprep.subr.bf16.mxu0 0
      %1266 = vmatpush1.bf16.msra.mxu0 0
      %1267 = vmatprep.subr.bf16.mxu0 0
      %1268 = vmatpush1.bf16.msra.mxu0 0
      %1269 = vmatprep.subr.bf16.mxu0 0
      %1270 = vmatpush1.bf16.msra.mxu0 0
      %1271 = vmatprep.subr.bf16.mxu0 0
      %1272 = vmatpush1.bf16.msra.mxu0 0
      %1273 = vmatprep.subr.bf16.mxu0 0
      %1274 = vmatpush1.bf16.msra.mxu0 0
      %1275 = vmatprep.subr.bf16.mxu0 0
      %1276 = vmatpush1.bf16.msra.mxu0 0
      %1277 = vmatprep.subr.bf16.mxu0 0
      %1278 = vmatpush1.bf16.msra.mxu0 0
      %1279 = vmatprep.subr.bf16.mxu0 0
      %1280 = vmatpush1.bf16.msra.mxu0 0
      %1281 = vmatprep.mubr.bf16.mxu0 0
      %1282 = vmatmul.mubr.bf16.gmra.mrb[0].mxu0 %v960
      %v1283 = vpop.f32.mrb[0].mxu0
      %v1284 = vadd.f32 %v850, %v1283
      %v1285 = vpop.f32.mrb[0].mxu0
      %v1286 = vadd.f32 %v852, %v1285
      %v1287 = vpop.f32.mrb[0].mxu0
      %v1288 = vadd.f32 %v854, %v1287
      %v1289 = vpop.f32.mrb[0].mxu0
      %v1290 = vadd.f32 %v856, %v1289
      %1291 = vmatprep.mubr.bf16.mxu0 0
      %1292 = vmatmul.mubr.bf16.gmra.mrb[0].mxu0 %v961
      %v1293 = vpop.f32.mrb[0].mxu0
      %v1294 = vadd.f32 %v860, %v1293
      %v1295 = vpop.f32.mrb[0].mxu0
      %v1296 = vadd.f32 %v862, %v1295
      %v1297 = vpop.f32.mrb[0].mxu0
      %v1298 = vadd.f32 %v864, %v1297
      %v1299 = vpop.f32.mrb[0].mxu0
      %v1300 = vadd.f32 %v866, %v1299
      %1301 = vmatprep.mubr.bf16.mxu0 0
      %1302 = vmatmul.mubr.bf16.gmra.mrb[0].mxu0 %v962
      %v1303 = vpop.f32.mrb[0].mxu0
      %v1304 = vadd.f32 %v870, %v1303
      %v1305 = vpop.f32.mrb[0].mxu0
      %v1306 = vadd.f32 %v872, %v1305
      %v1307 = vpop.f32.mrb[0].mxu0
      %v1308 = vadd.f32 %v874, %v1307
      %v1309 = vpop.f32.mrb[0].mxu0
      %v1310 = vadd.f32 %v876, %v1309
      %1311 = vmatprep.mubr.bf16.mxu0 0
      %1312 = vmatmul.mubr.bf16.gmra.mrb[0].mxu0 %v963
      %v1313 = vpop.f32.mrb[0].mxu0
      %v1314 = vadd.f32 %v880, %v1313
      %v1315 = vpop.f32.mrb[0].mxu0
      %v1316 = vadd.f32 %v882, %v1315
      %v1317 = vpop.f32.mrb[0].mxu0
      %v1318 = vadd.f32 %v884, %v1317
      %v1319 = vpop.f32.mrb[0].mxu0
      %v1320 = vadd.f32 %v886, %v1319
      %1321 = vmatprep.mubr.bf16.mxu0 0
      %1322 = vmatmul.mubr.bf16.gmra.mrb[0].mxu0 %v964
      %v1323 = vpop.f32.mrb[0].mxu0
      %v1324 = vadd.f32 %v890, %v1323
      %v1325 = vpop.f32.mrb[0].mxu0
      %v1326 = vadd.f32 %v892, %v1325
      %v1327 = vpop.f32.mrb[0].mxu0
      %v1328 = vadd.f32 %v894, %v1327
      %v1329 = vpop.f32.mrb[0].mxu0
      %v1330 = vadd.f32 %v896, %v1329
      %1331 = vmatprep.mubr.bf16.mxu0 0
      %1332 = vmatmul.mubr.bf16.gmra.mrb[0].mxu0 %v965
      %v1333 = vpop.f32.mrb[0].mxu0
      %v1334 = vadd.f32 %v900, %v1333
      %v1335 = vpop.f32.mrb[0].mxu0
      %v1336 = vadd.f32 %v902, %v1335
      %v1337 = vpop.f32.mrb[0].mxu0
      %v1338 = vadd.f32 %v904, %v1337
      %v1339 = vpop.f32.mrb[0].mxu0
      %v1340 = vadd.f32 %v906, %v1339
      %1341 = vmatprep.mubr.bf16.mxu0 0
      %1342 = vmatmul.mubr.bf16.gmra.mrb[0].mxu0 %v966
      %v1343 = vpop.f32.mrb[0].mxu0
      %v1344 = vadd.f32 %v910, %v1343
      %v1345 = vpop.f32.mrb[0].mxu0
      %v1346 = vadd.f32 %v912, %v1345
      %v1347 = vpop.f32.mrb[0].mxu0
      %v1348 = vadd.f32 %v914, %v1347
      %v1349 = vpop.f32.mrb[0].mxu0
      %v1350 = vadd.f32 %v916, %v1349
      %1351 = vmatprep.mubr.bf16.mxu0 0
      %1352 = vmatmul.mubr.bf16.gmra.mrb[0].mxu0 %v967
      %v1353 = vpop.f32.mrb[0].mxu0
      %v1354 = vadd.f32 %v920, %v1353
      %v1355 = vpop.f32.mrb[0].mxu0
      %v1356 = vadd.f32 %v922, %v1355
      %v1357 = vpop.f32.mrb[0].mxu0
      %v1358 = vadd.f32 %v924, %v1357
      %v1359 = vpop.f32.mrb[0].mxu0
      %v1360 = vadd.f32 %v926, %v1359
      %1361 = vdwg.mxu0
      %v1362 = vld [vmem:[%s379] sm:$0xf]
      %v1364 = vlaneseq
      %v1365 = vshrl.u32 %v1364, 7
      %v1366 = vsub.s32 0, %v1365
      %v1367 = vrot.slane %v1362, %v1366
      %v1368 = vlaneseq
      %v1369 = vshrl.u32 %v1368, 7
      %v1370 = vsub.s32 1, %v1369
      %v1371 = vrot.slane %v1362, %v1370
      %v1372 = vlaneseq
      %v1373 = vshrl.u32 %v1372, 7
      %v1374 = vsub.s32 2, %v1373
      %v1375 = vrot.slane %v1362, %v1374
      %v1376 = vlaneseq
      %v1377 = vshrl.u32 %v1376, 7
      %v1378 = vsub.s32 3, %v1377
      %v1379 = vrot.slane %v1362, %v1378
      %v1384 = vadd.f32 %v1171, %v1367
      %v1385 = vadd.f32 %v1173, %v1371
      %v1386 = vadd.f32 %v1284, %v1375
      %v1387 = vadd.f32 %v1286, %v1379
      %v1388 = vadd.f32 %v1175, %v1367
      %v1389 = vadd.f32 %v1177, %v1371
      %v1390 = vadd.f32 %v1288, %v1375
      %v1391 = vadd.f32 %v1290, %v1379
      %v1392 = vadd.f32 %v1181, %v1367
      %v1393 = vadd.f32 %v1183, %v1371
      %v1394 = vadd.f32 %v1294, %v1375
      %v1395 = vadd.f32 %v1296, %v1379
      %v1396 = vadd.f32 %v1185, %v1367
      %v1397 = vadd.f32 %v1187, %v1371
      %v1398 = vadd.f32 %v1298, %v1375
      %v1399 = vadd.f32 %v1300, %v1379
      %v1400 = vadd.f32 %v1191, %v1367
      %v1401 = vadd.f32 %v1193, %v1371
      %v1402 = vadd.f32 %v1304, %v1375
      %v1403 = vadd.f32 %v1306, %v1379
      %v1404 = vadd.f32 %v1195, %v1367
      %v1405 = vadd.f32 %v1197, %v1371
      %v1406 = vadd.f32 %v1308, %v1375
      %v1407 = vadd.f32 %v1310, %v1379
      %v1408 = vadd.f32 %v1201, %v1367
      %v1409 = vadd.f32 %v1203, %v1371
      %v1410 = vadd.f32 %v1314, %v1375
      %v1411 = vadd.f32 %v1316, %v1379
      %v1412 = vadd.f32 %v1205, %v1367
      %v1413 = vadd.f32 %v1207, %v1371
      %v1414 = vadd.f32 %v1318, %v1375
      %v1415 = vadd.f32 %v1320, %v1379
      %v1416 = vadd.f32 %v1211, %v1367
      %v1417 = vadd.f32 %v1213, %v1371
      %v1418 = vadd.f32 %v1324, %v1375
      %v1419 = vadd.f32 %v1326, %v1379
      %v1420 = vadd.f32 %v1215, %v1367
      %v1421 = vadd.f32 %v1217, %v1371
      %v1422 = vadd.f32 %v1328, %v1375
      %v1423 = vadd.f32 %v1330, %v1379
      %v1424 = vadd.f32 %v1221, %v1367
      %v1425 = vadd.f32 %v1223, %v1371
      %v1426 = vadd.f32 %v1334, %v1375
      %v1427 = vadd.f32 %v1336, %v1379
      %v1428 = vadd.f32 %v1225, %v1367
      %v1429 = vadd.f32 %v1227, %v1371
      %v1430 = vadd.f32 %v1338, %v1375
      %v1431 = vadd.f32 %v1340, %v1379
      %v1432 = vadd.f32 %v1231, %v1367
      %v1433 = vadd.f32 %v1233, %v1371
      %v1434 = vadd.f32 %v1344, %v1375
      %v1435 = vadd.f32 %v1346, %v1379
      %v1436 = vadd.f32 %v1235, %v1367
      %v1437 = vadd.f32 %v1237, %v1371
      %v1438 = vadd.f32 %v1348, %v1375
      %v1439 = vadd.f32 %v1350, %v1379
      %v1440 = vadd.f32 %v1241, %v1367
      %v1441 = vadd.f32 %v1243, %v1371
      %v1442 = vadd.f32 %v1354, %v1375
      %v1443 = vadd.f32 %v1356, %v1379
      %v1444 = vadd.f32 %v1245, %v1367
      %v1445 = vadd.f32 %v1247, %v1371
      %v1446 = vadd.f32 %v1358, %v1375
      %v1447 = vadd.f32 %v1360, %v1379
      %v1448 = vpack.c.bf16 %v1388, %v1384
      %v1449 = vpack.c.bf16 %v1389, %v1385
      %v1450 = vpack.c.bf16 %v1390, %v1386
      %v1451 = vpack.c.bf16 %v1391, %v1387
      %v1452 = vpack.c.bf16 %v1396, %v1392
      %v1453 = vpack.c.bf16 %v1397, %v1393
      %v1454 = vpack.c.bf16 %v1398, %v1394
      %v1455 = vpack.c.bf16 %v1399, %v1395
      %v1456 = vpack.c.bf16 %v1404, %v1400
      %v1457 = vpack.c.bf16 %v1405, %v1401
      %v1458 = vpack.c.bf16 %v1406, %v1402
      %v1459 = vpack.c.bf16 %v1407, %v1403
      %v1460 = vpack.c.bf16 %v1412, %v1408
      %v1461 = vpack.c.bf16 %v1413, %v1409
      %v1462 = vpack.c.bf16 %v1414, %v1410
      %v1463 = vpack.c.bf16 %v1415, %v1411
      %v1464 = vpack.c.bf16 %v1420, %v1416
      %v1465 = vpack.c.bf16 %v1421, %v1417
      %v1466 = vpack.c.bf16 %v1422, %v1418
      %v1467 = vpack.c.bf16 %v1423, %v1419
      %v1468 = vpack.c.bf16 %v1428, %v1424
      %v1469 = vpack.c.bf16 %v1429, %v1425
      %v1470 = vpack.c.bf16 %v1430, %v1426
      %v1471 = vpack.c.bf16 %v1431, %v1427
      %v1472 = vpack.c.bf16 %v1436, %v1432
      %v1473 = vpack.c.bf16 %v1437, %v1433
      %v1474 = vpack.c.bf16 %v1438, %v1434
      %v1475 = vpack.c.bf16 %v1439, %v1435
      %v1476 = vpack.c.bf16 %v1444, %v1440
      %v1477 = vpack.c.bf16 %v1445, %v1441
      %v1478 = vpack.c.bf16 %v1446, %v1442
      %v1479 = vpack.c.bf16 %v1447, %v1443
      %v1512 = vunpack.c.l.b16 %v1448
      %v1513 = vunpack.c.l.b16 %v1449
      %v1514 = vunpack.c.l.b16 %v1450
      %v1515 = vunpack.c.l.b16 %v1451
      %v1516 = vunpack.c.h.b16 %v1448
      %v1517 = vunpack.c.h.b16 %v1449
      %v1518 = vunpack.c.h.b16 %v1450
      %v1519 = vunpack.c.h.b16 %v1451
      %v1520 = vunpack.c.l.b16 %v1452
      %v1521 = vunpack.c.l.b16 %v1453
      %v1522 = vunpack.c.l.b16 %v1454
      %v1523 = vunpack.c.l.b16 %v1455
      %v1524 = vunpack.c.h.b16 %v1452
      %v1525 = vunpack.c.h.b16 %v1453
      %v1526 = vunpack.c.h.b16 %v1454
      %v1527 = vunpack.c.h.b16 %v1455
      %v1528 = vunpack.c.l.b16 %v1456
      %v1529 = vunpack.c.l.b16 %v1457
      %v1530 = vunpack.c.l.b16 %v1458
      %v1531 = vunpack.c.l.b16 %v1459
      %v1532 = vunpack.c.h.b16 %v1456
      %v1533 = vunpack.c.h.b16 %v1457
      %v1534 = vunpack.c.h.b16 %v1458
      %v1535 = vunpack.c.h.b16 %v1459
      %v1536 = vunpack.c.l.b16 %v1460
      %v1537 = vunpack.c.l.b16 %v1461
      %v1538 = vunpack.c.l.b16 %v1462
      %v1539 = vunpack.c.l.b16 %v1463
      %v1540 = vunpack.c.h.b16 %v1460
      %v1541 = vunpack.c.h.b16 %v1461
      %v1542 = vunpack.c.h.b16 %v1462
      %v1543 = vunpack.c.h.b16 %v1463
      %v1544 = vunpack.c.l.b16 %v1464
      %v1545 = vunpack.c.l.b16 %v1465
      %v1546 = vunpack.c.l.b16 %v1466
      %v1547 = vunpack.c.l.b16 %v1467
      %v1548 = vunpack.c.h.b16 %v1464
      %v1549 = vunpack.c.h.b16 %v1465
      %v1550 = vunpack.c.h.b16 %v1466
      %v1551 = vunpack.c.h.b16 %v1467
      %v1552 = vunpack.c.l.b16 %v1468
      %v1553 = vunpack.c.l.b16 %v1469
      %v1554 = vunpack.c.l.b16 %v1470
      %v1555 = vunpack.c.l.b16 %v1471
      %v1556 = vunpack.c.h.b16 %v1468
      %v1557 = vunpack.c.h.b16 %v1469
      %v1558 = vunpack.c.h.b16 %v1470
      %v1559 = vunpack.c.h.b16 %v1471
      %v1560 = vunpack.c.l.b16 %v1472
      %v1561 = vunpack.c.l.b16 %v1473
      %v1562 = vunpack.c.l.b16 %v1474
      %v1563 = vunpack.c.l.b16 %v1475
      %v1564 = vunpack.c.h.b16 %v1472
      %v1565 = vunpack.c.h.b16 %v1473
      %v1566 = vunpack.c.h.b16 %v1474
      %v1567 = vunpack.c.h.b16 %v1475
      %v1568 = vunpack.c.l.b16 %v1476
      %v1569 = vunpack.c.l.b16 %v1477
      %v1570 = vunpack.c.l.b16 %v1478
      %v1571 = vunpack.c.l.b16 %v1479
      %v1572 = vunpack.c.h.b16 %v1476
      %v1573 = vunpack.c.h.b16 %v1477
      %v1574 = vunpack.c.h.b16 %v1478
      %v1575 = vunpack.c.h.b16 %v1479
      %v1576 = vpack.c.b16 %v1513, %v1512
      %v1577 = vpack.c.b16 %v1515, %v1514
      %v1578 = vpack.c.b16 %v1517, %v1516
      %v1579 = vpack.c.b16 %v1519, %v1518
      %v1580 = vpack.c.b16 %v1521, %v1520
      %v1581 = vpack.c.b16 %v1523, %v1522
      %v1582 = vpack.c.b16 %v1525, %v1524
      %v1583 = vpack.c.b16 %v1527, %v1526
      %v1584 = vpack.c.b16 %v1529, %v1528
      %v1585 = vpack.c.b16 %v1531, %v1530
      %v1586 = vpack.c.b16 %v1533, %v1532
      %v1587 = vpack.c.b16 %v1535, %v1534
      %v1588 = vpack.c.b16 %v1537, %v1536
      %v1589 = vpack.c.b16 %v1539, %v1538
      %v1590 = vpack.c.b16 %v1541, %v1540
      %v1591 = vpack.c.b16 %v1543, %v1542
      %v1592 = vpack.c.b16 %v1545, %v1544
      %v1593 = vpack.c.b16 %v1547, %v1546
      %v1594 = vpack.c.b16 %v1549, %v1548
      %v1595 = vpack.c.b16 %v1551, %v1550
      %v1596 = vpack.c.b16 %v1553, %v1552
      %v1597 = vpack.c.b16 %v1555, %v1554
      %v1598 = vpack.c.b16 %v1557, %v1556
      %v1599 = vpack.c.b16 %v1559, %v1558
      %v1600 = vpack.c.b16 %v1561, %v1560
      %v1601 = vpack.c.b16 %v1563, %v1562
      %v1602 = vpack.c.b16 %v1565, %v1564
      %v1603 = vpack.c.b16 %v1567, %v1566
      %v1604 = vpack.c.b16 %v1569, %v1568
      %v1605 = vpack.c.b16 %v1571, %v1570
      %v1606 = vpack.c.b16 %v1573, %v1572
      %v1607 = vpack.c.b16 %v1575, %v1574
      %1640 = vst [vmem:[%s394] sm:$0xff] %v1576
      %1641 = vst [vmem:[%s394 + $0x8] sm:$0xff] %v1577
      %1642 = vst [vmem:[%s394 + $0x10] sm:$0xff] %v1578
      %1643 = vst [vmem:[%s394 + $0x18] sm:$0xff] %v1579
      %1644 = vst [vmem:[%s394 + $0x20] sm:$0xff] %v1580
      %1645 = vst [vmem:[%s394 + $0x28] sm:$0xff] %v1581
      %1646 = vst [vmem:[%s394 + $0x30] sm:$0xff] %v1582
      %1647 = vst [vmem:[%s394 + $0x38] sm:$0xff] %v1583
      %1648 = vst [vmem:[%s394 + $0x40] sm:$0xff] %v1584
      %1649 = vst [vmem:[%s394 + $0x48] sm:$0xff] %v1585
      %1650 = vst [vmem:[%s394 + $0x50] sm:$0xff] %v1586
      %1651 = vst [vmem:[%s394 + $0x58] sm:$0xff] %v1587
      %1652 = vst [vmem:[%s394 + $0x60] sm:$0xff] %v1588
      %1653 = vst [vmem:[%s394 + $0x68] sm:$0xff] %v1589
      %1654 = vst [vmem:[%s394 + $0x70] sm:$0xff] %v1590
      %1655 = vst [vmem:[%s394 + $0x78] sm:$0xff] %v1591
      %1656 = vst [vmem:[%s394 + $0x80] sm:$0xff] %v1592
      %1657 = vst [vmem:[%s394 + $0x88] sm:$0xff] %v1593
      %1658 = vst [vmem:[%s394 + $0x90] sm:$0xff] %v1594
      %1659 = vst [vmem:[%s394 + $0x98] sm:$0xff] %v1595
      %1660 = vst [vmem:[%s394 + $0xa0] sm:$0xff] %v1596
      %1661 = vst [vmem:[%s394 + $0xa8] sm:$0xff] %v1597
      %1662 = vst [vmem:[%s394 + $0xb0] sm:$0xff] %v1598
      %1663 = vst [vmem:[%s394 + $0xb8] sm:$0xff] %v1599
      %1664 = vst [vmem:[%s394 + $0xc0] sm:$0xff] %v1600
      %1665 = vst [vmem:[%s394 + $0xc8] sm:$0xff] %v1601
      %1666 = vst [vmem:[%s394 + $0xd0] sm:$0xff] %v1602
      %1667 = vst [vmem:[%s394 + $0xd8] sm:$0xff] %v1603
      %1668 = vst [vmem:[%s394 + $0xe0] sm:$0xff] %v1604
      %1669 = vst [vmem:[%s394 + $0xe8] sm:$0xff] %v1605
      %1670 = vst [vmem:[%s394 + $0xf0] sm:$0xff] %v1606
      %1671 = vst [vmem:[%s394 + $0xf8] sm:$0xff] %v1607
      %s1672 = smul.u32 16, %s23
      %s1673 = smul.u32 4, %s22
      %p1674 = scmp.lt.s32.totalorder %s21, 1
      %s1675 = scalar_select %p1674, %s21, 1
      %p1676 = scmp.lt.s32.totalorder %s1672, 15
      %s1677 = scalar_select %p1676, %s1672, 15
      %p1678 = scmp.lt.s32.totalorder %s1673, 3
      %s1679 = scalar_select %p1678, %s1673, 3
      %s1680 = smul.addr %s1677, 4
      %s1681 = sadd.s32 %s1679, %s1680
      %s1682 = smul.addr %s1675, 64
      %s1683 = sadd.s32 %s1681, %s1682
      %s1684 = smul.addr %s1683, 4
      %s1685 = scalar_lea.vmem %s5, %s1684
      // Predicated region
      $region41: #{dpcl_forward.7} parent=39 // pred_check
        %p1686 = pneg %p193
      $region42: #{dpcl_forward.7} parent=39 // pred_check_branch
        %1688 = sbr.rel (%p1686) target = $region44
      $region43: #{dpcl_forward.7} parent=39 // pred_region
        %s1689 = smul.u32 16, %s23
        %s1690 = smul.u32 4, %s22
      $region44: #{dpcl_forward.7} parent=39 // pred_fallthru
        _
    $region40: #{dpcl_forward.7} parent=5 // pred_fallthru
      _
    %p1691 = scmp.le.s32.totalorder 2, %s11
    // Predicated region
    $region45: #{dpcl_forward.7} parent=5 // pred_check
      %p1692 = pneg %p1691
    $region46: #{dpcl_forward.7} parent=5 // pred_check_branch
      %1694 = sbr.rel (%p1692) target = $region48
    $region47: #{dpcl_forward.7} parent=5 // pred_region
      %s1695 = ssub.s32 %s11, 2
      // Predicated region
      $region49: #{dpcl_forward.7} parent=47 // pred_check
        %p1696 = pneg %p199
      $region50: #{dpcl_forward.7} parent=47 // pred_check_branch
        %1698 = sbr.rel (%p1696) target = $region52
      $region51: #{dpcl_forward.7} parent=47 // pred_region
        %s1699 = smul.u32 16, %s26
        %s1700 = smul.u32 4, %s25
        %p1701 = scmp.lt.s32.totalorder %s24, 1
        %s1702 = scalar_select %p1701, %s24, 1
        %p1703 = scmp.lt.s32.totalorder %s1699, 15
        %s1704 = scalar_select %p1703, %s1699, 15
        %p1705 = scmp.lt.s32.totalorder %s1700, 3
        %s1706 = scalar_select %p1705, %s1700, 3
        %s1707 = smul.addr %s1704, 4
        %s1708 = sadd.s32 %s1706, %s1707
        %s1709 = smul.addr %s1702, 64
        %s1710 = sadd.s32 %s1708, %s1709
        %s1711 = smul.addr %s1710, 4
        %s1712 = scalar_lea.vmem %s5, %s1711
      $region52: #{dpcl_forward.7} parent=47 // pred_fallthru
        _
    $region48: #{dpcl_forward.7} parent=5 // pred_fallthru
      _
  $region6: #{dpcl_forward.7} parent=0 // loop_footer
    %s15 = sadd.s32 1, %s11
  $region7: #{dpcl_forward.7} parent=0 // loop_footer_branch
    %10 = sbr.rel target = $region3
  $region8: #{dpcl_forward.7} parent=0 // loop_exit
    _

// kernel: dpcl_forward.6
$region0: #{dpcl_forward.6}
  #allocation0 [shape = 'u32[]', space=smem, size = 0x4, offset = 0x4, fixed_abs, tag = 'smem constant byte address 0x4 - core index']
  #allocation1 [shape = 'u32[144,128]{1,0:T(1,128)}', space=vmem, size = 0x12000, scoped, tag = 'internal scratch']
  #allocation2 [shape = 'f32[8,128]{1,0:T(8,128)}', space=vmem, size = 0x1000, scoped, tag = 'scratch operand']
  #allocation3 [shape = 'f32[8,128]{1,0:T(8,128)}', space=vmem, size = 0x1000, scoped, tag = 'scratch operand']
  %s0 = inlined_call_operand.vmem [shape: bf16[2,16,8,512], index: 0, kind: input, shape index: {}]
  %s1 = inlined_call_operand.vmem [shape: bf16[2,128,512], index: 1, kind: input, shape index: {}]
  %s2 = inlined_call_operand.vmem [shape: bf16[2,16,8,128], index: 2, kind: output, shape index: {}]
  %s3 = sld [smem:[#allocation0]]
  $region53: #{dpcl_forward.6} parent=0
    _
  %s5 = ssub.s32 1, %s3
  %s6 = scalar_select 0, %s5, %s3
  loop: start=0, step=1, limit=6
  $region2: #{dpcl_forward.6} parent=0 // loop_pre_header
    _
  $region3: #{dpcl_forward.6} parent=0 // loop_header
    %s8 = sphi 0, %s12
    %p9 = scmp.ge.s32.totalorder %s8, 6
    %s15 = sphi 0, %s27
    %s16 = sphi 0, %s23
    %s17 = sphi 0, %s15
    %s18 = sphi 0, %s16
    %s19 = sphi 0, %s17
    %s20 = sphi 0, %s18
    %s42 = sphi 0, %s44
    %s45 = sphi 0, %s42
    %s46 = sphi 0, %s45
    %s62 = sphi 0, %s46
    %s68 = sphi 0, %s70
    %s71 = sphi 0, %s68
    %s72 = sphi 0, %s71
    %s88 = sphi 0, %s72
    %s106 = sphi 0, %s108
    %s109 = sphi 0, %s106
    %s110 = sphi 0, %s109
    %s126 = sphi 0, %s110
  $region4: #{dpcl_forward.6} parent=0 // loop_header_branch
    %11 = sbr.rel (%p9) target = $region8
  $region5: #{dpcl_forward.6} parent=0 // loop_body
    %s13 = ssub.s32 %s8, 1
    %s14 = ssub.s32 %s8, 2
    %s21 = sadd.s32 1, %s16
    %p22 = scmp.ge.s32.totalorder %s21, 2
    %s23 = scalar_select %p22, 0, %s21
    %s24 = sadd.s32 1, %s15
    %s25 = scalar_select %p22, %s24, %s15
    %p26 = scmp.ge.s32.totalorder %s25, 2
    %s27 = scalar_select %p26, 0, %s25
    %s28 = ssub.s32 1, %s15
    %s29 = smul.u32 %s28, %s16
    %s30 = ssub.s32 1, %s16
    %s31 = smul.u32 %s15, %s30
    %s32 = sadd.s32 %s29, %s31
    %s33 = ssub.s32 1, %s27
    %s34 = smul.u32 %s33, %s23
    %s35 = ssub.s32 1, %s23
    %s36 = smul.u32 %s27, %s35
    %s37 = sadd.s32 %s34, %s36
    %s38 = ssub.s32 %s15, %s27
    %s39 = ssub.s32 %s32, %s37
    %s40 = sor.u32 %s38, %s39
    %p41 = scmp.eq.s32.totalorder %s40, 0
    %s43 = sadd.s32 %s42, 1
    %s44 = scalar_select %p41, %s42, %s43
    %p47 = pneg %p41
    %p48 = scmp.eq.s32.totalorder %s8, 3
    %p49 = por %p47, %p48
    %p50 = scmp.ne.s32.totalorder %s42, %s45
    %p51 = scmp.eq.s32.totalorder %s8, 0
    %p52 = por %p50, %p51
    %p53 = scmp.ne.s32.totalorder %s42, %s45
    %p54 = scmp.eq.s32.totalorder %s13, 3
    %p55 = por %p53, %p54
    %p56 = scmp.ne.s32.totalorder %s45, %s46
    %p57 = scmp.eq.s32.totalorder %s13, 0
    %p58 = por %p56, %p57
    %p59 = scmp.ne.s32.totalorder %s45, %s46
    %p60 = scmp.eq.s32.totalorder %s14, 3
    %p61 = por %p59, %p60
    %p63 = scmp.ne.s32.totalorder %s46, %s62
    %p64 = scmp.eq.s32.totalorder %s14, 0
    %p65 = por %p63, %p64
    %s66 = ssub.s32 %s15, %s27
    %p67 = scmp.eq.s32.totalorder %s66, 0
    %s69 = sadd.s32 %s68, 1
    %s70 = scalar_select %p67, %s68, %s69
    %p73 = pneg %p67
    %p74 = scmp.eq.s32.totalorder %s8, 3
    %p75 = por %p73, %p74
    %p76 = scmp.ne.s32.totalorder %s68, %s71
    %p77 = scmp.eq.s32.totalorder %s8, 0
    %p78 = por %p76, %p77
    %p79 = scmp.ne.s32.totalorder %s68, %s71
    %p80 = scmp.eq.s32.totalorder %s13, 3
    %p81 = por %p79, %p80
    %p82 = scmp.ne.s32.totalorder %s71, %s72
    %p83 = scmp.eq.s32.totalorder %s13, 0
    %p84 = por %p82, %p83
    %p85 = scmp.ne.s32.totalorder %s71, %s72
    %p86 = scmp.eq.s32.totalorder %s14, 3
    %p87 = por %p85, %p86
    %p89 = scmp.ne.s32.totalorder %s72, %s88
    %p90 = scmp.eq.s32.totalorder %s14, 0
    %p91 = por %p89, %p90
    %s92 = ssub.s32 1, %s15
    %s93 = smul.u32 %s92, %s16
    %s94 = ssub.s32 1, %s16
    %s95 = smul.u32 %s15, %s94
    %s96 = sadd.s32 %s93, %s95
    %s97 = ssub.s32 1, %s27
    %s98 = smul.u32 %s97, %s23
    %s99 = ssub.s32 1, %s23
    %s100 = smul.u32 %s27, %s99
    %s101 = sadd.s32 %s98, %s100
    %s102 = ssub.s32 %s15, %s27
    %s103 = ssub.s32 %s96, %s101
    %s104 = sor.u32 %s102, %s103
    %p105 = scmp.eq.s32.totalorder %s104, 0
    %s107 = sadd.s32 %s106, 1
    %s108 = scalar_select %p105, %s106, %s107
    %p111 = pneg %p105
    %p112 = scmp.eq.s32.totalorder %s8, 3
    %p113 = por %p111, %p112
    %p114 = scmp.ne.s32.totalorder %s106, %s109
    %p115 = scmp.eq.s32.totalorder %s8, 0
    %p116 = por %p114, %p115
    %p117 = scmp.ne.s32.totalorder %s106, %s109
    %p118 = scmp.eq.s32.totalorder %s13, 3
    %p119 = por %p117, %p118
    %p120 = scmp.ne.s32.totalorder %s109, %s110
    %p121 = scmp.eq.s32.totalorder %s13, 0
    %p122 = por %p120, %p121
    %p123 = scmp.ne.s32.totalorder %s109, %s110
    %p124 = scmp.eq.s32.totalorder %s14, 3
    %p125 = por %p123, %p124
    %p127 = scmp.ne.s32.totalorder %s110, %s126
    %p128 = scmp.eq.s32.totalorder %s14, 0
    %p129 = por %p127, %p128
    %p130 = scmp.le.s32.totalorder 1, %s8
    %p131 = scmp.lt.s32.totalorder %s8, 5
    %p132 = pnand %p130, %p131
    %p133 = pneg %p132
    // Predicated region
    $region9: #{dpcl_forward.6} parent=5 // pred_check
      _
    $region10: #{dpcl_forward.6} parent=5 // pred_check_branch
      %135 = sbr.rel (%p132) target = $region12
    $region11: #{dpcl_forward.6} parent=5 // pred_region
      %s136 = ssub.s32 %s8, 1
    $region12: #{dpcl_forward.6} parent=5 // pred_fallthru
      _
    %p137 = scmp.lt.s32.totalorder %s8, 4
    // Predicated region
    $region13: #{dpcl_forward.6} parent=5 // pred_check
      %p138 = pneg %p137
    $region14: #{dpcl_forward.6} parent=5 // pred_check_branch
      %140 = sbr.rel (%p138) target = $region16
    $region15: #{dpcl_forward.6} parent=5 // pred_region
      // Predicated region
      $region17: #{dpcl_forward.6} parent=15 // pred_check
        %p141 = pneg %p52
      $region18: #{dpcl_forward.6} parent=15 // pred_check_branch
        %143 = sbr.rel (%p141) target = $region20
      $region19: #{dpcl_forward.6} parent=15 // pred_region
        %s144 = ssub.s32 1, %s15
        %s145 = smul.u32 %s144, %s16
        %s146 = ssub.s32 1, %s16
        %s147 = smul.u32 %s15, %s146
        %s148 = sadd.s32 %s145, %s147
        %s149 = smul.u32 8, %s148
        %p150 = scmp.lt.s32.totalorder %s15, 1
        %s151 = scalar_select %p150, %s15, 1
        %p152 = scmp.lt.s32.totalorder %s149, 15
        %s153 = scalar_select %p152, %s149, 15
        %s154 = smul.addr %s153, 4
        %s155 = smul.addr %s151, 64
        %s156 = sadd.s32 %s154, %s155
        %s157 = smul.addr %s156, 4
        %s158 = scalar_lea.vmem %s0, %s157
        %s159 = ssub.s32 1, %s15
        %s160 = smul.u32 %s159, %s16
        %s161 = ssub.s32 1, %s16
        %s162 = smul.u32 %s15, %s161
        %s163 = sadd.s32 %s160, %s162
        %s164 = smul.u32 8, %s163
      $region20: #{dpcl_forward.6} parent=15 // pred_fallthru
        _
      // Predicated region
      $region21: #{dpcl_forward.6} parent=15 // pred_check
        %p165 = pneg %p78
      $region22: #{dpcl_forward.6} parent=15 // pred_check_branch
        %167 = sbr.rel (%p165) target = $region24
      $region23: #{dpcl_forward.6} parent=15 // pred_region
        %p168 = scmp.lt.s32.totalorder %s15, 1
        %s169 = scalar_select %p168, %s15, 1
        %s170 = smul.addr %s169, 64
        %s171 = smul.addr %s170, 4
        %s172 = scalar_lea.vmem %s1, %s171
      $region24: #{dpcl_forward.6} parent=15 // pred_fallthru
        _
    $region16: #{dpcl_forward.6} parent=5 // pred_fallthru
      _
    %p173 = scmp.le.s32.totalorder 1, %s8
    %p174 = scmp.lt.s32.totalorder %s8, 5
    %p175 = pnand %p173, %p174
    %p176 = pneg %p175
    // Predicated region
    $region25: #{dpcl_forward.6} parent=5 // pred_check
      _
    $region26: #{dpcl_forward.6} parent=5 // pred_check_branch
      %178 = sbr.rel (%p175) target = $region28
    $region27: #{dpcl_forward.6} parent=5 // pred_region
      %s179 = ssub.s32 %s8, 1
      %s180 = ssub.s32 1, %s17
      %s181 = smul.u32 %s180, %s18
      %s182 = ssub.s32 1, %s18
      %s183 = smul.u32 %s17, %s182
      %s184 = sadd.s32 %s181, %s183
      %s185 = smul.u32 8, %s184
      %p186 = scmp.lt.s32.totalorder %s17, 1
      %s187 = scalar_select %p186, %s17, 1
      %p188 = scmp.lt.s32.totalorder %s185, 15
      %s189 = scalar_select %p188, %s185, 15
      %s190 = smul.addr %s189, 4
      %s191 = smul.addr %s187, 64
      %s192 = sadd.s32 %s190, %s191
      %s193 = smul.addr %s192, 4
      %s194 = scalar_lea.vmem %s0, %s193
      %p195 = pneg %p58
      %p196 = pneg %p55
      %p197 = scmp.lt.s32.totalorder %s17, 1
      %s198 = scalar_select %p197, %s17, 1
      %s199 = smul.addr %s198, 64
      %s200 = smul.addr %s199, 4
      %s201 = scalar_lea.vmem %s1, %s200
      %p202 = pneg %p84
      %p203 = pneg %p81
      %p204 = pneg %p122
      %p205 = pneg %p119
      %s206 = ssub.s32 1, %s17
      %s207 = smul.u32 %s206, %s18
      %s208 = ssub.s32 1, %s18
      %s209 = smul.u32 %s17, %s208
      %s210 = sadd.s32 %s207, %s209
      %s211 = smul.u32 8, %s210
      %p212 = scmp.lt.s32.totalorder %s17, 1
      %s213 = scalar_select %p212, %s17, 1
      %p214 = scmp.lt.s32.totalorder %s211, 15
      %s215 = scalar_select %p214, %s211, 15
      %s216 = smul.addr %s213, 16
      %s217 = sadd.s32 %s215, %s216
      %s218 = smul.addr %s217, 4
      %s219 = scalar_lea.vmem %s2, %s218
      %s220 = ssub.s32 1, %s17
      %s221 = smul.u32 %s220, %s18
      %s222 = ssub.s32 1, %s18
      %s223 = smul.u32 %s17, %s222
      %s224 = sadd.s32 %s221, %s223
      %s225 = smul.u32 8, %s224
      %p226 = scmp.lt.s32.totalorder %s17, 1
      %s227 = scalar_select %p226, %s17, 1
      %p228 = scmp.lt.s32.totalorder %s225, 15
      %s229 = scalar_select %p228, %s225, 15
      %s230 = smul.addr %s229, 4
      %s231 = smul.addr %s227, 64
      %s232 = sadd.s32 %s230, %s231
      %s233 = smul.addr %s232, 4
      %s234 = scalar_lea.vmem %s0, %s233
      %s235 = ssub.s32 1, %s17
      %s236 = smul.u32 %s235, %s18
      %s237 = ssub.s32 1, %s18
      %s238 = smul.u32 %s17, %s237
      %s239 = sadd.s32 %s236, %s238
      %s240 = smul.u32 8, %s239
      %p241 = scmp.lt.s32.totalorder %s17, 1
      %s242 = scalar_select %p241, %s17, 1
      %s243 = smul.addr %s242, 64
      %s244 = smul.addr %s243, 4
      %s245 = scalar_lea.vmem %s1, %s244
      %s246 = ssub.s32 1, %s17
      %s247 = smul.u32 %s246, %s18
      %s248 = ssub.s32 1, %s18
      %s249 = smul.u32 %s17, %s248
      %s250 = sadd.s32 %s247, %s249
      %s251 = smul.u32 8, %s250
      %p252 = scmp.lt.s32.totalorder %s17, 1
      %s253 = scalar_select %p252, %s17, 1
      %p254 = scmp.lt.s32.totalorder %s251, 15
      %s255 = scalar_select %p254, %s251, 15
      %s256 = smul.addr %s253, 16
      %s257 = sadd.s32 %s255, %s256
      %s258 = smul.addr %s257, 4
      %s259 = scalar_lea.vmem %s2, %s258
      %s260 = ssub.s32 1, %s17
      %s261 = smul.u32 %s260, %s18
      %s262 = ssub.s32 1, %s18
      %s263 = smul.u32 %s17, %s262
      %s264 = sadd.s32 %s261, %s263
      %s265 = smul.u32 8, %s264
      %p267 = scmp.eq.s32.totalorder %s18, 0
      // Predicated region
      $region29: #{dpcl_forward.6} parent=27 // pred_check
        %p268 = pneg %p267
      $region30: #{dpcl_forward.6} parent=27 // pred_check_branch
        %270 = sbr.rel (%p268) target = $region32
      $region31: #{dpcl_forward.6} parent=27 // pred_region
        %271 = vst [vmem:[#allocation2] sm:$0xff] 0.0
        %272 = vst [vmem:[#allocation3] sm:$0xff] 0.0
      $region32: #{dpcl_forward.6} parent=27 // pred_fallthru
        _
      %v273 = vld [vmem:[%s245] sm:$0xff]
      %v274 = vld [vmem:[%s245 + $0x8] sm:$0xff]
      %v275 = vld [vmem:[%s245 + $0x10] sm:$0xff]
      %v276 = vld [vmem:[%s245 + $0x18] sm:$0xff]
      %v277 = vld [vmem:[%s245 + $0x20] sm:$0xff]
      %v278 = vld [vmem:[%s245 + $0x28] sm:$0xff]
      %v279 = vld [vmem:[%s245 + $0x30] sm:$0xff]
      %v280 = vld [vmem:[%s245 + $0x38] sm:$0xff]
      %v281 = vld [vmem:[%s245 + $0x40] sm:$0xff]
      %v282 = vld [vmem:[%s245 + $0x48] sm:$0xff]
      %v283 = vld [vmem:[%s245 + $0x50] sm:$0xff]
      %v284 = vld [vmem:[%s245 + $0x58] sm:$0xff]
      %v285 = vld [vmem:[%s245 + $0x60] sm:$0xff]
      %v286 = vld [vmem:[%s245 + $0x68] sm:$0xff]
      %v287 = vld [vmem:[%s245 + $0x70] sm:$0xff]
      %v288 = vld [vmem:[%s245 + $0x78] sm:$0xff]
      %v289 = vld [vmem:[%s245 + $0x80] sm:$0xff]
      %v290 = vld [vmem:[%s245 + $0x88] sm:$0xff]
      %v291 = vld [vmem:[%s245 + $0x90] sm:$0xff]
      %v292 = vld [vmem:[%s245 + $0x98] sm:$0xff]
      %v293 = vld [vmem:[%s245 + $0xa0] sm:$0xff]
      %v294 = vld [vmem:[%s245 + $0xa8] sm:$0xff]
      %v295 = vld [vmem:[%s245 + $0xb0] sm:$0xff]
      %v296 = vld [vmem:[%s245 + $0xb8] sm:$0xff]
      %v297 = vld [vmem:[%s245 + $0xc0] sm:$0xff]
      %v298 = vld [vmem:[%s245 + $0xc8] sm:$0xff]
      %v299 = vld [vmem:[%s245 + $0xd0] sm:$0xff]
      %v300 = vld [vmem:[%s245 + $0xd8] sm:$0xff]
      %v301 = vld [vmem:[%s245 + $0xe0] sm:$0xff]
      %v302 = vld [vmem:[%s245 + $0xe8] sm:$0xff]
      %v303 = vld [vmem:[%s245 + $0xf0] sm:$0xff]
      %v304 = vld [vmem:[%s245 + $0xf8] sm:$0xff]
      %p305 = scmp.eq.s32.totalorder %s17, 0
      // Predicated region
      $region33: #{dpcl_forward.6} parent=27 // pred_check
        %p306 = pneg %p305
      $region34: #{dpcl_forward.6} parent=27 // pred_check_branch
        %308 = sbr.rel (%p306) target = $region36
      $region35: #{dpcl_forward.6} parent=27 // pred_region
        %v309 = vld [vmem:[#allocation2] sm:$0xff]
        %v310 = vld [vmem:[#allocation3] sm:$0xff]
        %v311 = vld [vmem:[%s234] sm:$0xff]
        %v312 = vld [vmem:[%s234 + $0x8] sm:$0xff]
        %v313 = vunpack.c.l.bf16 %v311
        %v314 = vunpack.c.h.bf16 %v311
        %v315 = vunpack.c.l.bf16 %v312
        %v316 = vunpack.c.h.bf16 %v312
        %v317 = vpack.c.bf16 %v309, %v309
        %v350 = vunpack.c.l.b16 %v273
        %v351 = vunpack.c.h.b16 %v273
        %v352 = vunpack.c.l.b16 %v274
        %v353 = vunpack.c.h.b16 %v274
        %v354 = vunpack.c.l.b16 %v275
        %v355 = vunpack.c.h.b16 %v275
        %v356 = vunpack.c.l.b16 %v276
        %v357 = vunpack.c.h.b16 %v276
        %v358 = vunpack.c.l.b16 %v277
        %v359 = vunpack.c.h.b16 %v277
        %v360 = vunpack.c.l.b16 %v278
        %v361 = vunpack.c.h.b16 %v278
        %v362 = vunpack.c.l.b16 %v279
        %v363 = vunpack.c.h.b16 %v279
        %v364 = vunpack.c.l.b16 %v280
        %v365 = vunpack.c.h.b16 %v280
        %v366 = vunpack.c.l.b16 %v281
        %v367 = vunpack.c.h.b16 %v281
        %v368 = vunpack.c.l.b16 %v282
        %v369 = vunpack.c.h.b16 %v282
        %v370 = vunpack.c.l.b16 %v283
        %v371 = vunpack.c.h.b16 %v283
        %v372 = vunpack.c.l.b16 %v284
        %v373 = vunpack.c.h.b16 %v284
        %v374 = vunpack.c.l.b16 %v285
        %v375 = vunpack.c.h.b16 %v285
        %v376 = vunpack.c.l.b16 %v286
        %v377 = vunpack.c.h.b16 %v286
        %v378 = vunpack.c.l.b16 %v287
        %v379 = vunpack.c.h.b16 %v287
        %v380 = vunpack.c.l.b16 %v288
        %v381 = vunpack.c.h.b16 %v288
        %v382 = vunpack.c.l.b16 %v289
        %v383 = vunpack.c.h.b16 %v289
        %v384 = vunpack.c.l.b16 %v290
        %v385 = vunpack.c.h.b16 %v290
        %v386 = vunpack.c.l.b16 %v291
        %v387 = vunpack.c.h.b16 %v291
        %v388 = vunpack.c.l.b16 %v292
        %v389 = vunpack.c.h.b16 %v292
        %v390 = vunpack.c.l.b16 %v293
        %v391 = vunpack.c.h.b16 %v293
        %v392 = vunpack.c.l.b16 %v294
        %v393 = vunpack.c.h.b16 %v294
        %v394 = vunpack.c.l.b16 %v295
        %v395 = vunpack.c.h.b16 %v295
        %v396 = vunpack.c.l.b16 %v296
        %v397 = vunpack.c.h.b16 %v296
        %v398 = vunpack.c.l.b16 %v297
        %v399 = vunpack.c.h.b16 %v297
        %v400 = vunpack.c.l.b16 %v298
        %v401 = vunpack.c.h.b16 %v298
        %v402 = vunpack.c.l.b16 %v299
        %v403 = vunpack.c.h.b16 %v299
        %v404 = vunpack.c.l.b16 %v300
        %v405 = vunpack.c.h.b16 %v300
        %v406 = vunpack.c.l.b16 %v301
        %v407 = vunpack.c.h.b16 %v301
        %v408 = vunpack.c.l.b16 %v302
        %v409 = vunpack.c.h.b16 %v302
        %v410 = vunpack.c.l.b16 %v303
        %v411 = vunpack.c.h.b16 %v303
        %v412 = vunpack.c.l.b16 %v304
        %v413 = vunpack.c.h.b16 %v304
        %v414 = vpack.c.b16 %v354, %v350
        %v415 = vpack.c.b16 %v355, %v351
        %v416 = vpack.c.b16 %v356, %v352
        %v417 = vpack.c.b16 %v357, %v353
        %v418 = vpack.c.b16 %v362, %v358
        %v419 = vpack.c.b16 %v363, %v359
        %v420 = vpack.c.b16 %v364, %v360
        %v421 = vpack.c.b16 %v365, %v361
        %v422 = vpack.c.b16 %v370, %v366
        %v423 = vpack.c.b16 %v371, %v367
        %v424 = vpack.c.b16 %v372, %v368
        %v425 = vpack.c.b16 %v373, %v369
        %v426 = vpack.c.b16 %v378, %v374
        %v427 = vpack.c.b16 %v379, %v375
        %v428 = vpack.c.b16 %v380, %v376
        %v429 = vpack.c.b16 %v381, %v377
        %v430 = vpack.c.b16 %v386, %v382
        %v431 = vpack.c.b16 %v387, %v383
        %v432 = vpack.c.b16 %v388, %v384
        %v433 = vpack.c.b16 %v389, %v385
        %v434 = vpack.c.b16 %v394, %v390
        %v435 = vpack.c.b16 %v395, %v391
        %v436 = vpack.c.b16 %v396, %v392
        %v437 = vpack.c.b16 %v397, %v393
        %v438 = vpack.c.b16 %v402, %v398
        %v439 = vpack.c.b16 %v403, %v399
        %v440 = vpack.c.b16 %v404, %v400
        %v441 = vpack.c.b16 %v405, %v401
        %v442 = vpack.c.b16 %v410, %v406
        %v443 = vpack.c.b16 %v411, %v407
        %v444 = vpack.c.b16 %v412, %v408
        %v445 = vpack.c.b16 %v413, %v409
        %478 = vmatprep.subr.bf16.mxu0 %v415
        %479 = vmatpush1.bf16.msra.mxu0 %v414
        %480 = vmatprep.subr.bf16.mxu0 %v419
        %481 = vmatpush1.bf16.msra.mxu0 %v418
        %482 = vmatprep.subr.bf16.mxu0 %v423
        %483 = vmatpush1.bf16.msra.mxu0 %v422
        %484 = vmatprep.subr.bf16.mxu0 %v427
        %485 = vmatpush1.bf16.msra.mxu0 %v426
        %486 = vmatprep.subr.bf16.mxu0 %v431
        %487 = vmatpush1.bf16.msra.mxu0 %v430
        %488 = vmatprep.subr.bf16.mxu0 %v435
        %489 = vmatpush1.bf16.msra.mxu0 %v434
        %490 = vmatprep.subr.bf16.mxu0 %v439
        %491 = vmatpush1.bf16.msra.mxu0 %v438
        %492 = vmatprep.subr.bf16.mxu0 %v443
        %493 = vmatpush1.bf16.msra.mxu0 %v442
        %494 = vmatprep.subr.bf16.mxu0 0
        %495 = vmatpush1.bf16.msra.mxu0 0
        %496 = vmatprep.subr.bf16.mxu0 0
        %497 = vmatpush1.bf16.msra.mxu0 0
        %498 = vmatprep.subr.bf16.mxu0 0
        %499 = vmatpush1.bf16.msra.mxu0 0
        %500 = vmatprep.subr.bf16.mxu0 0
        %501 = vmatpush1.bf16.msra.mxu0 0
        %502 = vmatprep.subr.bf16.mxu0 0
        %503 = vmatpush1.bf16.msra.mxu0 0
        %504 = vmatprep.subr.bf16.mxu0 0
        %505 = vmatpush1.bf16.msra.mxu0 0
        %506 = vmatprep.subr.bf16.mxu0 0
        %507 = vmatpush1.bf16.msra.mxu0 0
        %508 = vmatprep.subr.bf16.mxu0 0
        %509 = vmatpush1.bf16.msra.mxu0 0
        %510 = vmatprep.mubr.bf16.mxu0 0
        %511 = vmatmul.mubr.bf16.gmra.mrb[0].mxu0 %v317
        %v512 = vpop.f32.mrb[0].mxu0
        %v513 = vadd.f32 0.0, %v512
        %v514 = vpop.f32.mrb[0].mxu0
        %v515 = vadd.f32 0.0, %v514
        %v516 = vpop.f32.mrb[0].mxu0
        %v517 = vpop.f32.mrb[0].mxu0
        %518 = vdwg.mxu0
        %519 = vmatprep.subr.bf16.mxu0 %v417
        %520 = vmatpush1.bf16.msra.mxu0 %v416
        %521 = vmatprep.subr.bf16.mxu0 %v421
        %522 = vmatpush1.bf16.msra.mxu0 %v420
        %523 = vmatprep.subr.bf16.mxu0 %v425
        %524 = vmatpush1.bf16.msra.mxu0 %v424
        %525 = vmatprep.subr.bf16.mxu0 %v429
        %526 = vmatpush1.bf16.msra.mxu0 %v428
        %527 = vmatprep.subr.bf16.mxu0 %v433
        %528 = vmatpush1.bf16.msra.mxu0 %v432
        %529 = vmatprep.subr.bf16.mxu0 %v437
        %530 = vmatpush1.bf16.msra.mxu0 %v436
        %531 = vmatprep.subr.bf16.mxu0 %v441
        %532 = vmatpush1.bf16.msra.mxu0 %v440
        %533 = vmatprep.subr.bf16.mxu0 %v445
        %534 = vmatpush1.bf16.msra.mxu0 %v444
        %535 = vmatprep.subr.bf16.mxu0 0
        %536 = vmatpush1.bf16.msra.mxu0 0
        %537 = vmatprep.subr.bf16.mxu0 0
        %538 = vmatpush1.bf16.msra.mxu0 0
        %539 = vmatprep.subr.bf16.mxu0 0
        %540 = vmatpush1.bf16.msra.mxu0 0
        %541 = vmatprep.subr.bf16.mxu0 0
        %542 = vmatpush1.bf16.msra.mxu0 0
        %543 = vmatprep.subr.bf16.mxu0 0
        %544 = vmatpush1.bf16.msra.mxu0 0
        %545 = vmatprep.subr.bf16.mxu0 0
        %546 = vmatpush1.bf16.msra.mxu0 0
        %547 = vmatprep.subr.bf16.mxu0 0
        %548 = vmatpush1.bf16.msra.mxu0 0
        %549 = vmatprep.subr.bf16.mxu0 0
        %550 = vmatpush1.bf16.msra.mxu0 0
        %551 = vmatprep.mubr.bf16.mxu0 0
        %552 = vmatmul.mubr.bf16.gmra.mrb[0].mxu0 %v317
        %v553 = vpop.f32.mrb[0].mxu0
        %v554 = vadd.f32 0.0, %v553
        %v555 = vpop.f32.mrb[0].mxu0
        %v556 = vadd.f32 0.0, %v555
        %v557 = vpop.f32.mrb[0].mxu0
        %v558 = vpop.f32.mrb[0].mxu0
        %559 = vdwg.mxu0
        %v560 = vadd.f32 %v313, %v513
        %v561 = vadd.f32 %v314, %v515
        %v562 = vadd.f32 %v315, %v554
        %v563 = vadd.f32 %v316, %v556
        %v564 = vxor.u32 %v560, 2147483648
        %v565 = vxor.u32 %v561, 2147483648
        %v566 = vxor.u32 %v562, 2147483648
        %v567 = vmul.f32 %v564, 1.442695
        %v568 = vpow.pop %v567
        %v569 = vmul.f32 %v565, 1.442695
        %v570 = vpow.pop %v569
        %v571 = vmul.f32 %v566, 1.442695
        %v572 = vpow.pop %v571
        %v573 = vadd.f32 %v568, 1.0
        %v574 = vadd.f32 %v570, 1.0
        %v575 = vadd.f32 %v572, 1.0
        %v576 = vrcp.pop %v573
        %v577 = vmul.f32 1.0, %v576
        %v578 = vrcp.pop %v574
        %v579 = vmul.f32 1.0, %v578
        %v580 = vrcp.pop %v575
        %v581 = vmul.f32 1.0, %v580
        %v582 = vtanh.pop %v563
        %v583 = vmul.f32 %v579, %v310
        %v584 = vmul.f32 %v577, %v582
        %v585 = vadd.f32 %v583, %v584
        %v586 = vtanh.pop %v585
        %v587 = vmul.f32 %v581, %v586
        %v588 = vpack.c.bf16 %v587, %v587
        %589 = vst [vmem:[%s259] sm:$0xf] %v588
        %s590 = scalar_lea.vmem %s234, 16
        %v591 = vld [vmem:[%s590] sm:$0xff]
        %v592 = vld [vmem:[%s590 + $0x8] sm:$0xff]
        %v593 = vunpack.c.l.bf16 %v591
        %v594 = vunpack.c.h.bf16 %v591
        %v595 = vunpack.c.l.bf16 %v592
        %v596 = vunpack.c.h.bf16 %v592
        %597 = vmatprep.subr.bf16.mxu0 %v415
        %598 = vmatpush1.bf16.msra.mxu0 %v414
        %599 = vmatprep.subr.bf16.mxu0 %v419
        %600 = vmatpush1.bf16.msra.mxu0 %v418
        %601 = vmatprep.subr.bf16.mxu0 %v423
        %602 = vmatpush1.bf16.msra.mxu0 %v422
        %603 = vmatprep.subr.bf16.mxu0 %v427
        %604 = vmatpush1.bf16.msra.mxu0 %v426
        %605 = vmatprep.subr.bf16.mxu0 %v431
        %606 = vmatpush1.bf16.msra.mxu0 %v430
        %607 = vmatprep.subr.bf16.mxu0 %v435
        %608 = vmatpush1.bf16.msra.mxu0 %v434
        %609 = vmatprep.subr.bf16.mxu0 %v439
        %610 = vmatpush1.bf16.msra.mxu0 %v438
        %611 = vmatprep.subr.bf16.mxu0 %v443
        %612 = vmatpush1.bf16.msra.mxu0 %v442
        %613 = vmatprep.subr.bf16.mxu0 0
        %614 = vmatpush1.bf16.msra.mxu0 0
        %615 = vmatprep.subr.bf16.mxu0 0
        %616 = vmatpush1.bf16.msra.mxu0 0
        %617 = vmatprep.subr.bf16.mxu0 0
        %618 = vmatpush1.bf16.msra.mxu0 0
        %619 = vmatprep.subr.bf16.mxu0 0
        %620 = vmatpush1.bf16.msra.mxu0 0
        %621 = vmatprep.subr.bf16.mxu0 0
        %622 = vmatpush1.bf16.msra.mxu0 0
        %623 = vmatprep.subr.bf16.mxu0 0
        %624 = vmatpush1.bf16.msra.mxu0 0
        %625 = vmatprep.subr.bf16.mxu0 0
        %626 = vmatpush1.bf16.msra.mxu0 0
        %627 = vmatprep.subr.bf16.mxu0 0
        %628 = vmatpush1.bf16.msra.mxu0 0
        %629 = vmatprep.mubr.bf16.mxu0 0
        %630 = vmatmul.mubr.bf16.gmra.mrb[0].mxu0 %v588
        %v631 = vpop.f32.mrb[0].mxu0
        %v632 = vadd.f32 0.0, %v631
        %v633 = vpop.f32.mrb[0].mxu0
        %v634 = vadd.f32 0.0, %v633
        %v635 = vpop.f32.mrb[0].mxu0
        %v636 = vpop.f32.mrb[0].mxu0
        %637 = vdwg.mxu0
        %638 = vmatprep.subr.bf16.mxu0 %v417
        %639 = vmatpush1.bf16.msra.mxu0 %v416
        %640 = vmatprep.subr.bf16.mxu0 %v421
        %641 = vmatpush1.bf16.msra.mxu0 %v420
        %642 = vmatprep.subr.bf16.mxu0 %v425
        %643 = vmatpush1.bf16.msra.mxu0 %v424
        %644 = vmatprep.subr.bf16.mxu0 %v429
        %645 = vmatpush1.bf16.msra.mxu0 %v428
        %646 = vmatprep.subr.bf16.mxu0 %v433
        %647 = vmatpush1.bf16.msra.mxu0 %v432
        %648 = vmatprep.subr.bf16.mxu0 %v437
        %649 = vmatpush1.bf16.msra.mxu0 %v436
        %650 = vmatprep.subr.bf16.mxu0 %v441
        %651 = vmatpush1.bf16.msra.mxu0 %v440
        %652 = vmatprep.subr.bf16.mxu0 %v445
        %653 = vmatpush1.bf16.msra.mxu0 %v444
        %654 = vmatprep.subr.bf16.mxu0 0
        %655 = vmatpush1.bf16.msra.mxu0 0
        %656 = vmatprep.subr.bf16.mxu0 0
        %657 = vmatpush1.bf16.msra.mxu0 0
        %658 = vmatprep.subr.bf16.mxu0 0
        %659 = vmatpush1.bf16.msra.mxu0 0
        %660 = vmatprep.subr.bf16.mxu0 0
        %661 = vmatpush1.bf16.msra.mxu0 0
        %662 = vmatprep.subr.bf16.mxu0 0
        %663 = vmatpush1.bf16.msra.mxu0 0
        %664 = vmatprep.subr.bf16.mxu0 0
        %665 = vmatpush1.bf16.msra.mxu0 0
        %666 = vmatprep.subr.bf16.mxu0 0
        %667 = vmatpush1.bf16.msra.mxu0 0
        %668 = vmatprep.subr.bf16.mxu0 0
        %669 = vmatpush1.bf16.msra.mxu0 0
        %670 = vmatprep.mubr.bf16.mxu0 0
        %671 = vmatmul.mubr.bf16.gmra.mrb[0].mxu0 %v588
        %v672 = vpop.f32.mrb[0].mxu0
        %v673 = vadd.f32 0.0, %v672
        %v674 = vpop.f32.mrb[0].mxu0
        %v675 = vadd.f32 0.0, %v674
        %v676 = vpop.f32.mrb[0].mxu0
        %v677 = vpop.f32.mrb[0].mxu0
        %678 = vdwg.mxu0
        %v679 = vadd.f32 %v593, %v632
        %v680 = vadd.f32 %v594, %v634
        %v681 = vadd.f32 %v595, %v673
        %v682 = vadd.f32 %v596, %v675
        %v683 = vxor.u32 %v679, 2147483648
        %v684 = vxor.u32 %v680, 2147483648
        %v685 = vxor.u32 %v681, 2147483648
        %v686 = vmul.f32 %v683, 1.442695
        %v687 = vpow.pop %v686
        %v688 = vmul.f32 %v684, 1.442695
        %v689 = vpow.pop %v688
        %v690 = vmul.f32 %v685, 1.442695
        %v691 = vpow.pop %v690
        %v692 = vadd.f32 %v687, 1.0
        %v693 = vadd.f32 %v689, 1.0
        %v694 = vadd.f32 %v691, 1.0
        %v695 = vrcp.pop %v692
        %v696 = vmul.f32 1.0, %v695
        %v697 = vrcp.pop %v693
        %v698 = vmul.f32 1.0, %v697
        %v699 = vrcp.pop %v694
        %v700 = vmul.f32 1.0, %v699
        %v701 = vtanh.pop %v682
        %v702 = vmul.f32 %v698, %v585
        %v703 = vmul.f32 %v696, %v701
        %v704 = vadd.f32 %v702, %v703
        %v705 = vtanh.pop %v704
        %v706 = vmul.f32 %v700, %v705
        %v707 = vpack.c.bf16 %v706, %v706
        %s708 = scalar_lea.vmem %s259, 4
        %709 = vst [vmem:[%s708] sm:$0xf] %v707
        %s710 = scalar_lea.vmem %s234, 32
        %v711 = vld [vmem:[%s710] sm:$0xff]
        %v712 = vld [vmem:[%s710 + $0x8] sm:$0xff]
        %v713 = vunpack.c.l.bf16 %v711
        %v714 = vunpack.c.h.bf16 %v711
        %v715 = vunpack.c.l.bf16 %v712
        %v716 = vunpack.c.h.bf16 %v712
        %717 = vmatprep.subr.bf16.mxu0 %v415
        %718 = vmatpush1.bf16.msra.mxu0 %v414
        %719 = vmatprep.subr.bf16.mxu0 %v419
        %720 = vmatpush1.bf16.msra.mxu0 %v418
        %721 = vmatprep.subr.bf16.mxu0 %v423
        %722 = vmatpush1.bf16.msra.mxu0 %v422
        %723 = vmatprep.subr.bf16.mxu0 %v427
        %724 = vmatpush1.bf16.msra.mxu0 %v426
        %725 = vmatprep.subr.bf16.mxu0 %v431
        %726 = vmatpush1.bf16.msra.mxu0 %v430
        %727 = vmatprep.subr.bf16.mxu0 %v435
        %728 = vmatpush1.bf16.msra.mxu0 %v434
        %729 = vmatprep.subr.bf16.mxu0 %v439
        %730 = vmatpush1.bf16.msra.mxu0 %v438
        %731 = vmatprep.subr.bf16.mxu0 %v443
        %732 = vmatpush1.bf16.msra.mxu0 %v442
        %733 = vmatprep.subr.bf16.mxu0 0
        %734 = vmatpush1.bf16.msra.mxu0 0
        %735 = vmatprep.subr.bf16.mxu0 0
        %736 = vmatpush1.bf16.msra.mxu0 0
        %737 = vmatprep.subr.bf16.mxu0 0
        %738 = vmatpush1.bf16.msra.mxu0 0
        %739 = vmatprep.subr.bf16.mxu0 0
        %740 = vmatpush1.bf16.msra.mxu0 0
        %741 = vmatprep.subr.bf16.mxu0 0
        %742 = vmatpush1.bf16.msra.mxu0 0
        %743 = vmatprep.subr.bf16.mxu0 0
        %744 = vmatpush1.bf16.msra.mxu0 0
        %745 = vmatprep.subr.bf16.mxu0 0
        %746 = vmatpush1.bf16.msra.mxu0 0
        %747 = vmatprep.subr.bf16.mxu0 0
        %748 = vmatpush1.bf16.msra.mxu0 0
        %749 = vmatprep.mubr.bf16.mxu0 0
        %750 = vmatmul.mubr.bf16.gmra.mrb[0].mxu0 %v707
        %v751 = vpop.f32.mrb[0].mxu0
        %v752 = vadd.f32 0.0, %v751
        %v753 = vpop.f32.mrb[0].mxu0
        %v754 = vadd.f32 0.0, %v753
        %v755 = vpop.f32.mrb[0].mxu0
        %v756 = vpop.f32.mrb[0].mxu0
        %757 = vdwg.mxu0
        %758 = vmatprep.subr.bf16.mxu0 %v417
        %759 = vmatpush1.bf16.msra.mxu0 %v416
        %760 = vmatprep.subr.bf16.mxu0 %v421
        %761 = vmatpush1.bf16.msra.mxu0 %v420
        %762 = vmatprep.subr.bf16.mxu0 %v425
        %763 = vmatpush1.bf16.msra.mxu0 %v424
        %764 = vmatprep.subr.bf16.mxu0 %v429
        %765 = vmatpush1.bf16.msra.mxu0 %v428
        %766 = vmatprep.subr.bf16.mxu0 %v433
        %767 = vmatpush1.bf16.msra.mxu0 %v432
        %768 = vmatprep.subr.bf16.mxu0 %v437
        %769 = vmatpush1.bf16.msra.mxu0 %v436
        %770 = vmatprep.subr.bf16.mxu0 %v441
        %771 = vmatpush1.bf16.msra.mxu0 %v440
        %772 = vmatprep.subr.bf16.mxu0 %v445
        %773 = vmatpush1.bf16.msra.mxu0 %v444
        %774 = vmatprep.subr.bf16.mxu0 0
        %775 = vmatpush1.bf16.msra.mxu0 0
        %776 = vmatprep.subr.bf16.mxu0 0
        %777 = vmatpush1.bf16.msra.mxu0 0
        %778 = vmatprep.subr.bf16.mxu0 0
        %779 = vmatpush1.bf16.msra.mxu0 0
        %780 = vmatprep.subr.bf16.mxu0 0
        %781 = vmatpush1.bf16.msra.mxu0 0
        %782 = vmatprep.subr.bf16.mxu0 0
        %783 = vmatpush1.bf16.msra.mxu0 0
        %784 = vmatprep.subr.bf16.mxu0 0
        %785 = vmatpush1.bf16.msra.mxu0 0
        %786 = vmatprep.subr.bf16.mxu0 0
        %787 = vmatpush1.bf16.msra.mxu0 0
        %788 = vmatprep.subr.bf16.mxu0 0
        %789 = vmatpush1.bf16.msra.mxu0 0
        %790 = vmatprep.mubr.bf16.mxu0 0
        %791 = vmatmul.mubr.bf16.gmra.mrb[0].mxu0 %v707
        %v792 = vpop.f32.mrb[0].mxu0
        %v793 = vadd.f32 0.0, %v792
        %v794 = vpop.f32.mrb[0].mxu0
        %v795 = vadd.f32 0.0, %v794
        %v796 = vpop.f32.mrb[0].mxu0
        %v797 = vpop.f32.mrb[0].mxu0
        %798 = vdwg.mxu0
        %v799 = vadd.f32 %v713, %v752
        %v800 = vadd.f32 %v714, %v754
        %v801 = vadd.f32 %v715, %v793
        %v802 = vadd.f32 %v716, %v795
        %v803 = vxor.u32 %v799, 2147483648
        %v804 = vxor.u32 %v800, 2147483648
        %v805 = vxor.u32 %v801, 2147483648
        %v806 = vmul.f32 %v803, 1.442695
        %v807 = vpow.pop %v806
        %v808 = vmul.f32 %v804, 1.442695
        %v809 = vpow.pop %v808
        %v810 = vmul.f32 %v805, 1.442695
        %v811 = vpow.pop %v810
        %v812 = vadd.f32 %v807, 1.0
        %v813 = vadd.f32 %v809, 1.0
        %v814 = vadd.f32 %v811, 1.0
        %v815 = vrcp.pop %v812
        %v816 = vmul.f32 1.0, %v815
        %v817 = vrcp.pop %v813
        %v818 = vmul.f32 1.0, %v817
        %v819 = vrcp.pop %v814
        %v820 = vmul.f32 1.0, %v819
        %v821 = vtanh.pop %v802
        %v822 = vmul.f32 %v818, %v704
        %v823 = vmul.f32 %v816, %v821
        %v824 = vadd.f32 %v822, %v823
        %v825 = vtanh.pop %v824
        %v826 = vmul.f32 %v820, %v825
        %v827 = vpack.c.bf16 %v826, %v826
        %s828 = scalar_lea.vmem %s259, 8
        %829 = vst [vmem:[%s828] sm:$0xf] %v827
        %s830 = scalar_lea.vmem %s234, 48
        %v831 = vld [vmem:[%s830] sm:$0xff]
        %v832 = vld [vmem:[%s830 + $0x8] sm:$0xff]
        %v833 = vunpack.c.l.bf16 %v831
        %v834 = vunpack.c.h.bf16 %v831
        %v835 = vunpack.c.l.bf16 %v832
        %v836 = vunpack.c.h.bf16 %v832
        %837 = vmatprep.subr.bf16.mxu0 %v415
        %838 = vmatpush1.bf16.msra.mxu0 %v414
        %839 = vmatprep.subr.bf16.mxu0 %v419
        %840 = vmatpush1.bf16.msra.mxu0 %v418
        %841 = vmatprep.subr.bf16.mxu0 %v423
        %842 = vmatpush1.bf16.msra.mxu0 %v422
        %843 = vmatprep.subr.bf16.mxu0 %v427
        %844 = vmatpush1.bf16.msra.mxu0 %v426
        %845 = vmatprep.subr.bf16.mxu0 %v431
        %846 = vmatpush1.bf16.msra.mxu0 %v430
        %847 = vmatprep.subr.bf16.mxu0 %v435
        %848 = vmatpush1.bf16.msra.mxu0 %v434
        %849 = vmatprep.subr.bf16.mxu0 %v439
        %850 = vmatpush1.bf16.msra.mxu0 %v438
        %851 = vmatprep.subr.bf16.mxu0 %v443
        %852 = vmatpush1.bf16.msra.mxu0 %v442
        %853 = vmatprep.subr.bf16.mxu0 0
        %854 = vmatpush1.bf16.msra.mxu0 0
        %855 = vmatprep.subr.bf16.mxu0 0
        %856 = vmatpush1.bf16.msra.mxu0 0
        %857 = vmatprep.subr.bf16.mxu0 0
        %858 = vmatpush1.bf16.msra.mxu0 0
        %859 = vmatprep.subr.bf16.mxu0 0
        %860 = vmatpush1.bf16.msra.mxu0 0
        %861 = vmatprep.subr.bf16.mxu0 0
        %862 = vmatpush1.bf16.msra.mxu0 0
        %863 = vmatprep.subr.bf16.mxu0 0
        %864 = vmatpush1.bf16.msra.mxu0 0
        %865 = vmatprep.subr.bf16.mxu0 0
        %866 = vmatpush1.bf16.msra.mxu0 0
        %867 = vmatprep.subr.bf16.mxu0 0
        %868 = vmatpush1.bf16.msra.mxu0 0
        %869 = vmatprep.mubr.bf16.mxu0 0
        %870 = vmatmul.mubr.bf16.gmra.mrb[0].mxu0 %v827
        %v871 = vpop.f32.mrb[0].mxu0
        %v872 = vadd.f32 0.0, %v871
        %v873 = vpop.f32.mrb[0].mxu0
        %v874 = vadd.f32 0.0, %v873
        %v875 = vpop.f32.mrb[0].mxu0
        %v876 = vpop.f32.mrb[0].mxu0
        %877 = vdwg.mxu0
        %878 = vmatprep.subr.bf16.mxu0 %v417
        %879 = vmatpush1.bf16.msra.mxu0 %v416
        %880 = vmatprep.subr.bf16.mxu0 %v421
        %881 = vmatpush1.bf16.msra.mxu0 %v420
        %882 = vmatprep.subr.bf16.mxu0 %v425
        %883 = vmatpush1.bf16.msra.mxu0 %v424
        %884 = vmatprep.subr.bf16.mxu0 %v429
        %885 = vmatpush1.bf16.msra.mxu0 %v428
        %886 = vmatprep.subr.bf16.mxu0 %v433
        %887 = vmatpush1.bf16.msra.mxu0 %v432
        %888 = vmatprep.subr.bf16.mxu0 %v437
        %889 = vmatpush1.bf16.msra.mxu0 %v436
        %890 = vmatprep.subr.bf16.mxu0 %v441
        %891 = vmatpush1.bf16.msra.mxu0 %v440
        %892 = vmatprep.subr.bf16.mxu0 %v445
        %893 = vmatpush1.bf16.msra.mxu0 %v444
        %894 = vmatprep.subr.bf16.mxu0 0
        %895 = vmatpush1.bf16.msra.mxu0 0
        %896 = vmatprep.subr.bf16.mxu0 0
        %897 = vmatpush1.bf16.msra.mxu0 0
        %898 = vmatprep.subr.bf16.mxu0 0
        %899 = vmatpush1.bf16.msra.mxu0 0
        %900 = vmatprep.subr.bf16.mxu0 0
        %901 = vmatpush1.bf16.msra.mxu0 0
        %902 = vmatprep.subr.bf16.mxu0 0
        %903 = vmatpush1.bf16.msra.mxu0 0
        %904 = vmatprep.subr.bf16.mxu0 0
        %905 = vmatpush1.bf16.msra.mxu0 0
        %906 = vmatprep.subr.bf16.mxu0 0
        %907 = vmatpush1.bf16.msra.mxu0 0
        %908 = vmatprep.subr.bf16.mxu0 0
        %909 = vmatpush1.bf16.msra.mxu0 0
        %910 = vmatprep.mubr.bf16.mxu0 0
        %911 = vmatmul.mubr.bf16.gmra.mrb[0].mxu0 %v827
        %v912 = vpop.f32.mrb[0].mxu0
        %v913 = vadd.f32 0.0, %v912
        %v914 = vpop.f32.mrb[0].mxu0
        %v915 = vadd.f32 0.0, %v914
        %v916 = vpop.f32.mrb[0].mxu0
        %v917 = vpop.f32.mrb[0].mxu0
        %918 = vdwg.mxu0
        %v919 = vadd.f32 %v833, %v872
        %v920 = vadd.f32 %v834, %v874
        %v921 = vadd.f32 %v835, %v913
        %v922 = vadd.f32 %v836, %v915
        %v923 = vxor.u32 %v919, 2147483648
        %v924 = vxor.u32 %v920, 2147483648
        %v925 = vxor.u32 %v921, 2147483648
        %v926 = vmul.f32 %v923, 1.442695
        %v927 = vpow.pop %v926
        %v928 = vmul.f32 %v924, 1.442695
        %v929 = vpow.pop %v928
        %v930 = vmul.f32 %v925, 1.442695
        %v931 = vpow.pop %v930
        %v932 = vadd.f32 %v927, 1.0
        %v933 = vadd.f32 %v929, 1.0
        %v934 = vadd.f32 %v931, 1.0
        %v935 = vrcp.pop %v932
        %v936 = vmul.f32 1.0, %v935
        %v937 = vrcp.pop %v933
        %v938 = vmul.f32 1.0, %v937
        %v939 = vrcp.pop %v934
        %v940 = vmul.f32 1.0, %v939
        %v941 = vtanh.pop %v922
        %v942 = vmul.f32 %v938, %v824
        %v943 = vmul.f32 %v936, %v941
        %v944 = vadd.f32 %v942, %v943
        %v945 = vtanh.pop %v944
        %v946 = vmul.f32 %v940, %v945
        %v947 = vpack.c.bf16 %v946, %v946
        %s948 = scalar_lea.vmem %s259, 12
        %949 = vst [vmem:[%s948] sm:$0xf] %v947
        %s950 = scalar_lea.vmem %s234, 64
        %v951 = vld [vmem:[%s950] sm:$0xff]
        %v952 = vld [vmem:[%s950 + $0x8] sm:$0xff]
        %v953 = vunpack.c.l.bf16 %v951
        %v954 = vunpack.c.h.bf16 %v951
        %v955 = vunpack.c.l.bf16 %v952
        %v956 = vunpack.c.h.bf16 %v952
        %957 = vmatprep.subr.bf16.mxu0 %v415
        %958 = vmatpush1.bf16.msra.mxu0 %v414
        %959 = vmatprep.subr.bf16.mxu0 %v419
        %960 = vmatpush1.bf16.msra.mxu0 %v418
        %961 = vmatprep.subr.bf16.mxu0 %v423
        %962 = vmatpush1.bf16.msra.mxu0 %v422
        %963 = vmatprep.subr.bf16.mxu0 %v427
        %964 = vmatpush1.bf16.msra.mxu0 %v426
        %965 = vmatprep.subr.bf16.mxu0 %v431
        %966 = vmatpush1.bf16.msra.mxu0 %v430
        %967 = vmatprep.subr.bf16.mxu0 %v435
        %968 = vmatpush1.bf16.msra.mxu0 %v434
        %969 = vmatprep.subr.bf16.mxu0 %v439
        %970 = vmatpush1.bf16.msra.mxu0 %v438
        %971 = vmatprep.subr.bf16.mxu0 %v443
        %972 = vmatpush1.bf16.msra.mxu0 %v442
        %973 = vmatprep.subr.bf16.mxu0 0
        %974 = vmatpush1.bf16.msra.mxu0 0
        %975 = vmatprep.subr.bf16.mxu0 0
        %976 = vmatpush1.bf16.msra.mxu0 0
        %977 = vmatprep.subr.bf16.mxu0 0
        %978 = vmatpush1.bf16.msra.mxu0 0
        %979 = vmatprep.subr.bf16.mxu0 0
        %980 = vmatpush1.bf16.msra.mxu0 0
        %981 = vmatprep.subr.bf16.mxu0 0
        %982 = vmatpush1.bf16.msra.mxu0 0
        %983 = vmatprep.subr.bf16.mxu0 0
        %984 = vmatpush1.bf16.msra.mxu0 0
        %985 = vmatprep.subr.bf16.mxu0 0
        %986 = vmatpush1.bf16.msra.mxu0 0
        %987 = vmatprep.subr.bf16.mxu0 0
        %988 = vmatpush1.bf16.msra.mxu0 0
        %989 = vmatprep.mubr.bf16.mxu0 0
        %990 = vmatmul.mubr.bf16.gmra.mrb[0].mxu0 %v947
        %v991 = vpop.f32.mrb[0].mxu0
        %v992 = vadd.f32 0.0, %v991
        %v993 = vpop.f32.mrb[0].mxu0
        %v994 = vadd.f32 0.0, %v993
        %v995 = vpop.f32.mrb[0].mxu0
        %v996 = vpop.f32.mrb[0].mxu0
        %997 = vdwg.mxu0
        %998 = vmatprep.subr.bf16.mxu0 %v417
        %999 = vmatpush1.bf16.msra.mxu0 %v416
        %1000 = vmatprep.subr.bf16.mxu0 %v421
        %1001 = vmatpush1.bf16.msra.mxu0 %v420
        %1002 = vmatprep.subr.bf16.mxu0 %v425
        %1003 = vmatpush1.bf16.msra.mxu0 %v424
        %1004 = vmatprep.subr.bf16.mxu0 %v429
        %1005 = vmatpush1.bf16.msra.mxu0 %v428
        %1006 = vmatprep.subr.bf16.mxu0 %v433
        %1007 = vmatpush1.bf16.msra.mxu0 %v432
        %1008 = vmatprep.subr.bf16.mxu0 %v437
        %1009 = vmatpush1.bf16.msra.mxu0 %v436
        %1010 = vmatprep.subr.bf16.mxu0 %v441
        %1011 = vmatpush1.bf16.msra.mxu0 %v440
        %1012 = vmatprep.subr.bf16.mxu0 %v445
        %1013 = vmatpush1.bf16.msra.mxu0 %v444
        %1014 = vmatprep.subr.bf16.mxu0 0
        %1015 = vmatpush1.bf16.msra.mxu0 0
        %1016 = vmatprep.subr.bf16.mxu0 0
        %1017 = vmatpush1.bf16.msra.mxu0 0
        %1018 = vmatprep.subr.bf16.mxu0 0
        %1019 = vmatpush1.bf16.msra.mxu0 0
        %1020 = vmatprep.subr.bf16.mxu0 0
        %1021 = vmatpush1.bf16.msra.mxu0 0
        %1022 = vmatprep.subr.bf16.mxu0 0
        %1023 = vmatpush1.bf16.msra.mxu0 0
        %1024 = vmatprep.subr.bf16.mxu0 0
        %1025 = vmatpush1.bf16.msra.mxu0 0
        %1026 = vmatprep.subr.bf16.mxu0 0
        %1027 = vmatpush1.bf16.msra.mxu0 0
        %1028 = vmatprep.subr.bf16.mxu0 0
        %1029 = vmatpush1.bf16.msra.mxu0 0
        %1030 = vmatprep.mubr.bf16.mxu0 0
        %1031 = vmatmul.mubr.bf16.gmra.mrb[0].mxu0 %v947
        %v1032 = vpop.f32.mrb[0].mxu0
        %v1033 = vadd.f32 0.0, %v1032
        %v1034 = vpop.f32.mrb[0].mxu0
        %v1035 = vadd.f32 0.0, %v1034
        %v1036 = vpop.f32.mrb[0].mxu0
        %v1037 = vpop.f32.mrb[0].mxu0
        %1038 = vdwg.mxu0
        %v1039 = vadd.f32 %v953, %v992
        %v1040 = vadd.f32 %v954, %v994
        %v1041 = vadd.f32 %v955, %v1033
        %v1042 = vadd.f32 %v956, %v1035
        %v1043 = vxor.u32 %v1039, 2147483648
        %v1044 = vxor.u32 %v1040, 2147483648
        %v1045 = vxor.u32 %v1041, 2147483648
        %v1046 = vmul.f32 %v1043, 1.442695
        %v1047 = vpow.pop %v1046
        %v1048 = vmul.f32 %v1044, 1.442695
        %v1049 = vpow.pop %v1048
        %v1050 = vmul.f32 %v1045, 1.442695
        %v1051 = vpow.pop %v1050
        %v1052 = vadd.f32 %v1047, 1.0
        %v1053 = vadd.f32 %v1049, 1.0
        %v1054 = vadd.f32 %v1051, 1.0
        %v1055 = vrcp.pop %v1052
        %v1056 = vmul.f32 1.0, %v1055
        %v1057 = vrcp.pop %v1053
        %v1058 = vmul.f32 1.0, %v1057
        %v1059 = vrcp.pop %v1054
        %v1060 = vmul.f32 1.0, %v1059
        %v1061 = vtanh.pop %v1042
        %v1062 = vmul.f32 %v1058, %v944
        %v1063 = vmul.f32 %v1056, %v1061
        %v1064 = vadd.f32 %v1062, %v1063
        %v1065 = vtanh.pop %v1064
        %v1066 = vmul.f32 %v1060, %v1065
        %v1067 = vpack.c.bf16 %v1066, %v1066
        %s1068 = scalar_lea.vmem %s259, 16
        %1069 = vst [vmem:[%s1068] sm:$0xf] %v1067
        %s1070 = scalar_lea.vmem %s234, 80
        %v1071 = vld [vmem:[%s1070] sm:$0xff]
        %v1072 = vld [vmem:[%s1070 + $0x8] sm:$0xff]
        %v1073 = vunpack.c.l.bf16 %v1071
        %v1074 = vunpack.c.h.bf16 %v1071
        %v1075 = vunpack.c.l.bf16 %v1072
        %v1076 = vunpack.c.h.bf16 %v1072
        %1077 = vmatprep.subr.bf16.mxu0 %v415
        %1078 = vmatpush1.bf16.msra.mxu0 %v414
        %1079 = vmatprep.subr.bf16.mxu0 %v419
        %1080 = vmatpush1.bf16.msra.mxu0 %v418
        %1081 = vmatprep.subr.bf16.mxu0 %v423
        %1082 = vmatpush1.bf16.msra.mxu0 %v422
        %1083 = vmatprep.subr.bf16.mxu0 %v427
        %1084 = vmatpush1.bf16.msra.mxu0 %v426
        %1085 = vmatprep.subr.bf16.mxu0 %v431
        %1086 = vmatpush1.bf16.msra.mxu0 %v430
        %1087 = vmatprep.subr.bf16.mxu0 %v435
        %1088 = vmatpush1.bf16.msra.mxu0 %v434
        %1089 = vmatprep.subr.bf16.mxu0 %v439
        %1090 = vmatpush1.bf16.msra.mxu0 %v438
        %1091 = vmatprep.subr.bf16.mxu0 %v443
        %1092 = vmatpush1.bf16.msra.mxu0 %v442
        %1093 = vmatprep.subr.bf16.mxu0 0
        %1094 = vmatpush1.bf16.msra.mxu0 0
        %1095 = vmatprep.subr.bf16.mxu0 0
        %1096 = vmatpush1.bf16.msra.mxu0 0
        %1097 = vmatprep.subr.bf16.mxu0 0
        %1098 = vmatpush1.bf16.msra.mxu0 0
        %1099 = vmatprep.subr.bf16.mxu0 0
        %1100 = vmatpush1.bf16.msra.mxu0 0
        %1101 = vmatprep.subr.bf16.mxu0 0
        %1102 = vmatpush1.bf16.msra.mxu0 0
        %1103 = vmatprep.subr.bf16.mxu0 0
        %1104 = vmatpush1.bf16.msra.mxu0 0
        %1105 = vmatprep.subr.bf16.mxu0 0
        %1106 = vmatpush1.bf16.msra.mxu0 0
        %1107 = vmatprep.subr.bf16.mxu0 0
        %1108 = vmatpush1.bf16.msra.mxu0 0
        %1109 = vmatprep.mubr.bf16.mxu0 0
        %1110 = vmatmul.mubr.bf16.gmra.mrb[0].mxu0 %v1067
        %v1111 = vpop.f32.mrb[0].mxu0
        %v1112 = vadd.f32 0.0, %v1111
        %v1113 = vpop.f32.mrb[0].mxu0
        %v1114 = vadd.f32 0.0, %v1113
        %v1115 = vpop.f32.mrb[0].mxu0
        %v1116 = vpop.f32.mrb[0].mxu0
        %1117 = vdwg.mxu0
        %1118 = vmatprep.subr.bf16.mxu0 %v417
        %1119 = vmatpush1.bf16.msra.mxu0 %v416
        %1120 = vmatprep.subr.bf16.mxu0 %v421
        %1121 = vmatpush1.bf16.msra.mxu0 %v420
        %1122 = vmatprep.subr.bf16.mxu0 %v425
        %1123 = vmatpush1.bf16.msra.mxu0 %v424
        %1124 = vmatprep.subr.bf16.mxu0 %v429
        %1125 = vmatpush1.bf16.msra.mxu0 %v428
        %1126 = vmatprep.subr.bf16.mxu0 %v433
        %1127 = vmatpush1.bf16.msra.mxu0 %v432
        %1128 = vmatprep.subr.bf16.mxu0 %v437
        %1129 = vmatpush1.bf16.msra.mxu0 %v436
        %1130 = vmatprep.subr.bf16.mxu0 %v441
        %1131 = vmatpush1.bf16.msra.mxu0 %v440
        %1132 = vmatprep.subr.bf16.mxu0 %v445
        %1133 = vmatpush1.bf16.msra.mxu0 %v444
        %1134 = vmatprep.subr.bf16.mxu0 0
        %1135 = vmatpush1.bf16.msra.mxu0 0
        %1136 = vmatprep.subr.bf16.mxu0 0
        %1137 = vmatpush1.bf16.msra.mxu0 0
        %1138 = vmatprep.subr.bf16.mxu0 0
        %1139 = vmatpush1.bf16.msra.mxu0 0
        %1140 = vmatprep.subr.bf16.mxu0 0
        %1141 = vmatpush1.bf16.msra.mxu0 0
        %1142 = vmatprep.subr.bf16.mxu0 0
        %1143 = vmatpush1.bf16.msra.mxu0 0
        %1144 = vmatprep.subr.bf16.mxu0 0
        %1145 = vmatpush1.bf16.msra.mxu0 0
        %1146 = vmatprep.subr.bf16.mxu0 0
        %1147 = vmatpush1.bf16.msra.mxu0 0
        %1148 = vmatprep.subr.bf16.mxu0 0
        %1149 = vmatpush1.bf16.msra.mxu0 0
        %1150 = vmatprep.mubr.bf16.mxu0 0
        %1151 = vmatmul.mubr.bf16.gmra.mrb[0].mxu0 %v1067
        %v1152 = vpop.f32.mrb[0].mxu0
        %v1153 = vadd.f32 0.0, %v1152
        %v1154 = vpop.f32.mrb[0].mxu0
        %v1155 = vadd.f32 0.0, %v1154
        %v1156 = vpop.f32.mrb[0].mxu0
        %v1157 = vpop.f32.mrb[0].mxu0
        %1158 = vdwg.mxu0
        %v1159 = vadd.f32 %v1073, %v1112
        %v1160 = vadd.f32 %v1074, %v1114
        %v1161 = vadd.f32 %v1075, %v1153
        %v1162 = vadd.f32 %v1076, %v1155
        %v1163 = vxor.u32 %v1159, 2147483648
        %v1164 = vxor.u32 %v1160, 2147483648
        %v1165 = vxor.u32 %v1161, 2147483648
        %v1166 = vmul.f32 %v1163, 1.442695
        %v1167 = vpow.pop %v1166
        %v1168 = vmul.f32 %v1164, 1.442695
        %v1169 = vpow.pop %v1168
        %v1170 = vmul.f32 %v1165, 1.442695
        %v1171 = vpow.pop %v1170
        %v1172 = vadd.f32 %v1167, 1.0
        %v1173 = vadd.f32 %v1169, 1.0
        %v1174 = vadd.f32 %v1171, 1.0
        %v1175 = vrcp.pop %v1172
        %v1176 = vmul.f32 1.0, %v1175
        %v1177 = vrcp.pop %v1173
        %v1178 = vmul.f32 1.0, %v1177
        %v1179 = vrcp.pop %v1174
        %v1180 = vmul.f32 1.0, %v1179
        %v1181 = vtanh.pop %v1162
        %v1182 = vmul.f32 %v1178, %v1064
        %v1183 = vmul.f32 %v1176, %v1181
        %v1184 = vadd.f32 %v1182, %v1183
        %v1185 = vtanh.pop %v1184
        %v1186 = vmul.f32 %v1180, %v1185
        %v1187 = vpack.c.bf16 %v1186, %v1186
        %s1188 = scalar_lea.vmem %s259, 20
        %1189 = vst [vmem:[%s1188] sm:$0xf] %v1187
        %s1190 = scalar_lea.vmem %s234, 96
        %v1191 = vld [vmem:[%s1190] sm:$0xff]
        %v1192 = vld [vmem:[%s1190 + $0x8] sm:$0xff]
        %v1193 = vunpack.c.l.bf16 %v1191
        %v1194 = vunpack.c.h.bf16 %v1191
        %v1195 = vunpack.c.l.bf16 %v1192
        %v1196 = vunpack.c.h.bf16 %v1192
        %1197 = vmatprep.subr.bf16.mxu0 %v415
        %1198 = vmatpush1.bf16.msra.mxu0 %v414
        %1199 = vmatprep.subr.bf16.mxu0 %v419
        %1200 = vmatpush1.bf16.msra.mxu0 %v418
        %1201 = vmatprep.subr.bf16.mxu0 %v423
        %1202 = vmatpush1.bf16.msra.mxu0 %v422
        %1203 = vmatprep.subr.bf16.mxu0 %v427
        %1204 = vmatpush1.bf16.msra.mxu0 %v426
        %1205 = vmatprep.subr.bf16.mxu0 %v431
        %1206 = vmatpush1.bf16.msra.mxu0 %v430
        %1207 = vmatprep.subr.bf16.mxu0 %v435
        %1208 = vmatpush1.bf16.msra.mxu0 %v434
        %1209 = vmatprep.subr.bf16.mxu0 %v439
        %1210 = vmatpush1.bf16.msra.mxu0 %v438
        %1211 = vmatprep.subr.bf16.mxu0 %v443
        %1212 = vmatpush1.bf16.msra.mxu0 %v442
        %1213 = vmatprep.subr.bf16.mxu0 0
        %1214 = vmatpush1.bf16.msra.mxu0 0
        %1215 = vmatprep.subr.bf16.mxu0 0
        %1216 = vmatpush1.bf16.msra.mxu0 0
        %1217 = vmatprep.subr.bf16.mxu0 0
        %1218 = vmatpush1.bf16.msra.mxu0 0
        %1219 = vmatprep.subr.bf16.mxu0 0
        %1220 = vmatpush1.bf16.msra.mxu0 0
        %1221 = vmatprep.subr.bf16.mxu0 0
        %1222 = vmatpush1.bf16.msra.mxu0 0
        %1223 = vmatprep.subr.bf16.mxu0 0
        %1224 = vmatpush1.bf16.msra.mxu0 0
        %1225 = vmatprep.subr.bf16.mxu0 0
        %1226 = vmatpush1.bf16.msra.mxu0 0
        %1227 = vmatprep.subr.bf16.mxu0 0
        %1228 = vmatpush1.bf16.msra.mxu0 0
        %1229 = vmatprep.mubr.bf16.mxu0 0
        %1230 = vmatmul.mubr.bf16.gmra.mrb[0].mxu0 %v1187
        %v1231 = vpop.f32.mrb[0].mxu0
        %v1232 = vadd.f32 0.0, %v1231
        %v1233 = vpop.f32.mrb[0].mxu0
        %v1234 = vadd.f32 0.0, %v1233
        %v1235 = vpop.f32.mrb[0].mxu0
        %v1236 = vpop.f32.mrb[0].mxu0
        %1237 = vdwg.mxu0
        %1238 = vmatprep.subr.bf16.mxu0 %v417
        %1239 = vmatpush1.bf16.msra.mxu0 %v416
        %1240 = vmatprep.subr.bf16.mxu0 %v421
        %1241 = vmatpush1.bf16.msra.mxu0 %v420
        %1242 = vmatprep.subr.bf16.mxu0 %v425
        %1243 = vmatpush1.bf16.msra.mxu0 %v424
        %1244 = vmatprep.subr.bf16.mxu0 %v429
        %1245 = vmatpush1.bf16.msra.mxu0 %v428
        %1246 = vmatprep.subr.bf16.mxu0 %v433
        %1247 = vmatpush1.bf16.msra.mxu0 %v432
        %1248 = vmatprep.subr.bf16.mxu0 %v437
        %1249 = vmatpush1.bf16.msra.mxu0 %v436
        %1250 = vmatprep.subr.bf16.mxu0 %v441
        %1251 = vmatpush1.bf16.msra.mxu0 %v440
        %1252 = vmatprep.subr.bf16.mxu0 %v445
        %1253 = vmatpush1.bf16.msra.mxu0 %v444
        %1254 = vmatprep.subr.bf16.mxu0 0
        %1255 = vmatpush1.bf16.msra.mxu0 0
        %1256 = vmatprep.subr.bf16.mxu0 0
        %1257 = vmatpush1.bf16.msra.mxu0 0
        %1258 = vmatprep.subr.bf16.mxu0 0
        %1259 = vmatpush1.bf16.msra.mxu0 0
        %1260 = vmatprep.subr.bf16.mxu0 0
        %1261 = vmatpush1.bf16.msra.mxu0 0
        %1262 = vmatprep.subr.bf16.mxu0 0
        %1263 = vmatpush1.bf16.msra.mxu0 0
        %1264 = vmatprep.subr.bf16.mxu0 0
        %1265 = vmatpush1.bf16.msra.mxu0 0
        %1266 = vmatprep.subr.bf16.mxu0 0
        %1267 = vmatpush1.bf16.msra.mxu0 0
        %1268 = vmatprep.subr.bf16.mxu0 0
        %1269 = vmatpush1.bf16.msra.mxu0 0
        %1270 = vmatprep.mubr.bf16.mxu0 0
        %1271 = vmatmul.mubr.bf16.gmra.mrb[0].mxu0 %v1187
        %v1272 = vpop.f32.mrb[0].mxu0
        %v1273 = vadd.f32 0.0, %v1272
        %v1274 = vpop.f32.mrb[0].mxu0
        %v1275 = vadd.f32 0.0, %v1274
        %v1276 = vpop.f32.mrb[0].mxu0
        %v1277 = vpop.f32.mrb[0].mxu0
        %1278 = vdwg.mxu0
        %v1279 = vadd.f32 %v1193, %v1232
        %v1280 = vadd.f32 %v1194, %v1234
        %v1281 = vadd.f32 %v1195, %v1273
        %v1282 = vadd.f32 %v1196, %v1275
        %v1283 = vxor.u32 %v1279, 2147483648
        %v1284 = vxor.u32 %v1280, 2147483648
        %v1285 = vxor.u32 %v1281, 2147483648
        %v1286 = vmul.f32 %v1283, 1.442695
        %v1287 = vpow.pop %v1286
        %v1288 = vmul.f32 %v1284, 1.442695
        %v1289 = vpow.pop %v1288
        %v1290 = vmul.f32 %v1285, 1.442695
        %v1291 = vpow.pop %v1290
        %v1292 = vadd.f32 %v1287, 1.0
        %v1293 = vadd.f32 %v1289, 1.0
        %v1294 = vadd.f32 %v1291, 1.0
        %v1295 = vrcp.pop %v1292
        %v1296 = vmul.f32 1.0, %v1295
        %v1297 = vrcp.pop %v1293
        %v1298 = vmul.f32 1.0, %v1297
        %v1299 = vrcp.pop %v1294
        %v1300 = vmul.f32 1.0, %v1299
        %v1301 = vtanh.pop %v1282
        %v1302 = vmul.f32 %v1298, %v1184
        %v1303 = vmul.f32 %v1296, %v1301
        %v1304 = vadd.f32 %v1302, %v1303
        %v1305 = vtanh.pop %v1304
        %v1306 = vmul.f32 %v1300, %v1305
        %v1307 = vpack.c.bf16 %v1306, %v1306
        %s1308 = scalar_lea.vmem %s259, 24
        %1309 = vst [vmem:[%s1308] sm:$0xf] %v1307
        %s1310 = scalar_lea.vmem %s234, 112
        %v1311 = vld [vmem:[%s1310] sm:$0xff]
        %v1312 = vld [vmem:[%s1310 + $0x8] sm:$0xff]
        %v1313 = vunpack.c.l.bf16 %v1311
        %v1314 = vunpack.c.h.bf16 %v1311
        %v1315 = vunpack.c.l.bf16 %v1312
        %v1316 = vunpack.c.h.bf16 %v1312
        %1317 = vmatprep.subr.bf16.mxu0 %v415
        %1318 = vmatpush1.bf16.msra.mxu0 %v414
        %1319 = vmatprep.subr.bf16.mxu0 %v419
        %1320 = vmatpush1.bf16.msra.mxu0 %v418
        %1321 = vmatprep.subr.bf16.mxu0 %v423
        %1322 = vmatpush1.bf16.msra.mxu0 %v422
        %1323 = vmatprep.subr.bf16.mxu0 %v427
        %1324 = vmatpush1.bf16.msra.mxu0 %v426
        %1325 = vmatprep.subr.bf16.mxu0 %v431
        %1326 = vmatpush1.bf16.msra.mxu0 %v430
        %1327 = vmatprep.subr.bf16.mxu0 %v435
        %1328 = vmatpush1.bf16.msra.mxu0 %v434
        %1329 = vmatprep.subr.bf16.mxu0 %v439
        %1330 = vmatpush1.bf16.msra.mxu0 %v438
        %1331 = vmatprep.subr.bf16.mxu0 %v443
        %1332 = vmatpush1.bf16.msra.mxu0 %v442
        %1333 = vmatprep.subr.bf16.mxu0 0
        %1334 = vmatpush1.bf16.msra.mxu0 0
        %1335 = vmatprep.subr.bf16.mxu0 0
        %1336 = vmatpush1.bf16.msra.mxu0 0
        %1337 = vmatprep.subr.bf16.mxu0 0
        %1338 = vmatpush1.bf16.msra.mxu0 0
        %1339 = vmatprep.subr.bf16.mxu0 0
        %1340 = vmatpush1.bf16.msra.mxu0 0
        %1341 = vmatprep.subr.bf16.mxu0 0
        %1342 = vmatpush1.bf16.msra.mxu0 0
        %1343 = vmatprep.subr.bf16.mxu0 0
        %1344 = vmatpush1.bf16.msra.mxu0 0
        %1345 = vmatprep.subr.bf16.mxu0 0
        %1346 = vmatpush1.bf16.msra.mxu0 0
        %1347 = vmatprep.subr.bf16.mxu0 0
        %1348 = vmatpush1.bf16.msra.mxu0 0
        %1349 = vmatprep.mubr.bf16.mxu0 0
        %1350 = vmatmul.mubr.bf16.gmra.mrb[0].mxu0 %v1307
        %v1351 = vpop.f32.mrb[0].mxu0
        %v1352 = vadd.f32 0.0, %v1351
        %v1353 = vpop.f32.mrb[0].mxu0
        %v1354 = vadd.f32 0.0, %v1353
        %v1355 = vpop.f32.mrb[0].mxu0
        %v1356 = vpop.f32.mrb[0].mxu0
        %1357 = vdwg.mxu0
        %1358 = vmatprep.subr.bf16.mxu0 %v417
        %1359 = vmatpush1.bf16.msra.mxu0 %v416
        %1360 = vmatprep.subr.bf16.mxu0 %v421
        %1361 = vmatpush1.bf16.msra.mxu0 %v420
        %1362 = vmatprep.subr.bf16.mxu0 %v425
        %1363 = vmatpush1.bf16.msra.mxu0 %v424
        %1364 = vmatprep.subr.bf16.mxu0 %v429
        %1365 = vmatpush1.bf16.msra.mxu0 %v428
        %1366 = vmatprep.subr.bf16.mxu0 %v433
        %1367 = vmatpush1.bf16.msra.mxu0 %v432
        %1368 = vmatprep.subr.bf16.mxu0 %v437
        %1369 = vmatpush1.bf16.msra.mxu0 %v436
        %1370 = vmatprep.subr.bf16.mxu0 %v441
        %1371 = vmatpush1.bf16.msra.mxu0 %v440
        %1372 = vmatprep.subr.bf16.mxu0 %v445
        %1373 = vmatpush1.bf16.msra.mxu0 %v444
        %1374 = vmatprep.subr.bf16.mxu0 0
        %1375 = vmatpush1.bf16.msra.mxu0 0
        %1376 = vmatprep.subr.bf16.mxu0 0
        %1377 = vmatpush1.bf16.msra.mxu0 0
        %1378 = vmatprep.subr.bf16.mxu0 0
        %1379 = vmatpush1.bf16.msra.mxu0 0
        %1380 = vmatprep.subr.bf16.mxu0 0
        %1381 = vmatpush1.bf16.msra.mxu0 0
        %1382 = vmatprep.subr.bf16.mxu0 0
        %1383 = vmatpush1.bf16.msra.mxu0 0
        %1384 = vmatprep.subr.bf16.mxu0 0
        %1385 = vmatpush1.bf16.msra.mxu0 0
        %1386 = vmatprep.subr.bf16.mxu0 0
        %1387 = vmatpush1.bf16.msra.mxu0 0
        %1388 = vmatprep.subr.bf16.mxu0 0
        %1389 = vmatpush1.bf16.msra.mxu0 0
        %1390 = vmatprep.mubr.bf16.mxu0 0
        %1391 = vmatmul.mubr.bf16.gmra.mrb[0].mxu0 %v1307
        %v1392 = vpop.f32.mrb[0].mxu0
        %v1393 = vadd.f32 0.0, %v1392
        %v1394 = vpop.f32.mrb[0].mxu0
        %v1395 = vadd.f32 0.0, %v1394
        %v1396 = vpop.f32.mrb[0].mxu0
        %v1397 = vpop.f32.mrb[0].mxu0
        %1398 = vdwg.mxu0
        %v1399 = vadd.f32 %v1313, %v1352
        %v1400 = vadd.f32 %v1314, %v1354
        %v1401 = vadd.f32 %v1315, %v1393
        %v1402 = vadd.f32 %v1316, %v1395
        %v1403 = vxor.u32 %v1399, 2147483648
        %v1404 = vxor.u32 %v1400, 2147483648
        %v1405 = vxor.u32 %v1401, 2147483648
        %v1406 = vmul.f32 %v1403, 1.442695
        %v1407 = vpow.pop %v1406
        %v1408 = vmul.f32 %v1404, 1.442695
        %v1409 = vpow.pop %v1408
        %v1410 = vmul.f32 %v1405, 1.442695
        %v1411 = vpow.pop %v1410
        %v1412 = vadd.f32 %v1407, 1.0
        %v1413 = vadd.f32 %v1409, 1.0
        %v1414 = vadd.f32 %v1411, 1.0
        %v1415 = vrcp.pop %v1412
        %v1416 = vmul.f32 1.0, %v1415
        %v1417 = vrcp.pop %v1413
        %v1418 = vmul.f32 1.0, %v1417
        %v1419 = vrcp.pop %v1414
        %v1420 = vmul.f32 1.0, %v1419
        %v1421 = vtanh.pop %v1402
        %v1422 = vmul.f32 %v1418, %v1304
        %v1423 = vmul.f32 %v1416, %v1421
        %v1424 = vadd.f32 %v1422, %v1423
        %v1425 = vtanh.pop %v1424
        %v1426 = vmul.f32 %v1420, %v1425
        %v1427 = vpack.c.bf16 %v1426, %v1426
        %s1428 = scalar_lea.vmem %s259, 28
        %1429 = vst [vmem:[%s1428] sm:$0xf] %v1427
        %1430 = vst [vmem:[#allocation2] sm:$0xff] %v1426
        %1431 = vst [vmem:[#allocation3] sm:$0xff] %v1424
      $region36: #{dpcl_forward.6} parent=27 // pred_fallthru
        _
      %p1432 = scmp.eq.s32.totalorder %s17, 1
      // Predicated region
      $region37: #{dpcl_forward.6} parent=27 // pred_check
        %p1433 = pneg %p1432
      $region38: #{dpcl_forward.6} parent=27 // pred_check_branch
        %1435 = sbr.rel (%p1433) target = $region40
      $region39: #{dpcl_forward.6} parent=27 // pred_region
        %v1436 = vld [vmem:[#allocation2] sm:$0xff]
        %v1437 = vld [vmem:[#allocation3] sm:$0xff]
        %s1438 = scalar_lea.vmem %s234, 112
        %v1439 = vld [vmem:[%s1438] sm:$0xff]
        %v1440 = vld [vmem:[%s1438 + $0x8] sm:$0xff]
        %v1441 = vunpack.c.l.bf16 %v1439
        %v1442 = vunpack.c.h.bf16 %v1439
        %v1443 = vunpack.c.l.bf16 %v1440
        %v1444 = vunpack.c.h.bf16 %v1440
        %v1445 = vpack.c.bf16 %v1436, %v1436
        %v1478 = vunpack.c.l.b16 %v273
        %v1479 = vunpack.c.h.b16 %v273
        %v1480 = vunpack.c.l.b16 %v274
        %v1481 = vunpack.c.h.b16 %v274
        %v1482 = vunpack.c.l.b16 %v275
        %v1483 = vunpack.c.h.b16 %v275
        %v1484 = vunpack.c.l.b16 %v276
        %v1485 = vunpack.c.h.b16 %v276
        %v1486 = vunpack.c.l.b16 %v277
        %v1487 = vunpack.c.h.b16 %v277
        %v1488 = vunpack.c.l.b16 %v278
        %v1489 = vunpack.c.h.b16 %v278
        %v1490 = vunpack.c.l.b16 %v279
        %v1491 = vunpack.c.h.b16 %v279
        %v1492 = vunpack.c.l.b16 %v280
        %v1493 = vunpack.c.h.b16 %v280
        %v1494 = vunpack.c.l.b16 %v281
        %v1495 = vunpack.c.h.b16 %v281
        %v1496 = vunpack.c.l.b16 %v282
        %v1497 = vunpack.c.h.b16 %v282
        %v1498 = vunpack.c.l.b16 %v283
        %v1499 = vunpack.c.h.b16 %v283
        %v1500 = vunpack.c.l.b16 %v284
        %v1501 = vunpack.c.h.b16 %v284
        %v1502 = vunpack.c.l.b16 %v285
        %v1503 = vunpack.c.h.b16 %v285
        %v1504 = vunpack.c.l.b16 %v286
        %v1505 = vunpack.c.h.b16 %v286
        %v1506 = vunpack.c.l.b16 %v287
        %v1507 = vunpack.c.h.b16 %v287
        %v1508 = vunpack.c.l.b16 %v288
        %v1509 = vunpack.c.h.b16 %v288
        %v1510 = vunpack.c.l.b16 %v289
        %v1511 = vunpack.c.h.b16 %v289
        %v1512 = vunpack.c.l.b16 %v290
        %v1513 = vunpack.c.h.b16 %v290
        %v1514 = vunpack.c.l.b16 %v291
        %v1515 = vunpack.c.h.b16 %v291
        %v1516 = vunpack.c.l.b16 %v292
        %v1517 = vunpack.c.h.b16 %v292
        %v1518 = vunpack.c.l.b16 %v293
        %v1519 = vunpack.c.h.b16 %v293
        %v1520 = vunpack.c.l.b16 %v294
        %v1521 = vunpack.c.h.b16 %v294
        %v1522 = vunpack.c.l.b16 %v295
        %v1523 = vunpack.c.h.b16 %v295
        %v1524 = vunpack.c.l.b16 %v296
        %v1525 = vunpack.c.h.b16 %v296
        %v1526 = vunpack.c.l.b16 %v297
        %v1527 = vunpack.c.h.b16 %v297
        %v1528 = vunpack.c.l.b16 %v298
        %v1529 = vunpack.c.h.b16 %v298
        %v1530 = vunpack.c.l.b16 %v299
        %v1531 = vunpack.c.h.b16 %v299
        %v1532 = vunpack.c.l.b16 %v300
        %v1533 = vunpack.c.h.b16 %v300
        %v1534 = vunpack.c.l.b16 %v301
        %v1535 = vunpack.c.h.b16 %v301
        %v1536 = vunpack.c.l.b16 %v302
        %v1537 = vunpack.c.h.b16 %v302
        %v1538 = vunpack.c.l.b16 %v303
        %v1539 = vunpack.c.h.b16 %v303
        %v1540 = vunpack.c.l.b16 %v304
        %v1541 = vunpack.c.h.b16 %v304
        %v1542 = vpack.c.b16 %v1482, %v1478
        %v1543 = vpack.c.b16 %v1483, %v1479
        %v1544 = vpack.c.b16 %v1484, %v1480
        %v1545 = vpack.c.b16 %v1485, %v1481
        %v1546 = vpack.c.b16 %v1490, %v1486
        %v1547 = vpack.c.b16 %v1491, %v1487
        %v1548 = vpack.c.b16 %v1492, %v1488
        %v1549 = vpack.c.b16 %v1493, %v1489
        %v1550 = vpack.c.b16 %v1498, %v1494
        %v1551 = vpack.c.b16 %v1499, %v1495
        %v1552 = vpack.c.b16 %v1500, %v1496
        %v1553 = vpack.c.b16 %v1501, %v1497
        %v1554 = vpack.c.b16 %v1506, %v1502
        %v1555 = vpack.c.b16 %v1507, %v1503
        %v1556 = vpack.c.b16 %v1508, %v1504
        %v1557 = vpack.c.b16 %v1509, %v1505
        %v1558 = vpack.c.b16 %v1514, %v1510
        %v1559 = vpack.c.b16 %v1515, %v1511
        %v1560 = vpack.c.b16 %v1516, %v1512
        %v1561 = vpack.c.b16 %v1517, %v1513
        %v1562 = vpack.c.b16 %v1522, %v1518
        %v1563 = vpack.c.b16 %v1523, %v1519
        %v1564 = vpack.c.b16 %v1524, %v1520
        %v1565 = vpack.c.b16 %v1525, %v1521
        %v1566 = vpack.c.b16 %v1530, %v1526
        %v1567 = vpack.c.b16 %v1531, %v1527
        %v1568 = vpack.c.b16 %v1532, %v1528
        %v1569 = vpack.c.b16 %v1533, %v1529
        %v1570 = vpack.c.b16 %v1538, %v1534
        %v1571 = vpack.c.b16 %v1539, %v1535
        %v1572 = vpack.c.b16 %v1540, %v1536
        %v1573 = vpack.c.b16 %v1541, %v1537
        %1606 = vmatprep.subr.bf16.mxu0 %v1543
        %1607 = vmatpush1.bf16.msra.mxu0 %v1542
        %1608 = vmatprep.subr.bf16.mxu0 %v1547
        %1609 = vmatpush1.bf16.msra.mxu0 %v1546
        %1610 = vmatprep.subr.bf16.mxu0 %v1551
        %1611 = vmatpush1.bf16.msra.mxu0 %v1550
        %1612 = vmatprep.subr.bf16.mxu0 %v1555
        %1613 = vmatpush1.bf16.msra.mxu0 %v1554
        %1614 = vmatprep.subr.bf16.mxu0 %v1559
        %1615 = vmatpush1.bf16.msra.mxu0 %v1558
        %1616 = vmatprep.subr.bf16.mxu0 %v1563
        %1617 = vmatpush1.bf16.msra.mxu0 %v1562
        %1618 = vmatprep.subr.bf16.mxu0 %v1567
        %1619 = vmatpush1.bf16.msra.mxu0 %v1566
        %1620 = vmatprep.subr.bf16.mxu0 %v1571
        %1621 = vmatpush1.bf16.msra.mxu0 %v1570
        %1622 = vmatprep.subr.bf16.mxu0 0
        %1623 = vmatpush1.bf16.msra.mxu0 0
        %1624 = vmatprep.subr.bf16.mxu0 0
        %1625 = vmatpush1.bf16.msra.mxu0 0
        %1626 = vmatprep.subr.bf16.mxu0 0
        %1627 = vmatpush1.bf16.msra.mxu0 0
        %1628 = vmatprep.subr.bf16.mxu0 0
        %1629 = vmatpush1.bf16.msra.mxu0 0
        %1630 = vmatprep.subr.bf16.mxu0 0
        %1631 = vmatpush1.bf16.msra.mxu0 0
        %1632 = vmatprep.subr.bf16.mxu0 0
        %1633 = vmatpush1.bf16.msra.mxu0 0
        %1634 = vmatprep.subr.bf16.mxu0 0
        %1635 = vmatpush1.bf16.msra.mxu0 0
        %1636 = vmatprep.subr.bf16.mxu0 0
        %1637 = vmatpush1.bf16.msra.mxu0 0
        %1638 = vmatprep.mubr.bf16.mxu0 0
        %1639 = vmatmul.mubr.bf16.gmra.mrb[0].mxu0 %v1445
        %v1640 = vpop.f32.mrb[0].mxu0
        %v1641 = vadd.f32 0.0, %v1640
        %v1642 = vpop.f32.mrb[0].mxu0
        %v1643 = vadd.f32 0.0, %v1642
        %v1644 = vpop.f32.mrb[0].mxu0
        %v1645 = vpop.f32.mrb[0].mxu0
        %1646 = vdwg.mxu0
        %1647 = vmatprep.subr.bf16.mxu0 %v1545
        %1648 = vmatpush1.bf16.msra.mxu0 %v1544
        %1649 = vmatprep.subr.bf16.mxu0 %v1549
        %1650 = vmatpush1.bf16.msra.mxu0 %v1548
        %1651 = vmatprep.subr.bf16.mxu0 %v1553
        %1652 = vmatpush1.bf16.msra.mxu0 %v1552
        %1653 = vmatprep.subr.bf16.mxu0 %v1557
        %1654 = vmatpush1.bf16.msra.mxu0 %v1556
        %1655 = vmatprep.subr.bf16.mxu0 %v1561
        %1656 = vmatpush1.bf16.msra.mxu0 %v1560
        %1657 = vmatprep.subr.bf16.mxu0 %v1565
        %1658 = vmatpush1.bf16.msra.mxu0 %v1564
        %1659 = vmatprep.subr.bf16.mxu0 %v1569
        %1660 = vmatpush1.bf16.msra.mxu0 %v1568
        %1661 = vmatprep.subr.bf16.mxu0 %v1573
        %1662 = vmatpush1.bf16.msra.mxu0 %v1572
        %1663 = vmatprep.subr.bf16.mxu0 0
        %1664 = vmatpush1.bf16.msra.mxu0 0
        %1665 = vmatprep.subr.bf16.mxu0 0
        %1666 = vmatpush1.bf16.msra.mxu0 0
        %1667 = vmatprep.subr.bf16.mxu0 0
        %1668 = vmatpush1.bf16.msra.mxu0 0
        %1669 = vmatprep.subr.bf16.mxu0 0
        %1670 = vmatpush1.bf16.msra.mxu0 0
        %1671 = vmatprep.subr.bf16.mxu0 0
        %1672 = vmatpush1.bf16.msra.mxu0 0
        %1673 = vmatprep.subr.bf16.mxu0 0
        %1674 = vmatpush1.bf16.msra.mxu0 0
        %1675 = vmatprep.subr.bf16.mxu0 0
        %1676 = vmatpush1.bf16.msra.mxu0 0
        %1677 = vmatprep.subr.bf16.mxu0 0
        %1678 = vmatpush1.bf16.msra.mxu0 0
        %1679 = vmatprep.mubr.bf16.mxu0 0
        %1680 = vmatmul.mubr.bf16.gmra.mrb[0].mxu0 %v1445
        %v1681 = vpop.f32.mrb[0].mxu0
        %v1682 = vadd.f32 0.0, %v1681
        %v1683 = vpop.f32.mrb[0].mxu0
        %v1684 = vadd.f32 0.0, %v1683
        %v1685 = vpop.f32.mrb[0].mxu0
        %v1686 = vpop.f32.mrb[0].mxu0
        %1687 = vdwg.mxu0
        %v1688 = vadd.f32 %v1441, %v1641
        %v1689 = vadd.f32 %v1442, %v1643
        %v1690 = vadd.f32 %v1443, %v1682
        %v1691 = vadd.f32 %v1444, %v1684
        %v1692 = vxor.u32 %v1688, 2147483648
        %v1693 = vxor.u32 %v1689, 2147483648
        %v1694 = vxor.u32 %v1690, 2147483648
        %v1695 = vmul.f32 %v1692, 1.442695
        %v1696 = vpow.pop %v1695
        %v1697 = vmul.f32 %v1693, 1.442695
        %v1698 = vpow.pop %v1697
        %v1699 = vmul.f32 %v1694, 1.442695
        %v1700 = vpow.pop %v1699
        %v1701 = vadd.f32 %v1696, 1.0
        %v1702 = vadd.f32 %v1698, 1.0
        %v1703 = vadd.f32 %v1700, 1.0
        %v1704 = vrcp.pop %v1701
        %v1705 = vmul.f32 1.0, %v1704
        %v1706 = vrcp.pop %v1702
        %v1707 = vmul.f32 1.0, %v1706
        %v1708 = vrcp.pop %v1703
        %v1709 = vmul.f32 1.0, %v1708
        %v1710 = vtanh.pop %v1691
        %v1711 = vmul.f32 %v1707, %v1437
        %v1712 = vmul.f32 %v1705, %v1710
        %v1713 = vadd.f32 %v1711, %v1712
        %v1714 = vtanh.pop %v1713
        %v1715 = vmul.f32 %v1709, %v1714
        %v1716 = vpack.c.bf16 %v1715, %v1715
        %s1717 = scalar_lea.vmem %s259, 28
        %1718 = vst [vmem:[%s1717] sm:$0xf] %v1716
        %s1719 = scalar_lea.vmem %s234, 96
        %v1720 = vld [vmem:[%s1719] sm:$0xff]
        %v1721 = vld [vmem:[%s1719 + $0x8] sm:$0xff]
        %v1722 = vunpack.c.l.bf16 %v1720
        %v1723 = vunpack.c.h.bf16 %v1720
        %v1724 = vunpack.c.l.bf16 %v1721
        %v1725 = vunpack.c.h.bf16 %v1721
        %1726 = vmatprep.subr.bf16.mxu0 %v1543
        %1727 = vmatpush1.bf16.msra.mxu0 %v1542
        %1728 = vmatprep.subr.bf16.mxu0 %v1547
        %1729 = vmatpush1.bf16.msra.mxu0 %v1546
        %1730 = vmatprep.subr.bf16.mxu0 %v1551
        %1731 = vmatpush1.bf16.msra.mxu0 %v1550
        %1732 = vmatprep.subr.bf16.mxu0 %v1555
        %1733 = vmatpush1.bf16.msra.mxu0 %v1554
        %1734 = vmatprep.subr.bf16.mxu0 %v1559
        %1735 = vmatpush1.bf16.msra.mxu0 %v1558
        %1736 = vmatprep.subr.bf16.mxu0 %v1563
        %1737 = vmatpush1.bf16.msra.mxu0 %v1562
        %1738 = vmatprep.subr.bf16.mxu0 %v1567
        %1739 = vmatpush1.bf16.msra.mxu0 %v1566
        %1740 = vmatprep.subr.bf16.mxu0 %v1571
        %1741 = vmatpush1.bf16.msra.mxu0 %v1570
        %1742 = vmatprep.subr.bf16.mxu0 0
        %1743 = vmatpush1.bf16.msra.mxu0 0
        %1744 = vmatprep.subr.bf16.mxu0 0
        %1745 = vmatpush1.bf16.msra.mxu0 0
        %1746 = vmatprep.subr.bf16.mxu0 0
        %1747 = vmatpush1.bf16.msra.mxu0 0
        %1748 = vmatprep.subr.bf16.mxu0 0
        %1749 = vmatpush1.bf16.msra.mxu0 0
        %1750 = vmatprep.subr.bf16.mxu0 0
        %1751 = vmatpush1.bf16.msra.mxu0 0
        %1752 = vmatprep.subr.bf16.mxu0 0
        %1753 = vmatpush1.bf16.msra.mxu0 0
        %1754 = vmatprep.subr.bf16.mxu0 0
        %1755 = vmatpush1.bf16.msra.mxu0 0
        %1756 = vmatprep.subr.bf16.mxu0 0
        %1757 = vmatpush1.bf16.msra.mxu0 0
        %1758 = vmatprep.mubr.bf16.mxu0 0
        %1759 = vmatmul.mubr.bf16.gmra.mrb[0].mxu0 %v1716
        %v1760 = vpop.f32.mrb[0].mxu0
        %v1761 = vadd.f32 0.0, %v1760
        %v1762 = vpop.f32.mrb[0].mxu0
        %v1763 = vadd.f32 0.0, %v1762
        %v1764 = vpop.f32.mrb[0].mxu0
        %v1765 = vpop.f32.mrb[0].mxu0
        %1766 = vdwg.mxu0
        %1767 = vmatprep.subr.bf16.mxu0 %v1545
        %1768 = vmatpush1.bf16.msra.mxu0 %v1544
        %1769 = vmatprep.subr.bf16.mxu0 %v1549
        %1770 = vmatpush1.bf16.msra.mxu0 %v1548
        %1771 = vmatprep.subr.bf16.mxu0 %v1553
        %1772 = vmatpush1.bf16.msra.mxu0 %v1552
        %1773 = vmatprep.subr.bf16.mxu0 %v1557
        %1774 = vmatpush1.bf16.msra.mxu0 %v1556
        %1775 = vmatprep.subr.bf16.mxu0 %v1561
        %1776 = vmatpush1.bf16.msra.mxu0 %v1560
        %1777 = vmatprep.subr.bf16.mxu0 %v1565
        %1778 = vmatpush1.bf16.msra.mxu0 %v1564
        %1779 = vmatprep.subr.bf16.mxu0 %v1569
        %1780 = vmatpush1.bf16.msra.mxu0 %v1568
        %1781 = vmatprep.subr.bf16.mxu0 %v1573
        %1782 = vmatpush1.bf16.msra.mxu0 %v1572
        %1783 = vmatprep.subr.bf16.mxu0 0
        %1784 = vmatpush1.bf16.msra.mxu0 0
        %1785 = vmatprep.subr.bf16.mxu0 0
        %1786 = vmatpush1.bf16.msra.mxu0 0
        %1787 = vmatprep.subr.bf16.mxu0 0
        %1788 = vmatpush1.bf16.msra.mxu0 0
        %1789 = vmatprep.subr.bf16.mxu0 0
        %1790 = vmatpush1.bf16.msra.mxu0 0
        %1791 = vmatprep.subr.bf16.mxu0 0
        %1792 = vmatpush1.bf16.msra.mxu0 0
        %1793 = vmatprep.subr.bf16.mxu0 0
        %1794 = vmatpush1.bf16.msra.mxu0 0
        %1795 = vmatprep.subr.bf16.mxu0 0
        %1796 = vmatpush1.bf16.msra.mxu0 0
        %1797 = vmatprep.subr.bf16.mxu0 0
        %1798 = vmatpush1.bf16.msra.mxu0 0
        %1799 = vmatprep.mubr.bf16.mxu0 0
        %1800 = vmatmul.mubr.bf16.gmra.mrb[0].mxu0 %v1716
        %v1801 = vpop.f32.mrb[0].mxu0
        %v1802 = vadd.f32 0.0, %v1801
        %v1803 = vpop.f32.mrb[0].mxu0
        %v1804 = vadd.f32 0.0, %v1803
        %v1805 = vpop.f32.mrb[0].mxu0
        %v1806 = vpop.f32.mrb[0].mxu0
        %1807 = vdwg.mxu0
        %v1808 = vadd.f32 %v1722, %v1761
        %v1809 = vadd.f32 %v1723, %v1763
        %v1810 = vadd.f32 %v1724, %v1802
        %v1811 = vadd.f32 %v1725, %v1804
        %v1812 = vxor.u32 %v1808, 2147483648
        %v1813 = vxor.u32 %v1809, 2147483648
        %v1814 = vxor.u32 %v1810, 2147483648
        %v1815 = vmul.f32 %v1812, 1.442695
        %v1816 = vpow.pop %v1815
        %v1817 = vmul.f32 %v1813, 1.442695
        %v1818 = vpow.pop %v1817
        %v1819 = vmul.f32 %v1814, 1.442695
        %v1820 = vpow.pop %v1819
        %v1821 = vadd.f32 %v1816, 1.0
        %v1822 = vadd.f32 %v1818, 1.0
        %v1823 = vadd.f32 %v1820, 1.0
        %v1824 = vrcp.pop %v1821
        %v1825 = vmul.f32 1.0, %v1824
        %v1826 = vrcp.pop %v1822
        %v1827 = vmul.f32 1.0, %v1826
        %v1828 = vrcp.pop %v1823
        %v1829 = vmul.f32 1.0, %v1828
        %v1830 = vtanh.pop %v1811
        %v1831 = vmul.f32 %v1827, %v1713
        %v1832 = vmul.f32 %v1825, %v1830
        %v1833 = vadd.f32 %v1831, %v1832
        %v1834 = vtanh.pop %v1833
        %v1835 = vmul.f32 %v1829, %v1834
        %v1836 = vpack.c.bf16 %v1835, %v1835
        %s1837 = scalar_lea.vmem %s259, 24
        %1838 = vst [vmem:[%s1837] sm:$0xf] %v1836
        %s1839 = scalar_lea.vmem %s234, 80
        %v1840 = vld [vmem:[%s1839] sm:$0xff]
        %v1841 = vld [vmem:[%s1839 + $0x8] sm:$0xff]
        %v1842 = vunpack.c.l.bf16 %v1840
        %v1843 = vunpack.c.h.bf16 %v1840
        %v1844 = vunpack.c.l.bf16 %v1841
        %v1845 = vunpack.c.h.bf16 %v1841
        %1846 = vmatprep.subr.bf16.mxu0 %v1543
        %1847 = vmatpush1.bf16.msra.mxu0 %v1542
        %1848 = vmatprep.subr.bf16.mxu0 %v1547
        %1849 = vmatpush1.bf16.msra.mxu0 %v1546
        %1850 = vmatprep.subr.bf16.mxu0 %v1551
        %1851 = vmatpush1.bf16.msra.mxu0 %v1550
        %1852 = vmatprep.subr.bf16.mxu0 %v1555
        %1853 = vmatpush1.bf16.msra.mxu0 %v1554
        %1854 = vmatprep.subr.bf16.mxu0 %v1559
        %1855 = vmatpush1.bf16.msra.mxu0 %v1558
        %1856 = vmatprep.subr.bf16.mxu0 %v1563
        %1857 = vmatpush1.bf16.msra.mxu0 %v1562
        %1858 = vmatprep.subr.bf16.mxu0 %v1567
        %1859 = vmatpush1.bf16.msra.mxu0 %v1566
        %1860 = vmatprep.subr.bf16.mxu0 %v1571
        %1861 = vmatpush1.bf16.msra.mxu0 %v1570
        %1862 = vmatprep.subr.bf16.mxu0 0
        %1863 = vmatpush1.bf16.msra.mxu0 0
        %1864 = vmatprep.subr.bf16.mxu0 0
        %1865 = vmatpush1.bf16.msra.mxu0 0
        %1866 = vmatprep.subr.bf16.mxu0 0
        %1867 = vmatpush1.bf16.msra.mxu0 0
        %1868 = vmatprep.subr.bf16.mxu0 0
        %1869 = vmatpush1.bf16.msra.mxu0 0
        %1870 = vmatprep.subr.bf16.mxu0 0
        %1871 = vmatpush1.bf16.msra.mxu0 0
        %1872 = vmatprep.subr.bf16.mxu0 0
        %1873 = vmatpush1.bf16.msra.mxu0 0
        %1874 = vmatprep.subr.bf16.mxu0 0
        %1875 = vmatpush1.bf16.msra.mxu0 0
        %1876 = vmatprep.subr.bf16.mxu0 0
        %1877 = vmatpush1.bf16.msra.mxu0 0
        %1878 = vmatprep.mubr.bf16.mxu0 0
        %1879 = vmatmul.mubr.bf16.gmra.mrb[0].mxu0 %v1836
        %v1880 = vpop.f32.mrb[0].mxu0
        %v1881 = vadd.f32 0.0, %v1880
        %v1882 = vpop.f32.mrb[0].mxu0
        %v1883 = vadd.f32 0.0, %v1882
        %v1884 = vpop.f32.mrb[0].mxu0
        %v1885 = vpop.f32.mrb[0].mxu0
        %1886 = vdwg.mxu0
        %1887 = vmatprep.subr.bf16.mxu0 %v1545
        %1888 = vmatpush1.bf16.msra.mxu0 %v1544
        %1889 = vmatprep.subr.bf16.mxu0 %v1549
        %1890 = vmatpush1.bf16.msra.mxu0 %v1548
        %1891 = vmatprep.subr.bf16.mxu0 %v1553
        %1892 = vmatpush1.bf16.msra.mxu0 %v1552
        %1893 = vmatprep.subr.bf16.mxu0 %v1557
        %1894 = vmatpush1.bf16.msra.mxu0 %v1556
        %1895 = vmatprep.subr.bf16.mxu0 %v1561
        %1896 = vmatpush1.bf16.msra.mxu0 %v1560
        %1897 = vmatprep.subr.bf16.mxu0 %v1565
        %1898 = vmatpush1.bf16.msra.mxu0 %v1564
        %1899 = vmatprep.subr.bf16.mxu0 %v1569
        %1900 = vmatpush1.bf16.msra.mxu0 %v1568
        %1901 = vmatprep.subr.bf16.mxu0 %v1573
        %1902 = vmatpush1.bf16.msra.mxu0 %v1572
        %1903 = vmatprep.subr.bf16.mxu0 0
        %1904 = vmatpush1.bf16.msra.mxu0 0
        %1905 = vmatprep.subr.bf16.mxu0 0
        %1906 = vmatpush1.bf16.msra.mxu0 0
        %1907 = vmatprep.subr.bf16.mxu0 0
        %1908 = vmatpush1.bf16.msra.mxu0 0
        %1909 = vmatprep.subr.bf16.mxu0 0
        %1910 = vmatpush1.bf16.msra.mxu0 0
        %1911 = vmatprep.subr.bf16.mxu0 0
        %1912 = vmatpush1.bf16.msra.mxu0 0
        %1913 = vmatprep.subr.bf16.mxu0 0
        %1914 = vmatpush1.bf16.msra.mxu0 0
        %1915 = vmatprep.subr.bf16.mxu0 0
        %1916 = vmatpush1.bf16.msra.mxu0 0
        %1917 = vmatprep.subr.bf16.mxu0 0
        %1918 = vmatpush1.bf16.msra.mxu0 0
        %1919 = vmatprep.mubr.bf16.mxu0 0
        %1920 = vmatmul.mubr.bf16.gmra.mrb[0].mxu0 %v1836
        %v1921 = vpop.f32.mrb[0].mxu0
        %v1922 = vadd.f32 0.0, %v1921
        %v1923 = vpop.f32.mrb[0].mxu0
        %v1924 = vadd.f32 0.0, %v1923
        %v1925 = vpop.f32.mrb[0].mxu0
        %v1926 = vpop.f32.mrb[0].mxu0
        %1927 = vdwg.mxu0
        %v1928 = vadd.f32 %v1842, %v1881
        %v1929 = vadd.f32 %v1843, %v1883
        %v1930 = vadd.f32 %v1844, %v1922
        %v1931 = vadd.f32 %v1845, %v1924
        %v1932 = vxor.u32 %v1928, 2147483648
        %v1933 = vxor.u32 %v1929, 2147483648
        %v1934 = vxor.u32 %v1930, 2147483648
        %v1935 = vmul.f32 %v1932, 1.442695
        %v1936 = vpow.pop %v1935
        %v1937 = vmul.f32 %v1933, 1.442695
        %v1938 = vpow.pop %v1937
        %v1939 = vmul.f32 %v1934, 1.442695
        %v1940 = vpow.pop %v1939
        %v1941 = vadd.f32 %v1936, 1.0
        %v1942 = vadd.f32 %v1938, 1.0
        %v1943 = vadd.f32 %v1940, 1.0
        %v1944 = vrcp.pop %v1941
        %v1945 = vmul.f32 1.0, %v1944
        %v1946 = vrcp.pop %v1942
        %v1947 = vmul.f32 1.0, %v1946
        %v1948 = vrcp.pop %v1943
        %v1949 = vmul.f32 1.0, %v1948
        %v1950 = vtanh.pop %v1931
        %v1951 = vmul.f32 %v1947, %v1833
        %v1952 = vmul.f32 %v1945, %v1950
        %v1953 = vadd.f32 %v1951, %v1952
        %v1954 = vtanh.pop %v1953
        %v1955 = vmul.f32 %v1949, %v1954
        %v1956 = vpack.c.bf16 %v1955, %v1955
        %s1957 = scalar_lea.vmem %s259, 20
        %1958 = vst [vmem:[%s1957] sm:$0xf] %v1956
        %s1959 = scalar_lea.vmem %s234, 64
        %v1960 = vld [vmem:[%s1959] sm:$0xff]
        %v1961 = vld [vmem:[%s1959 + $0x8] sm:$0xff]
        %v1962 = vunpack.c.l.bf16 %v1960
        %v1963 = vunpack.c.h.bf16 %v1960
        %v1964 = vunpack.c.l.bf16 %v1961
        %v1965 = vunpack.c.h.bf16 %v1961
        %1966 = vmatprep.subr.bf16.mxu0 %v1543
        %1967 = vmatpush1.bf16.msra.mxu0 %v1542
        %1968 = vmatprep.subr.bf16.mxu0 %v1547
        %1969 = vmatpush1.bf16.msra.mxu0 %v1546
        %1970 = vmatprep.subr.bf16.mxu0 %v1551
        %1971 = vmatpush1.bf16.msra.mxu0 %v1550
        %1972 = vmatprep.subr.bf16.mxu0 %v1555
        %1973 = vmatpush1.bf16.msra.mxu0 %v1554
        %1974 = vmatprep.subr.bf16.mxu0 %v1559
        %1975 = vmatpush1.bf16.msra.mxu0 %v1558
        %1976 = vmatprep.subr.bf16.mxu0 %v1563
        %1977 = vmatpush1.bf16.msra.mxu0 %v1562
        %1978 = vmatprep.subr.bf16.mxu0 %v1567
        %1979 = vmatpush1.bf16.msra.mxu0 %v1566
        %1980 = vmatprep.subr.bf16.mxu0 %v1571
        %1981 = vmatpush1.bf16.msra.mxu0 %v1570
        %1982 = vmatprep.subr.bf16.mxu0 0
        %1983 = vmatpush1.bf16.msra.mxu0 0
        %1984 = vmatprep.subr.bf16.mxu0 0
        %1985 = vmatpush1.bf16.msra.mxu0 0
        %1986 = vmatprep.subr.bf16.mxu0 0
        %1987 = vmatpush1.bf16.msra.mxu0 0
        %1988 = vmatprep.subr.bf16.mxu0 0
        %1989 = vmatpush1.bf16.msra.mxu0 0
        %1990 = vmatprep.subr.bf16.mxu0 0
        %1991 = vmatpush1.bf16.msra.mxu0 0
        %1992 = vmatprep.subr.bf16.mxu0 0
        %1993 = vmatpush1.bf16.msra.mxu0 0
        %1994 = vmatprep.subr.bf16.mxu0 0
        %1995 = vmatpush1.bf16.msra.mxu0 0
        %1996 = vmatprep.subr.bf16.mxu0 0
        %1997 = vmatpush1.bf16.msra.mxu0 0
        %1998 = vmatprep.mubr.bf16.mxu0 0
        %1999 = vmatmul.mubr.bf16.gmra.mrb[0].mxu0 %v1956
        %v2000 = vpop.f32.mrb[0].mxu0
        %v2001 = vadd.f32 0.0, %v2000
        %v2002 = vpop.f32.mrb[0].mxu0
        %v2003 = vadd.f32 0.0, %v2002
        %v2004 = vpop.f32.mrb[0].mxu0
        %v2005 = vpop.f32.mrb[0].mxu0
        %2006 = vdwg.mxu0
        %2007 = vmatprep.subr.bf16.mxu0 %v1545
        %2008 = vmatpush1.bf16.msra.mxu0 %v1544
        %2009 = vmatprep.subr.bf16.mxu0 %v1549
        %2010 = vmatpush1.bf16.msra.mxu0 %v1548
        %2011 = vmatprep.subr.bf16.mxu0 %v1553
        %2012 = vmatpush1.bf16.msra.mxu0 %v1552
        %2013 = vmatprep.subr.bf16.mxu0 %v1557
        %2014 = vmatpush1.bf16.msra.mxu0 %v1556
        %2015 = vmatprep.subr.bf16.mxu0 %v1561
        %2016 = vmatpush1.bf16.msra.mxu0 %v1560
        %2017 = vmatprep.subr.bf16.mxu0 %v1565
        %2018 = vmatpush1.bf16.msra.mxu0 %v1564
        %2019 = vmatprep.subr.bf16.mxu0 %v1569
        %2020 = vmatpush1.bf16.msra.mxu0 %v1568
        %2021 = vmatprep.subr.bf16.mxu0 %v1573
        %2022 = vmatpush1.bf16.msra.mxu0 %v1572
        %2023 = vmatprep.subr.bf16.mxu0 0
        %2024 = vmatpush1.bf16.msra.mxu0 0
        %2025 = vmatprep.subr.bf16.mxu0 0
        %2026 = vmatpush1.bf16.msra.mxu0 0
        %2027 = vmatprep.subr.bf16.mxu0 0
        %2028 = vmatpush1.bf16.msra.mxu0 0
        %2029 = vmatprep.subr.bf16.mxu0 0
        %2030 = vmatpush1.bf16.msra.mxu0 0
        %2031 = vmatprep.subr.bf16.mxu0 0
        %2032 = vmatpush1.bf16.msra.mxu0 0
        %2033 = vmatprep.subr.bf16.mxu0 0
        %2034 = vmatpush1.bf16.msra.mxu0 0
        %2035 = vmatprep.subr.bf16.mxu0 0
        %2036 = vmatpush1.bf16.msra.mxu0 0
        %2037 = vmatprep.subr.bf16.mxu0 0
        %2038 = vmatpush1.bf16.msra.mxu0 0
        %2039 = vmatprep.mubr.bf16.mxu0 0
        %2040 = vmatmul.mubr.bf16.gmra.mrb[0].mxu0 %v1956
        %v2041 = vpop.f32.mrb[0].mxu0
        %v2042 = vadd.f32 0.0, %v2041
        %v2043 = vpop.f32.mrb[0].mxu0
        %v2044 = vadd.f32 0.0, %v2043
        %v2045 = vpop.f32.mrb[0].mxu0
        %v2046 = vpop.f32.mrb[0].mxu0
        %2047 = vdwg.mxu0
        %v2048 = vadd.f32 %v1962, %v2001
        %v2049 = vadd.f32 %v1963, %v2003
        %v2050 = vadd.f32 %v1964, %v2042
        %v2051 = vadd.f32 %v1965, %v2044
        %v2052 = vxor.u32 %v2048, 2147483648
        %v2053 = vxor.u32 %v2049, 2147483648
        %v2054 = vxor.u32 %v2050, 2147483648
        %v2055 = vmul.f32 %v2052, 1.442695
        %v2056 = vpow.pop %v2055
        %v2057 = vmul.f32 %v2053, 1.442695
        %v2058 = vpow.pop %v2057
        %v2059 = vmul.f32 %v2054, 1.442695
        %v2060 = vpow.pop %v2059
        %v2061 = vadd.f32 %v2056, 1.0
        %v2062 = vadd.f32 %v2058, 1.0
        %v2063 = vadd.f32 %v2060, 1.0
        %v2064 = vrcp.pop %v2061
        %v2065 = vmul.f32 1.0, %v2064
        %v2066 = vrcp.pop %v2062
        %v2067 = vmul.f32 1.0, %v2066
        %v2068 = vrcp.pop %v2063
        %v2069 = vmul.f32 1.0, %v2068
        %v2070 = vtanh.pop %v2051
        %v2071 = vmul.f32 %v2067, %v1953
        %v2072 = vmul.f32 %v2065, %v2070
        %v2073 = vadd.f32 %v2071, %v2072
        %v2074 = vtanh.pop %v2073
        %v2075 = vmul.f32 %v2069, %v2074
        %v2076 = vpack.c.bf16 %v2075, %v2075
        %s2077 = scalar_lea.vmem %s259, 16
        %2078 = vst [vmem:[%s2077] sm:$0xf] %v2076
        %s2079 = scalar_lea.vmem %s234, 48
        %v2080 = vld [vmem:[%s2079] sm:$0xff]
        %v2081 = vld [vmem:[%s2079 + $0x8] sm:$0xff]
        %v2082 = vunpack.c.l.bf16 %v2080
        %v2083 = vunpack.c.h.bf16 %v2080
        %v2084 = vunpack.c.l.bf16 %v2081
        %v2085 = vunpack.c.h.bf16 %v2081
        %2086 = vmatprep.subr.bf16.mxu0 %v1543
        %2087 = vmatpush1.bf16.msra.mxu0 %v1542
        %2088 = vmatprep.subr.bf16.mxu0 %v1547
        %2089 = vmatpush1.bf16.msra.mxu0 %v1546
        %2090 = vmatprep.subr.bf16.mxu0 %v1551
        %2091 = vmatpush1.bf16.msra.mxu0 %v1550
        %2092 = vmatprep.subr.bf16.mxu0 %v1555
        %2093 = vmatpush1.bf16.msra.mxu0 %v1554
        %2094 = vmatprep.subr.bf16.mxu0 %v1559
        %2095 = vmatpush1.bf16.msra.mxu0 %v1558
        %2096 = vmatprep.subr.bf16.mxu0 %v1563
        %2097 = vmatpush1.bf16.msra.mxu0 %v1562
        %2098 = vmatprep.subr.bf16.mxu0 %v1567
        %2099 = vmatpush1.bf16.msra.mxu0 %v1566
        %2100 = vmatprep.subr.bf16.mxu0 %v1571
        %2101 = vmatpush1.bf16.msra.mxu0 %v1570
        %2102 = vmatprep.subr.bf16.mxu0 0
        %2103 = vmatpush1.bf16.msra.mxu0 0
        %2104 = vmatprep.subr.bf16.mxu0 0
        %2105 = vmatpush1.bf16.msra.mxu0 0
        %2106 = vmatprep.subr.bf16.mxu0 0
        %2107 = vmatpush1.bf16.msra.mxu0 0
        %2108 = vmatprep.subr.bf16.mxu0 0
        %2109 = vmatpush1.bf16.msra.mxu0 0
        %2110 = vmatprep.subr.bf16.mxu0 0
        %2111 = vmatpush1.bf16.msra.mxu0 0
        %2112 = vmatprep.subr.bf16.mxu0 0
        %2113 = vmatpush1.bf16.msra.mxu0 0
        %2114 = vmatprep.subr.bf16.mxu0 0
        %2115 = vmatpush1.bf16.msra.mxu0 0
        %2116 = vmatprep.subr.bf16.mxu0 0
        %2117 = vmatpush1.bf16.msra.mxu0 0
        %2118 = vmatprep.mubr.bf16.mxu0 0
        %2119 = vmatmul.mubr.bf16.gmra.mrb[0].mxu0 %v2076
        %v2120 = vpop.f32.mrb[0].mxu0
        %v2121 = vadd.f32 0.0, %v2120
        %v2122 = vpop.f32.mrb[0].mxu0
        %v2123 = vadd.f32 0.0, %v2122
        %v2124 = vpop.f32.mrb[0].mxu0
        %v2125 = vpop.f32.mrb[0].mxu0
        %2126 = vdwg.mxu0
        %2127 = vmatprep.subr.bf16.mxu0 %v1545
        %2128 = vmatpush1.bf16.msra.mxu0 %v1544
        %2129 = vmatprep.subr.bf16.mxu0 %v1549
        %2130 = vmatpush1.bf16.msra.mxu0 %v1548
        %2131 = vmatprep.subr.bf16.mxu0 %v1553
        %2132 = vmatpush1.bf16.msra.mxu0 %v1552
        %2133 = vmatprep.subr.bf16.mxu0 %v1557
        %2134 = vmatpush1.bf16.msra.mxu0 %v1556
        %2135 = vmatprep.subr.bf16.mxu0 %v1561
        %2136 = vmatpush1.bf16.msra.mxu0 %v1560
        %2137 = vmatprep.subr.bf16.mxu0 %v1565
        %2138 = vmatpush1.bf16.msra.mxu0 %v1564
        %2139 = vmatprep.subr.bf16.mxu0 %v1569
        %2140 = vmatpush1.bf16.msra.mxu0 %v1568
        %2141 = vmatprep.subr.bf16.mxu0 %v1573
        %2142 = vmatpush1.bf16.msra.mxu0 %v1572
        %2143 = vmatprep.subr.bf16.mxu0 0
        %2144 = vmatpush1.bf16.msra.mxu0 0
        %2145 = vmatprep.subr.bf16.mxu0 0
        %2146 = vmatpush1.bf16.msra.mxu0 0
        %2147 = vmatprep.subr.bf16.mxu0 0
        %2148 = vmatpush1.bf16.msra.mxu0 0
        %2149 = vmatprep.subr.bf16.mxu0 0
        %2150 = vmatpush1.bf16.msra.mxu0 0
        %2151 = vmatprep.subr.bf16.mxu0 0
        %2152 = vmatpush1.bf16.msra.mxu0 0
        %2153 = vmatprep.subr.bf16.mxu0 0
        %2154 = vmatpush1.bf16.msra.mxu0 0
        %2155 = vmatprep.subr.bf16.mxu0 0
        %2156 = vmatpush1.bf16.msra.mxu0 0
        %2157 = vmatprep.subr.bf16.mxu0 0
        %2158 = vmatpush1.bf16.msra.mxu0 0
        %2159 = vmatprep.mubr.bf16.mxu0 0
        %2160 = vmatmul.mubr.bf16.gmra.mrb[0].mxu0 %v2076
        %v2161 = vpop.f32.mrb[0].mxu0
        %v2162 = vadd.f32 0.0, %v2161
        %v2163 = vpop.f32.mrb[0].mxu0
        %v2164 = vadd.f32 0.0, %v2163
        %v2165 = vpop.f32.mrb[0].mxu0
        %v2166 = vpop.f32.mrb[0].mxu0
        %2167 = vdwg.mxu0
        %v2168 = vadd.f32 %v2082, %v2121
        %v2169 = vadd.f32 %v2083, %v2123
        %v2170 = vadd.f32 %v2084, %v2162
        %v2171 = vadd.f32 %v2085, %v2164
        %v2172 = vxor.u32 %v2168, 2147483648
        %v2173 = vxor.u32 %v2169, 2147483648
        %v2174 = vxor.u32 %v2170, 2147483648
        %v2175 = vmul.f32 %v2172, 1.442695
        %v2176 = vpow.pop %v2175
        %v2177 = vmul.f32 %v2173, 1.442695
        %v2178 = vpow.pop %v2177
        %v2179 = vmul.f32 %v2174, 1.442695
        %v2180 = vpow.pop %v2179
        %v2181 = vadd.f32 %v2176, 1.0
        %v2182 = vadd.f32 %v2178, 1.0
        %v2183 = vadd.f32 %v2180, 1.0
        %v2184 = vrcp.pop %v2181
        %v2185 = vmul.f32 1.0, %v2184
        %v2186 = vrcp.pop %v2182
        %v2187 = vmul.f32 1.0, %v2186
        %v2188 = vrcp.pop %v2183
        %v2189 = vmul.f32 1.0, %v2188
        %v2190 = vtanh.pop %v2171
        %v2191 = vmul.f32 %v2187, %v2073
        %v2192 = vmul.f32 %v2185, %v2190
        %v2193 = vadd.f32 %v2191, %v2192
        %v2194 = vtanh.pop %v2193
        %v2195 = vmul.f32 %v2189, %v2194
        %v2196 = vpack.c.bf16 %v2195, %v2195
        %s2197 = scalar_lea.vmem %s259, 12
        %2198 = vst [vmem:[%s2197] sm:$0xf] %v2196
        %s2199 = scalar_lea.vmem %s234, 32
        %v2200 = vld [vmem:[%s2199] sm:$0xff]
        %v2201 = vld [vmem:[%s2199 + $0x8] sm:$0xff]
        %v2202 = vunpack.c.l.bf16 %v2200
        %v2203 = vunpack.c.h.bf16 %v2200
        %v2204 = vunpack.c.l.bf16 %v2201
        %v2205 = vunpack.c.h.bf16 %v2201
        %2206 = vmatprep.subr.bf16.mxu0 %v1543
        %2207 = vmatpush1.bf16.msra.mxu0 %v1542
        %2208 = vmatprep.subr.bf16.mxu0 %v1547
        %2209 = vmatpush1.bf16.msra.mxu0 %v1546
        %2210 = vmatprep.subr.bf16.mxu0 %v1551
        %2211 = vmatpush1.bf16.msra.mxu0 %v1550
        %2212 = vmatprep.subr.bf16.mxu0 %v1555
        %2213 = vmatpush1.bf16.msra.mxu0 %v1554
        %2214 = vmatprep.subr.bf16.mxu0 %v1559
        %2215 = vmatpush1.bf16.msra.mxu0 %v1558
        %2216 = vmatprep.subr.bf16.mxu0 %v1563
        %2217 = vmatpush1.bf16.msra.mxu0 %v1562
        %2218 = vmatprep.subr.bf16.mxu0 %v1567
        %2219 = vmatpush1.bf16.msra.mxu0 %v1566
        %2220 = vmatprep.subr.bf16.mxu0 %v1571
        %2221 = vmatpush1.bf16.msra.mxu0 %v1570
        %2222 = vmatprep.subr.bf16.mxu0 0
        %2223 = vmatpush1.bf16.msra.mxu0 0
        %2224 = vmatprep.subr.bf16.mxu0 0
        %2225 = vmatpush1.bf16.msra.mxu0 0
        %2226 = vmatprep.subr.bf16.mxu0 0
        %2227 = vmatpush1.bf16.msra.mxu0 0
        %2228 = vmatprep.subr.bf16.mxu0 0
        %2229 = vmatpush1.bf16.msra.mxu0 0
        %2230 = vmatprep.subr.bf16.mxu0 0
        %2231 = vmatpush1.bf16.msra.mxu0 0
        %2232 = vmatprep.subr.bf16.mxu0 0
        %2233 = vmatpush1.bf16.msra.mxu0 0
        %2234 = vmatprep.subr.bf16.mxu0 0
        %2235 = vmatpush1.bf16.msra.mxu0 0
        %2236 = vmatprep.subr.bf16.mxu0 0
        %2237 = vmatpush1.bf16.msra.mxu0 0
        %2238 = vmatprep.mubr.bf16.mxu0 0
        %2239 = vmatmul.mubr.bf16.gmra.mrb[0].mxu0 %v2196
        %v2240 = vpop.f32.mrb[0].mxu0
        %v2241 = vadd.f32 0.0, %v2240
        %v2242 = vpop.f32.mrb[0].mxu0
        %v2243 = vadd.f32 0.0, %v2242
        %v2244 = vpop.f32.mrb[0].mxu0
        %v2245 = vpop.f32.mrb[0].mxu0
        %2246 = vdwg.mxu0
        %2247 = vmatprep.subr.bf16.mxu0 %v1545
        %2248 = vmatpush1.bf16.msra.mxu0 %v1544
        %2249 = vmatprep.subr.bf16.mxu0 %v1549
        %2250 = vmatpush1.bf16.msra.mxu0 %v1548
        %2251 = vmatprep.subr.bf16.mxu0 %v1553
        %2252 = vmatpush1.bf16.msra.mxu0 %v1552
        %2253 = vmatprep.subr.bf16.mxu0 %v1557
        %2254 = vmatpush1.bf16.msra.mxu0 %v1556
        %2255 = vmatprep.subr.bf16.mxu0 %v1561
        %2256 = vmatpush1.bf16.msra.mxu0 %v1560
        %2257 = vmatprep.subr.bf16.mxu0 %v1565
        %2258 = vmatpush1.bf16.msra.mxu0 %v1564
        %2259 = vmatprep.subr.bf16.mxu0 %v1569
        %2260 = vmatpush1.bf16.msra.mxu0 %v1568
        %2261 = vmatprep.subr.bf16.mxu0 %v1573
        %2262 = vmatpush1.bf16.msra.mxu0 %v1572
        %2263 = vmatprep.subr.bf16.mxu0 0
        %2264 = vmatpush1.bf16.msra.mxu0 0
        %2265 = vmatprep.subr.bf16.mxu0 0
        %2266 = vmatpush1.bf16.msra.mxu0 0
        %2267 = vmatprep.subr.bf16.mxu0 0
        %2268 = vmatpush1.bf16.msra.mxu0 0
        %2269 = vmatprep.subr.bf16.mxu0 0
        %2270 = vmatpush1.bf16.msra.mxu0 0
        %2271 = vmatprep.subr.bf16.mxu0 0
        %2272 = vmatpush1.bf16.msra.mxu0 0
        %2273 = vmatprep.subr.bf16.mxu0 0
        %2274 = vmatpush1.bf16.msra.mxu0 0
        %2275 = vmatprep.subr.bf16.mxu0 0
        %2276 = vmatpush1.bf16.msra.mxu0 0
        %2277 = vmatprep.subr.bf16.mxu0 0
        %2278 = vmatpush1.bf16.msra.mxu0 0
        %2279 = vmatprep.mubr.bf16.mxu0 0
        %2280 = vmatmul.mubr.bf16.gmra.mrb[0].mxu0 %v2196
        %v2281 = vpop.f32.mrb[0].mxu0
        %v2282 = vadd.f32 0.0, %v2281
        %v2283 = vpop.f32.mrb[0].mxu0
        %v2284 = vadd.f32 0.0, %v2283
        %v2285 = vpop.f32.mrb[0].mxu0
        %v2286 = vpop.f32.mrb[0].mxu0
        %2287 = vdwg.mxu0
        %v2288 = vadd.f32 %v2202, %v2241
        %v2289 = vadd.f32 %v2203, %v2243
        %v2290 = vadd.f32 %v2204, %v2282
        %v2291 = vadd.f32 %v2205, %v2284
        %v2292 = vxor.u32 %v2288, 2147483648
        %v2293 = vxor.u32 %v2289, 2147483648
        %v2294 = vxor.u32 %v2290, 2147483648
        %v2295 = vmul.f32 %v2292, 1.442695
        %v2296 = vpow.pop %v2295
        %v2297 = vmul.f32 %v2293, 1.442695
        %v2298 = vpow.pop %v2297
        %v2299 = vmul.f32 %v2294, 1.442695
        %v2300 = vpow.pop %v2299
        %v2301 = vadd.f32 %v2296, 1.0
        %v2302 = vadd.f32 %v2298, 1.0
        %v2303 = vadd.f32 %v2300, 1.0
        %v2304 = vrcp.pop %v2301
        %v2305 = vmul.f32 1.0, %v2304
        %v2306 = vrcp.pop %v2302
        %v2307 = vmul.f32 1.0, %v2306
        %v2308 = vrcp.pop %v2303
        %v2309 = vmul.f32 1.0, %v2308
        %v2310 = vtanh.pop %v2291
        %v2311 = vmul.f32 %v2307, %v2193
        %v2312 = vmul.f32 %v2305, %v2310
        %v2313 = vadd.f32 %v2311, %v2312
        %v2314 = vtanh.pop %v2313
        %v2315 = vmul.f32 %v2309, %v2314
        %v2316 = vpack.c.bf16 %v2315, %v2315
        %s2317 = scalar_lea.vmem %s259, 8
        %2318 = vst [vmem:[%s2317] sm:$0xf] %v2316
        %s2319 = scalar_lea.vmem %s234, 16
        %v2320 = vld [vmem:[%s2319] sm:$0xff]
        %v2321 = vld [vmem:[%s2319 + $0x8] sm:$0xff]
        %v2322 = vunpack.c.l.bf16 %v2320
        %v2323 = vunpack.c.h.bf16 %v2320
        %v2324 = vunpack.c.l.bf16 %v2321
        %v2325 = vunpack.c.h.bf16 %v2321
        %2326 = vmatprep.subr.bf16.mxu0 %v1543
        %2327 = vmatpush1.bf16.msra.mxu0 %v1542
        %2328 = vmatprep.subr.bf16.mxu0 %v1547
        %2329 = vmatpush1.bf16.msra.mxu0 %v1546
        %2330 = vmatprep.subr.bf16.mxu0 %v1551
        %2331 = vmatpush1.bf16.msra.mxu0 %v1550
        %2332 = vmatprep.subr.bf16.mxu0 %v1555
        %2333 = vmatpush1.bf16.msra.mxu0 %v1554
        %2334 = vmatprep.subr.bf16.mxu0 %v1559
        %2335 = vmatpush1.bf16.msra.mxu0 %v1558
        %2336 = vmatprep.subr.bf16.mxu0 %v1563
        %2337 = vmatpush1.bf16.msra.mxu0 %v1562
        %2338 = vmatprep.subr.bf16.mxu0 %v1567
        %2339 = vmatpush1.bf16.msra.mxu0 %v1566
        %2340 = vmatprep.subr.bf16.mxu0 %v1571
        %2341 = vmatpush1.bf16.msra.mxu0 %v1570
        %2342 = vmatprep.subr.bf16.mxu0 0
        %2343 = vmatpush1.bf16.msra.mxu0 0
        %2344 = vmatprep.subr.bf16.mxu0 0
        %2345 = vmatpush1.bf16.msra.mxu0 0
        %2346 = vmatprep.subr.bf16.mxu0 0
        %2347 = vmatpush1.bf16.msra.mxu0 0
        %2348 = vmatprep.subr.bf16.mxu0 0
        %2349 = vmatpush1.bf16.msra.mxu0 0
        %2350 = vmatprep.subr.bf16.mxu0 0
        %2351 = vmatpush1.bf16.msra.mxu0 0
        %2352 = vmatprep.subr.bf16.mxu0 0
        %2353 = vmatpush1.bf16.msra.mxu0 0
        %2354 = vmatprep.subr.bf16.mxu0 0
        %2355 = vmatpush1.bf16.msra.mxu0 0
        %2356 = vmatprep.subr.bf16.mxu0 0
        %2357 = vmatpush1.bf16.msra.mxu0 0
        %2358 = vmatprep.mubr.bf16.mxu0 0
        %2359 = vmatmul.mubr.bf16.gmra.mrb[0].mxu0 %v2316
        %v2360 = vpop.f32.mrb[0].mxu0
        %v2361 = vadd.f32 0.0, %v2360
        %v2362 = vpop.f32.mrb[0].mxu0
        %v2363 = vadd.f32 0.0, %v2362
        %v2364 = vpop.f32.mrb[0].mxu0
        %v2365 = vpop.f32.mrb[0].mxu0
        %2366 = vdwg.mxu0
        %2367 = vmatprep.subr.bf16.mxu0 %v1545
        %2368 = vmatpush1.bf16.msra.mxu0 %v1544
        %2369 = vmatprep.subr.bf16.mxu0 %v1549
        %2370 = vmatpush1.bf16.msra.mxu0 %v1548
        %2371 = vmatprep.subr.bf16.mxu0 %v1553
        %2372 = vmatpush1.bf16.msra.mxu0 %v1552
        %2373 = vmatprep.subr.bf16.mxu0 %v1557
        %2374 = vmatpush1.bf16.msra.mxu0 %v1556
        %2375 = vmatprep.subr.bf16.mxu0 %v1561
        %2376 = vmatpush1.bf16.msra.mxu0 %v1560
        %2377 = vmatprep.subr.bf16.mxu0 %v1565
        %2378 = vmatpush1.bf16.msra.mxu0 %v1564
        %2379 = vmatprep.subr.bf16.mxu0 %v1569
        %2380 = vmatpush1.bf16.msra.mxu0 %v1568
        %2381 = vmatprep.subr.bf16.mxu0 %v1573
        %2382 = vmatpush1.bf16.msra.mxu0 %v1572
        %2383 = vmatprep.subr.bf16.mxu0 0
        %2384 = vmatpush1.bf16.msra.mxu0 0
        %2385 = vmatprep.subr.bf16.mxu0 0
        %2386 = vmatpush1.bf16.msra.mxu0 0
        %2387 = vmatprep.subr.bf16.mxu0 0
        %2388 = vmatpush1.bf16.msra.mxu0 0
        %2389 = vmatprep.subr.bf16.mxu0 0
        %2390 = vmatpush1.bf16.msra.mxu0 0
        %2391 = vmatprep.subr.bf16.mxu0 0
        %2392 = vmatpush1.bf16.msra.mxu0 0
        %2393 = vmatprep.subr.bf16.mxu0 0
        %2394 = vmatpush1.bf16.msra.mxu0 0
        %2395 = vmatprep.subr.bf16.mxu0 0
        %2396 = vmatpush1.bf16.msra.mxu0 0
        %2397 = vmatprep.subr.bf16.mxu0 0
        %2398 = vmatpush1.bf16.msra.mxu0 0
        %2399 = vmatprep.mubr.bf16.mxu0 0
        %2400 = vmatmul.mubr.bf16.gmra.mrb[0].mxu0 %v2316
        %v2401 = vpop.f32.mrb[0].mxu0
        %v2402 = vadd.f32 0.0, %v2401
        %v2403 = vpop.f32.mrb[0].mxu0
        %v2404 = vadd.f32 0.0, %v2403
        %v2405 = vpop.f32.mrb[0].mxu0
        %v2406 = vpop.f32.mrb[0].mxu0
        %2407 = vdwg.mxu0
        %v2408 = vadd.f32 %v2322, %v2361
        %v2409 = vadd.f32 %v2323, %v2363
        %v2410 = vadd.f32 %v2324, %v2402
        %v2411 = vadd.f32 %v2325, %v2404
        %v2412 = vxor.u32 %v2408, 2147483648
        %v2413 = vxor.u32 %v2409, 2147483648
        %v2414 = vxor.u32 %v2410, 2147483648
        %v2415 = vmul.f32 %v2412, 1.442695
        %v2416 = vpow.pop %v2415
        %v2417 = vmul.f32 %v2413, 1.442695
        %v2418 = vpow.pop %v2417
        %v2419 = vmul.f32 %v2414, 1.442695
        %v2420 = vpow.pop %v2419
        %v2421 = vadd.f32 %v2416, 1.0
        %v2422 = vadd.f32 %v2418, 1.0
        %v2423 = vadd.f32 %v2420, 1.0
        %v2424 = vrcp.pop %v2421
        %v2425 = vmul.f32 1.0, %v2424
        %v2426 = vrcp.pop %v2422
        %v2427 = vmul.f32 1.0, %v2426
        %v2428 = vrcp.pop %v2423
        %v2429 = vmul.f32 1.0, %v2428
        %v2430 = vtanh.pop %v2411
        %v2431 = vmul.f32 %v2427, %v2313
        %v2432 = vmul.f32 %v2425, %v2430
        %v2433 = vadd.f32 %v2431, %v2432
        %v2434 = vtanh.pop %v2433
        %v2435 = vmul.f32 %v2429, %v2434
        %v2436 = vpack.c.bf16 %v2435, %v2435
        %s2437 = scalar_lea.vmem %s259, 4
        %2438 = vst [vmem:[%s2437] sm:$0xf] %v2436
        %v2439 = vld [vmem:[%s234] sm:$0xff]
        %v2440 = vld [vmem:[%s234 + $0x8] sm:$0xff]
        %v2441 = vunpack.c.l.bf16 %v2439
        %v2442 = vunpack.c.h.bf16 %v2439
        %v2443 = vunpack.c.l.bf16 %v2440
        %v2444 = vunpack.c.h.bf16 %v2440
        %2445 = vmatprep.subr.bf16.mxu0 %v1543
        %2446 = vmatpush1.bf16.msra.mxu0 %v1542
        %2447 = vmatprep.subr.bf16.mxu0 %v1547
        %2448 = vmatpush1.bf16.msra.mxu0 %v1546
        %2449 = vmatprep.subr.bf16.mxu0 %v1551
        %2450 = vmatpush1.bf16.msra.mxu0 %v1550
        %2451 = vmatprep.subr.bf16.mxu0 %v1555
        %2452 = vmatpush1.bf16.msra.mxu0 %v1554
        %2453 = vmatprep.subr.bf16.mxu0 %v1559
        %2454 = vmatpush1.bf16.msra.mxu0 %v1558
        %2455 = vmatprep.subr.bf16.mxu0 %v1563
        %2456 = vmatpush1.bf16.msra.mxu0 %v1562
        %2457 = vmatprep.subr.bf16.mxu0 %v1567
        %2458 = vmatpush1.bf16.msra.mxu0 %v1566
        %2459 = vmatprep.subr.bf16.mxu0 %v1571
        %2460 = vmatpush1.bf16.msra.mxu0 %v1570
        %2461 = vmatprep.subr.bf16.mxu0 0
        %2462 = vmatpush1.bf16.msra.mxu0 0
        %2463 = vmatprep.subr.bf16.mxu0 0
        %2464 = vmatpush1.bf16.msra.mxu0 0
        %2465 = vmatprep.subr.bf16.mxu0 0
        %2466 = vmatpush1.bf16.msra.mxu0 0
        %2467 = vmatprep.subr.bf16.mxu0 0
        %2468 = vmatpush1.bf16.msra.mxu0 0
        %2469 = vmatprep.subr.bf16.mxu0 0
        %2470 = vmatpush1.bf16.msra.mxu0 0
        %2471 = vmatprep.subr.bf16.mxu0 0
        %2472 = vmatpush1.bf16.msra.mxu0 0
        %2473 = vmatprep.subr.bf16.mxu0 0
        %2474 = vmatpush1.bf16.msra.mxu0 0
        %2475 = vmatprep.subr.bf16.mxu0 0
        %2476 = vmatpush1.bf16.msra.mxu0 0
        %2477 = vmatprep.mubr.bf16.mxu0 0
        %2478 = vmatmul.mubr.bf16.gmra.mrb[0].mxu0 %v2436
        %v2479 = vpop.f32.mrb[0].mxu0
        %v2480 = vadd.f32 0.0, %v2479
        %v2481 = vpop.f32.mrb[0].mxu0
        %v2482 = vadd.f32 0.0, %v2481
        %v2483 = vpop.f32.mrb[0].mxu0
        %v2484 = vpop.f32.mrb[0].mxu0
        %2485 = vdwg.mxu0
        %2486 = vmatprep.subr.bf16.mxu0 %v1545
        %2487 = vmatpush1.bf16.msra.mxu0 %v1544
        %2488 = vmatprep.subr.bf16.mxu0 %v1549
        %2489 = vmatpush1.bf16.msra.mxu0 %v1548
        %2490 = vmatprep.subr.bf16.mxu0 %v1553
        %2491 = vmatpush1.bf16.msra.mxu0 %v1552
        %2492 = vmatprep.subr.bf16.mxu0 %v1557
        %2493 = vmatpush1.bf16.msra.mxu0 %v1556
        %2494 = vmatprep.subr.bf16.mxu0 %v1561
        %2495 = vmatpush1.bf16.msra.mxu0 %v1560
        %2496 = vmatprep.subr.bf16.mxu0 %v1565
        %2497 = vmatpush1.bf16.msra.mxu0 %v1564
        %2498 = vmatprep.subr.bf16.mxu0 %v1569
        %2499 = vmatpush1.bf16.msra.mxu0 %v1568
        %2500 = vmatprep.subr.bf16.mxu0 %v1573
        %2501 = vmatpush1.bf16.msra.mxu0 %v1572
        %2502 = vmatprep.subr.bf16.mxu0 0
        %2503 = vmatpush1.bf16.msra.mxu0 0
        %2504 = vmatprep.subr.bf16.mxu0 0
        %2505 = vmatpush1.bf16.msra.mxu0 0
        %2506 = vmatprep.subr.bf16.mxu0 0
        %2507 = vmatpush1.bf16.msra.mxu0 0
        %2508 = vmatprep.subr.bf16.mxu0 0
        %2509 = vmatpush1.bf16.msra.mxu0 0
        %2510 = vmatprep.subr.bf16.mxu0 0
        %2511 = vmatpush1.bf16.msra.mxu0 0
        %2512 = vmatprep.subr.bf16.mxu0 0
        %2513 = vmatpush1.bf16.msra.mxu0 0
        %2514 = vmatprep.subr.bf16.mxu0 0
        %2515 = vmatpush1.bf16.msra.mxu0 0
        %2516 = vmatprep.subr.bf16.mxu0 0
        %2517 = vmatpush1.bf16.msra.mxu0 0
        %2518 = vmatprep.mubr.bf16.mxu0 0
        %2519 = vmatmul.mubr.bf16.gmra.mrb[0].mxu0 %v2436
        %v2520 = vpop.f32.mrb[0].mxu0
        %v2521 = vadd.f32 0.0, %v2520
        %v2522 = vpop.f32.mrb[0].mxu0
        %v2523 = vadd.f32 0.0, %v2522
        %v2524 = vpop.f32.mrb[0].mxu0
        %v2525 = vpop.f32.mrb[0].mxu0
        %2526 = vdwg.mxu0
        %v2527 = vadd.f32 %v2441, %v2480
        %v2528 = vadd.f32 %v2442, %v2482
        %v2529 = vadd.f32 %v2443, %v2521
        %v2530 = vadd.f32 %v2444, %v2523
        %v2531 = vxor.u32 %v2527, 2147483648
        %v2532 = vxor.u32 %v2528, 2147483648
        %v2533 = vxor.u32 %v2529, 2147483648
        %v2534 = vmul.f32 %v2531, 1.442695
        %v2535 = vpow.pop %v2534
        %v2536 = vmul.f32 %v2532, 1.442695
        %v2537 = vpow.pop %v2536
        %v2538 = vmul.f32 %v2533, 1.442695
        %v2539 = vpow.pop %v2538
        %v2540 = vadd.f32 %v2535, 1.0
        %v2541 = vadd.f32 %v2537, 1.0
        %v2542 = vadd.f32 %v2539, 1.0
        %v2543 = vrcp.pop %v2540
        %v2544 = vmul.f32 1.0, %v2543
        %v2545 = vrcp.pop %v2541
        %v2546 = vmul.f32 1.0, %v2545
        %v2547 = vrcp.pop %v2542
        %v2548 = vmul.f32 1.0, %v2547
        %v2549 = vtanh.pop %v2530
        %v2550 = vmul.f32 %v2546, %v2433
        %v2551 = vmul.f32 %v2544, %v2549
        %v2552 = vadd.f32 %v2550, %v2551
        %v2553 = vtanh.pop %v2552
        %v2554 = vmul.f32 %v2548, %v2553
        %v2555 = vpack.c.bf16 %v2554, %v2554
        %2556 = vst [vmem:[%s259] sm:$0xf] %v2555
        %2557 = vst [vmem:[#allocation2] sm:$0xff] %v2554
        %2558 = vst [vmem:[#allocation3] sm:$0xff] %v2552
      $region40: #{dpcl_forward.6} parent=27 // pred_fallthru
        _
      %s2559 = ssub.s32 1, %s17
      %s2560 = smul.u32 %s2559, %s18
      %s2561 = ssub.s32 1, %s18
      %s2562 = smul.u32 %s17, %s2561
      %s2563 = sadd.s32 %s2560, %s2562
      %s2564 = smul.u32 8, %s2563
      %p2565 = scmp.lt.s32.totalorder %s17, 1
      %s2566 = scalar_select %p2565, %s17, 1
      %p2567 = scmp.lt.s32.totalorder %s2564, 15
      %s2568 = scalar_select %p2567, %s2564, 15
      %s2569 = smul.addr %s2566, 16
      %s2570 = sadd.s32 %s2568, %s2569
      %s2571 = smul.addr %s2570, 4
      %s2572 = scalar_lea.vmem %s2, %s2571
      // Predicated region
      $region41: #{dpcl_forward.6} parent=27 // pred_check
        %p2573 = pneg %p119
      $region42: #{dpcl_forward.6} parent=27 // pred_check_branch
        %2575 = sbr.rel (%p2573) target = $region44
      $region43: #{dpcl_forward.6} parent=27 // pred_region
        %s2576 = ssub.s32 1, %s17
        %s2577 = smul.u32 %s2576, %s18
        %s2578 = ssub.s32 1, %s18
        %s2579 = smul.u32 %s17, %s2578
        %s2580 = sadd.s32 %s2577, %s2579
        %s2581 = smul.u32 8, %s2580
      $region44: #{dpcl_forward.6} parent=27 // pred_fallthru
        _
    $region28: #{dpcl_forward.6} parent=5 // pred_fallthru
      _
    %p2582 = scmp.le.s32.totalorder 2, %s8
    // Predicated region
    $region45: #{dpcl_forward.6} parent=5 // pred_check
      %p2583 = pneg %p2582
    $region46: #{dpcl_forward.6} parent=5 // pred_check_branch
      %2585 = sbr.rel (%p2583) target = $region48
    $region47: #{dpcl_forward.6} parent=5 // pred_region
      %s2586 = ssub.s32 %s8, 2
      // Predicated region
      $region49: #{dpcl_forward.6} parent=47 // pred_check
        %p2587 = pneg %p125
      $region50: #{dpcl_forward.6} parent=47 // pred_check_branch
        %2589 = sbr.rel (%p2587) target = $region52
      $region51: #{dpcl_forward.6} parent=47 // pred_region
        %s2590 = ssub.s32 1, %s19
        %s2591 = smul.u32 %s2590, %s20
        %s2592 = ssub.s32 1, %s20
        %s2593 = smul.u32 %s19, %s2592
        %s2594 = sadd.s32 %s2591, %s2593
        %s2595 = smul.u32 8, %s2594
        %p2596 = scmp.lt.s32.totalorder %s19, 1
        %s2597 = scalar_select %p2596, %s19, 1
        %p2598 = scmp.lt.s32.totalorder %s2595, 15
        %s2599 = scalar_select %p2598, %s2595, 15
        %s2600 = smul.addr %s2597, 16
        %s2601 = sadd.s32 %s2599, %s2600
        %s2602 = smul.addr %s2601, 4
        %s2603 = scalar_lea.vmem %s2, %s2602
      $region52: #{dpcl_forward.6} parent=47 // pred_fallthru
        _
    $region48: #{dpcl_forward.6} parent=5 // pred_fallthru
      _
  $region6: #{dpcl_forward.6} parent=0 // loop_footer
    %s12 = sadd.s32 1, %s8
  $region7: #{dpcl_forward.6} parent=0 // loop_footer_branch
    %7 = sbr.rel target = $region3
  $region8: #{dpcl_forward.6} parent=0 // loop_exit
    _

// kernel: dpcl_forward.9
$region0: #{dpcl_forward.9}
  #allocation0 [shape = 'u32[]', space=smem, size = 0x4, offset = 0x4, fixed_abs, tag = 'smem constant byte address 0x4 - core index']
  #allocation1 [shape = 'u32[144,128]{1,0:T(1,128)}', space=vmem, size = 0x12000, scoped, tag = 'internal scratch']
  %s0 = inlined_call_operand.vmem [shape: bf16[128,128], index: 0, kind: input, shape index: {}]
  %s1 = inlined_call_operand.vmem [shape: bf16[128,128], index: 1, kind: input, shape index: {}]
  %s2 = inlined_call_operand.vmem [shape: bf16[1,128,128], index: 2, kind: input, shape index: {}]
  %s3 = inlined_call_operand.vmem [shape: bf16[1,128,128], index: 3, kind: input, shape index: {}]
  %s4 = inlined_call_operand.vmem [shape: f32[1,1,128], index: 4, kind: input, shape index: {}]
  %s5 = inlined_call_operand.vmem [shape: f32[1,128,128], index: 5, kind: output, shape index: {}]
  %s6 = sld [smem:[#allocation0]]
  $region30: #{dpcl_forward.9} parent=0
    _
  %s8 = ssub.s32 1, %s6
  %s9 = scalar_select 0, %s8, %s6
  // Predicated region
  $region2: #{dpcl_forward.9} parent=0 // pred_check
    _
  $region3: #{dpcl_forward.9} parent=0 // pred_check_branch
    %11 = sbr.rel (0) target = $region5
  $region4: #{dpcl_forward.9} parent=0 // pred_region
    _
  $region5: #{dpcl_forward.9} parent=0 // pred_fallthru
    _
  // Predicated region
  $region6: #{dpcl_forward.9} parent=0 // pred_check
    _
  $region7: #{dpcl_forward.9} parent=0 // pred_check_branch
    %13 = sbr.rel (0) target = $region9
  $region8: #{dpcl_forward.9} parent=0 // pred_region
    _
  $region9: #{dpcl_forward.9} parent=0 // pred_fallthru
    _
  // Predicated region
  $region10: #{dpcl_forward.9} parent=0 // pred_check
    _
  $region11: #{dpcl_forward.9} parent=0 // pred_check_branch
    %15 = sbr.rel (0) target = $region13
  $region12: #{dpcl_forward.9} parent=0 // pred_region
    _
  $region13: #{dpcl_forward.9} parent=0 // pred_fallthru
    _
  // Predicated region
  $region14: #{dpcl_forward.9} parent=0 // pred_check
    _
  $region15: #{dpcl_forward.9} parent=0 // pred_check_branch
    %17 = sbr.rel (0) target = $region17
  $region16: #{dpcl_forward.9} parent=0 // pred_region
    _
  $region17: #{dpcl_forward.9} parent=0 // pred_fallthru
    _
  // Predicated region
  $region18: #{dpcl_forward.9} parent=0 // pred_check
    _
  $region19: #{dpcl_forward.9} parent=0 // pred_check_branch
    %19 = sbr.rel (0) target = $region21
  $region20: #{dpcl_forward.9} parent=0 // pred_region
    _
  $region21: #{dpcl_forward.9} parent=0 // pred_fallthru
    _
  %v21 = vld [vmem:[%s0] sm:$0xf]
  %v22 = vld [vmem:[%s0 + $0x4] sm:$0xf]
  %v23 = vld [vmem:[%s0 + $0x8] sm:$0xf]
  %v24 = vld [vmem:[%s0 + $0xc] sm:$0xf]
  %v25 = vld [vmem:[%s0 + $0x10] sm:$0xf]
  %v26 = vld [vmem:[%s0 + $0x14] sm:$0xf]
  %v27 = vld [vmem:[%s0 + $0x18] sm:$0xf]
  %v28 = vld [vmem:[%s0 + $0x1c] sm:$0xf]
  %v29 = vld [vmem:[%s0 + $0x20] sm:$0xf]
  %v30 = vld [vmem:[%s0 + $0x24] sm:$0xf]
  %v31 = vld [vmem:[%s0 + $0x28] sm:$0xf]
  %v32 = vld [vmem:[%s0 + $0x2c] sm:$0xf]
  %v33 = vld [vmem:[%s0 + $0x30] sm:$0xf]
  %v34 = vld [vmem:[%s0 + $0x34] sm:$0xf]
  %v35 = vld [vmem:[%s0 + $0x38] sm:$0xf]
  %v36 = vld [vmem:[%s0 + $0x3c] sm:$0xf]
  %v37 = vld [vmem:[%s2] sm:$0xf]
  %v38 = vld [vmem:[%s2 + $0x4] sm:$0xf]
  %v39 = vld [vmem:[%s2 + $0x8] sm:$0xf]
  %v40 = vld [vmem:[%s2 + $0xc] sm:$0xf]
  %v41 = vld [vmem:[%s2 + $0x10] sm:$0xf]
  %v42 = vld [vmem:[%s2 + $0x14] sm:$0xf]
  %v43 = vld [vmem:[%s2 + $0x18] sm:$0xf]
  %v44 = vld [vmem:[%s2 + $0x1c] sm:$0xf]
  %v45 = vld [vmem:[%s2 + $0x20] sm:$0xf]
  %v46 = vld [vmem:[%s2 + $0x24] sm:$0xf]
  %v47 = vld [vmem:[%s2 + $0x28] sm:$0xf]
  %v48 = vld [vmem:[%s2 + $0x2c] sm:$0xf]
  %v49 = vld [vmem:[%s2 + $0x30] sm:$0xf]
  %v50 = vld [vmem:[%s2 + $0x34] sm:$0xf]
  %v51 = vld [vmem:[%s2 + $0x38] sm:$0xf]
  %v52 = vld [vmem:[%s2 + $0x3c] sm:$0xf]
  %v53 = vld [vmem:[%s1] sm:$0xf]
  %v54 = vld [vmem:[%s1 + $0x4] sm:$0xf]
  %v55 = vld [vmem:[%s1 + $0x8] sm:$0xf]
  %v56 = vld [vmem:[%s1 + $0xc] sm:$0xf]
  %v57 = vld [vmem:[%s1 + $0x10] sm:$0xf]
  %v58 = vld [vmem:[%s1 + $0x14] sm:$0xf]
  %v59 = vld [vmem:[%s1 + $0x18] sm:$0xf]
  %v60 = vld [vmem:[%s1 + $0x1c] sm:$0xf]
  %v61 = vld [vmem:[%s1 + $0x20] sm:$0xf]
  %v62 = vld [vmem:[%s1 + $0x24] sm:$0xf]
  %v63 = vld [vmem:[%s1 + $0x28] sm:$0xf]
  %v64 = vld [vmem:[%s1 + $0x2c] sm:$0xf]
  %v65 = vld [vmem:[%s1 + $0x30] sm:$0xf]
  %v66 = vld [vmem:[%s1 + $0x34] sm:$0xf]
  %v67 = vld [vmem:[%s1 + $0x38] sm:$0xf]
  %v68 = vld [vmem:[%s1 + $0x3c] sm:$0xf]
  %v69 = vld [vmem:[%s3] sm:$0xf]
  %v70 = vld [vmem:[%s3 + $0x4] sm:$0xf]
  %v71 = vld [vmem:[%s3 + $0x8] sm:$0xf]
  %v72 = vld [vmem:[%s3 + $0xc] sm:$0xf]
  %v73 = vld [vmem:[%s3 + $0x10] sm:$0xf]
  %v74 = vld [vmem:[%s3 + $0x14] sm:$0xf]
  %v75 = vld [vmem:[%s3 + $0x18] sm:$0xf]
  %v76 = vld [vmem:[%s3 + $0x1c] sm:$0xf]
  %v77 = vld [vmem:[%s3 + $0x20] sm:$0xf]
  %v78 = vld [vmem:[%s3 + $0x24] sm:$0xf]
  %v79 = vld [vmem:[%s3 + $0x28] sm:$0xf]
  %v80 = vld [vmem:[%s3 + $0x2c] sm:$0xf]
  %v81 = vld [vmem:[%s3 + $0x30] sm:$0xf]
  %v82 = vld [vmem:[%s3 + $0x34] sm:$0xf]
  %v83 = vld [vmem:[%s3 + $0x38] sm:$0xf]
  %v84 = vld [vmem:[%s3 + $0x3c] sm:$0xf]
  %v101 = vunpack.c.l.b16 %v53
  %v102 = vunpack.c.l.b16 %v54
  %v103 = vunpack.c.l.b16 %v55
  %v104 = vunpack.c.l.b16 %v56
  %v105 = vunpack.c.l.b16 %v57
  %v106 = vunpack.c.l.b16 %v58
  %v107 = vunpack.c.l.b16 %v59
  %v108 = vunpack.c.l.b16 %v60
  %v109 = vunpack.c.l.b16 %v61
  %v110 = vunpack.c.l.b16 %v62
  %v111 = vunpack.c.l.b16 %v63
  %v112 = vunpack.c.l.b16 %v64
  %v113 = vunpack.c.l.b16 %v65
  %v114 = vunpack.c.l.b16 %v66
  %v115 = vunpack.c.l.b16 %v67
  %v116 = vunpack.c.l.b16 %v68
  %v117 = vpack.c.b16 %v102, %v101
  %v118 = vpack.c.b16 %v104, %v103
  %v119 = vpack.c.b16 %v106, %v105
  %v120 = vpack.c.b16 %v108, %v107
  %v121 = vpack.c.b16 %v110, %v109
  %v122 = vpack.c.b16 %v112, %v111
  %v123 = vpack.c.b16 %v114, %v113
  %v124 = vpack.c.b16 %v116, %v115
  %v149 = vunpack.c.l.b16 %v69
  %v150 = vunpack.c.l.b16 %v70
  %v151 = vunpack.c.l.b16 %v71
  %v152 = vunpack.c.l.b16 %v72
  %v153 = vunpack.c.l.b16 %v73
  %v154 = vunpack.c.l.b16 %v74
  %v155 = vunpack.c.l.b16 %v75
  %v156 = vunpack.c.l.b16 %v76
  %v157 = vunpack.c.l.b16 %v77
  %v158 = vunpack.c.l.b16 %v78
  %v159 = vunpack.c.l.b16 %v79
  %v160 = vunpack.c.l.b16 %v80
  %v161 = vunpack.c.l.b16 %v81
  %v162 = vunpack.c.l.b16 %v82
  %v163 = vunpack.c.l.b16 %v83
  %v164 = vunpack.c.l.b16 %v84
  %v165 = vpack.c.b16 %v150, %v149
  %v166 = vpack.c.b16 %v152, %v151
  %v167 = vpack.c.b16 %v154, %v153
  %v168 = vpack.c.b16 %v156, %v155
  %v169 = vpack.c.b16 %v158, %v157
  %v170 = vpack.c.b16 %v160, %v159
  %v171 = vpack.c.b16 %v162, %v161
  %v172 = vpack.c.b16 %v164, %v163
  %181 = vmatprep.subr.bf16.mxu0 0
  %182 = vmatpush1.bf16.msra.mxu0 %v165
  %183 = vmatprep.subr.bf16.mxu0 0
  %184 = vmatpush1.bf16.msra.mxu0 %v166
  %185 = vmatprep.subr.bf16.mxu0 0
  %186 = vmatpush1.bf16.msra.mxu0 %v167
  %187 = vmatprep.subr.bf16.mxu0 0
  %188 = vmatpush1.bf16.msra.mxu0 %v168
  %189 = vmatprep.subr.bf16.mxu0 0
  %190 = vmatpush1.bf16.msra.mxu0 %v169
  %191 = vmatprep.subr.bf16.mxu0 0
  %192 = vmatpush1.bf16.msra.mxu0 %v170
  %193 = vmatprep.subr.bf16.mxu0 0
  %194 = vmatpush1.bf16.msra.mxu0 %v171
  %195 = vmatprep.subr.bf16.mxu0 0
  %196 = vmatpush1.bf16.msra.mxu0 %v172
  %197 = vmatprep.subr.bf16.mxu0 0
  %198 = vmatpush1.bf16.msra.mxu0 0
  %199 = vmatprep.subr.bf16.mxu0 0
  %200 = vmatpush1.bf16.msra.mxu0 0
  %201 = vmatprep.subr.bf16.mxu0 0
  %202 = vmatpush1.bf16.msra.mxu0 0
  %203 = vmatprep.subr.bf16.mxu0 0
  %204 = vmatpush1.bf16.msra.mxu0 0
  %205 = vmatprep.subr.bf16.mxu0 0
  %206 = vmatpush1.bf16.msra.mxu0 0
  %207 = vmatprep.subr.bf16.mxu0 0
  %208 = vmatpush1.bf16.msra.mxu0 0
  %209 = vmatprep.subr.bf16.mxu0 0
  %210 = vmatpush1.bf16.msra.mxu0 0
  %211 = vmatprep.subr.bf16.mxu0 0
  %212 = vmatpush1.bf16.msra.mxu0 0
  %213 = vmatprep.mubr.bf16.mxu0 0
  %214 = vmatmul.mubr.bf16.gmra.mrb[0].mxu0 %v117
  %v215 = vpop.f32.mrb[0].mxu0
  %v216 = vadd.f32 0.0, %v215
  %v217 = vpop.f32.mrb[0].mxu0
  %v218 = vpop.f32.mrb[0].mxu0
  %v219 = vadd.f32 0.0, %v218
  %v220 = vpop.f32.mrb[0].mxu0
  %221 = vmatprep.mubr.bf16.mxu0 0
  %222 = vmatmul.mubr.bf16.gmra.mrb[0].mxu0 %v118
  %v223 = vpop.f32.mrb[0].mxu0
  %v224 = vadd.f32 0.0, %v223
  %v225 = vpop.f32.mrb[0].mxu0
  %v226 = vpop.f32.mrb[0].mxu0
  %v227 = vadd.f32 0.0, %v226
  %v228 = vpop.f32.mrb[0].mxu0
  %229 = vmatprep.mubr.bf16.mxu0 0
  %230 = vmatmul.mubr.bf16.gmra.mrb[0].mxu0 %v119
  %v231 = vpop.f32.mrb[0].mxu0
  %v232 = vadd.f32 0.0, %v231
  %v233 = vpop.f32.mrb[0].mxu0
  %v234 = vpop.f32.mrb[0].mxu0
  %v235 = vadd.f32 0.0, %v234
  %v236 = vpop.f32.mrb[0].mxu0
  %237 = vmatprep.mubr.bf16.mxu0 0
  %238 = vmatmul.mubr.bf16.gmra.mrb[0].mxu0 %v120
  %v239 = vpop.f32.mrb[0].mxu0
  %v240 = vadd.f32 0.0, %v239
  %v241 = vpop.f32.mrb[0].mxu0
  %v242 = vpop.f32.mrb[0].mxu0
  %v243 = vadd.f32 0.0, %v242
  %v244 = vpop.f32.mrb[0].mxu0
  %245 = vmatprep.mubr.bf16.mxu0 0
  %246 = vmatmul.mubr.bf16.gmra.mrb[0].mxu0 %v121
  %v247 = vpop.f32.mrb[0].mxu0
  %v248 = vadd.f32 0.0, %v247
  %v249 = vpop.f32.mrb[0].mxu0
  %v250 = vpop.f32.mrb[0].mxu0
  %v251 = vadd.f32 0.0, %v250
  %v252 = vpop.f32.mrb[0].mxu0
  %253 = vmatprep.mubr.bf16.mxu0 0
  %254 = vmatmul.mubr.bf16.gmra.mrb[0].mxu0 %v122
  %v255 = vpop.f32.mrb[0].mxu0
  %v256 = vadd.f32 0.0, %v255
  %v257 = vpop.f32.mrb[0].mxu0
  %v258 = vpop.f32.mrb[0].mxu0
  %v259 = vadd.f32 0.0, %v258
  %v260 = vpop.f32.mrb[0].mxu0
  %261 = vmatprep.mubr.bf16.mxu0 0
  %262 = vmatmul.mubr.bf16.gmra.mrb[0].mxu0 %v123
  %v263 = vpop.f32.mrb[0].mxu0
  %v264 = vadd.f32 0.0, %v263
  %v265 = vpop.f32.mrb[0].mxu0
  %v266 = vpop.f32.mrb[0].mxu0
  %v267 = vadd.f32 0.0, %v266
  %v268 = vpop.f32.mrb[0].mxu0
  %269 = vmatprep.mubr.bf16.mxu0 0
  %270 = vmatmul.mubr.bf16.gmra.mrb[0].mxu0 %v124
  %v271 = vpop.f32.mrb[0].mxu0
  %v272 = vadd.f32 0.0, %v271
  %v273 = vpop.f32.mrb[0].mxu0
  %v274 = vpop.f32.mrb[0].mxu0
  %v275 = vadd.f32 0.0, %v274
  %v276 = vpop.f32.mrb[0].mxu0
  %277 = vdwg.mxu0
  %v294 = vunpack.c.l.b16 %v21
  %v295 = vunpack.c.l.b16 %v22
  %v296 = vunpack.c.l.b16 %v23
  %v297 = vunpack.c.l.b16 %v24
  %v298 = vunpack.c.l.b16 %v25
  %v299 = vunpack.c.l.b16 %v26
  %v300 = vunpack.c.l.b16 %v27
  %v301 = vunpack.c.l.b16 %v28
  %v302 = vunpack.c.l.b16 %v29
  %v303 = vunpack.c.l.b16 %v30
  %v304 = vunpack.c.l.b16 %v31
  %v305 = vunpack.c.l.b16 %v32
  %v306 = vunpack.c.l.b16 %v33
  %v307 = vunpack.c.l.b16 %v34
  %v308 = vunpack.c.l.b16 %v35
  %v309 = vunpack.c.l.b16 %v36
  %v310 = vpack.c.b16 %v295, %v294
  %v311 = vpack.c.b16 %v297, %v296
  %v312 = vpack.c.b16 %v299, %v298
  %v313 = vpack.c.b16 %v301, %v300
  %v314 = vpack.c.b16 %v303, %v302
  %v315 = vpack.c.b16 %v305, %v304
  %v316 = vpack.c.b16 %v307, %v306
  %v317 = vpack.c.b16 %v309, %v308
  %v342 = vunpack.c.l.b16 %v37
  %v343 = vunpack.c.l.b16 %v38
  %v344 = vunpack.c.l.b16 %v39
  %v345 = vunpack.c.l.b16 %v40
  %v346 = vunpack.c.l.b16 %v41
  %v347 = vunpack.c.l.b16 %v42
  %v348 = vunpack.c.l.b16 %v43
  %v349 = vunpack.c.l.b16 %v44
  %v350 = vunpack.c.l.b16 %v45
  %v351 = vunpack.c.l.b16 %v46
  %v352 = vunpack.c.l.b16 %v47
  %v353 = vunpack.c.l.b16 %v48
  %v354 = vunpack.c.l.b16 %v49
  %v355 = vunpack.c.l.b16 %v50
  %v356 = vunpack.c.l.b16 %v51
  %v357 = vunpack.c.l.b16 %v52
  %v358 = vpack.c.b16 %v343, %v342
  %v359 = vpack.c.b16 %v345, %v344
  %v360 = vpack.c.b16 %v347, %v346
  %v361 = vpack.c.b16 %v349, %v348
  %v362 = vpack.c.b16 %v351, %v350
  %v363 = vpack.c.b16 %v353, %v352
  %v364 = vpack.c.b16 %v355, %v354
  %v365 = vpack.c.b16 %v357, %v356
  %374 = vmatprep.subr.bf16.mxu0 0
  %375 = vmatpush1.bf16.msra.mxu0 %v358
  %376 = vmatprep.subr.bf16.mxu0 0
  %377 = vmatpush1.bf16.msra.mxu0 %v359
  %378 = vmatprep.subr.bf16.mxu0 0
  %379 = vmatpush1.bf16.msra.mxu0 %v360
  %380 = vmatprep.subr.bf16.mxu0 0
  %381 = vmatpush1.bf16.msra.mxu0 %v361
  %382 = vmatprep.subr.bf16.mxu0 0
  %383 = vmatpush1.bf16.msra.mxu0 %v362
  %384 = vmatprep.subr.bf16.mxu0 0
  %385 = vmatpush1.bf16.msra.mxu0 %v363
  %386 = vmatprep.subr.bf16.mxu0 0
  %387 = vmatpush1.bf16.msra.mxu0 %v364
  %388 = vmatprep.subr.bf16.mxu0 0
  %389 = vmatpush1.bf16.msra.mxu0 %v365
  %390 = vmatprep.subr.bf16.mxu0 0
  %391 = vmatpush1.bf16.msra.mxu0 0
  %392 = vmatprep.subr.bf16.mxu0 0
  %393 = vmatpush1.bf16.msra.mxu0 0
  %394 = vmatprep.subr.bf16.mxu0 0
  %395 = vmatpush1.bf16.msra.mxu0 0
  %396 = vmatprep.subr.bf16.mxu0 0
  %397 = vmatpush1.bf16.msra.mxu0 0
  %398 = vmatprep.subr.bf16.mxu0 0
  %399 = vmatpush1.bf16.msra.mxu0 0
  %400 = vmatprep.subr.bf16.mxu0 0
  %401 = vmatpush1.bf16.msra.mxu0 0
  %402 = vmatprep.subr.bf16.mxu0 0
  %403 = vmatpush1.bf16.msra.mxu0 0
  %404 = vmatprep.subr.bf16.mxu0 0
  %405 = vmatpush1.bf16.msra.mxu0 0
  %406 = vmatprep.mubr.bf16.mxu0 0
  %407 = vmatmul.mubr.bf16.gmra.mrb[0].mxu0 %v310
  %v408 = vpop.f32.mrb[0].mxu0
  %v409 = vadd.f32 %v216, %v408
  %v410 = vpop.f32.mrb[0].mxu0
  %v411 = vpop.f32.mrb[0].mxu0
  %v412 = vadd.f32 %v219, %v411
  %v413 = vpop.f32.mrb[0].mxu0
  %414 = vmatprep.mubr.bf16.mxu0 0
  %415 = vmatmul.mubr.bf16.gmra.mrb[0].mxu0 %v311
  %v416 = vpop.f32.mrb[0].mxu0
  %v417 = vadd.f32 %v224, %v416
  %v418 = vpop.f32.mrb[0].mxu0
  %v419 = vpop.f32.mrb[0].mxu0
  %v420 = vadd.f32 %v227, %v419
  %v421 = vpop.f32.mrb[0].mxu0
  %422 = vmatprep.mubr.bf16.mxu0 0
  %423 = vmatmul.mubr.bf16.gmra.mrb[0].mxu0 %v312
  %v424 = vpop.f32.mrb[0].mxu0
  %v425 = vadd.f32 %v232, %v424
  %v426 = vpop.f32.mrb[0].mxu0
  %v427 = vpop.f32.mrb[0].mxu0
  %v428 = vadd.f32 %v235, %v427
  %v429 = vpop.f32.mrb[0].mxu0
  %430 = vmatprep.mubr.bf16.mxu0 0
  %431 = vmatmul.mubr.bf16.gmra.mrb[0].mxu0 %v313
  %v432 = vpop.f32.mrb[0].mxu0
  %v433 = vadd.f32 %v240, %v432
  %v434 = vpop.f32.mrb[0].mxu0
  %v435 = vpop.f32.mrb[0].mxu0
  %v436 = vadd.f32 %v243, %v435
  %v437 = vpop.f32.mrb[0].mxu0
  %438 = vmatprep.mubr.bf16.mxu0 0
  %439 = vmatmul.mubr.bf16.gmra.mrb[0].mxu0 %v314
  %v440 = vpop.f32.mrb[0].mxu0
  %v441 = vadd.f32 %v248, %v440
  %v442 = vpop.f32.mrb[0].mxu0
  %v443 = vpop.f32.mrb[0].mxu0
  %v444 = vadd.f32 %v251, %v443
  %v445 = vpop.f32.mrb[0].mxu0
  %446 = vmatprep.mubr.bf16.mxu0 0
  %447 = vmatmul.mubr.bf16.gmra.mrb[0].mxu0 %v315
  %v448 = vpop.f32.mrb[0].mxu0
  %v449 = vadd.f32 %v256, %v448
  %v450 = vpop.f32.mrb[0].mxu0
  %v451 = vpop.f32.mrb[0].mxu0
  %v452 = vadd.f32 %v259, %v451
  %v453 = vpop.f32.mrb[0].mxu0
  %454 = vmatprep.mubr.bf16.mxu0 0
  %455 = vmatmul.mubr.bf16.gmra.mrb[0].mxu0 %v316
  %v456 = vpop.f32.mrb[0].mxu0
  %v457 = vadd.f32 %v264, %v456
  %v458 = vpop.f32.mrb[0].mxu0
  %v459 = vpop.f32.mrb[0].mxu0
  %v460 = vadd.f32 %v267, %v459
  %v461 = vpop.f32.mrb[0].mxu0
  %462 = vmatprep.mubr.bf16.mxu0 0
  %463 = vmatmul.mubr.bf16.gmra.mrb[0].mxu0 %v317
  %v464 = vpop.f32.mrb[0].mxu0
  %v465 = vadd.f32 %v272, %v464
  %v466 = vpop.f32.mrb[0].mxu0
  %v467 = vpop.f32.mrb[0].mxu0
  %v468 = vadd.f32 %v275, %v467
  %v469 = vpop.f32.mrb[0].mxu0
  %470 = vdwg.mxu0
  %v471 = vld [vmem:[%s4] sm:$0x1]
  %v473 = vlaneseq
  %v474 = vshrl.u32 %v473, 7
  %v475 = vsub.s32 0, %v474
  %v476 = vrot.slane %v471, %v475
  %v478 = vadd.f32 %v409, %v476
  %v479 = vadd.f32 %v412, %v476
  %v480 = vadd.f32 %v417, %v476
  %v481 = vadd.f32 %v420, %v476
  %v482 = vadd.f32 %v425, %v476
  %v483 = vadd.f32 %v428, %v476
  %v484 = vadd.f32 %v433, %v476
  %v485 = vadd.f32 %v436, %v476
  %v486 = vadd.f32 %v441, %v476
  %v487 = vadd.f32 %v444, %v476
  %v488 = vadd.f32 %v449, %v476
  %v489 = vadd.f32 %v452, %v476
  %v490 = vadd.f32 %v457, %v476
  %v491 = vadd.f32 %v460, %v476
  %v492 = vadd.f32 %v465, %v476
  %v493 = vadd.f32 %v468, %v476
  %v494 = vtanh.pop %v478
  %v495 = vtanh.pop %v479
  %v496 = vtanh.pop %v480
  %v497 = vtanh.pop %v481
  %v498 = vtanh.pop %v482
  %v499 = vtanh.pop %v483
  %v500 = vtanh.pop %v484
  %v501 = vtanh.pop %v485
  %v502 = vtanh.pop %v486
  %v503 = vtanh.pop %v487
  %v504 = vtanh.pop %v488
  %v505 = vtanh.pop %v489
  %v506 = vtanh.pop %v490
  %v507 = vtanh.pop %v491
  %v508 = vtanh.pop %v492
  %v509 = vtanh.pop %v493
  %510 = vst [vmem:[%s5] sm:$0xff] %v494
  %511 = vst [vmem:[%s5 + $0x8] sm:$0xff] %v495
  %512 = vst [vmem:[%s5 + $0x10] sm:$0xff] %v496
  %513 = vst [vmem:[%s5 + $0x18] sm:$0xff] %v497
  %514 = vst [vmem:[%s5 + $0x20] sm:$0xff] %v498
  %515 = vst [vmem:[%s5 + $0x28] sm:$0xff] %v499
  %516 = vst [vmem:[%s5 + $0x30] sm:$0xff] %v500
  %517 = vst [vmem:[%s5 + $0x38] sm:$0xff] %v501
  %518 = vst [vmem:[%s5 + $0x40] sm:$0xff] %v502
  %519 = vst [vmem:[%s5 + $0x48] sm:$0xff] %v503
  %520 = vst [vmem:[%s5 + $0x50] sm:$0xff] %v504
  %521 = vst [vmem:[%s5 + $0x58] sm:$0xff] %v505
  %522 = vst [vmem:[%s5 + $0x60] sm:$0xff] %v506
  %523 = vst [vmem:[%s5 + $0x68] sm:$0xff] %v507
  %524 = vst [vmem:[%s5 + $0x70] sm:$0xff] %v508
  %525 = vst [vmem:[%s5 + $0x78] sm:$0xff] %v509
  // Predicated region
  $region22: #{dpcl_forward.9} parent=0 // pred_check
    _
  $region23: #{dpcl_forward.9} parent=0 // pred_check_branch
    %527 = sbr.rel (0) target = $region25
  $region24: #{dpcl_forward.9} parent=0 // pred_region
    _
  $region25: #{dpcl_forward.9} parent=0 // pred_fallthru
    _
  // Predicated region
  $region26: #{dpcl_forward.9} parent=0 // pred_check
    _
  $region27: #{dpcl_forward.9} parent=0 // pred_check_branch
    %529 = sbr.rel (0) target = $region29
  $region28: #{dpcl_forward.9} parent=0 // pred_region
    _
  $region29: #{dpcl_forward.9} parent=0 // pred_fallthru
    _

</llo_original>
